<compile_context>
chip_gen: v5e
topology: v5e:2x2
jax: 0.10.0
libtpu: 0.0.40
codegen_flags: <defaults>
</compile_context>

<pallas_src>
import functools

import jax
import jax.numpy as jnp
from jax.experimental import pallas as pl
from jax.experimental.pallas import tpu as pltpu

NEG_SLOPE = 0.2          # LeakyReLU negative slope
BN_EPS = 1e-5
LANE = 128               # TPU lane width -> output-channel padding target
TM_MAX = 512             # big M tiles (~85% of HBM roofline per measured Pallas data)
FUSED_BN_BYTES = 6 << 20 # budget for the single-tile fused conv+BN path

# (cin, cout, stride, mode) per conv layer
LAYERS = (
    (3,   32, 1, "leaky"),
    (32,  64, 2, "leaky"),
    (64,  64, 1, "bn_leaky"),
    (64, 128, 2, "leaky"),
    (128, 128, 1, "bn_leaky"),
    (128, 256, 1, "bn_leaky"),
    (256,   1, 1, "linear"),
)


def _round_up(x, m):
    return (x + m - 1) // m * m


# ----------------------------- Pallas kernels ------------------------------ #

def _mm_act_kernel(a_ref, b_ref, o_ref, *, slope):
    """(TM,K)bf16 @ (K,Cp)bf16 on the MXU, f32 accumulate, fused LeakyReLU."""
    acc = jnp.dot(a_ref[...], b_ref[...], preferred_element_type=jnp.float32)
    if slope is not None:
        acc = jnp.where(acc > 0, acc, slope * acc)
    o_ref[...] = acc.astype(o_ref.dtype)


def _mm_bn_leaky_kernel(a_ref, b_ref, g_ref, bt_ref, o_ref, *, count, slope, eps):
    """Fully fused conv-matmul + train-mode BatchNorm (batch stats) + LeakyReLU.

    Whole (M, Cp) output lives in one VMEM tile (grid=1).  Padded rows/channels
    are all-zero and contribute nothing to the sums; `count` is the real M.
    """
    acc = jnp.dot(a_ref[...], b_ref[...], preferred_element_type=jnp.float32)
    inv_n = 1.0 / count
    mean = jnp.sum(acc, axis=0, keepdims=True) * inv_n                 # (1, Cp)
    var = jnp.sum(acc * acc, axis=0, keepdims=True) * inv_n - mean * mean
    var = jnp.maximum(var, 0.0)
    scale = jax.lax.rsqrt(var + eps) * g_ref[...]
    shift = bt_ref[...] - mean * scale
    y = acc * scale + shift
    o_ref[...] = jnp.where(y > 0, y, slope * y).astype(o_ref.dtype)


def _mm_stats_acc_kernel(a_ref, b_ref, y_ref, s_ref, q_ref):
    """Fallback pass 1 (large M): matmul tile + accumulated per-channel stats."""
    @pl.when(pl.program_id(0) == 0)
    def _():
        s_ref[...] = jnp.zeros_like(s_ref)
        q_ref[...] = jnp.zeros_like(q_ref)

    acc = jnp.dot(a_ref[...], b_ref[...], preferred_element_type=jnp.float32)
    y_ref[...] = acc.astype(y_ref.dtype)
    row = jax.lax.broadcasted_iota(jnp.int32, s_ref.shape, 0)
    s_ref[...] += jnp.where(row == 0, jnp.sum(acc, axis=0, keepdims=True), 0.0)
    q_ref[...] += jnp.where(row == 0, jnp.sum(acc * acc, axis=0, keepdims=True), 0.0)


def _bn_leaky_apply_kernel(y_ref, s_ref, q_ref, g_ref, bt_ref, o_ref,
                           *, count, slope, eps):
    """Fallback pass 2: apply BN (from accumulated stats) + LeakyReLU."""
    inv_n = 1.0 / count
    mean = jnp.sum(s_ref[...], axis=0, keepdims=True) * inv_n
    var = jnp.sum(q_ref[...], axis=0, keepdims=True) * inv_n - mean * mean
    var = jnp.maximum(var, 0.0)
    scale = jax.lax.rsqrt(var + eps) * g_ref[...]
    shift = bt_ref[...] - mean * scale
    y = y_ref[...].astype(jnp.float32) * scale + shift
    o_ref[...] = jnp.where(y > 0, y, slope * y).astype(o_ref.dtype)


# ------------------------------ layer wrapper ------------------------------ #

def _im2col(x, cin, stride):
    """x: (N,H,W,C_pad) bf16 -> (N*Ho*Wo, 9*cin) bf16 columns, plus Ho, Wo.

    Slices to the REAL input channels first, so K = 9*cin (no lane-pad waste).
    TODO(synk): moving the 9 conv taps in-kernel (haloed row tiles + 9 jnp.dot
    accumulations) would avoid this XLA-side 9x activation materialization.
    """
    n, h, w, _ = x.shape
    x = x[..., :cin]
    ho = (h + 2 - 3) // stride + 1
    wo = (w + 2 - 3) // stride + 1
    xp = jnp.pad(x, ((0, 0), (1, 1), (1, 1), (0, 0)))
    cols = [
        xp[:, dy:dy + stride * ho:stride, dx:dx + stride * wo:stride, :]
        for dy in range(3) for dx in range(3)
    ]
    a = jnp.concatenate(cols, axis=-1).reshape(n * ho * wo, 9 * cin)
    return a, ho, wo


def conv3x3(x, layer, p):
    """3x3 conv (pad=1, no bias) with fused epilogue.

    x: (N,H,W,Cin_pad) bf16 NHWC (channels may be lane-padded with zeros)
    p: prepped params: w_mat (9*Cin, Cp) bf16 [+ gamma_p/beta_p (1,Cp) f32]
    Returns (N, Ho, Wo, Cp) with Cp = round_up(Cout, 128); padded channels are 0.
    Output dtype: bf16 for hidden layers, f32 for the final linear head.
    """
    cin, cout, stride, mode = layer
    cp = _round_up(cout, LANE)
    n = x.shape[0]

    a, ho, wo = _im2col(x, cin, stride)             # (M, K) bf16
    m, k = a.shape
    bmat = p["w_mat"]                               # (K, Cp) bf16, prepped at init

    tm = min(TM_MAX, _round_up(m, 8))               # no forced split: 1 step if it fits
    mp = _round_up(m, tm)
    nm = mp // tm
    if mp != m:
        a = jnp.pad(a, ((0, mp - m), (0, 0)))       # zero rows -> zero outputs

    a_spec = pl.BlockSpec((tm, k), lambda i: (i, 0))
    b_spec = pl.BlockSpec((k, cp), lambda i: (0, 0))
    y_spec = pl.BlockSpec((tm, cp), lambda i: (i, 0))
    out_dtype = jnp.float32 if mode == "linear" else jnp.bfloat16

    if mode == "bn_leaky":
        g, bt = p["gamma_p"], p["beta_p"]
        fused_bytes = mp * cp * 4 + mp * k * 2 + k * cp * 2
        if fused_bytes <= FUSED_BN_BYTES:
            # Single fused pallas_call: matmul + batch-stats + BN + LeakyReLU.
            out = pl.pallas_call(
                functools.partial(_mm_bn_leaky_kernel, count=float(m),
                                  slope=NEG_SLOPE, eps=BN_EPS),
                grid=(1,),
                in_specs=[pl.BlockSpec((mp, k), lambda i: (0, 0)),
                          pl.BlockSpec((k, cp), lambda i: (0, 0)),
                          pl.BlockSpec((1, cp), lambda i: (0, 0)),
                          pl.BlockSpec((1, cp), lambda i: (0, 0))],
                out_specs=pl.BlockSpec((mp, cp), lambda i: (0, 0)),
                out_shape=jax.ShapeDtypeStruct((mp, cp), out_dtype),
                compiler_params=pltpu.CompilerParams(
                    dimension_semantics=("arbitrary",)),
            )(a, bmat, g, bt)
        else:
            # Fallback for very large M: two passes with accumulated stats.
            y, s, q = pl.pallas_call(
                _mm_stats_acc_kernel,
                grid=(nm,),
                in_specs=[a_spec, b_spec],
                out_specs=(y_spec,
                           pl.BlockSpec((8, cp), lambda i: (0, 0)),
                           pl.BlockSpec((8, cp), lambda i: (0, 0))),
                out_shape=(jax.ShapeDtypeStruct((mp, cp), out_dtype),
                           jax.ShapeDtypeStruct((8, cp), jnp.float32),
                           jax.ShapeDtypeStruct((8, cp), jnp.float32)),
                compiler_params=pltpu.CompilerParams(
                    dimension_semantics=("arbitrary",)),  # stats accumulator
            )(a, bmat)
            out = pl.pallas_call(
                functools.partial(_bn_leaky_apply_kernel, count=float(m),
                                  slope=NEG_SLOPE, eps=BN_EPS),
                grid=(nm,),
                in_specs=[y_spec,
                          pl.BlockSpec((8, cp), lambda i: (0, 0)),
                          pl.BlockSpec((8, cp), lambda i: (0, 0)),
                          pl.BlockSpec((1, cp), lambda i: (0, 0)),
                          pl.BlockSpec((1, cp), lambda i: (0, 0))],
                out_specs=y_spec,
                out_shape=jax.ShapeDtypeStruct((mp, cp), out_dtype),
                compiler_params=pltpu.CompilerParams(
                    dimension_semantics=("parallel",)),
            )(y, s, q, g, bt)
    else:
        slope = NEG_SLOPE if mode == "leaky" else None
        out = pl.pallas_call(
            functools.partial(_mm_act_kernel, slope=slope),
            grid=(nm,),
            in_specs=[a_spec, b_spec],
            out_specs=y_spec,
            out_shape=jax.ShapeDtypeStruct((mp, cp), out_dtype),
            compiler_params=pltpu.CompilerParams(
                dimension_semantics=("parallel",)),
        )(a, bmat)

    return out[:m].reshape(n, ho, wo, cp)


# ------------------------------ model wrapper ------------------------------ #

def init_params(key):
    # TODO(synk): trained Discriminator weights cannot be loaded here; parameters
    #             are deterministic synthetic tensors with the correct shapes.
    params = []
    for cin, cout, _stride, mode in LAYERS:
        key, kw, kg, kb = jax.random.split(key, 4)
        std = (2.0 / (9.0 * cin)) ** 0.5
        p = {"w": jax.random.normal(kw, (cout, cin, 3, 3), jnp.float32) * std}
        if mode == "bn_leaky":
            p["gamma"] = 1.0 + 0.1 * jax.random.normal(kg, (cout,), jnp.float32)
            p["beta"] = 0.1 * jax.random.normal(kb, (cout,), jnp.float32)
        params.append(p)
    return params


def prepare_params(params):
    """One-time weight prep (runs at init, not per forward call):
    (Cout,Cin,3,3) -> lane-padded (9*Cin, Cp) bf16 matmul operand;
    gamma/beta -> zero-padded (1, Cp) f32 (padded channels stay exactly 0)."""
    prepped = []
    for (cin, cout, _s, mode), p in zip(LAYERS, params):
        cp = _round_up(cout, LANE)
        bmat = jnp.transpose(p["w"], (2, 3, 1, 0)).reshape(9 * cin, cout)
        bmat = jnp.pad(bmat, ((0, 0), (0, cp - cout))).astype(jnp.bfloat16)
        q = {"w_mat": bmat}
        if mode == "bn_leaky":
            q["gamma_p"] = jnp.pad(p["gamma"], (0, cp - cout)).reshape(1, cp).astype(jnp.float32)
            q["beta_p"] = jnp.pad(p["beta"], (0, cp - cout)).reshape(1, cp).astype(jnp.float32)
        prepped.append(q)
    return prepped


def discriminator(x_nchw, prepped):
    # layout: NCHW (PyTorch) -> NHWC (channels on the 128-lane axis); bf16 MXU operand.
    x = jnp.transpose(x_nchw, (0, 2, 3, 1)).astype(jnp.bfloat16)
    for layer, p in zip(LAYERS, prepped):
        x = conv3x3(x, layer, p)
    x = x[..., :1].astype(jnp.float32)        # drop lane padding of the 1-channel head
    return jnp.transpose(x, (0, 3, 1, 2))     # back to NCHW


if __name__ == "__main__":
    key = jax.random.PRNGKey(0)
    key, kx = jax.random.split(key)
    x = jax.random.normal(kx, (2, 3, 32, 32), jnp.float32)   # NCHW like PyTorch
    params = init_params(key)
    prepped = jax.tree_util.tree_map(jax.block_until_ready, prepare_params(params))

    fwd = jax.jit(discriminator)
    out = jax.block_until_ready(fwd(x, prepped))

    assert out.shape == (2, 1, 8, 8), out.shape
    assert bool(jnp.all(jnp.isfinite(out)))
    print("KERNEL_OK")
</pallas_src>

<mosaic_0001>
module attributes {stable_mosaic.version = 11 : i64} {
  func.func @_mm_act_kernel(%arg0: i32, %arg1: memref<512x27xbf16, #tpu.memory_space<vmem>>, %arg2: memref<27x128xbf16, #tpu.memory_space<vmem>>, %arg3: memref<512x128xbf16, #tpu.memory_space<vmem>>) attributes {dimension_semantics = [#tpu.dimension_semantics<parallel>], iteration_bounds = array<i64: 4>, scalar_prefetch = 0 : i64, scratch_operands = 0 : i64, tpu.core_type = #tpu.core_type<tc>, window_params = [{transform_indices = @transform_0, window_bounds = array<i64: 512, 27>}, {pipeline_mode = #tpu.pipeline_mode<synchronous>, transform_indices = @transform_1, window_bounds = array<i64: 27, 128>}, {transform_indices = @transform_2, window_bounds = array<i64: 512, 128>}]} {
    %c0 = arith.constant 0 : index
    %c0_0 = arith.constant 0 : index
    %0 = vector.load %arg1[%c0, %c0_0] : memref<512x27xbf16, #tpu.memory_space<vmem>>, vector<512x27xbf16>
    %c0_1 = arith.constant 0 : index
    %c0_2 = arith.constant 0 : index
    %1 = vector.load %arg2[%c0_1, %c0_2] : memref<27x128xbf16, #tpu.memory_space<vmem>>, vector<27x128xbf16>
    %cst = arith.constant dense<0.000000e+00> : vector<512x128xf32>
    %2 = tpu.matmul %0, %1, %cst {dimension_numbers = #tpu.dot_dimension_numbers<[1], [0], [0], [1], [0, 0, 1, 1], [], []>} : vector<512x27xbf16>, vector<27x128xbf16>, vector<512x128xf32> -> vector<512x128xf32>
    %cst_3 = arith.constant 0.000000e+00 : f32
    %3 = vector.broadcast %cst_3 : f32 to vector<512x128xf32>
    %4 = arith.cmpf ogt, %2, %3 : vector<512x128xf32>
    %cst_4 = arith.constant 2.000000e-01 : f32
    %5 = vector.broadcast %cst_4 : f32 to vector<512x128xf32>
    %6 = arith.mulf %5, %2 : vector<512x128xf32>
    %7 = arith.select %4, %2, %6 : vector<512x128xi1>, vector<512x128xf32>
    %8 = arith.truncf %7 : vector<512x128xf32> to vector<512x128xbf16>
    %c0_5 = arith.constant 0 : index
    %c0_6 = arith.constant 0 : index
    %9 = vector.load %arg3[%c0_5, %c0_6] : memref<512x128xbf16, #tpu.memory_space<vmem>>, vector<512x128xbf16>
    tpu.vector_store %arg3[%c0_5, %c0_6], %8 {strides = array<i32>} : memref<512x128xbf16, #tpu.memory_space<vmem>>, vector<512x128xbf16>,
    return
  }
  func.func @transform_0(%arg0: i32) -> (i32, i32) {
    %c0_i32 = arith.constant 0 : i32
    %c0_i32_0 = arith.constant 0 : i32
    return %arg0, %c0_i32 : i32, i32
  }
  func.func @transform_1(%arg0: i32) -> (i32, i32) {
    %c0_i32 = arith.constant 0 : i32
    %c0_i32_0 = arith.constant 0 : i32
    %c0_i32_1 = arith.constant 0 : i32
    return %c0_i32, %c0_i32_0 : i32, i32
  }
  func.func @transform_2(%arg0: i32) -> (i32, i32) {
    %c0_i32 = arith.constant 0 : i32
    %c0_i32_0 = arith.constant 0 : i32
    return %arg0, %c0_i32 : i32, i32
  }
}

module attributes {stable_mosaic.version = 11 : i64} {
  func.func @_mm_act_kernel(%arg0: i32, %arg1: memref<512x288xbf16, #tpu.memory_space<vmem>>, %arg2: memref<288x128xbf16, #tpu.memory_space<vmem>>, %arg3: memref<512x128xbf16, #tpu.memory_space<vmem>>) attributes {dimension_semantics = [#tpu.dimension_semantics<parallel>], iteration_bounds = array<i64: 1>, scalar_prefetch = 0 : i64, scratch_operands = 0 : i64, tpu.core_type = #tpu.core_type<tc>, window_params = [{transform_indices = @transform_0, window_bounds = array<i64: 512, 288>}, {pipeline_mode = #tpu.pipeline_mode<synchronous>, transform_indices = @transform_1, window_bounds = array<i64: 288, 128>}, {transform_indices = @transform_2, window_bounds = array<i64: 512, 128>}]} {
    %c0 = arith.constant 0 : index
    %c0_0 = arith.constant 0 : index
    %0 = vector.load %arg1[%c0, %c0_0] : memref<512x288xbf16, #tpu.memory_space<vmem>>, vector<512x288xbf16>
    %c0_1 = arith.constant 0 : index
    %c0_2 = arith.constant 0 : index
    %1 = vector.load %arg2[%c0_1, %c0_2] : memref<288x128xbf16, #tpu.memory_space<vmem>>, vector<288x128xbf16>
    %cst = arith.constant dense<0.000000e+00> : vector<512x128xf32>
    %2 = tpu.matmul %0, %1, %cst {dimension_numbers = #tpu.dot_dimension_numbers<[1], [0], [0], [1], [0, 0, 1, 1], [], []>} : vector<512x288xbf16>, vector<288x128xbf16>, vector<512x128xf32> -> vector<512x128xf32>
    %cst_3 = arith.constant 0.000000e+00 : f32
    %3 = vector.broadcast %cst_3 : f32 to vector<512x128xf32>
    %4 = arith.cmpf ogt, %2, %3 : vector<512x128xf32>
    %cst_4 = arith.constant 2.000000e-01 : f32
    %5 = vector.broadcast %cst_4 : f32 to vector<512x128xf32>
    %6 = arith.mulf %5, %2 : vector<512x128xf32>
    %7 = arith.select %4, %2, %6 : vector<512x128xi1>, vector<512x128xf32>
    %8 = arith.truncf %7 : vector<512x128xf32> to vector<512x128xbf16>
    %c0_5 = arith.constant 0 : index
    %c0_6 = arith.constant 0 : index
    %9 = vector.load %arg3[%c0_5, %c0_6] : memref<512x128xbf16, #tpu.memory_space<vmem>>, vector<512x128xbf16>
    tpu.vector_store %arg3[%c0_5, %c0_6], %8 {strides = array<i32>} : memref<512x128xbf16, #tpu.memory_space<vmem>>, vector<512x128xbf16>,
    return
  }
  func.func @transform_0(%arg0: i32) -> (i32, i32) {
    %c0_i32 = arith.constant 0 : i32
    %c0_i32_0 = arith.constant 0 : i32
    return %arg0, %c0_i32 : i32, i32
  }
  func.func @transform_1(%arg0: i32) -> (i32, i32) {
    %c0_i32 = arith.constant 0 : i32
    %c0_i32_0 = arith.constant 0 : i32
    %c0_i32_1 = arith.constant 0 : i32
    return %c0_i32, %c0_i32_0 : i32, i32
  }
  func.func @transform_2(%arg0: i32) -> (i32, i32) {
    %c0_i32 = arith.constant 0 : i32
    %c0_i32_0 = arith.constant 0 : i32
    return %arg0, %c0_i32 : i32, i32
  }
}

module attributes {stable_mosaic.version = 11 : i64} {
  func.func @_mm_bn_leaky_kernel(%arg0: i32, %arg1: memref<512x576xbf16, #tpu.memory_space<vmem>>, %arg2: memref<576x128xbf16, #tpu.memory_space<vmem>>, %arg3: memref<1x128xf32, #tpu.memory_space<vmem>>, %arg4: memref<1x128xf32, #tpu.memory_space<vmem>>, %arg5: memref<512x128xbf16, #tpu.memory_space<vmem>>) attributes {dimension_semantics = [#tpu.dimension_semantics<arbitrary>], iteration_bounds = array<i64: 1>, scalar_prefetch = 0 : i64, scratch_operands = 0 : i64, tpu.core_type = #tpu.core_type<tc>, window_params = [{pipeline_mode = #tpu.pipeline_mode<synchronous>, transform_indices = @transform_0, window_bounds = array<i64: 512, 576>}, {pipeline_mode = #tpu.pipeline_mode<synchronous>, transform_indices = @transform_1, window_bounds = array<i64: 576, 128>}, {pipeline_mode = #tpu.pipeline_mode<synchronous>, transform_indices = @transform_2, window_bounds = array<i64: 1, 128>}, {pipeline_mode = #tpu.pipeline_mode<synchronous>, transform_indices = @transform_3, window_bounds = array<i64: 1, 128>}, {pipeline_mode = #tpu.pipeline_mode<synchronous>, transform_indices = @transform_4, window_bounds = array<i64: 512, 128>}]} {
    %c0 = arith.constant 0 : index
    %c0_0 = arith.constant 0 : index
    %0 = vector.load %arg1[%c0, %c0_0] : memref<512x576xbf16, #tpu.memory_space<vmem>>, vector<512x576xbf16>
    %c0_1 = arith.constant 0 : index
    %c0_2 = arith.constant 0 : index
    %1 = vector.load %arg2[%c0_1, %c0_2] : memref<576x128xbf16, #tpu.memory_space<vmem>>, vector<576x128xbf16>
    %cst = arith.constant dense<0.000000e+00> : vector<512x128xf32>
    %2 = tpu.matmul %0, %1, %cst {dimension_numbers = #tpu.dot_dimension_numbers<[1], [0], [0], [1], [0, 0, 1, 1], [], []>} : vector<512x576xbf16>, vector<576x128xbf16>, vector<512x128xf32> -> vector<512x128xf32>
    %cst_3 = arith.constant dense<0.000000e+00> : vector<128xf32>
    %3 = vector.multi_reduction <add>, %2, %cst_3 [0] : vector<512x128xf32> to vector<128xf32>
    %4 = vector.shape_cast %3 : vector<128xf32> to vector<1x128xf32>
    %cst_4 = arith.constant 0.001953125 : f32
    %5 = vector.broadcast %cst_4 : f32 to vector<1x128xf32>
    %6 = arith.mulf %4, %5 : vector<1x128xf32>
    %7 = arith.mulf %2, %2 : vector<512x128xf32>
    %cst_5 = arith.constant dense<0.000000e+00> : vector<128xf32>
    %8 = vector.multi_reduction <add>, %7, %cst_5 [0] : vector<512x128xf32> to vector<128xf32>
    %9 = vector.shape_cast %8 : vector<128xf32> to vector<1x128xf32>
    %cst_6 = arith.constant 0.001953125 : f32
    %10 = vector.broadcast %cst_6 : f32 to vector<1x128xf32>
    %11 = arith.mulf %9, %10 : vector<1x128xf32>
    %12 = arith.mulf %6, %6 : vector<1x128xf32>
    %13 = arith.subf %11, %12 : vector<1x128xf32>
    %cst_7 = arith.constant 0.000000e+00 : f32
    %14 = vector.broadcast %cst_7 : f32 to vector<1x128xf32>
    %15 = arith.maximumf %13, %14 : vector<1x128xf32>
    %cst_8 = arith.constant 9.99999974E-6 : f32
    %16 = vector.broadcast %cst_8 : f32 to vector<1x128xf32>
    %17 = arith.addf %15, %16 : vector<1x128xf32>
    %18 = math.rsqrt %17 : vector<1x128xf32>
    %c0_9 = arith.constant 0 : index
    %c0_10 = arith.constant 0 : index
    %19 = vector.load %arg3[%c0_9, %c0_10] : memref<1x128xf32, #tpu.memory_space<vmem>>, vector<1x128xf32>
    %20 = arith.mulf %18, %19 : vector<1x128xf32>
    %c0_11 = arith.constant 0 : index
    %c0_12 = arith.constant 0 : index
    %21 = vector.load %arg4[%c0_11, %c0_12] : memref<1x128xf32, #tpu.memory_space<vmem>>, vector<1x128xf32>
    %22 = arith.mulf %6, %20 : vector<1x128xf32>
    %23 = arith.subf %21, %22 : vector<1x128xf32>
    %24 = vector.broadcast %20 : vector<1x128xf32> to vector<512x128xf32>
    %25 = arith.mulf %2, %24 : vector<512x128xf32>
    %26 = vector.broadcast %23 : vector<1x128xf32> to vector<512x128xf32>
    %27 = arith.addf %25, %26 : vector<512x128xf32>
    %cst_13 = arith.constant 0.000000e+00 : f32
    %28 = vector.broadcast %cst_13 : f32 to vector<512x128xf32>
    %29 = arith.cmpf ogt, %27, %28 : vector<512x128xf32>
    %cst_14 = arith.constant 2.000000e-01 : f32
    %30 = vector.broadcast %cst_14 : f32 to vector<512x128xf32>
    %31 = arith.mulf %30, %27 : vector<512x128xf32>
    %32 = arith.select %29, %27, %31 : vector<512x128xi1>, vector<512x128xf32>
    %33 = arith.truncf %32 : vector<512x128xf32> to vector<512x128xbf16>
    %c0_15 = arith.constant 0 : index
    %c0_16 = arith.constant 0 : index
    %34 = vector.load %arg5[%c0_15, %c0_16] : memref<512x128xbf16, #tpu.memory_space<vmem>>, vector<512x128xbf16>
    tpu.vector_store %arg5[%c0_15, %c0_16], %33 {strides = array<i32>} : memref<512x128xbf16, #tpu.memory_space<vmem>>, vector<512x128xbf16>,
    return
  }
  func.func @transform_0(%arg0: i32) -> (i32, i32) {
    %c0_i32 = arith.constant 0 : i32
    %c0_i32_0 = arith.constant 0 : i32
    %c0_i32_1 = arith.constant 0 : i32
    return %c0_i32, %c0_i32_0 : i32, i32
  }
  func.func @transform_1(%arg0: i32) -> (i32, i32) {
    %c0_i32 = arith.constant 0 : i32
    %c0_i32_0 = arith.constant 0 : i32
    %c0_i32_1 = arith.constant 0 : i32
    return %c0_i32, %c0_i32_0 : i32, i32
  }
  func.func @transform_2(%arg0: i32) -> (i32, i32) {
    %c0_i32 = arith.constant 0 : i32
    %c0_i32_0 = arith.constant 0 : i32
    %c0_i32_1 = arith.constant 0 : i32
    return %c0_i32, %c0_i32_0 : i32, i32
  }
  func.func @transform_3(%arg0: i32) -> (i32, i32) {
    %c0_i32 = arith.constant 0 : i32
    %c0_i32_0 = arith.constant 0 : i32
    %c0_i32_1 = arith.constant 0 : i32
    return %c0_i32, %c0_i32_0 : i32, i32
  }
  func.func @transform_4(%arg0: i32) -> (i32, i32) {
    %c0_i32 = arith.constant 0 : i32
    %c0_i32_0 = arith.constant 0 : i32
    %c0_i32_1 = arith.constant 0 : i32
    return %c0_i32, %c0_i32_0 : i32, i32
  }
}

module attributes {stable_mosaic.version = 11 : i64} {
  func.func @_mm_act_kernel(%arg0: i32, %arg1: memref<128x576xbf16, #tpu.memory_space<vmem>>, %arg2: memref<576x128xbf16, #tpu.memory_space<vmem>>, %arg3: memref<128x128xbf16, #tpu.memory_space<vmem>>) attributes {dimension_semantics = [#tpu.dimension_semantics<parallel>], iteration_bounds = array<i64: 1>, scalar_prefetch = 0 : i64, scratch_operands = 0 : i64, tpu.core_type = #tpu.core_type<tc>, window_params = [{transform_indices = @transform_0, window_bounds = array<i64: 128, 576>}, {pipeline_mode = #tpu.pipeline_mode<synchronous>, transform_indices = @transform_1, window_bounds = array<i64: 576, 128>}, {transform_indices = @transform_2, window_bounds = array<i64: 128, 128>}]} {
    %c0 = arith.constant 0 : index
    %c0_0 = arith.constant 0 : index
    %0 = vector.load %arg1[%c0, %c0_0] : memref<128x576xbf16, #tpu.memory_space<vmem>>, vector<128x576xbf16>
    %c0_1 = arith.constant 0 : index
    %c0_2 = arith.constant 0 : index
    %1 = vector.load %arg2[%c0_1, %c0_2] : memref<576x128xbf16, #tpu.memory_space<vmem>>, vector<576x128xbf16>
    %cst = arith.constant dense<0.000000e+00> : vector<128x128xf32>
    %2 = tpu.matmul %0, %1, %cst {dimension_numbers = #tpu.dot_dimension_numbers<[1], [0], [0], [1], [0, 0, 1, 1], [], []>} : vector<128x576xbf16>, vector<576x128xbf16>, vector<128x128xf32> -> vector<128x128xf32>
    %cst_3 = arith.constant 0.000000e+00 : f32
    %3 = vector.broadcast %cst_3 : f32 to vector<128x128xf32>
    %4 = arith.cmpf ogt, %2, %3 : vector<128x128xf32>
    %cst_4 = arith.constant 2.000000e-01 : f32
    %5 = vector.broadcast %cst_4 : f32 to vector<128x128xf32>
    %6 = arith.mulf %5, %2 : vector<128x128xf32>
    %7 = arith.select %4, %2, %6 : vector<128x128xi1>, vector<128x128xf32>
    %8 = arith.truncf %7 : vector<128x128xf32> to vector<128x128xbf16>
    %c0_5 = arith.constant 0 : index
    %c0_6 = arith.constant 0 : index
    %9 = vector.load %arg3[%c0_5, %c0_6] : memref<128x128xbf16, #tpu.memory_space<vmem>>, vector<128x128xbf16>
    tpu.vector_store %arg3[%c0_5, %c0_6], %8 {strides = array<i32>} : memref<128x128xbf16, #tpu.memory_space<vmem>>, vector<128x128xbf16>,
    return
  }
  func.func @transform_0(%arg0: i32) -> (i32, i32) {
    %c0_i32 = arith.constant 0 : i32
    %c0_i32_0 = arith.constant 0 : i32
    return %arg0, %c0_i32 : i32, i32
  }
  func.func @transform_1(%arg0: i32) -> (i32, i32) {
    %c0_i32 = arith.constant 0 : i32
    %c0_i32_0 = arith.constant 0 : i32
    %c0_i32_1 = arith.constant 0 : i32
    return %c0_i32, %c0_i32_0 : i32, i32
  }
  func.func @transform_2(%arg0: i32) -> (i32, i32) {
    %c0_i32 = arith.constant 0 : i32
    %c0_i32_0 = arith.constant 0 : i32
    return %arg0, %c0_i32 : i32, i32
  }
}

module attributes {stable_mosaic.version = 11 : i64} {
  func.func @_mm_bn_leaky_kernel(%arg0: i32, %arg1: memref<128x1152xbf16, #tpu.memory_space<vmem>>, %arg2: memref<1152x128xbf16, #tpu.memory_space<vmem>>, %arg3: memref<1x128xf32, #tpu.memory_space<vmem>>, %arg4: memref<1x128xf32, #tpu.memory_space<vmem>>, %arg5: memref<128x128xbf16, #tpu.memory_space<vmem>>) attributes {dimension_semantics = [#tpu.dimension_semantics<arbitrary>], iteration_bounds = array<i64: 1>, scalar_prefetch = 0 : i64, scratch_operands = 0 : i64, tpu.core_type = #tpu.core_type<tc>, window_params = [{pipeline_mode = #tpu.pipeline_mode<synchronous>, transform_indices = @transform_0, window_bounds = array<i64: 128, 1152>}, {pipeline_mode = #tpu.pipeline_mode<synchronous>, transform_indices = @transform_1, window_bounds = array<i64: 1152, 128>}, {pipeline_mode = #tpu.pipeline_mode<synchronous>, transform_indices = @transform_2, window_bounds = array<i64: 1, 128>}, {pipeline_mode = #tpu.pipeline_mode<synchronous>, transform_indices = @transform_3, window_bounds = array<i64: 1, 128>}, {pipeline_mode = #tpu.pipeline_mode<synchronous>, transform_indices = @transform_4, window_bounds = array<i64: 128, 128>}]} {
    %c0 = arith.constant 0 : index
    %c0_0 = arith.constant 0 : index
    %0 = vector.load %arg1[%c0, %c0_0] : memref<128x1152xbf16, #tpu.memory_space<vmem>>, vector<128x1152xbf16>
    %c0_1 = arith.constant 0 : index
    %c0_2 = arith.constant 0 : index
    %1 = vector.load %arg2[%c0_1, %c0_2] : memref<1152x128xbf16, #tpu.memory_space<vmem>>, vector<1152x128xbf16>
    %cst = arith.constant dense<0.000000e+00> : vector<128x128xf32>
    %2 = tpu.matmul %0, %1, %cst {dimension_numbers = #tpu.dot_dimension_numbers<[1], [0], [0], [1], [0, 0, 1, 1], [], []>} : vector<128x1152xbf16>, vector<1152x128xbf16>, vector<128x128xf32> -> vector<128x128xf32>
    %cst_3 = arith.constant dense<0.000000e+00> : vector<128xf32>
    %3 = vector.multi_reduction <add>, %2, %cst_3 [0] : vector<128x128xf32> to vector<128xf32>
    %4 = vector.shape_cast %3 : vector<128xf32> to vector<1x128xf32>
    %cst_4 = arith.constant 7.812500e-03 : f32
    %5 = vector.broadcast %cst_4 : f32 to vector<1x128xf32>
    %6 = arith.mulf %4, %5 : vector<1x128xf32>
    %7 = arith.mulf %2, %2 : vector<128x128xf32>
    %cst_5 = arith.constant dense<0.000000e+00> : vector<128xf32>
    %8 = vector.multi_reduction <add>, %7, %cst_5 [0] : vector<128x128xf32> to vector<128xf32>
    %9 = vector.shape_cast %8 : vector<128xf32> to vector<1x128xf32>
    %cst_6 = arith.constant 7.812500e-03 : f32
    %10 = vector.broadcast %cst_6 : f32 to vector<1x128xf32>
    %11 = arith.mulf %9, %10 : vector<1x128xf32>
    %12 = arith.mulf %6, %6 : vector<1x128xf32>
    %13 = arith.subf %11, %12 : vector<1x128xf32>
    %cst_7 = arith.constant 0.000000e+00 : f32
    %14 = vector.broadcast %cst_7 : f32 to vector<1x128xf32>
    %15 = arith.maximumf %13, %14 : vector<1x128xf32>
    %cst_8 = arith.constant 9.99999974E-6 : f32
    %16 = vector.broadcast %cst_8 : f32 to vector<1x128xf32>
    %17 = arith.addf %15, %16 : vector<1x128xf32>
    %18 = math.rsqrt %17 : vector<1x128xf32>
    %c0_9 = arith.constant 0 : index
    %c0_10 = arith.constant 0 : index
    %19 = vector.load %arg3[%c0_9, %c0_10] : memref<1x128xf32, #tpu.memory_space<vmem>>, vector<1x128xf32>
    %20 = arith.mulf %18, %19 : vector<1x128xf32>
    %c0_11 = arith.constant 0 : index
    %c0_12 = arith.constant 0 : index
    %21 = vector.load %arg4[%c0_11, %c0_12] : memref<1x128xf32, #tpu.memory_space<vmem>>, vector<1x128xf32>
    %22 = arith.mulf %6, %20 : vector<1x128xf32>
    %23 = arith.subf %21, %22 : vector<1x128xf32>
    %24 = vector.broadcast %20 : vector<1x128xf32> to vector<128x128xf32>
    %25 = arith.mulf %2, %24 : vector<128x128xf32>
    %26 = vector.broadcast %23 : vector<1x128xf32> to vector<128x128xf32>
    %27 = arith.addf %25, %26 : vector<128x128xf32>
    %cst_13 = arith.constant 0.000000e+00 : f32
    %28 = vector.broadcast %cst_13 : f32 to vector<128x128xf32>
    %29 = arith.cmpf ogt, %27, %28 : vector<128x128xf32>
    %cst_14 = arith.constant 2.000000e-01 : f32
    %30 = vector.broadcast %cst_14 : f32 to vector<128x128xf32>
    %31 = arith.mulf %30, %27 : vector<128x128xf32>
    %32 = arith.select %29, %27, %31 : vector<128x128xi1>, vector<128x128xf32>
    %33 = arith.truncf %32 : vector<128x128xf32> to vector<128x128xbf16>
    %c0_15 = arith.constant 0 : index
    %c0_16 = arith.constant 0 : index
    %34 = vector.load %arg5[%c0_15, %c0_16] : memref<128x128xbf16, #tpu.memory_space<vmem>>, vector<128x128xbf16>
    tpu.vector_store %arg5[%c0_15, %c0_16], %33 {strides = array<i32>} : memref<128x128xbf16, #tpu.memory_space<vmem>>, vector<128x128xbf16>,
    return
  }
  func.func @transform_0(%arg0: i32) -> (i32, i32) {
    %c0_i32 = arith.constant 0 : i32
    %c0_i32_0 = arith.constant 0 : i32
    %c0_i32_1 = arith.constant 0 : i32
    return %c0_i32, %c0_i32_0 : i32, i32
  }
  func.func @transform_1(%arg0: i32) -> (i32, i32) {
    %c0_i32 = arith.constant 0 : i32
    %c0_i32_0 = arith.constant 0 : i32
    %c0_i32_1 = arith.constant 0 : i32
    return %c0_i32, %c0_i32_0 : i32, i32
  }
  func.func @transform_2(%arg0: i32) -> (i32, i32) {
    %c0_i32 = arith.constant 0 : i32
    %c0_i32_0 = arith.constant 0 : i32
    %c0_i32_1 = arith.constant 0 : i32
    return %c0_i32, %c0_i32_0 : i32, i32
  }
  func.func @transform_3(%arg0: i32) -> (i32, i32) {
    %c0_i32 = arith.constant 0 : i32
    %c0_i32_0 = arith.constant 0 : i32
    %c0_i32_1 = arith.constant 0 : i32
    return %c0_i32, %c0_i32_0 : i32, i32
  }
  func.func @transform_4(%arg0: i32) -> (i32, i32) {
    %c0_i32 = arith.constant 0 : i32
    %c0_i32_0 = arith.constant 0 : i32
    %c0_i32_1 = arith.constant 0 : i32
    return %c0_i32, %c0_i32_0 : i32, i32
  }
}

module attributes {stable_mosaic.version = 11 : i64} {
  func.func @_mm_bn_leaky_kernel(%arg0: i32, %arg1: memref<128x1152xbf16, #tpu.memory_space<vmem>>, %arg2: memref<1152x256xbf16, #tpu.memory_space<vmem>>, %arg3: memref<1x256xf32, #tpu.memory_space<vmem>>, %arg4: memref<1x256xf32, #tpu.memory_space<vmem>>, %arg5: memref<128x256xbf16, #tpu.memory_space<vmem>>) attributes {dimension_semantics = [#tpu.dimension_semantics<arbitrary>], iteration_bounds = array<i64: 1>, scalar_prefetch = 0 : i64, scratch_operands = 0 : i64, tpu.core_type = #tpu.core_type<tc>, window_params = [{pipeline_mode = #tpu.pipeline_mode<synchronous>, transform_indices = @transform_0, window_bounds = array<i64: 128, 1152>}, {pipeline_mode = #tpu.pipeline_mode<synchronous>, transform_indices = @transform_1, window_bounds = array<i64: 1152, 256>}, {pipeline_mode = #tpu.pipeline_mode<synchronous>, transform_indices = @transform_2, window_bounds = array<i64: 1, 256>}, {pipeline_mode = #tpu.pipeline_mode<synchronous>, transform_indices = @transform_3, window_bounds = array<i64: 1, 256>}, {pipeline_mode = #tpu.pipeline_mode<synchronous>, transform_indices = @transform_4, window_bounds = array<i64: 128, 256>}]} {
    %c0 = arith.constant 0 : index
    %c0_0 = arith.constant 0 : index
    %0 = vector.load %arg1[%c0, %c0_0] : memref<128x1152xbf16, #tpu.memory_space<vmem>>, vector<128x1152xbf16>
    %c0_1 = arith.constant 0 : index
    %c0_2 = arith.constant 0 : index
    %1 = vector.load %arg2[%c0_1, %c0_2] : memref<1152x256xbf16, #tpu.memory_space<vmem>>, vector<1152x256xbf16>
    %cst = arith.constant dense<0.000000e+00> : vector<128x256xf32>
    %2 = tpu.matmul %0, %1, %cst {dimension_numbers = #tpu.dot_dimension_numbers<[1], [0], [0], [1], [0, 0, 1, 1], [], []>} : vector<128x1152xbf16>, vector<1152x256xbf16>, vector<128x256xf32> -> vector<128x256xf32>
    %cst_3 = arith.constant dense<0.000000e+00> : vector<256xf32>
    %3 = vector.multi_reduction <add>, %2, %cst_3 [0] : vector<128x256xf32> to vector<256xf32>
    %4 = vector.shape_cast %3 : vector<256xf32> to vector<1x256xf32>
    %cst_4 = arith.constant 7.812500e-03 : f32
    %5 = vector.broadcast %cst_4 : f32 to vector<1x256xf32>
    %6 = arith.mulf %4, %5 : vector<1x256xf32>
    %7 = arith.mulf %2, %2 : vector<128x256xf32>
    %cst_5 = arith.constant dense<0.000000e+00> : vector<256xf32>
    %8 = vector.multi_reduction <add>, %7, %cst_5 [0] : vector<128x256xf32> to vector<256xf32>
    %9 = vector.shape_cast %8 : vector<256xf32> to vector<1x256xf32>
    %cst_6 = arith.constant 7.812500e-03 : f32
    %10 = vector.broadcast %cst_6 : f32 to vector<1x256xf32>
    %11 = arith.mulf %9, %10 : vector<1x256xf32>
    %12 = arith.mulf %6, %6 : vector<1x256xf32>
    %13 = arith.subf %11, %12 : vector<1x256xf32>
    %cst_7 = arith.constant 0.000000e+00 : f32
    %14 = vector.broadcast %cst_7 : f32 to vector<1x256xf32>
    %15 = arith.maximumf %13, %14 : vector<1x256xf32>
    %cst_8 = arith.constant 9.99999974E-6 : f32
    %16 = vector.broadcast %cst_8 : f32 to vector<1x256xf32>
    %17 = arith.addf %15, %16 : vector<1x256xf32>
    %18 = math.rsqrt %17 : vector<1x256xf32>
    %c0_9 = arith.constant 0 : index
    %c0_10 = arith.constant 0 : index
    %19 = vector.load %arg3[%c0_9, %c0_10] : memref<1x256xf32, #tpu.memory_space<vmem>>, vector<1x256xf32>
    %20 = arith.mulf %18, %19 : vector<1x256xf32>
    %c0_11 = arith.constant 0 : index
    %c0_12 = arith.constant 0 : index
    %21 = vector.load %arg4[%c0_11, %c0_12] : memref<1x256xf32, #tpu.memory_space<vmem>>, vector<1x256xf32>
    %22 = arith.mulf %6, %20 : vector<1x256xf32>
    %23 = arith.subf %21, %22 : vector<1x256xf32>
    %24 = vector.broadcast %20 : vector<1x256xf32> to vector<128x256xf32>
    %25 = arith.mulf %2, %24 : vector<128x256xf32>
    %26 = vector.broadcast %23 : vector<1x256xf32> to vector<128x256xf32>
    %27 = arith.addf %25, %26 : vector<128x256xf32>
    %cst_13 = arith.constant 0.000000e+00 : f32
    %28 = vector.broadcast %cst_13 : f32 to vector<128x256xf32>
    %29 = arith.cmpf ogt, %27, %28 : vector<128x256xf32>
    %cst_14 = arith.constant 2.000000e-01 : f32
    %30 = vector.broadcast %cst_14 : f32 to vector<128x256xf32>
    %31 = arith.mulf %30, %27 : vector<128x256xf32>
    %32 = arith.select %29, %27, %31 : vector<128x256xi1>, vector<128x256xf32>
    %33 = arith.truncf %32 : vector<128x256xf32> to vector<128x256xbf16>
    %c0_15 = arith.constant 0 : index
    %c0_16 = arith.constant 0 : index
    %34 = vector.load %arg5[%c0_15, %c0_16] : memref<128x256xbf16, #tpu.memory_space<vmem>>, vector<128x256xbf16>
    tpu.vector_store %arg5[%c0_15, %c0_16], %33 {strides = array<i32>} : memref<128x256xbf16, #tpu.memory_space<vmem>>, vector<128x256xbf16>,
    return
  }
  func.func @transform_0(%arg0: i32) -> (i32, i32) {
    %c0_i32 = arith.constant 0 : i32
    %c0_i32_0 = arith.constant 0 : i32
    %c0_i32_1 = arith.constant 0 : i32
    return %c0_i32, %c0_i32_0 : i32, i32
  }
  func.func @transform_1(%arg0: i32) -> (i32, i32) {
    %c0_i32 = arith.constant 0 : i32
    %c0_i32_0 = arith.constant 0 : i32
    %c0_i32_1 = arith.constant 0 : i32
    return %c0_i32, %c0_i32_0 : i32, i32
  }
  func.func @transform_2(%arg0: i32) -> (i32, i32) {
    %c0_i32 = arith.constant 0 : i32
    %c0_i32_0 = arith.constant 0 : i32
    %c0_i32_1 = arith.constant 0 : i32
    return %c0_i32, %c0_i32_0 : i32, i32
  }
  func.func @transform_3(%arg0: i32) -> (i32, i32) {
    %c0_i32 = arith.constant 0 : i32
    %c0_i32_0 = arith.constant 0 : i32
    %c0_i32_1 = arith.constant 0 : i32
    return %c0_i32, %c0_i32_0 : i32, i32
  }
  func.func @transform_4(%arg0: i32) -> (i32, i32) {
    %c0_i32 = arith.constant 0 : i32
    %c0_i32_0 = arith.constant 0 : i32
    %c0_i32_1 = arith.constant 0 : i32
    return %c0_i32, %c0_i32_0 : i32, i32
  }
}

module attributes {stable_mosaic.version = 11 : i64} {
  func.func @_mm_act_kernel(%arg0: i32, %arg1: memref<128x2304xbf16, #tpu.memory_space<vmem>>, %arg2: memref<2304x128xbf16, #tpu.memory_space<vmem>>, %arg3: memref<128x128xf32, #tpu.memory_space<vmem>>) attributes {dimension_semantics = [#tpu.dimension_semantics<parallel>], iteration_bounds = array<i64: 1>, scalar_prefetch = 0 : i64, scratch_operands = 0 : i64, tpu.core_type = #tpu.core_type<tc>, window_params = [{transform_indices = @transform_0, window_bounds = array<i64: 128, 2304>}, {pipeline_mode = #tpu.pipeline_mode<synchronous>, transform_indices = @transform_1, window_bounds = array<i64: 2304, 128>}, {transform_indices = @transform_2, window_bounds = array<i64: 128, 128>}]} {
    %c0 = arith.constant 0 : index
    %c0_0 = arith.constant 0 : index
    %0 = vector.load %arg1[%c0, %c0_0] : memref<128x2304xbf16, #tpu.memory_space<vmem>>, vector<128x2304xbf16>
    %c0_1 = arith.constant 0 : index
    %c0_2 = arith.constant 0 : index
    %1 = vector.load %arg2[%c0_1, %c0_2] : memref<2304x128xbf16, #tpu.memory_space<vmem>>, vector<2304x128xbf16>
    %cst = arith.constant dense<0.000000e+00> : vector<128x128xf32>
    %2 = tpu.matmul %0, %1, %cst {dimension_numbers = #tpu.dot_dimension_numbers<[1], [0], [0], [1], [0, 0, 1, 1], [], []>} : vector<128x2304xbf16>, vector<2304x128xbf16>, vector<128x128xf32> -> vector<128x128xf32>
    %c0_3 = arith.constant 0 : index
    %c0_4 = arith.constant 0 : index
    %3 = vector.load %arg3[%c0_3, %c0_4] : memref<128x128xf32, #tpu.memory_space<vmem>>, vector<128x128xf32>
    tpu.vector_store %arg3[%c0_3, %c0_4], %2 {strides = array<i32>} : memref<128x128xf32, #tpu.memory_space<vmem>>, vector<128x128xf32>,
    return
  }
  func.func @transform_0(%arg0: i32) -> (i32, i32) {
    %c0_i32 = arith.constant 0 : i32
    %c0_i32_0 = arith.constant 0 : i32
    return %arg0, %c0_i32 : i32, i32
  }
  func.func @transform_1(%arg0: i32) -> (i32, i32) {
    %c0_i32 = arith.constant 0 : i32
    %c0_i32_0 = arith.constant 0 : i32
    %c0_i32_1 = arith.constant 0 : i32
    return %c0_i32, %c0_i32_0 : i32, i32
  }
  func.func @transform_2(%arg0: i32) -> (i32, i32) {
    %c0_i32 = arith.constant 0 : i32
    %c0_i32_0 = arith.constant 0 : i32
    return %arg0, %c0_i32 : i32, i32
  }
}

</mosaic_0001>

<llo_original>
// kernel: discriminator.7
$region0: #{discriminator.7}
  #allocation0 [shape = 'u32[]', space=smem, size = 0x4, offset = 0x4, fixed_abs, tag = 'smem constant byte address 0x4 - core index']
  #allocation1 [shape = 'u32[72,128]{1,0:T(1,128)}', space=vmem, size = 0x9000, scoped, tag = 'internal scratch']
  %s0 = inlined_call_operand.vmem [shape: bf16[2048,27], index: 0, kind: input, shape index: {}]
  %s1 = inlined_call_operand.vmem [shape: bf16[27,128], index: 1, kind: input, shape index: {}]
  %s2 = inlined_call_operand.vmem [shape: bf16[2048,128], index: 2, kind: output, shape index: {}]
  %s3 = sld [smem:[#allocation0]]
  $region41: #{discriminator.7} parent=0
    _
  %s5 = ssub.s32 1, %s3
  %s6 = scalar_select 0, %s5, %s3
  loop: start=0, step=1, limit=6
  $region2: #{discriminator.7} parent=0 // loop_pre_header
    _
  $region3: #{discriminator.7} parent=0 // loop_header
    %s8 = sphi 0, %s12
    %p9 = scmp.ge.s32.totalorder %s8, 6
    %s18 = sphi 0, %s20
    %s21 = sphi 0, %s18
    %s22 = sphi 0, %s21
    %s38 = sphi 0, %s22
    %s42 = sphi 0, %s42
    %s44 = sphi 0, %s42
    %s45 = sphi 0, %s44
    %s59 = sphi 0, %s45
    %s65 = sphi 0, %s67
    %s68 = sphi 0, %s65
    %s69 = sphi 0, %s68
    %s85 = sphi 0, %s69
  $region4: #{discriminator.7} parent=0 // loop_header_branch
    %11 = sbr.rel (%p9) target = $region8
  $region5: #{discriminator.7} parent=0 // loop_body
    %s13 = ssub.s32 %s8, 1
    %s14 = ssub.s32 %s8, 2
    %s15 = sadd.s32 %s8, 1
    %s16 = ssub.s32 %s8, %s15
    %p17 = scmp.eq.s32.totalorder %s16, 0
    %s19 = sadd.s32 %s18, 1
    %s20 = scalar_select %p17, %s18, %s19
    %p23 = pneg %p17
    %p24 = scmp.eq.s32.totalorder %s8, 3
    %p25 = por %p23, %p24
    %p26 = scmp.ne.s32.totalorder %s18, %s21
    %p27 = scmp.eq.s32.totalorder %s8, 0
    %p28 = por %p26, %p27
    %p29 = scmp.ne.s32.totalorder %s18, %s21
    %p30 = scmp.eq.s32.totalorder %s13, 3
    %p31 = por %p29, %p30
    %p32 = scmp.ne.s32.totalorder %s21, %s22
    %p33 = scmp.eq.s32.totalorder %s13, 0
    %p34 = por %p32, %p33
    %p35 = scmp.ne.s32.totalorder %s21, %s22
    %p36 = scmp.eq.s32.totalorder %s14, 3
    %p37 = por %p35, %p36
    %p39 = scmp.ne.s32.totalorder %s22, %s38
    %p40 = scmp.eq.s32.totalorder %s14, 0
    %p41 = por %p39, %p40
    %s43 = sadd.s32 %s42, 1
    %p46 = scmp.eq.s32.totalorder %s8, 3
    %p47 = scmp.ne.s32.totalorder %s42, %s44
    %p48 = scmp.eq.s32.totalorder %s8, 0
    %p49 = por %p47, %p48
    %p50 = scmp.ne.s32.totalorder %s42, %s44
    %p51 = scmp.eq.s32.totalorder %s13, 3
    %p52 = por %p50, %p51
    %p53 = scmp.ne.s32.totalorder %s44, %s45
    %p54 = scmp.eq.s32.totalorder %s13, 0
    %p55 = por %p53, %p54
    %p56 = scmp.ne.s32.totalorder %s44, %s45
    %p57 = scmp.eq.s32.totalorder %s14, 3
    %p58 = por %p56, %p57
    %p60 = scmp.ne.s32.totalorder %s45, %s59
    %p61 = scmp.eq.s32.totalorder %s14, 0
    %p62 = por %p60, %p61
    %s63 = ssub.s32 %s8, %s15
    %p64 = scmp.eq.s32.totalorder %s63, 0
    %s66 = sadd.s32 %s65, 1
    %s67 = scalar_select %p64, %s65, %s66
    %p70 = pneg %p64
    %p71 = scmp.eq.s32.totalorder %s8, 3
    %p72 = por %p70, %p71
    %p73 = scmp.ne.s32.totalorder %s65, %s68
    %p74 = scmp.eq.s32.totalorder %s8, 0
    %p75 = por %p73, %p74
    %p76 = scmp.ne.s32.totalorder %s65, %s68
    %p77 = scmp.eq.s32.totalorder %s13, 3
    %p78 = por %p76, %p77
    %p79 = scmp.ne.s32.totalorder %s68, %s69
    %p80 = scmp.eq.s32.totalorder %s13, 0
    %p81 = por %p79, %p80
    %p82 = scmp.ne.s32.totalorder %s68, %s69
    %p83 = scmp.eq.s32.totalorder %s14, 3
    %p84 = por %p82, %p83
    %p86 = scmp.ne.s32.totalorder %s69, %s85
    %p87 = scmp.eq.s32.totalorder %s14, 0
    %p88 = por %p86, %p87
    %p89 = scmp.le.s32.totalorder 1, %s8
    %p90 = scmp.lt.s32.totalorder %s8, 5
    %p91 = pnand %p89, %p90
    %p92 = pneg %p91
    // Predicated region
    $region9: #{discriminator.7} parent=5 // pred_check
      _
    $region10: #{discriminator.7} parent=5 // pred_check_branch
      %94 = sbr.rel (%p91) target = $region12
    $region11: #{discriminator.7} parent=5 // pred_region
      %s95 = ssub.s32 %s8, 1
      // Predicated region
      $region13: #{discriminator.7} parent=11 // pred_check
        %p96 = pneg %p55
      $region14: #{discriminator.7} parent=11 // pred_check_branch
        %98 = sbr.rel (%p96) target = $region16
      $region15: #{discriminator.7} parent=11 // pred_region
        _
      $region16: #{discriminator.7} parent=11 // pred_fallthru
        _
    $region12: #{discriminator.7} parent=5 // pred_fallthru
      _
    %p99 = scmp.lt.s32.totalorder %s8, 4
    // Predicated region
    $region17: #{discriminator.7} parent=5 // pred_check
      %p100 = pneg %p99
    $region18: #{discriminator.7} parent=5 // pred_check_branch
      %102 = sbr.rel (%p100) target = $region20
    $region19: #{discriminator.7} parent=5 // pred_region
      // Predicated region
      $region21: #{discriminator.7} parent=19 // pred_check
        %p103 = pneg %p28
      $region22: #{discriminator.7} parent=19 // pred_check_branch
        %105 = sbr.rel (%p103) target = $region24
      $region23: #{discriminator.7} parent=19 // pred_region
        %s106 = smul.u32 64, %s8
        %p107 = scmp.lt.s32.totalorder %s106, 255
        %s108 = scalar_select %p107, %s106, 255
        %s109 = smul.addr %s108, 4
        %s110 = scalar_lea.vmem %s0, %s109
        %s111 = smul.u32 64, %s8
      $region24: #{discriminator.7} parent=19 // pred_fallthru
        _
    $region20: #{discriminator.7} parent=5 // pred_fallthru
      _
    %p112 = scmp.le.s32.totalorder 1, %s8
    %p113 = scmp.lt.s32.totalorder %s8, 5
    %p114 = pnand %p112, %p113
    %p115 = pneg %p114
    // Predicated region
    $region25: #{discriminator.7} parent=5 // pred_check
      _
    $region26: #{discriminator.7} parent=5 // pred_check_branch
      %117 = sbr.rel (%p114) target = $region28
    $region27: #{discriminator.7} parent=5 // pred_region
      %s118 = ssub.s32 %s8, 1
      %s119 = smul.u32 64, %s13
      %p120 = scmp.lt.s32.totalorder %s119, 255
      %s121 = scalar_select %p120, %s119, 255
      %s122 = smul.addr %s121, 4
      %s123 = scalar_lea.vmem %s0, %s122
      %p124 = pneg %p34
      %p125 = pneg %p31
      %p126 = pneg %p55
      %p127 = pneg %p52
      %p128 = pneg %p81
      %p129 = pneg %p78
      %s130 = smul.u32 64, %s13
      %p131 = scmp.lt.s32.totalorder %s130, 255
      %s132 = scalar_select %p131, %s130, 255
      %s133 = smul.addr %s132, 4
      %s134 = scalar_lea.vmem %s2, %s133
      %s135 = smul.u32 64, %s13
      %p136 = scmp.lt.s32.totalorder %s135, 255
      %s137 = scalar_select %p136, %s135, 255
      %s138 = smul.addr %s137, 4
      %s139 = scalar_lea.vmem %s0, %s138
      %s140 = smul.u32 64, %s13
      %s141 = smul.u32 64, %s13
      %p142 = scmp.lt.s32.totalorder %s141, 255
      %s143 = scalar_select %p142, %s141, 255
      %s144 = smul.addr %s143, 4
      %s145 = scalar_lea.vmem %s2, %s144
      %s146 = smul.u32 64, %s13
      %v148 = vld [vmem:[%s139] sm:$0xf]
      %v149 = vld [vmem:[%s139 + $0x4] sm:$0xf]
      %v150 = vld [vmem:[%s139 + $0x8] sm:$0xf]
      %v151 = vld [vmem:[%s139 + $0xc] sm:$0xf]
      %v152 = vld [vmem:[%s139 + $0x10] sm:$0xf]
      %v153 = vld [vmem:[%s139 + $0x14] sm:$0xf]
      %v154 = vld [vmem:[%s139 + $0x18] sm:$0xf]
      %v155 = vld [vmem:[%s139 + $0x1c] sm:$0xf]
      %v156 = vld [vmem:[%s139 + $0x20] sm:$0xf]
      %v157 = vld [vmem:[%s139 + $0x24] sm:$0xf]
      %v158 = vld [vmem:[%s139 + $0x28] sm:$0xf]
      %v159 = vld [vmem:[%s139 + $0x2c] sm:$0xf]
      %v160 = vld [vmem:[%s139 + $0x30] sm:$0xf]
      %v161 = vld [vmem:[%s139 + $0x34] sm:$0xf]
      %v162 = vld [vmem:[%s139 + $0x38] sm:$0xf]
      %v163 = vld [vmem:[%s139 + $0x3c] sm:$0xf]
      %v164 = vld [vmem:[%s139 + $0x40] sm:$0xf]
      %v165 = vld [vmem:[%s139 + $0x44] sm:$0xf]
      %v166 = vld [vmem:[%s139 + $0x48] sm:$0xf]
      %v167 = vld [vmem:[%s139 + $0x4c] sm:$0xf]
      %v168 = vld [vmem:[%s139 + $0x50] sm:$0xf]
      %v169 = vld [vmem:[%s139 + $0x54] sm:$0xf]
      %v170 = vld [vmem:[%s139 + $0x58] sm:$0xf]
      %v171 = vld [vmem:[%s139 + $0x5c] sm:$0xf]
      %v172 = vld [vmem:[%s139 + $0x60] sm:$0xf]
      %v173 = vld [vmem:[%s139 + $0x64] sm:$0xf]
      %v174 = vld [vmem:[%s139 + $0x68] sm:$0xf]
      %v175 = vld [vmem:[%s139 + $0x6c] sm:$0xf]
      %v176 = vld [vmem:[%s139 + $0x70] sm:$0xf]
      %v177 = vld [vmem:[%s139 + $0x74] sm:$0xf]
      %v178 = vld [vmem:[%s139 + $0x78] sm:$0xf]
      %v179 = vld [vmem:[%s139 + $0x7c] sm:$0xf]
      %v180 = vld [vmem:[%s139 + $0x80] sm:$0xf]
      %v181 = vld [vmem:[%s139 + $0x84] sm:$0xf]
      %v182 = vld [vmem:[%s139 + $0x88] sm:$0xf]
      %v183 = vld [vmem:[%s139 + $0x8c] sm:$0xf]
      %v184 = vld [vmem:[%s139 + $0x90] sm:$0xf]
      %v185 = vld [vmem:[%s139 + $0x94] sm:$0xf]
      %v186 = vld [vmem:[%s139 + $0x98] sm:$0xf]
      %v187 = vld [vmem:[%s139 + $0x9c] sm:$0xf]
      %v188 = vld [vmem:[%s139 + $0xa0] sm:$0xf]
      %v189 = vld [vmem:[%s139 + $0xa4] sm:$0xf]
      %v190 = vld [vmem:[%s139 + $0xa8] sm:$0xf]
      %v191 = vld [vmem:[%s139 + $0xac] sm:$0xf]
      %v192 = vld [vmem:[%s139 + $0xb0] sm:$0xf]
      %v193 = vld [vmem:[%s139 + $0xb4] sm:$0xf]
      %v194 = vld [vmem:[%s139 + $0xb8] sm:$0xf]
      %v195 = vld [vmem:[%s139 + $0xbc] sm:$0xf]
      %v196 = vld [vmem:[%s139 + $0xc0] sm:$0xf]
      %v197 = vld [vmem:[%s139 + $0xc4] sm:$0xf]
      %v198 = vld [vmem:[%s139 + $0xc8] sm:$0xf]
      %v199 = vld [vmem:[%s139 + $0xcc] sm:$0xf]
      %v200 = vld [vmem:[%s139 + $0xd0] sm:$0xf]
      %v201 = vld [vmem:[%s139 + $0xd4] sm:$0xf]
      %v202 = vld [vmem:[%s139 + $0xd8] sm:$0xf]
      %v203 = vld [vmem:[%s139 + $0xdc] sm:$0xf]
      %v204 = vld [vmem:[%s139 + $0xe0] sm:$0xf]
      %v205 = vld [vmem:[%s139 + $0xe4] sm:$0xf]
      %v206 = vld [vmem:[%s139 + $0xe8] sm:$0xf]
      %v207 = vld [vmem:[%s139 + $0xec] sm:$0xf]
      %v208 = vld [vmem:[%s139 + $0xf0] sm:$0xf]
      %v209 = vld [vmem:[%s139 + $0xf4] sm:$0xf]
      %v210 = vld [vmem:[%s139 + $0xf8] sm:$0xf]
      %v211 = vld [vmem:[%s139 + $0xfc] sm:$0xf]
      %v212 = vld [vmem:[%s1] sm:$0xf]
      %v213 = vld [vmem:[%s1 + $0x4] sm:$0xf]
      %v214 = vld [vmem:[%s1 + $0x8] sm:$0xf]
      %v215 = vld [vmem:[%s1 + $0xc] sm:$0x3]
      %v280 = vunpack.c.l.b16 %v148
      %v281 = vunpack.c.l.b16 %v149
      %v282 = vunpack.c.l.b16 %v150
      %v283 = vunpack.c.l.b16 %v151
      %v284 = vunpack.c.l.b16 %v152
      %v285 = vunpack.c.l.b16 %v153
      %v286 = vunpack.c.l.b16 %v154
      %v287 = vunpack.c.l.b16 %v155
      %v288 = vunpack.c.l.b16 %v156
      %v289 = vunpack.c.l.b16 %v157
      %v290 = vunpack.c.l.b16 %v158
      %v291 = vunpack.c.l.b16 %v159
      %v292 = vunpack.c.l.b16 %v160
      %v293 = vunpack.c.l.b16 %v161
      %v294 = vunpack.c.l.b16 %v162
      %v295 = vunpack.c.l.b16 %v163
      %v296 = vunpack.c.l.b16 %v164
      %v297 = vunpack.c.l.b16 %v165
      %v298 = vunpack.c.l.b16 %v166
      %v299 = vunpack.c.l.b16 %v167
      %v300 = vunpack.c.l.b16 %v168
      %v301 = vunpack.c.l.b16 %v169
      %v302 = vunpack.c.l.b16 %v170
      %v303 = vunpack.c.l.b16 %v171
      %v304 = vunpack.c.l.b16 %v172
      %v305 = vunpack.c.l.b16 %v173
      %v306 = vunpack.c.l.b16 %v174
      %v307 = vunpack.c.l.b16 %v175
      %v308 = vunpack.c.l.b16 %v176
      %v309 = vunpack.c.l.b16 %v177
      %v310 = vunpack.c.l.b16 %v178
      %v311 = vunpack.c.l.b16 %v179
      %v312 = vunpack.c.l.b16 %v180
      %v313 = vunpack.c.l.b16 %v181
      %v314 = vunpack.c.l.b16 %v182
      %v315 = vunpack.c.l.b16 %v183
      %v316 = vunpack.c.l.b16 %v184
      %v317 = vunpack.c.l.b16 %v185
      %v318 = vunpack.c.l.b16 %v186
      %v319 = vunpack.c.l.b16 %v187
      %v320 = vunpack.c.l.b16 %v188
      %v321 = vunpack.c.l.b16 %v189
      %v322 = vunpack.c.l.b16 %v190
      %v323 = vunpack.c.l.b16 %v191
      %v324 = vunpack.c.l.b16 %v192
      %v325 = vunpack.c.l.b16 %v193
      %v326 = vunpack.c.l.b16 %v194
      %v327 = vunpack.c.l.b16 %v195
      %v328 = vunpack.c.l.b16 %v196
      %v329 = vunpack.c.l.b16 %v197
      %v330 = vunpack.c.l.b16 %v198
      %v331 = vunpack.c.l.b16 %v199
      %v332 = vunpack.c.l.b16 %v200
      %v333 = vunpack.c.l.b16 %v201
      %v334 = vunpack.c.l.b16 %v202
      %v335 = vunpack.c.l.b16 %v203
      %v336 = vunpack.c.l.b16 %v204
      %v337 = vunpack.c.l.b16 %v205
      %v338 = vunpack.c.l.b16 %v206
      %v339 = vunpack.c.l.b16 %v207
      %v340 = vunpack.c.l.b16 %v208
      %v341 = vunpack.c.l.b16 %v209
      %v342 = vunpack.c.l.b16 %v210
      %v343 = vunpack.c.l.b16 %v211
      %v344 = vpack.c.b16 %v281, %v280
      %v345 = vpack.c.b16 %v283, %v282
      %v346 = vpack.c.b16 %v285, %v284
      %v347 = vpack.c.b16 %v287, %v286
      %v348 = vpack.c.b16 %v289, %v288
      %v349 = vpack.c.b16 %v291, %v290
      %v350 = vpack.c.b16 %v293, %v292
      %v351 = vpack.c.b16 %v295, %v294
      %v352 = vpack.c.b16 %v297, %v296
      %v353 = vpack.c.b16 %v299, %v298
      %v354 = vpack.c.b16 %v301, %v300
      %v355 = vpack.c.b16 %v303, %v302
      %v356 = vpack.c.b16 %v305, %v304
      %v357 = vpack.c.b16 %v307, %v306
      %v358 = vpack.c.b16 %v309, %v308
      %v359 = vpack.c.b16 %v311, %v310
      %v360 = vpack.c.b16 %v313, %v312
      %v361 = vpack.c.b16 %v315, %v314
      %v362 = vpack.c.b16 %v317, %v316
      %v363 = vpack.c.b16 %v319, %v318
      %v364 = vpack.c.b16 %v321, %v320
      %v365 = vpack.c.b16 %v323, %v322
      %v366 = vpack.c.b16 %v325, %v324
      %v367 = vpack.c.b16 %v327, %v326
      %v368 = vpack.c.b16 %v329, %v328
      %v369 = vpack.c.b16 %v331, %v330
      %v370 = vpack.c.b16 %v333, %v332
      %v371 = vpack.c.b16 %v335, %v334
      %v372 = vpack.c.b16 %v337, %v336
      %v373 = vpack.c.b16 %v339, %v338
      %v374 = vpack.c.b16 %v341, %v340
      %v375 = vpack.c.b16 %v343, %v342
      %v380 = vunpack.c.l.b16 %v212
      %v381 = vunpack.c.l.b16 %v213
      %v382 = vunpack.c.l.b16 %v214
      %v383 = vunpack.c.l.b16 %v215
      %v384 = vpack.c.b16 %v381, %v380
      %v385 = vpack.c.b16 %v383, %v382
      %vm387 = vcmask 220160
      %v389 = vsel %vm387, %v344, 0
      %v392 = vsel %vm387, %v345, 0
      %v395 = vsel %vm387, %v346, 0
      %v398 = vsel %vm387, %v347, 0
      %v401 = vsel %vm387, %v348, 0
      %v404 = vsel %vm387, %v349, 0
      %v407 = vsel %vm387, %v350, 0
      %v410 = vsel %vm387, %v351, 0
      %v413 = vsel %vm387, %v352, 0
      %v416 = vsel %vm387, %v353, 0
      %v419 = vsel %vm387, %v354, 0
      %v422 = vsel %vm387, %v355, 0
      %v425 = vsel %vm387, %v356, 0
      %v428 = vsel %vm387, %v357, 0
      %v431 = vsel %vm387, %v358, 0
      %v434 = vsel %vm387, %v359, 0
      %v437 = vsel %vm387, %v360, 0
      %v440 = vsel %vm387, %v361, 0
      %v443 = vsel %vm387, %v362, 0
      %v446 = vsel %vm387, %v363, 0
      %v449 = vsel %vm387, %v364, 0
      %v452 = vsel %vm387, %v365, 0
      %v455 = vsel %vm387, %v366, 0
      %v458 = vsel %vm387, %v367, 0
      %v461 = vsel %vm387, %v368, 0
      %v464 = vsel %vm387, %v369, 0
      %v467 = vsel %vm387, %v370, 0
      %v470 = vsel %vm387, %v371, 0
      %v473 = vsel %vm387, %v372, 0
      %v476 = vsel %vm387, %v373, 0
      %v479 = vsel %vm387, %v374, 0
      %v482 = vsel %vm387, %v375, 0
      %vm484 = vcmask 1044480
      %vm485 = vcmask 1045504
      %v486 = vsel %vm484, 4294967295, 65535
      %v487 = vsel %vm485, %v486, 0
      %v489 = vand.u32 %v385, %v487
      %491 = vmatpush.bf16.msra.mxu0 0
      %492 = vmatpush.bf16.msra.mxu0 0
      %493 = vmatpush.bf16.msra.mxu0 0
      %494 = vmatpush.bf16.msra.mxu0 0
      %495 = vmatpush.bf16.msra.mxu0 0
      %496 = vmatpush.bf16.msra.mxu0 0
      %497 = vmatpush.bf16.msra.mxu0 %v489
      %498 = vmatpush.bf16.msra.mxu0 %v384
      %499 = vmatmul.bf16.gmra.mxu0 %v389
      %v500 = vpop.f32.mrf.mxu0
      %v501 = vadd.f32 0.0, %v500
      %v502 = vpop.f32.mrf.mxu0
      %v503 = vadd.f32 0.0, %v502
      %504 = vmatmul.bf16.gmra.mxu0 %v392
      %v505 = vpop.f32.mrf.mxu0
      %v506 = vadd.f32 0.0, %v505
      %v507 = vpop.f32.mrf.mxu0
      %v508 = vadd.f32 0.0, %v507
      %509 = vmatmul.bf16.gmra.mxu0 %v395
      %v510 = vpop.f32.mrf.mxu0
      %v511 = vadd.f32 0.0, %v510
      %v512 = vpop.f32.mrf.mxu0
      %v513 = vadd.f32 0.0, %v512
      %514 = vmatmul.bf16.gmra.mxu0 %v398
      %v515 = vpop.f32.mrf.mxu0
      %v516 = vadd.f32 0.0, %v515
      %v517 = vpop.f32.mrf.mxu0
      %v518 = vadd.f32 0.0, %v517
      %519 = vmatmul.bf16.gmra.mxu0 %v401
      %v520 = vpop.f32.mrf.mxu0
      %v521 = vadd.f32 0.0, %v520
      %v522 = vpop.f32.mrf.mxu0
      %v523 = vadd.f32 0.0, %v522
      %524 = vmatmul.bf16.gmra.mxu0 %v404
      %v525 = vpop.f32.mrf.mxu0
      %v526 = vadd.f32 0.0, %v525
      %v527 = vpop.f32.mrf.mxu0
      %v528 = vadd.f32 0.0, %v527
      %529 = vmatmul.bf16.gmra.mxu0 %v407
      %v530 = vpop.f32.mrf.mxu0
      %v531 = vadd.f32 0.0, %v530
      %v532 = vpop.f32.mrf.mxu0
      %v533 = vadd.f32 0.0, %v532
      %534 = vmatmul.bf16.gmra.mxu0 %v410
      %v535 = vpop.f32.mrf.mxu0
      %v536 = vadd.f32 0.0, %v535
      %v537 = vpop.f32.mrf.mxu0
      %v538 = vadd.f32 0.0, %v537
      %539 = vmatmul.bf16.gmra.mxu0 %v413
      %v540 = vpop.f32.mrf.mxu0
      %v541 = vadd.f32 0.0, %v540
      %v542 = vpop.f32.mrf.mxu0
      %v543 = vadd.f32 0.0, %v542
      %544 = vmatmul.bf16.gmra.mxu0 %v416
      %v545 = vpop.f32.mrf.mxu0
      %v546 = vadd.f32 0.0, %v545
      %v547 = vpop.f32.mrf.mxu0
      %v548 = vadd.f32 0.0, %v547
      %549 = vmatmul.bf16.gmra.mxu0 %v419
      %v550 = vpop.f32.mrf.mxu0
      %v551 = vadd.f32 0.0, %v550
      %v552 = vpop.f32.mrf.mxu0
      %v553 = vadd.f32 0.0, %v552
      %554 = vmatmul.bf16.gmra.mxu0 %v422
      %v555 = vpop.f32.mrf.mxu0
      %v556 = vadd.f32 0.0, %v555
      %v557 = vpop.f32.mrf.mxu0
      %v558 = vadd.f32 0.0, %v557
      %559 = vmatmul.bf16.gmra.mxu0 %v425
      %v560 = vpop.f32.mrf.mxu0
      %v561 = vadd.f32 0.0, %v560
      %v562 = vpop.f32.mrf.mxu0
      %v563 = vadd.f32 0.0, %v562
      %564 = vmatmul.bf16.gmra.mxu0 %v428
      %v565 = vpop.f32.mrf.mxu0
      %v566 = vadd.f32 0.0, %v565
      %v567 = vpop.f32.mrf.mxu0
      %v568 = vadd.f32 0.0, %v567
      %569 = vmatmul.bf16.gmra.mxu0 %v431
      %v570 = vpop.f32.mrf.mxu0
      %v571 = vadd.f32 0.0, %v570
      %v572 = vpop.f32.mrf.mxu0
      %v573 = vadd.f32 0.0, %v572
      %574 = vmatmul.bf16.gmra.mxu0 %v434
      %v575 = vpop.f32.mrf.mxu0
      %v576 = vadd.f32 0.0, %v575
      %v577 = vpop.f32.mrf.mxu0
      %v578 = vadd.f32 0.0, %v577
      %579 = vmatmul.bf16.gmra.mxu0 %v437
      %v580 = vpop.f32.mrf.mxu0
      %v581 = vadd.f32 0.0, %v580
      %v582 = vpop.f32.mrf.mxu0
      %v583 = vadd.f32 0.0, %v582
      %584 = vmatmul.bf16.gmra.mxu0 %v440
      %v585 = vpop.f32.mrf.mxu0
      %v586 = vadd.f32 0.0, %v585
      %v587 = vpop.f32.mrf.mxu0
      %v588 = vadd.f32 0.0, %v587
      %589 = vmatmul.bf16.gmra.mxu0 %v443
      %v590 = vpop.f32.mrf.mxu0
      %v591 = vadd.f32 0.0, %v590
      %v592 = vpop.f32.mrf.mxu0
      %v593 = vadd.f32 0.0, %v592
      %594 = vmatmul.bf16.gmra.mxu0 %v446
      %v595 = vpop.f32.mrf.mxu0
      %v596 = vadd.f32 0.0, %v595
      %v597 = vpop.f32.mrf.mxu0
      %v598 = vadd.f32 0.0, %v597
      %599 = vmatmul.bf16.gmra.mxu0 %v449
      %v600 = vpop.f32.mrf.mxu0
      %v601 = vadd.f32 0.0, %v600
      %v602 = vpop.f32.mrf.mxu0
      %v603 = vadd.f32 0.0, %v602
      %604 = vmatmul.bf16.gmra.mxu0 %v452
      %v605 = vpop.f32.mrf.mxu0
      %v606 = vadd.f32 0.0, %v605
      %v607 = vpop.f32.mrf.mxu0
      %v608 = vadd.f32 0.0, %v607
      %609 = vmatmul.bf16.gmra.mxu0 %v455
      %v610 = vpop.f32.mrf.mxu0
      %v611 = vadd.f32 0.0, %v610
      %v612 = vpop.f32.mrf.mxu0
      %v613 = vadd.f32 0.0, %v612
      %614 = vmatmul.bf16.gmra.mxu0 %v458
      %v615 = vpop.f32.mrf.mxu0
      %v616 = vadd.f32 0.0, %v615
      %v617 = vpop.f32.mrf.mxu0
      %v618 = vadd.f32 0.0, %v617
      %619 = vmatmul.bf16.gmra.mxu0 %v461
      %v620 = vpop.f32.mrf.mxu0
      %v621 = vadd.f32 0.0, %v620
      %v622 = vpop.f32.mrf.mxu0
      %v623 = vadd.f32 0.0, %v622
      %624 = vmatmul.bf16.gmra.mxu0 %v464
      %v625 = vpop.f32.mrf.mxu0
      %v626 = vadd.f32 0.0, %v625
      %v627 = vpop.f32.mrf.mxu0
      %v628 = vadd.f32 0.0, %v627
      %629 = vmatmul.bf16.gmra.mxu0 %v467
      %v630 = vpop.f32.mrf.mxu0
      %v631 = vadd.f32 0.0, %v630
      %v632 = vpop.f32.mrf.mxu0
      %v633 = vadd.f32 0.0, %v632
      %634 = vmatmul.bf16.gmra.mxu0 %v470
      %v635 = vpop.f32.mrf.mxu0
      %v636 = vadd.f32 0.0, %v635
      %v637 = vpop.f32.mrf.mxu0
      %v638 = vadd.f32 0.0, %v637
      %639 = vmatmul.bf16.gmra.mxu0 %v473
      %v640 = vpop.f32.mrf.mxu0
      %v641 = vadd.f32 0.0, %v640
      %v642 = vpop.f32.mrf.mxu0
      %v643 = vadd.f32 0.0, %v642
      %644 = vmatmul.bf16.gmra.mxu0 %v476
      %v645 = vpop.f32.mrf.mxu0
      %v646 = vadd.f32 0.0, %v645
      %v647 = vpop.f32.mrf.mxu0
      %v648 = vadd.f32 0.0, %v647
      %649 = vmatmul.bf16.gmra.mxu0 %v479
      %v650 = vpop.f32.mrf.mxu0
      %v651 = vadd.f32 0.0, %v650
      %v652 = vpop.f32.mrf.mxu0
      %v653 = vadd.f32 0.0, %v652
      %654 = vmatmul.bf16.gmra.mxu0 %v482
      %v655 = vpop.f32.mrf.mxu0
      %v656 = vadd.f32 0.0, %v655
      %v657 = vpop.f32.mrf.mxu0
      %v658 = vadd.f32 0.0, %v657
      %659 = vdwg.mxu0
      %vm660 = vcmp.gt.f32.partialorder %v501, 0.0
      %vm661 = vcmp.gt.f32.partialorder %v503, 0.0
      %vm662 = vcmp.gt.f32.partialorder %v506, 0.0
      %vm663 = vcmp.gt.f32.partialorder %v508, 0.0
      %vm664 = vcmp.gt.f32.partialorder %v511, 0.0
      %vm665 = vcmp.gt.f32.partialorder %v513, 0.0
      %vm666 = vcmp.gt.f32.partialorder %v516, 0.0
      %vm667 = vcmp.gt.f32.partialorder %v518, 0.0
      %vm668 = vcmp.gt.f32.partialorder %v521, 0.0
      %vm669 = vcmp.gt.f32.partialorder %v523, 0.0
      %vm670 = vcmp.gt.f32.partialorder %v526, 0.0
      %vm671 = vcmp.gt.f32.partialorder %v528, 0.0
      %vm672 = vcmp.gt.f32.partialorder %v531, 0.0
      %vm673 = vcmp.gt.f32.partialorder %v533, 0.0
      %vm674 = vcmp.gt.f32.partialorder %v536, 0.0
      %vm675 = vcmp.gt.f32.partialorder %v538, 0.0
      %vm676 = vcmp.gt.f32.partialorder %v541, 0.0
      %vm677 = vcmp.gt.f32.partialorder %v543, 0.0
      %vm678 = vcmp.gt.f32.partialorder %v546, 0.0
      %vm679 = vcmp.gt.f32.partialorder %v548, 0.0
      %vm680 = vcmp.gt.f32.partialorder %v551, 0.0
      %vm681 = vcmp.gt.f32.partialorder %v553, 0.0
      %vm682 = vcmp.gt.f32.partialorder %v556, 0.0
      %vm683 = vcmp.gt.f32.partialorder %v558, 0.0
      %vm684 = vcmp.gt.f32.partialorder %v561, 0.0
      %vm685 = vcmp.gt.f32.partialorder %v563, 0.0
      %vm686 = vcmp.gt.f32.partialorder %v566, 0.0
      %vm687 = vcmp.gt.f32.partialorder %v568, 0.0
      %vm688 = vcmp.gt.f32.partialorder %v571, 0.0
      %vm689 = vcmp.gt.f32.partialorder %v573, 0.0
      %vm690 = vcmp.gt.f32.partialorder %v576, 0.0
      %vm691 = vcmp.gt.f32.partialorder %v578, 0.0
      %vm692 = vcmp.gt.f32.partialorder %v581, 0.0
      %vm693 = vcmp.gt.f32.partialorder %v583, 0.0
      %vm694 = vcmp.gt.f32.partialorder %v586, 0.0
      %vm695 = vcmp.gt.f32.partialorder %v588, 0.0
      %vm696 = vcmp.gt.f32.partialorder %v591, 0.0
      %vm697 = vcmp.gt.f32.partialorder %v593, 0.0
      %vm698 = vcmp.gt.f32.partialorder %v596, 0.0
      %vm699 = vcmp.gt.f32.partialorder %v598, 0.0
      %vm700 = vcmp.gt.f32.partialorder %v601, 0.0
      %vm701 = vcmp.gt.f32.partialorder %v603, 0.0
      %vm702 = vcmp.gt.f32.partialorder %v606, 0.0
      %vm703 = vcmp.gt.f32.partialorder %v608, 0.0
      %vm704 = vcmp.gt.f32.partialorder %v611, 0.0
      %vm705 = vcmp.gt.f32.partialorder %v613, 0.0
      %vm706 = vcmp.gt.f32.partialorder %v616, 0.0
      %vm707 = vcmp.gt.f32.partialorder %v618, 0.0
      %vm708 = vcmp.gt.f32.partialorder %v621, 0.0
      %vm709 = vcmp.gt.f32.partialorder %v623, 0.0
      %vm710 = vcmp.gt.f32.partialorder %v626, 0.0
      %vm711 = vcmp.gt.f32.partialorder %v628, 0.0
      %vm712 = vcmp.gt.f32.partialorder %v631, 0.0
      %vm713 = vcmp.gt.f32.partialorder %v633, 0.0
      %vm714 = vcmp.gt.f32.partialorder %v636, 0.0
      %vm715 = vcmp.gt.f32.partialorder %v638, 0.0
      %vm716 = vcmp.gt.f32.partialorder %v641, 0.0
      %vm717 = vcmp.gt.f32.partialorder %v643, 0.0
      %vm718 = vcmp.gt.f32.partialorder %v646, 0.0
      %vm719 = vcmp.gt.f32.partialorder %v648, 0.0
      %vm720 = vcmp.gt.f32.partialorder %v651, 0.0
      %vm721 = vcmp.gt.f32.partialorder %v653, 0.0
      %vm722 = vcmp.gt.f32.partialorder %v656, 0.0
      %vm723 = vcmp.gt.f32.partialorder %v658, 0.0
      %v724 = vmul.f32 %v501, 0.2
      %v725 = vmul.f32 %v503, 0.2
      %v726 = vmul.f32 %v506, 0.2
      %v727 = vmul.f32 %v508, 0.2
      %v728 = vmul.f32 %v511, 0.2
      %v729 = vmul.f32 %v513, 0.2
      %v730 = vmul.f32 %v516, 0.2
      %v731 = vmul.f32 %v518, 0.2
      %v732 = vmul.f32 %v521, 0.2
      %v733 = vmul.f32 %v523, 0.2
      %v734 = vmul.f32 %v526, 0.2
      %v735 = vmul.f32 %v528, 0.2
      %v736 = vmul.f32 %v531, 0.2
      %v737 = vmul.f32 %v533, 0.2
      %v738 = vmul.f32 %v536, 0.2
      %v739 = vmul.f32 %v538, 0.2
      %v740 = vmul.f32 %v541, 0.2
      %v741 = vmul.f32 %v543, 0.2
      %v742 = vmul.f32 %v546, 0.2
      %v743 = vmul.f32 %v548, 0.2
      %v744 = vmul.f32 %v551, 0.2
      %v745 = vmul.f32 %v553, 0.2
      %v746 = vmul.f32 %v556, 0.2
      %v747 = vmul.f32 %v558, 0.2
      %v748 = vmul.f32 %v561, 0.2
      %v749 = vmul.f32 %v563, 0.2
      %v750 = vmul.f32 %v566, 0.2
      %v751 = vmul.f32 %v568, 0.2
      %v752 = vmul.f32 %v571, 0.2
      %v753 = vmul.f32 %v573, 0.2
      %v754 = vmul.f32 %v576, 0.2
      %v755 = vmul.f32 %v578, 0.2
      %v756 = vmul.f32 %v581, 0.2
      %v757 = vmul.f32 %v583, 0.2
      %v758 = vmul.f32 %v586, 0.2
      %v759 = vmul.f32 %v588, 0.2
      %v760 = vmul.f32 %v591, 0.2
      %v761 = vmul.f32 %v593, 0.2
      %v762 = vmul.f32 %v596, 0.2
      %v763 = vmul.f32 %v598, 0.2
      %v764 = vmul.f32 %v601, 0.2
      %v765 = vmul.f32 %v603, 0.2
      %v766 = vmul.f32 %v606, 0.2
      %v767 = vmul.f32 %v608, 0.2
      %v768 = vmul.f32 %v611, 0.2
      %v769 = vmul.f32 %v613, 0.2
      %v770 = vmul.f32 %v616, 0.2
      %v771 = vmul.f32 %v618, 0.2
      %v772 = vmul.f32 %v621, 0.2
      %v773 = vmul.f32 %v623, 0.2
      %v774 = vmul.f32 %v626, 0.2
      %v775 = vmul.f32 %v628, 0.2
      %v776 = vmul.f32 %v631, 0.2
      %v777 = vmul.f32 %v633, 0.2
      %v778 = vmul.f32 %v636, 0.2
      %v779 = vmul.f32 %v638, 0.2
      %v780 = vmul.f32 %v641, 0.2
      %v781 = vmul.f32 %v643, 0.2
      %v782 = vmul.f32 %v646, 0.2
      %v783 = vmul.f32 %v648, 0.2
      %v784 = vmul.f32 %v651, 0.2
      %v785 = vmul.f32 %v653, 0.2
      %v786 = vmul.f32 %v656, 0.2
      %v787 = vmul.f32 %v658, 0.2
      %v788 = vsel %vm660, %v501, %v724
      %v789 = vsel %vm661, %v503, %v725
      %v790 = vsel %vm662, %v506, %v726
      %v791 = vsel %vm663, %v508, %v727
      %v792 = vsel %vm664, %v511, %v728
      %v793 = vsel %vm665, %v513, %v729
      %v794 = vsel %vm666, %v516, %v730
      %v795 = vsel %vm667, %v518, %v731
      %v796 = vsel %vm668, %v521, %v732
      %v797 = vsel %vm669, %v523, %v733
      %v798 = vsel %vm670, %v526, %v734
      %v799 = vsel %vm671, %v528, %v735
      %v800 = vsel %vm672, %v531, %v736
      %v801 = vsel %vm673, %v533, %v737
      %v802 = vsel %vm674, %v536, %v738
      %v803 = vsel %vm675, %v538, %v739
      %v804 = vsel %vm676, %v541, %v740
      %v805 = vsel %vm677, %v543, %v741
      %v806 = vsel %vm678, %v546, %v742
      %v807 = vsel %vm679, %v548, %v743
      %v808 = vsel %vm680, %v551, %v744
      %v809 = vsel %vm681, %v553, %v745
      %v810 = vsel %vm682, %v556, %v746
      %v811 = vsel %vm683, %v558, %v747
      %v812 = vsel %vm684, %v561, %v748
      %v813 = vsel %vm685, %v563, %v749
      %v814 = vsel %vm686, %v566, %v750
      %v815 = vsel %vm687, %v568, %v751
      %v816 = vsel %vm688, %v571, %v752
      %v817 = vsel %vm689, %v573, %v753
      %v818 = vsel %vm690, %v576, %v754
      %v819 = vsel %vm691, %v578, %v755
      %v820 = vsel %vm692, %v581, %v756
      %v821 = vsel %vm693, %v583, %v757
      %v822 = vsel %vm694, %v586, %v758
      %v823 = vsel %vm695, %v588, %v759
      %v824 = vsel %vm696, %v591, %v760
      %v825 = vsel %vm697, %v593, %v761
      %v826 = vsel %vm698, %v596, %v762
      %v827 = vsel %vm699, %v598, %v763
      %v828 = vsel %vm700, %v601, %v764
      %v829 = vsel %vm701, %v603, %v765
      %v830 = vsel %vm702, %v606, %v766
      %v831 = vsel %vm703, %v608, %v767
      %v832 = vsel %vm704, %v611, %v768
      %v833 = vsel %vm705, %v613, %v769
      %v834 = vsel %vm706, %v616, %v770
      %v835 = vsel %vm707, %v618, %v771
      %v836 = vsel %vm708, %v621, %v772
      %v837 = vsel %vm709, %v623, %v773
      %v838 = vsel %vm710, %v626, %v774
      %v839 = vsel %vm711, %v628, %v775
      %v840 = vsel %vm712, %v631, %v776
      %v841 = vsel %vm713, %v633, %v777
      %v842 = vsel %vm714, %v636, %v778
      %v843 = vsel %vm715, %v638, %v779
      %v844 = vsel %vm716, %v641, %v780
      %v845 = vsel %vm717, %v643, %v781
      %v846 = vsel %vm718, %v646, %v782
      %v847 = vsel %vm719, %v648, %v783
      %v848 = vsel %vm720, %v651, %v784
      %v849 = vsel %vm721, %v653, %v785
      %v850 = vsel %vm722, %v656, %v786
      %v851 = vsel %vm723, %v658, %v787
      %v852 = vpack.c.bf16 %v788, %v788
      %v853 = vpack.c.bf16 %v789, %v789
      %v854 = vpack.c.bf16 %v790, %v790
      %v855 = vpack.c.bf16 %v791, %v791
      %v856 = vpack.c.bf16 %v792, %v792
      %v857 = vpack.c.bf16 %v793, %v793
      %v858 = vpack.c.bf16 %v794, %v794
      %v859 = vpack.c.bf16 %v795, %v795
      %v860 = vpack.c.bf16 %v796, %v796
      %v861 = vpack.c.bf16 %v797, %v797
      %v862 = vpack.c.bf16 %v798, %v798
      %v863 = vpack.c.bf16 %v799, %v799
      %v864 = vpack.c.bf16 %v800, %v800
      %v865 = vpack.c.bf16 %v801, %v801
      %v866 = vpack.c.bf16 %v802, %v802
      %v867 = vpack.c.bf16 %v803, %v803
      %v868 = vpack.c.bf16 %v804, %v804
      %v869 = vpack.c.bf16 %v805, %v805
      %v870 = vpack.c.bf16 %v806, %v806
      %v871 = vpack.c.bf16 %v807, %v807
      %v872 = vpack.c.bf16 %v808, %v808
      %v873 = vpack.c.bf16 %v809, %v809
      %v874 = vpack.c.bf16 %v810, %v810
      %v875 = vpack.c.bf16 %v811, %v811
      %v876 = vpack.c.bf16 %v812, %v812
      %v877 = vpack.c.bf16 %v813, %v813
      %v878 = vpack.c.bf16 %v814, %v814
      %v879 = vpack.c.bf16 %v815, %v815
      %v880 = vpack.c.bf16 %v816, %v816
      %v881 = vpack.c.bf16 %v817, %v817
      %v882 = vpack.c.bf16 %v818, %v818
      %v883 = vpack.c.bf16 %v819, %v819
      %v884 = vpack.c.bf16 %v820, %v820
      %v885 = vpack.c.bf16 %v821, %v821
      %v886 = vpack.c.bf16 %v822, %v822
      %v887 = vpack.c.bf16 %v823, %v823
      %v888 = vpack.c.bf16 %v824, %v824
      %v889 = vpack.c.bf16 %v825, %v825
      %v890 = vpack.c.bf16 %v826, %v826
      %v891 = vpack.c.bf16 %v827, %v827
      %v892 = vpack.c.bf16 %v828, %v828
      %v893 = vpack.c.bf16 %v829, %v829
      %v894 = vpack.c.bf16 %v830, %v830
      %v895 = vpack.c.bf16 %v831, %v831
      %v896 = vpack.c.bf16 %v832, %v832
      %v897 = vpack.c.bf16 %v833, %v833
      %v898 = vpack.c.bf16 %v834, %v834
      %v899 = vpack.c.bf16 %v835, %v835
      %v900 = vpack.c.bf16 %v836, %v836
      %v901 = vpack.c.bf16 %v837, %v837
      %v902 = vpack.c.bf16 %v838, %v838
      %v903 = vpack.c.bf16 %v839, %v839
      %v904 = vpack.c.bf16 %v840, %v840
      %v905 = vpack.c.bf16 %v841, %v841
      %v906 = vpack.c.bf16 %v842, %v842
      %v907 = vpack.c.bf16 %v843, %v843
      %v908 = vpack.c.bf16 %v844, %v844
      %v909 = vpack.c.bf16 %v845, %v845
      %v910 = vpack.c.bf16 %v846, %v846
      %v911 = vpack.c.bf16 %v847, %v847
      %v912 = vpack.c.bf16 %v848, %v848
      %v913 = vpack.c.bf16 %v849, %v849
      %v914 = vpack.c.bf16 %v850, %v850
      %v915 = vpack.c.bf16 %v851, %v851
      %916 = vst [vmem:[%s145] sm:$0xf] %v852
      %917 = vst [vmem:[%s145 + $0x4] sm:$0xf] %v853
      %918 = vst [vmem:[%s145 + $0x8] sm:$0xf] %v854
      %919 = vst [vmem:[%s145 + $0xc] sm:$0xf] %v855
      %920 = vst [vmem:[%s145 + $0x10] sm:$0xf] %v856
      %921 = vst [vmem:[%s145 + $0x14] sm:$0xf] %v857
      %922 = vst [vmem:[%s145 + $0x18] sm:$0xf] %v858
      %923 = vst [vmem:[%s145 + $0x1c] sm:$0xf] %v859
      %924 = vst [vmem:[%s145 + $0x20] sm:$0xf] %v860
      %925 = vst [vmem:[%s145 + $0x24] sm:$0xf] %v861
      %926 = vst [vmem:[%s145 + $0x28] sm:$0xf] %v862
      %927 = vst [vmem:[%s145 + $0x2c] sm:$0xf] %v863
      %928 = vst [vmem:[%s145 + $0x30] sm:$0xf] %v864
      %929 = vst [vmem:[%s145 + $0x34] sm:$0xf] %v865
      %930 = vst [vmem:[%s145 + $0x38] sm:$0xf] %v866
      %931 = vst [vmem:[%s145 + $0x3c] sm:$0xf] %v867
      %932 = vst [vmem:[%s145 + $0x40] sm:$0xf] %v868
      %933 = vst [vmem:[%s145 + $0x44] sm:$0xf] %v869
      %934 = vst [vmem:[%s145 + $0x48] sm:$0xf] %v870
      %935 = vst [vmem:[%s145 + $0x4c] sm:$0xf] %v871
      %936 = vst [vmem:[%s145 + $0x50] sm:$0xf] %v872
      %937 = vst [vmem:[%s145 + $0x54] sm:$0xf] %v873
      %938 = vst [vmem:[%s145 + $0x58] sm:$0xf] %v874
      %939 = vst [vmem:[%s145 + $0x5c] sm:$0xf] %v875
      %940 = vst [vmem:[%s145 + $0x60] sm:$0xf] %v876
      %941 = vst [vmem:[%s145 + $0x64] sm:$0xf] %v877
      %942 = vst [vmem:[%s145 + $0x68] sm:$0xf] %v878
      %943 = vst [vmem:[%s145 + $0x6c] sm:$0xf] %v879
      %944 = vst [vmem:[%s145 + $0x70] sm:$0xf] %v880
      %945 = vst [vmem:[%s145 + $0x74] sm:$0xf] %v881
      %946 = vst [vmem:[%s145 + $0x78] sm:$0xf] %v882
      %947 = vst [vmem:[%s145 + $0x7c] sm:$0xf] %v883
      %948 = vst [vmem:[%s145 + $0x80] sm:$0xf] %v884
      %949 = vst [vmem:[%s145 + $0x84] sm:$0xf] %v885
      %950 = vst [vmem:[%s145 + $0x88] sm:$0xf] %v886
      %951 = vst [vmem:[%s145 + $0x8c] sm:$0xf] %v887
      %952 = vst [vmem:[%s145 + $0x90] sm:$0xf] %v888
      %953 = vst [vmem:[%s145 + $0x94] sm:$0xf] %v889
      %954 = vst [vmem:[%s145 + $0x98] sm:$0xf] %v890
      %955 = vst [vmem:[%s145 + $0x9c] sm:$0xf] %v891
      %956 = vst [vmem:[%s145 + $0xa0] sm:$0xf] %v892
      %957 = vst [vmem:[%s145 + $0xa4] sm:$0xf] %v893
      %958 = vst [vmem:[%s145 + $0xa8] sm:$0xf] %v894
      %959 = vst [vmem:[%s145 + $0xac] sm:$0xf] %v895
      %960 = vst [vmem:[%s145 + $0xb0] sm:$0xf] %v896
      %961 = vst [vmem:[%s145 + $0xb4] sm:$0xf] %v897
      %962 = vst [vmem:[%s145 + $0xb8] sm:$0xf] %v898
      %963 = vst [vmem:[%s145 + $0xbc] sm:$0xf] %v899
      %964 = vst [vmem:[%s145 + $0xc0] sm:$0xf] %v900
      %965 = vst [vmem:[%s145 + $0xc4] sm:$0xf] %v901
      %966 = vst [vmem:[%s145 + $0xc8] sm:$0xf] %v902
      %967 = vst [vmem:[%s145 + $0xcc] sm:$0xf] %v903
      %968 = vst [vmem:[%s145 + $0xd0] sm:$0xf] %v904
      %969 = vst [vmem:[%s145 + $0xd4] sm:$0xf] %v905
      %970 = vst [vmem:[%s145 + $0xd8] sm:$0xf] %v906
      %971 = vst [vmem:[%s145 + $0xdc] sm:$0xf] %v907
      %972 = vst [vmem:[%s145 + $0xe0] sm:$0xf] %v908
      %973 = vst [vmem:[%s145 + $0xe4] sm:$0xf] %v909
      %974 = vst [vmem:[%s145 + $0xe8] sm:$0xf] %v910
      %975 = vst [vmem:[%s145 + $0xec] sm:$0xf] %v911
      %976 = vst [vmem:[%s145 + $0xf0] sm:$0xf] %v912
      %977 = vst [vmem:[%s145 + $0xf4] sm:$0xf] %v913
      %978 = vst [vmem:[%s145 + $0xf8] sm:$0xf] %v914
      %979 = vst [vmem:[%s145 + $0xfc] sm:$0xf] %v915
      %s980 = smul.u32 64, %s13
      %p981 = scmp.lt.s32.totalorder %s980, 255
      %s982 = scalar_select %p981, %s980, 255
      %s983 = smul.addr %s982, 4
      %s984 = scalar_lea.vmem %s2, %s983
      // Predicated region
      $region29: #{discriminator.7} parent=27 // pred_check
        %p985 = pneg %p78
      $region30: #{discriminator.7} parent=27 // pred_check_branch
        %987 = sbr.rel (%p985) target = $region32
      $region31: #{discriminator.7} parent=27 // pred_region
        %s988 = smul.u32 64, %s13
      $region32: #{discriminator.7} parent=27 // pred_fallthru
        _
    $region28: #{discriminator.7} parent=5 // pred_fallthru
      _
    %p989 = scmp.le.s32.totalorder 2, %s8
    // Predicated region
    $region33: #{discriminator.7} parent=5 // pred_check
      %p990 = pneg %p989
    $region34: #{discriminator.7} parent=5 // pred_check_branch
      %992 = sbr.rel (%p990) target = $region36
    $region35: #{discriminator.7} parent=5 // pred_region
      %s993 = ssub.s32 %s8, 2
      // Predicated region
      $region37: #{discriminator.7} parent=35 // pred_check
        %p994 = pneg %p84
      $region38: #{discriminator.7} parent=35 // pred_check_branch
        %996 = sbr.rel (%p994) target = $region40
      $region39: #{discriminator.7} parent=35 // pred_region
        %s997 = smul.u32 64, %s14
        %p998 = scmp.lt.s32.totalorder %s997, 255
        %s999 = scalar_select %p998, %s997, 255
        %s1000 = smul.addr %s999, 4
        %s1001 = scalar_lea.vmem %s2, %s1000
      $region40: #{discriminator.7} parent=35 // pred_fallthru
        _
    $region36: #{discriminator.7} parent=5 // pred_fallthru
      _
  $region6: #{discriminator.7} parent=0 // loop_footer
    %s12 = sadd.s32 1, %s8
  $region7: #{discriminator.7} parent=0 // loop_footer_branch
    %7 = sbr.rel target = $region3
  $region8: #{discriminator.7} parent=0 // loop_exit
    _

// kernel: discriminator.8
$region0: #{discriminator.8}
  #allocation0 [shape = 'u32[]', space=smem, size = 0x4, offset = 0x4, fixed_abs, tag = 'smem constant byte address 0x4 - core index']
  #allocation1 [shape = 'u32[72,128]{1,0:T(1,128)}', space=vmem, size = 0x9000, scoped, tag = 'internal scratch']
  %s0 = inlined_call_operand.vmem [shape: bf16[512,288], index: 0, kind: input, shape index: {}]
  %s1 = inlined_call_operand.vmem [shape: bf16[288,128], index: 1, kind: input, shape index: {}]
  %s2 = inlined_call_operand.vmem [shape: bf16[512,128], index: 2, kind: output, shape index: {}]
  %s3 = sld [smem:[#allocation0]]
  $region18: #{discriminator.8} parent=0
    _
  %s5 = ssub.s32 1, %s3
  %s6 = scalar_select 0, %s5, %s3
  // Predicated region
  $region2: #{discriminator.8} parent=0 // pred_check
    _
  $region3: #{discriminator.8} parent=0 // pred_check_branch
    %8 = sbr.rel (0) target = $region5
  $region4: #{discriminator.8} parent=0 // pred_region
    _
  $region5: #{discriminator.8} parent=0 // pred_fallthru
    _
  // Predicated region
  $region6: #{discriminator.8} parent=0 // pred_check
    _
  $region7: #{discriminator.8} parent=0 // pred_check_branch
    %10 = sbr.rel (0) target = $region9
  $region8: #{discriminator.8} parent=0 // pred_region
    _
  $region9: #{discriminator.8} parent=0 // pred_fallthru
    _
  %v12 = vld [vmem:[%s0] sm:$0xff]
  %v13 = vld [vmem:[%s0 + $0x8] sm:$0xf]
  %v14 = vld [vmem:[%s0 + $0xc] sm:$0xff]
  %v15 = vld [vmem:[%s0 + $0x14] sm:$0xf]
  %v16 = vld [vmem:[%s0 + $0x18] sm:$0xff]
  %v17 = vld [vmem:[%s0 + $0x20] sm:$0xf]
  %v18 = vld [vmem:[%s0 + $0x24] sm:$0xff]
  %v19 = vld [vmem:[%s0 + $0x2c] sm:$0xf]
  %v20 = vld [vmem:[%s0 + $0x30] sm:$0xff]
  %v21 = vld [vmem:[%s0 + $0x38] sm:$0xf]
  %v22 = vld [vmem:[%s0 + $0x3c] sm:$0xff]
  %v23 = vld [vmem:[%s0 + $0x44] sm:$0xf]
  %v24 = vld [vmem:[%s0 + $0x48] sm:$0xff]
  %v25 = vld [vmem:[%s0 + $0x50] sm:$0xf]
  %v26 = vld [vmem:[%s0 + $0x54] sm:$0xff]
  %v27 = vld [vmem:[%s0 + $0x5c] sm:$0xf]
  %v28 = vld [vmem:[%s0 + $0x60] sm:$0xff]
  %v29 = vld [vmem:[%s0 + $0x68] sm:$0xf]
  %v30 = vld [vmem:[%s0 + $0x6c] sm:$0xff]
  %v31 = vld [vmem:[%s0 + $0x74] sm:$0xf]
  %v32 = vld [vmem:[%s0 + $0x78] sm:$0xff]
  %v33 = vld [vmem:[%s0 + $0x80] sm:$0xf]
  %v34 = vld [vmem:[%s0 + $0x84] sm:$0xff]
  %v35 = vld [vmem:[%s0 + $0x8c] sm:$0xf]
  %v36 = vld [vmem:[%s0 + $0x90] sm:$0xff]
  %v37 = vld [vmem:[%s0 + $0x98] sm:$0xf]
  %v38 = vld [vmem:[%s0 + $0x9c] sm:$0xff]
  %v39 = vld [vmem:[%s0 + $0xa4] sm:$0xf]
  %v40 = vld [vmem:[%s0 + $0xa8] sm:$0xff]
  %v41 = vld [vmem:[%s0 + $0xb0] sm:$0xf]
  %v42 = vld [vmem:[%s0 + $0xb4] sm:$0xff]
  %v43 = vld [vmem:[%s0 + $0xbc] sm:$0xf]
  %v44 = vld [vmem:[%s0 + $0xc0] sm:$0xff]
  %v45 = vld [vmem:[%s0 + $0xc8] sm:$0xf]
  %v46 = vld [vmem:[%s0 + $0xcc] sm:$0xff]
  %v47 = vld [vmem:[%s0 + $0xd4] sm:$0xf]
  %v48 = vld [vmem:[%s0 + $0xd8] sm:$0xff]
  %v49 = vld [vmem:[%s0 + $0xe0] sm:$0xf]
  %v50 = vld [vmem:[%s0 + $0xe4] sm:$0xff]
  %v51 = vld [vmem:[%s0 + $0xec] sm:$0xf]
  %v52 = vld [vmem:[%s0 + $0xf0] sm:$0xff]
  %v53 = vld [vmem:[%s0 + $0xf8] sm:$0xf]
  %v54 = vld [vmem:[%s0 + $0xfc] sm:$0xff]
  %v55 = vld [vmem:[%s0 + $0x104] sm:$0xf]
  %v56 = vld [vmem:[%s0 + $0x108] sm:$0xff]
  %v57 = vld [vmem:[%s0 + $0x110] sm:$0xf]
  %v58 = vld [vmem:[%s0 + $0x114] sm:$0xff]
  %v59 = vld [vmem:[%s0 + $0x11c] sm:$0xf]
  %v60 = vld [vmem:[%s0 + $0x120] sm:$0xff]
  %v61 = vld [vmem:[%s0 + $0x128] sm:$0xf]
  %v62 = vld [vmem:[%s0 + $0x12c] sm:$0xff]
  %v63 = vld [vmem:[%s0 + $0x134] sm:$0xf]
  %v64 = vld [vmem:[%s0 + $0x138] sm:$0xff]
  %v65 = vld [vmem:[%s0 + $0x140] sm:$0xf]
  %v66 = vld [vmem:[%s0 + $0x144] sm:$0xff]
  %v67 = vld [vmem:[%s0 + $0x14c] sm:$0xf]
  %v68 = vld [vmem:[%s0 + $0x150] sm:$0xff]
  %v69 = vld [vmem:[%s0 + $0x158] sm:$0xf]
  %v70 = vld [vmem:[%s0 + $0x15c] sm:$0xff]
  %v71 = vld [vmem:[%s0 + $0x164] sm:$0xf]
  %v72 = vld [vmem:[%s0 + $0x168] sm:$0xff]
  %v73 = vld [vmem:[%s0 + $0x170] sm:$0xf]
  %v74 = vld [vmem:[%s0 + $0x174] sm:$0xff]
  %v75 = vld [vmem:[%s0 + $0x17c] sm:$0xf]
  %v76 = vld [vmem:[%s0 + $0x180] sm:$0xff]
  %v77 = vld [vmem:[%s0 + $0x188] sm:$0xf]
  %v78 = vld [vmem:[%s0 + $0x18c] sm:$0xff]
  %v79 = vld [vmem:[%s0 + $0x194] sm:$0xf]
  %v80 = vld [vmem:[%s0 + $0x198] sm:$0xff]
  %v81 = vld [vmem:[%s0 + $0x1a0] sm:$0xf]
  %v82 = vld [vmem:[%s0 + $0x1a4] sm:$0xff]
  %v83 = vld [vmem:[%s0 + $0x1ac] sm:$0xf]
  %v84 = vld [vmem:[%s0 + $0x1b0] sm:$0xff]
  %v85 = vld [vmem:[%s0 + $0x1b8] sm:$0xf]
  %v86 = vld [vmem:[%s0 + $0x1bc] sm:$0xff]
  %v87 = vld [vmem:[%s0 + $0x1c4] sm:$0xf]
  %v88 = vld [vmem:[%s0 + $0x1c8] sm:$0xff]
  %v89 = vld [vmem:[%s0 + $0x1d0] sm:$0xf]
  %v90 = vld [vmem:[%s0 + $0x1d4] sm:$0xff]
  %v91 = vld [vmem:[%s0 + $0x1dc] sm:$0xf]
  %v92 = vld [vmem:[%s0 + $0x1e0] sm:$0xff]
  %v93 = vld [vmem:[%s0 + $0x1e8] sm:$0xf]
  %v94 = vld [vmem:[%s0 + $0x1ec] sm:$0xff]
  %v95 = vld [vmem:[%s0 + $0x1f4] sm:$0xf]
  %v96 = vld [vmem:[%s0 + $0x1f8] sm:$0xff]
  %v97 = vld [vmem:[%s0 + $0x200] sm:$0xf]
  %v98 = vld [vmem:[%s0 + $0x204] sm:$0xff]
  %v99 = vld [vmem:[%s0 + $0x20c] sm:$0xf]
  %v100 = vld [vmem:[%s0 + $0x210] sm:$0xff]
  %v101 = vld [vmem:[%s0 + $0x218] sm:$0xf]
  %v102 = vld [vmem:[%s0 + $0x21c] sm:$0xff]
  %v103 = vld [vmem:[%s0 + $0x224] sm:$0xf]
  %v104 = vld [vmem:[%s0 + $0x228] sm:$0xff]
  %v105 = vld [vmem:[%s0 + $0x230] sm:$0xf]
  %v106 = vld [vmem:[%s0 + $0x234] sm:$0xff]
  %v107 = vld [vmem:[%s0 + $0x23c] sm:$0xf]
  %v108 = vld [vmem:[%s0 + $0x240] sm:$0xff]
  %v109 = vld [vmem:[%s0 + $0x248] sm:$0xf]
  %v110 = vld [vmem:[%s0 + $0x24c] sm:$0xff]
  %v111 = vld [vmem:[%s0 + $0x254] sm:$0xf]
  %v112 = vld [vmem:[%s0 + $0x258] sm:$0xff]
  %v113 = vld [vmem:[%s0 + $0x260] sm:$0xf]
  %v114 = vld [vmem:[%s0 + $0x264] sm:$0xff]
  %v115 = vld [vmem:[%s0 + $0x26c] sm:$0xf]
  %v116 = vld [vmem:[%s0 + $0x270] sm:$0xff]
  %v117 = vld [vmem:[%s0 + $0x278] sm:$0xf]
  %v118 = vld [vmem:[%s0 + $0x27c] sm:$0xff]
  %v119 = vld [vmem:[%s0 + $0x284] sm:$0xf]
  %v120 = vld [vmem:[%s0 + $0x288] sm:$0xff]
  %v121 = vld [vmem:[%s0 + $0x290] sm:$0xf]
  %v122 = vld [vmem:[%s0 + $0x294] sm:$0xff]
  %v123 = vld [vmem:[%s0 + $0x29c] sm:$0xf]
  %v124 = vld [vmem:[%s0 + $0x2a0] sm:$0xff]
  %v125 = vld [vmem:[%s0 + $0x2a8] sm:$0xf]
  %v126 = vld [vmem:[%s0 + $0x2ac] sm:$0xff]
  %v127 = vld [vmem:[%s0 + $0x2b4] sm:$0xf]
  %v128 = vld [vmem:[%s0 + $0x2b8] sm:$0xff]
  %v129 = vld [vmem:[%s0 + $0x2c0] sm:$0xf]
  %v130 = vld [vmem:[%s0 + $0x2c4] sm:$0xff]
  %v131 = vld [vmem:[%s0 + $0x2cc] sm:$0xf]
  %v132 = vld [vmem:[%s0 + $0x2d0] sm:$0xff]
  %v133 = vld [vmem:[%s0 + $0x2d8] sm:$0xf]
  %v134 = vld [vmem:[%s0 + $0x2dc] sm:$0xff]
  %v135 = vld [vmem:[%s0 + $0x2e4] sm:$0xf]
  %v136 = vld [vmem:[%s0 + $0x2e8] sm:$0xff]
  %v137 = vld [vmem:[%s0 + $0x2f0] sm:$0xf]
  %v138 = vld [vmem:[%s0 + $0x2f4] sm:$0xff]
  %v139 = vld [vmem:[%s0 + $0x2fc] sm:$0xf]
  %v140 = vld [vmem:[%s1] sm:$0xf]
  %v141 = vld [vmem:[%s1 + $0x4] sm:$0xf]
  %v142 = vld [vmem:[%s1 + $0x8] sm:$0xf]
  %v143 = vld [vmem:[%s1 + $0xc] sm:$0xf]
  %v144 = vld [vmem:[%s1 + $0x10] sm:$0xf]
  %v145 = vld [vmem:[%s1 + $0x14] sm:$0xf]
  %v146 = vld [vmem:[%s1 + $0x18] sm:$0xf]
  %v147 = vld [vmem:[%s1 + $0x1c] sm:$0xf]
  %v148 = vld [vmem:[%s1 + $0x20] sm:$0xf]
  %v149 = vld [vmem:[%s1 + $0x24] sm:$0xf]
  %v150 = vld [vmem:[%s1 + $0x28] sm:$0xf]
  %v151 = vld [vmem:[%s1 + $0x2c] sm:$0xf]
  %v152 = vld [vmem:[%s1 + $0x30] sm:$0xf]
  %v153 = vld [vmem:[%s1 + $0x34] sm:$0xf]
  %v154 = vld [vmem:[%s1 + $0x38] sm:$0xf]
  %v155 = vld [vmem:[%s1 + $0x3c] sm:$0xf]
  %v156 = vld [vmem:[%s1 + $0x40] sm:$0xf]
  %v157 = vld [vmem:[%s1 + $0x44] sm:$0xf]
  %v158 = vld [vmem:[%s1 + $0x48] sm:$0xf]
  %v159 = vld [vmem:[%s1 + $0x4c] sm:$0xf]
  %v160 = vld [vmem:[%s1 + $0x50] sm:$0xf]
  %v161 = vld [vmem:[%s1 + $0x54] sm:$0xf]
  %v162 = vld [vmem:[%s1 + $0x58] sm:$0xf]
  %v163 = vld [vmem:[%s1 + $0x5c] sm:$0xf]
  %v164 = vld [vmem:[%s1 + $0x60] sm:$0xf]
  %v165 = vld [vmem:[%s1 + $0x64] sm:$0xf]
  %v166 = vld [vmem:[%s1 + $0x68] sm:$0xf]
  %v167 = vld [vmem:[%s1 + $0x6c] sm:$0xf]
  %v168 = vld [vmem:[%s1 + $0x70] sm:$0xf]
  %v169 = vld [vmem:[%s1 + $0x74] sm:$0xf]
  %v170 = vld [vmem:[%s1 + $0x78] sm:$0xf]
  %v171 = vld [vmem:[%s1 + $0x7c] sm:$0xf]
  %v172 = vld [vmem:[%s1 + $0x80] sm:$0xf]
  %v173 = vld [vmem:[%s1 + $0x84] sm:$0xf]
  %v174 = vld [vmem:[%s1 + $0x88] sm:$0xf]
  %v175 = vld [vmem:[%s1 + $0x8c] sm:$0xf]
  %v304 = vunpack.c.l.b16 %v12
  %v305 = vunpack.c.h.b16 %v12
  %v306 = vunpack.c.l.b16 %v13
  %v307 = vunpack.c.l.b16 %v14
  %v308 = vunpack.c.h.b16 %v14
  %v309 = vunpack.c.l.b16 %v15
  %v310 = vunpack.c.l.b16 %v16
  %v311 = vunpack.c.h.b16 %v16
  %v312 = vunpack.c.l.b16 %v17
  %v313 = vunpack.c.l.b16 %v18
  %v314 = vunpack.c.h.b16 %v18
  %v315 = vunpack.c.l.b16 %v19
  %v316 = vunpack.c.l.b16 %v20
  %v317 = vunpack.c.h.b16 %v20
  %v318 = vunpack.c.l.b16 %v21
  %v319 = vunpack.c.l.b16 %v22
  %v320 = vunpack.c.h.b16 %v22
  %v321 = vunpack.c.l.b16 %v23
  %v322 = vunpack.c.l.b16 %v24
  %v323 = vunpack.c.h.b16 %v24
  %v324 = vunpack.c.l.b16 %v25
  %v325 = vunpack.c.l.b16 %v26
  %v326 = vunpack.c.h.b16 %v26
  %v327 = vunpack.c.l.b16 %v27
  %v328 = vunpack.c.l.b16 %v28
  %v329 = vunpack.c.h.b16 %v28
  %v330 = vunpack.c.l.b16 %v29
  %v331 = vunpack.c.l.b16 %v30
  %v332 = vunpack.c.h.b16 %v30
  %v333 = vunpack.c.l.b16 %v31
  %v334 = vunpack.c.l.b16 %v32
  %v335 = vunpack.c.h.b16 %v32
  %v336 = vunpack.c.l.b16 %v33
  %v337 = vunpack.c.l.b16 %v34
  %v338 = vunpack.c.h.b16 %v34
  %v339 = vunpack.c.l.b16 %v35
  %v340 = vunpack.c.l.b16 %v36
  %v341 = vunpack.c.h.b16 %v36
  %v342 = vunpack.c.l.b16 %v37
  %v343 = vunpack.c.l.b16 %v38
  %v344 = vunpack.c.h.b16 %v38
  %v345 = vunpack.c.l.b16 %v39
  %v346 = vunpack.c.l.b16 %v40
  %v347 = vunpack.c.h.b16 %v40
  %v348 = vunpack.c.l.b16 %v41
  %v349 = vunpack.c.l.b16 %v42
  %v350 = vunpack.c.h.b16 %v42
  %v351 = vunpack.c.l.b16 %v43
  %v352 = vunpack.c.l.b16 %v44
  %v353 = vunpack.c.h.b16 %v44
  %v354 = vunpack.c.l.b16 %v45
  %v355 = vunpack.c.l.b16 %v46
  %v356 = vunpack.c.h.b16 %v46
  %v357 = vunpack.c.l.b16 %v47
  %v358 = vunpack.c.l.b16 %v48
  %v359 = vunpack.c.h.b16 %v48
  %v360 = vunpack.c.l.b16 %v49
  %v361 = vunpack.c.l.b16 %v50
  %v362 = vunpack.c.h.b16 %v50
  %v363 = vunpack.c.l.b16 %v51
  %v364 = vunpack.c.l.b16 %v52
  %v365 = vunpack.c.h.b16 %v52
  %v366 = vunpack.c.l.b16 %v53
  %v367 = vunpack.c.l.b16 %v54
  %v368 = vunpack.c.h.b16 %v54
  %v369 = vunpack.c.l.b16 %v55
  %v370 = vunpack.c.l.b16 %v56
  %v371 = vunpack.c.h.b16 %v56
  %v372 = vunpack.c.l.b16 %v57
  %v373 = vunpack.c.l.b16 %v58
  %v374 = vunpack.c.h.b16 %v58
  %v375 = vunpack.c.l.b16 %v59
  %v376 = vunpack.c.l.b16 %v60
  %v377 = vunpack.c.h.b16 %v60
  %v378 = vunpack.c.l.b16 %v61
  %v379 = vunpack.c.l.b16 %v62
  %v380 = vunpack.c.h.b16 %v62
  %v381 = vunpack.c.l.b16 %v63
  %v382 = vunpack.c.l.b16 %v64
  %v383 = vunpack.c.h.b16 %v64
  %v384 = vunpack.c.l.b16 %v65
  %v385 = vunpack.c.l.b16 %v66
  %v386 = vunpack.c.h.b16 %v66
  %v387 = vunpack.c.l.b16 %v67
  %v388 = vunpack.c.l.b16 %v68
  %v389 = vunpack.c.h.b16 %v68
  %v390 = vunpack.c.l.b16 %v69
  %v391 = vunpack.c.l.b16 %v70
  %v392 = vunpack.c.h.b16 %v70
  %v393 = vunpack.c.l.b16 %v71
  %v394 = vunpack.c.l.b16 %v72
  %v395 = vunpack.c.h.b16 %v72
  %v396 = vunpack.c.l.b16 %v73
  %v397 = vunpack.c.l.b16 %v74
  %v398 = vunpack.c.h.b16 %v74
  %v399 = vunpack.c.l.b16 %v75
  %v400 = vunpack.c.l.b16 %v76
  %v401 = vunpack.c.h.b16 %v76
  %v402 = vunpack.c.l.b16 %v77
  %v403 = vunpack.c.l.b16 %v78
  %v404 = vunpack.c.h.b16 %v78
  %v405 = vunpack.c.l.b16 %v79
  %v406 = vunpack.c.l.b16 %v80
  %v407 = vunpack.c.h.b16 %v80
  %v408 = vunpack.c.l.b16 %v81
  %v409 = vunpack.c.l.b16 %v82
  %v410 = vunpack.c.h.b16 %v82
  %v411 = vunpack.c.l.b16 %v83
  %v412 = vunpack.c.l.b16 %v84
  %v413 = vunpack.c.h.b16 %v84
  %v414 = vunpack.c.l.b16 %v85
  %v415 = vunpack.c.l.b16 %v86
  %v416 = vunpack.c.h.b16 %v86
  %v417 = vunpack.c.l.b16 %v87
  %v418 = vunpack.c.l.b16 %v88
  %v419 = vunpack.c.h.b16 %v88
  %v420 = vunpack.c.l.b16 %v89
  %v421 = vunpack.c.l.b16 %v90
  %v422 = vunpack.c.h.b16 %v90
  %v423 = vunpack.c.l.b16 %v91
  %v424 = vunpack.c.l.b16 %v92
  %v425 = vunpack.c.h.b16 %v92
  %v426 = vunpack.c.l.b16 %v93
  %v427 = vunpack.c.l.b16 %v94
  %v428 = vunpack.c.h.b16 %v94
  %v429 = vunpack.c.l.b16 %v95
  %v430 = vunpack.c.l.b16 %v96
  %v431 = vunpack.c.h.b16 %v96
  %v432 = vunpack.c.l.b16 %v97
  %v433 = vunpack.c.l.b16 %v98
  %v434 = vunpack.c.h.b16 %v98
  %v435 = vunpack.c.l.b16 %v99
  %v436 = vunpack.c.l.b16 %v100
  %v437 = vunpack.c.h.b16 %v100
  %v438 = vunpack.c.l.b16 %v101
  %v439 = vunpack.c.l.b16 %v102
  %v440 = vunpack.c.h.b16 %v102
  %v441 = vunpack.c.l.b16 %v103
  %v442 = vunpack.c.l.b16 %v104
  %v443 = vunpack.c.h.b16 %v104
  %v444 = vunpack.c.l.b16 %v105
  %v445 = vunpack.c.l.b16 %v106
  %v446 = vunpack.c.h.b16 %v106
  %v447 = vunpack.c.l.b16 %v107
  %v448 = vunpack.c.l.b16 %v108
  %v449 = vunpack.c.h.b16 %v108
  %v450 = vunpack.c.l.b16 %v109
  %v451 = vunpack.c.l.b16 %v110
  %v452 = vunpack.c.h.b16 %v110
  %v453 = vunpack.c.l.b16 %v111
  %v454 = vunpack.c.l.b16 %v112
  %v455 = vunpack.c.h.b16 %v112
  %v456 = vunpack.c.l.b16 %v113
  %v457 = vunpack.c.l.b16 %v114
  %v458 = vunpack.c.h.b16 %v114
  %v459 = vunpack.c.l.b16 %v115
  %v460 = vunpack.c.l.b16 %v116
  %v461 = vunpack.c.h.b16 %v116
  %v462 = vunpack.c.l.b16 %v117
  %v463 = vunpack.c.l.b16 %v118
  %v464 = vunpack.c.h.b16 %v118
  %v465 = vunpack.c.l.b16 %v119
  %v466 = vunpack.c.l.b16 %v120
  %v467 = vunpack.c.h.b16 %v120
  %v468 = vunpack.c.l.b16 %v121
  %v469 = vunpack.c.l.b16 %v122
  %v470 = vunpack.c.h.b16 %v122
  %v471 = vunpack.c.l.b16 %v123
  %v472 = vunpack.c.l.b16 %v124
  %v473 = vunpack.c.h.b16 %v124
  %v474 = vunpack.c.l.b16 %v125
  %v475 = vunpack.c.l.b16 %v126
  %v476 = vunpack.c.h.b16 %v126
  %v477 = vunpack.c.l.b16 %v127
  %v478 = vunpack.c.l.b16 %v128
  %v479 = vunpack.c.h.b16 %v128
  %v480 = vunpack.c.l.b16 %v129
  %v481 = vunpack.c.l.b16 %v130
  %v482 = vunpack.c.h.b16 %v130
  %v483 = vunpack.c.l.b16 %v131
  %v484 = vunpack.c.l.b16 %v132
  %v485 = vunpack.c.h.b16 %v132
  %v486 = vunpack.c.l.b16 %v133
  %v487 = vunpack.c.l.b16 %v134
  %v488 = vunpack.c.h.b16 %v134
  %v489 = vunpack.c.l.b16 %v135
  %v490 = vunpack.c.l.b16 %v136
  %v491 = vunpack.c.h.b16 %v136
  %v492 = vunpack.c.l.b16 %v137
  %v493 = vunpack.c.l.b16 %v138
  %v494 = vunpack.c.h.b16 %v138
  %v495 = vunpack.c.l.b16 %v139
  %v496 = vpack.c.b16 %v307, %v304
  %v497 = vpack.c.b16 %v308, %v305
  %v498 = vpack.c.b16 %v309, %v306
  %v499 = vpack.c.b16 %v313, %v310
  %v500 = vpack.c.b16 %v314, %v311
  %v501 = vpack.c.b16 %v315, %v312
  %v502 = vpack.c.b16 %v319, %v316
  %v503 = vpack.c.b16 %v320, %v317
  %v504 = vpack.c.b16 %v321, %v318
  %v505 = vpack.c.b16 %v325, %v322
  %v506 = vpack.c.b16 %v326, %v323
  %v507 = vpack.c.b16 %v327, %v324
  %v508 = vpack.c.b16 %v331, %v328
  %v509 = vpack.c.b16 %v332, %v329
  %v510 = vpack.c.b16 %v333, %v330
  %v511 = vpack.c.b16 %v337, %v334
  %v512 = vpack.c.b16 %v338, %v335
  %v513 = vpack.c.b16 %v339, %v336
  %v514 = vpack.c.b16 %v343, %v340
  %v515 = vpack.c.b16 %v344, %v341
  %v516 = vpack.c.b16 %v345, %v342
  %v517 = vpack.c.b16 %v349, %v346
  %v518 = vpack.c.b16 %v350, %v347
  %v519 = vpack.c.b16 %v351, %v348
  %v520 = vpack.c.b16 %v355, %v352
  %v521 = vpack.c.b16 %v356, %v353
  %v522 = vpack.c.b16 %v357, %v354
  %v523 = vpack.c.b16 %v361, %v358
  %v524 = vpack.c.b16 %v362, %v359
  %v525 = vpack.c.b16 %v363, %v360
  %v526 = vpack.c.b16 %v367, %v364
  %v527 = vpack.c.b16 %v368, %v365
  %v528 = vpack.c.b16 %v369, %v366
  %v529 = vpack.c.b16 %v373, %v370
  %v530 = vpack.c.b16 %v374, %v371
  %v531 = vpack.c.b16 %v375, %v372
  %v532 = vpack.c.b16 %v379, %v376
  %v533 = vpack.c.b16 %v380, %v377
  %v534 = vpack.c.b16 %v381, %v378
  %v535 = vpack.c.b16 %v385, %v382
  %v536 = vpack.c.b16 %v386, %v383
  %v537 = vpack.c.b16 %v387, %v384
  %v538 = vpack.c.b16 %v391, %v388
  %v539 = vpack.c.b16 %v392, %v389
  %v540 = vpack.c.b16 %v393, %v390
  %v541 = vpack.c.b16 %v397, %v394
  %v542 = vpack.c.b16 %v398, %v395
  %v543 = vpack.c.b16 %v399, %v396
  %v544 = vpack.c.b16 %v403, %v400
  %v545 = vpack.c.b16 %v404, %v401
  %v546 = vpack.c.b16 %v405, %v402
  %v547 = vpack.c.b16 %v409, %v406
  %v548 = vpack.c.b16 %v410, %v407
  %v549 = vpack.c.b16 %v411, %v408
  %v550 = vpack.c.b16 %v415, %v412
  %v551 = vpack.c.b16 %v416, %v413
  %v552 = vpack.c.b16 %v417, %v414
  %v553 = vpack.c.b16 %v421, %v418
  %v554 = vpack.c.b16 %v422, %v419
  %v555 = vpack.c.b16 %v423, %v420
  %v556 = vpack.c.b16 %v427, %v424
  %v557 = vpack.c.b16 %v428, %v425
  %v558 = vpack.c.b16 %v429, %v426
  %v559 = vpack.c.b16 %v433, %v430
  %v560 = vpack.c.b16 %v434, %v431
  %v561 = vpack.c.b16 %v435, %v432
  %v562 = vpack.c.b16 %v439, %v436
  %v563 = vpack.c.b16 %v440, %v437
  %v564 = vpack.c.b16 %v441, %v438
  %v565 = vpack.c.b16 %v445, %v442
  %v566 = vpack.c.b16 %v446, %v443
  %v567 = vpack.c.b16 %v447, %v444
  %v568 = vpack.c.b16 %v451, %v448
  %v569 = vpack.c.b16 %v452, %v449
  %v570 = vpack.c.b16 %v453, %v450
  %v571 = vpack.c.b16 %v457, %v454
  %v572 = vpack.c.b16 %v458, %v455
  %v573 = vpack.c.b16 %v459, %v456
  %v574 = vpack.c.b16 %v463, %v460
  %v575 = vpack.c.b16 %v464, %v461
  %v576 = vpack.c.b16 %v465, %v462
  %v577 = vpack.c.b16 %v469, %v466
  %v578 = vpack.c.b16 %v470, %v467
  %v579 = vpack.c.b16 %v471, %v468
  %v580 = vpack.c.b16 %v475, %v472
  %v581 = vpack.c.b16 %v476, %v473
  %v582 = vpack.c.b16 %v477, %v474
  %v583 = vpack.c.b16 %v481, %v478
  %v584 = vpack.c.b16 %v482, %v479
  %v585 = vpack.c.b16 %v483, %v480
  %v586 = vpack.c.b16 %v487, %v484
  %v587 = vpack.c.b16 %v488, %v485
  %v588 = vpack.c.b16 %v489, %v486
  %v589 = vpack.c.b16 %v493, %v490
  %v590 = vpack.c.b16 %v494, %v491
  %v591 = vpack.c.b16 %v495, %v492
  %v692 = vunpack.c.l.b16 %v140
  %v693 = vunpack.c.l.b16 %v141
  %v694 = vunpack.c.l.b16 %v142
  %v695 = vunpack.c.l.b16 %v143
  %v696 = vunpack.c.l.b16 %v144
  %v697 = vunpack.c.l.b16 %v145
  %v698 = vunpack.c.l.b16 %v146
  %v699 = vunpack.c.l.b16 %v147
  %v700 = vunpack.c.l.b16 %v148
  %v701 = vunpack.c.l.b16 %v149
  %v702 = vunpack.c.l.b16 %v150
  %v703 = vunpack.c.l.b16 %v151
  %v704 = vunpack.c.l.b16 %v152
  %v705 = vunpack.c.l.b16 %v153
  %v706 = vunpack.c.l.b16 %v154
  %v707 = vunpack.c.l.b16 %v155
  %v708 = vunpack.c.l.b16 %v156
  %v709 = vunpack.c.l.b16 %v157
  %v710 = vunpack.c.l.b16 %v158
  %v711 = vunpack.c.l.b16 %v159
  %v712 = vunpack.c.l.b16 %v160
  %v713 = vunpack.c.l.b16 %v161
  %v714 = vunpack.c.l.b16 %v162
  %v715 = vunpack.c.l.b16 %v163
  %v716 = vunpack.c.l.b16 %v164
  %v717 = vunpack.c.l.b16 %v165
  %v718 = vunpack.c.l.b16 %v166
  %v719 = vunpack.c.l.b16 %v167
  %v720 = vunpack.c.l.b16 %v168
  %v721 = vunpack.c.l.b16 %v169
  %v722 = vunpack.c.l.b16 %v170
  %v723 = vunpack.c.l.b16 %v171
  %v724 = vunpack.c.l.b16 %v172
  %v725 = vunpack.c.l.b16 %v173
  %v726 = vunpack.c.l.b16 %v174
  %v727 = vunpack.c.l.b16 %v175
  %v728 = vpack.c.b16 %v693, %v692
  %v729 = vpack.c.b16 %v695, %v694
  %v730 = vpack.c.b16 %v697, %v696
  %v731 = vpack.c.b16 %v699, %v698
  %v732 = vpack.c.b16 %v701, %v700
  %v733 = vpack.c.b16 %v703, %v702
  %v734 = vpack.c.b16 %v705, %v704
  %v735 = vpack.c.b16 %v707, %v706
  %v736 = vpack.c.b16 %v709, %v708
  %v737 = vpack.c.b16 %v711, %v710
  %v738 = vpack.c.b16 %v713, %v712
  %v739 = vpack.c.b16 %v715, %v714
  %v740 = vpack.c.b16 %v717, %v716
  %v741 = vpack.c.b16 %v719, %v718
  %v742 = vpack.c.b16 %v721, %v720
  %v743 = vpack.c.b16 %v723, %v722
  %v744 = vpack.c.b16 %v725, %v724
  %v745 = vpack.c.b16 %v727, %v726
  %vm764 = vcmask 261120
  %v766 = vsel %vm764, %v498, 0
  %v769 = vsel %vm764, %v501, 0
  %v772 = vsel %vm764, %v504, 0
  %v775 = vsel %vm764, %v507, 0
  %v778 = vsel %vm764, %v510, 0
  %v781 = vsel %vm764, %v513, 0
  %v784 = vsel %vm764, %v516, 0
  %v787 = vsel %vm764, %v519, 0
  %v790 = vsel %vm764, %v522, 0
  %v793 = vsel %vm764, %v525, 0
  %v796 = vsel %vm764, %v528, 0
  %v799 = vsel %vm764, %v531, 0
  %v802 = vsel %vm764, %v534, 0
  %v805 = vsel %vm764, %v537, 0
  %v808 = vsel %vm764, %v540, 0
  %v811 = vsel %vm764, %v543, 0
  %v814 = vsel %vm764, %v546, 0
  %v817 = vsel %vm764, %v549, 0
  %v820 = vsel %vm764, %v552, 0
  %v823 = vsel %vm764, %v555, 0
  %v826 = vsel %vm764, %v558, 0
  %v829 = vsel %vm764, %v561, 0
  %v832 = vsel %vm764, %v564, 0
  %v835 = vsel %vm764, %v567, 0
  %v838 = vsel %vm764, %v570, 0
  %v841 = vsel %vm764, %v573, 0
  %v844 = vsel %vm764, %v576, 0
  %v847 = vsel %vm764, %v579, 0
  %v850 = vsel %vm764, %v582, 0
  %v853 = vsel %vm764, %v585, 0
  %v856 = vsel %vm764, %v588, 0
  %v859 = vsel %vm764, %v591, 0
  %861 = vmatpush.bf16.msra.mxu0 %v735
  %862 = vmatpush.bf16.msra.mxu0 %v734
  %863 = vmatpush.bf16.msra.mxu0 %v733
  %864 = vmatpush.bf16.msra.mxu0 %v732
  %865 = vmatpush.bf16.msra.mxu0 %v731
  %866 = vmatpush.bf16.msra.mxu0 %v730
  %867 = vmatpush.bf16.msra.mxu0 %v729
  %868 = vmatpush.bf16.msra.mxu0 %v728
  %869 = vmatmul.bf16.gmra.mxu0 %v496
  %v870 = vpop.f32.mrf.mxu0
  %v871 = vadd.f32 0.0, %v870
  %v872 = vpop.f32.mrf.mxu0
  %v873 = vadd.f32 0.0, %v872
  %874 = vmatmul.bf16.gmra.mxu0 %v499
  %v875 = vpop.f32.mrf.mxu0
  %v876 = vadd.f32 0.0, %v875
  %v877 = vpop.f32.mrf.mxu0
  %v878 = vadd.f32 0.0, %v877
  %879 = vmatmul.bf16.gmra.mxu0 %v502
  %v880 = vpop.f32.mrf.mxu0
  %v881 = vadd.f32 0.0, %v880
  %v882 = vpop.f32.mrf.mxu0
  %v883 = vadd.f32 0.0, %v882
  %884 = vmatmul.bf16.gmra.mxu0 %v505
  %v885 = vpop.f32.mrf.mxu0
  %v886 = vadd.f32 0.0, %v885
  %v887 = vpop.f32.mrf.mxu0
  %v888 = vadd.f32 0.0, %v887
  %889 = vmatmul.bf16.gmra.mxu0 %v508
  %v890 = vpop.f32.mrf.mxu0
  %v891 = vadd.f32 0.0, %v890
  %v892 = vpop.f32.mrf.mxu0
  %v893 = vadd.f32 0.0, %v892
  %894 = vmatmul.bf16.gmra.mxu0 %v511
  %v895 = vpop.f32.mrf.mxu0
  %v896 = vadd.f32 0.0, %v895
  %v897 = vpop.f32.mrf.mxu0
  %v898 = vadd.f32 0.0, %v897
  %899 = vmatmul.bf16.gmra.mxu0 %v514
  %v900 = vpop.f32.mrf.mxu0
  %v901 = vadd.f32 0.0, %v900
  %v902 = vpop.f32.mrf.mxu0
  %v903 = vadd.f32 0.0, %v902
  %904 = vmatmul.bf16.gmra.mxu0 %v517
  %v905 = vpop.f32.mrf.mxu0
  %v906 = vadd.f32 0.0, %v905
  %v907 = vpop.f32.mrf.mxu0
  %v908 = vadd.f32 0.0, %v907
  %909 = vmatmul.bf16.gmra.mxu0 %v520
  %v910 = vpop.f32.mrf.mxu0
  %v911 = vadd.f32 0.0, %v910
  %v912 = vpop.f32.mrf.mxu0
  %v913 = vadd.f32 0.0, %v912
  %914 = vmatmul.bf16.gmra.mxu0 %v523
  %v915 = vpop.f32.mrf.mxu0
  %v916 = vadd.f32 0.0, %v915
  %v917 = vpop.f32.mrf.mxu0
  %v918 = vadd.f32 0.0, %v917
  %919 = vmatmul.bf16.gmra.mxu0 %v526
  %v920 = vpop.f32.mrf.mxu0
  %v921 = vadd.f32 0.0, %v920
  %v922 = vpop.f32.mrf.mxu0
  %v923 = vadd.f32 0.0, %v922
  %924 = vmatmul.bf16.gmra.mxu0 %v529
  %v925 = vpop.f32.mrf.mxu0
  %v926 = vadd.f32 0.0, %v925
  %v927 = vpop.f32.mrf.mxu0
  %v928 = vadd.f32 0.0, %v927
  %929 = vmatmul.bf16.gmra.mxu0 %v532
  %v930 = vpop.f32.mrf.mxu0
  %v931 = vadd.f32 0.0, %v930
  %v932 = vpop.f32.mrf.mxu0
  %v933 = vadd.f32 0.0, %v932
  %934 = vmatmul.bf16.gmra.mxu0 %v535
  %v935 = vpop.f32.mrf.mxu0
  %v936 = vadd.f32 0.0, %v935
  %v937 = vpop.f32.mrf.mxu0
  %v938 = vadd.f32 0.0, %v937
  %939 = vmatmul.bf16.gmra.mxu0 %v538
  %v940 = vpop.f32.mrf.mxu0
  %v941 = vadd.f32 0.0, %v940
  %v942 = vpop.f32.mrf.mxu0
  %v943 = vadd.f32 0.0, %v942
  %944 = vmatmul.bf16.gmra.mxu0 %v541
  %v945 = vpop.f32.mrf.mxu0
  %v946 = vadd.f32 0.0, %v945
  %v947 = vpop.f32.mrf.mxu0
  %v948 = vadd.f32 0.0, %v947
  %949 = vmatmul.bf16.gmra.mxu0 %v544
  %v950 = vpop.f32.mrf.mxu0
  %v951 = vadd.f32 0.0, %v950
  %v952 = vpop.f32.mrf.mxu0
  %v953 = vadd.f32 0.0, %v952
  %954 = vmatmul.bf16.gmra.mxu0 %v547
  %v955 = vpop.f32.mrf.mxu0
  %v956 = vadd.f32 0.0, %v955
  %v957 = vpop.f32.mrf.mxu0
  %v958 = vadd.f32 0.0, %v957
  %959 = vmatmul.bf16.gmra.mxu0 %v550
  %v960 = vpop.f32.mrf.mxu0
  %v961 = vadd.f32 0.0, %v960
  %v962 = vpop.f32.mrf.mxu0
  %v963 = vadd.f32 0.0, %v962
  %964 = vmatmul.bf16.gmra.mxu0 %v553
  %v965 = vpop.f32.mrf.mxu0
  %v966 = vadd.f32 0.0, %v965
  %v967 = vpop.f32.mrf.mxu0
  %v968 = vadd.f32 0.0, %v967
  %969 = vmatmul.bf16.gmra.mxu0 %v556
  %v970 = vpop.f32.mrf.mxu0
  %v971 = vadd.f32 0.0, %v970
  %v972 = vpop.f32.mrf.mxu0
  %v973 = vadd.f32 0.0, %v972
  %974 = vmatmul.bf16.gmra.mxu0 %v559
  %v975 = vpop.f32.mrf.mxu0
  %v976 = vadd.f32 0.0, %v975
  %v977 = vpop.f32.mrf.mxu0
  %v978 = vadd.f32 0.0, %v977
  %979 = vmatmul.bf16.gmra.mxu0 %v562
  %v980 = vpop.f32.mrf.mxu0
  %v981 = vadd.f32 0.0, %v980
  %v982 = vpop.f32.mrf.mxu0
  %v983 = vadd.f32 0.0, %v982
  %984 = vmatmul.bf16.gmra.mxu0 %v565
  %v985 = vpop.f32.mrf.mxu0
  %v986 = vadd.f32 0.0, %v985
  %v987 = vpop.f32.mrf.mxu0
  %v988 = vadd.f32 0.0, %v987
  %989 = vmatmul.bf16.gmra.mxu0 %v568
  %v990 = vpop.f32.mrf.mxu0
  %v991 = vadd.f32 0.0, %v990
  %v992 = vpop.f32.mrf.mxu0
  %v993 = vadd.f32 0.0, %v992
  %994 = vmatmul.bf16.gmra.mxu0 %v571
  %v995 = vpop.f32.mrf.mxu0
  %v996 = vadd.f32 0.0, %v995
  %v997 = vpop.f32.mrf.mxu0
  %v998 = vadd.f32 0.0, %v997
  %999 = vmatmul.bf16.gmra.mxu0 %v574
  %v1000 = vpop.f32.mrf.mxu0
  %v1001 = vadd.f32 0.0, %v1000
  %v1002 = vpop.f32.mrf.mxu0
  %v1003 = vadd.f32 0.0, %v1002
  %1004 = vmatmul.bf16.gmra.mxu0 %v577
  %v1005 = vpop.f32.mrf.mxu0
  %v1006 = vadd.f32 0.0, %v1005
  %v1007 = vpop.f32.mrf.mxu0
  %v1008 = vadd.f32 0.0, %v1007
  %1009 = vmatmul.bf16.gmra.mxu0 %v580
  %v1010 = vpop.f32.mrf.mxu0
  %v1011 = vadd.f32 0.0, %v1010
  %v1012 = vpop.f32.mrf.mxu0
  %v1013 = vadd.f32 0.0, %v1012
  %1014 = vmatmul.bf16.gmra.mxu0 %v583
  %v1015 = vpop.f32.mrf.mxu0
  %v1016 = vadd.f32 0.0, %v1015
  %v1017 = vpop.f32.mrf.mxu0
  %v1018 = vadd.f32 0.0, %v1017
  %1019 = vmatmul.bf16.gmra.mxu0 %v586
  %v1020 = vpop.f32.mrf.mxu0
  %v1021 = vadd.f32 0.0, %v1020
  %v1022 = vpop.f32.mrf.mxu0
  %v1023 = vadd.f32 0.0, %v1022
  %1024 = vmatmul.bf16.gmra.mxu0 %v589
  %v1025 = vpop.f32.mrf.mxu0
  %v1026 = vadd.f32 0.0, %v1025
  %v1027 = vpop.f32.mrf.mxu0
  %v1028 = vadd.f32 0.0, %v1027
  %1029 = vdwg.mxu0
  %1030 = vmatpush.bf16.msra.mxu0 %v743
  %1031 = vmatpush.bf16.msra.mxu0 %v742
  %1032 = vmatpush.bf16.msra.mxu0 %v741
  %1033 = vmatpush.bf16.msra.mxu0 %v740
  %1034 = vmatpush.bf16.msra.mxu0 %v739
  %1035 = vmatpush.bf16.msra.mxu0 %v738
  %1036 = vmatpush.bf16.msra.mxu0 %v737
  %1037 = vmatpush.bf16.msra.mxu0 %v736
  %1038 = vmatmul.bf16.gmra.mxu0 %v497
  %v1039 = vpop.f32.mrf.mxu0
  %v1040 = vadd.f32 %v871, %v1039
  %v1041 = vpop.f32.mrf.mxu0
  %v1042 = vadd.f32 %v873, %v1041
  %1043 = vmatmul.bf16.gmra.mxu0 %v500
  %v1044 = vpop.f32.mrf.mxu0
  %v1045 = vadd.f32 %v876, %v1044
  %v1046 = vpop.f32.mrf.mxu0
  %v1047 = vadd.f32 %v878, %v1046
  %1048 = vmatmul.bf16.gmra.mxu0 %v503
  %v1049 = vpop.f32.mrf.mxu0
  %v1050 = vadd.f32 %v881, %v1049
  %v1051 = vpop.f32.mrf.mxu0
  %v1052 = vadd.f32 %v883, %v1051
  %1053 = vmatmul.bf16.gmra.mxu0 %v506
  %v1054 = vpop.f32.mrf.mxu0
  %v1055 = vadd.f32 %v886, %v1054
  %v1056 = vpop.f32.mrf.mxu0
  %v1057 = vadd.f32 %v888, %v1056
  %1058 = vmatmul.bf16.gmra.mxu0 %v509
  %v1059 = vpop.f32.mrf.mxu0
  %v1060 = vadd.f32 %v891, %v1059
  %v1061 = vpop.f32.mrf.mxu0
  %v1062 = vadd.f32 %v893, %v1061
  %1063 = vmatmul.bf16.gmra.mxu0 %v512
  %v1064 = vpop.f32.mrf.mxu0
  %v1065 = vadd.f32 %v896, %v1064
  %v1066 = vpop.f32.mrf.mxu0
  %v1067 = vadd.f32 %v898, %v1066
  %1068 = vmatmul.bf16.gmra.mxu0 %v515
  %v1069 = vpop.f32.mrf.mxu0
  %v1070 = vadd.f32 %v901, %v1069
  %v1071 = vpop.f32.mrf.mxu0
  %v1072 = vadd.f32 %v903, %v1071
  %1073 = vmatmul.bf16.gmra.mxu0 %v518
  %v1074 = vpop.f32.mrf.mxu0
  %v1075 = vadd.f32 %v906, %v1074
  %v1076 = vpop.f32.mrf.mxu0
  %v1077 = vadd.f32 %v908, %v1076
  %1078 = vmatmul.bf16.gmra.mxu0 %v521
  %v1079 = vpop.f32.mrf.mxu0
  %v1080 = vadd.f32 %v911, %v1079
  %v1081 = vpop.f32.mrf.mxu0
  %v1082 = vadd.f32 %v913, %v1081
  %1083 = vmatmul.bf16.gmra.mxu0 %v524
  %v1084 = vpop.f32.mrf.mxu0
  %v1085 = vadd.f32 %v916, %v1084
  %v1086 = vpop.f32.mrf.mxu0
  %v1087 = vadd.f32 %v918, %v1086
  %1088 = vmatmul.bf16.gmra.mxu0 %v527
  %v1089 = vpop.f32.mrf.mxu0
  %v1090 = vadd.f32 %v921, %v1089
  %v1091 = vpop.f32.mrf.mxu0
  %v1092 = vadd.f32 %v923, %v1091
  %1093 = vmatmul.bf16.gmra.mxu0 %v530
  %v1094 = vpop.f32.mrf.mxu0
  %v1095 = vadd.f32 %v926, %v1094
  %v1096 = vpop.f32.mrf.mxu0
  %v1097 = vadd.f32 %v928, %v1096
  %1098 = vmatmul.bf16.gmra.mxu0 %v533
  %v1099 = vpop.f32.mrf.mxu0
  %v1100 = vadd.f32 %v931, %v1099
  %v1101 = vpop.f32.mrf.mxu0
  %v1102 = vadd.f32 %v933, %v1101
  %1103 = vmatmul.bf16.gmra.mxu0 %v536
  %v1104 = vpop.f32.mrf.mxu0
  %v1105 = vadd.f32 %v936, %v1104
  %v1106 = vpop.f32.mrf.mxu0
  %v1107 = vadd.f32 %v938, %v1106
  %1108 = vmatmul.bf16.gmra.mxu0 %v539
  %v1109 = vpop.f32.mrf.mxu0
  %v1110 = vadd.f32 %v941, %v1109
  %v1111 = vpop.f32.mrf.mxu0
  %v1112 = vadd.f32 %v943, %v1111
  %1113 = vmatmul.bf16.gmra.mxu0 %v542
  %v1114 = vpop.f32.mrf.mxu0
  %v1115 = vadd.f32 %v946, %v1114
  %v1116 = vpop.f32.mrf.mxu0
  %v1117 = vadd.f32 %v948, %v1116
  %1118 = vmatmul.bf16.gmra.mxu0 %v545
  %v1119 = vpop.f32.mrf.mxu0
  %v1120 = vadd.f32 %v951, %v1119
  %v1121 = vpop.f32.mrf.mxu0
  %v1122 = vadd.f32 %v953, %v1121
  %1123 = vmatmul.bf16.gmra.mxu0 %v548
  %v1124 = vpop.f32.mrf.mxu0
  %v1125 = vadd.f32 %v956, %v1124
  %v1126 = vpop.f32.mrf.mxu0
  %v1127 = vadd.f32 %v958, %v1126
  %1128 = vmatmul.bf16.gmra.mxu0 %v551
  %v1129 = vpop.f32.mrf.mxu0
  %v1130 = vadd.f32 %v961, %v1129
  %v1131 = vpop.f32.mrf.mxu0
  %v1132 = vadd.f32 %v963, %v1131
  %1133 = vmatmul.bf16.gmra.mxu0 %v554
  %v1134 = vpop.f32.mrf.mxu0
  %v1135 = vadd.f32 %v966, %v1134
  %v1136 = vpop.f32.mrf.mxu0
  %v1137 = vadd.f32 %v968, %v1136
  %1138 = vmatmul.bf16.gmra.mxu0 %v557
  %v1139 = vpop.f32.mrf.mxu0
  %v1140 = vadd.f32 %v971, %v1139
  %v1141 = vpop.f32.mrf.mxu0
  %v1142 = vadd.f32 %v973, %v1141
  %1143 = vmatmul.bf16.gmra.mxu0 %v560
  %v1144 = vpop.f32.mrf.mxu0
  %v1145 = vadd.f32 %v976, %v1144
  %v1146 = vpop.f32.mrf.mxu0
  %v1147 = vadd.f32 %v978, %v1146
  %1148 = vmatmul.bf16.gmra.mxu0 %v563
  %v1149 = vpop.f32.mrf.mxu0
  %v1150 = vadd.f32 %v981, %v1149
  %v1151 = vpop.f32.mrf.mxu0
  %v1152 = vadd.f32 %v983, %v1151
  %1153 = vmatmul.bf16.gmra.mxu0 %v566
  %v1154 = vpop.f32.mrf.mxu0
  %v1155 = vadd.f32 %v986, %v1154
  %v1156 = vpop.f32.mrf.mxu0
  %v1157 = vadd.f32 %v988, %v1156
  %1158 = vmatmul.bf16.gmra.mxu0 %v569
  %v1159 = vpop.f32.mrf.mxu0
  %v1160 = vadd.f32 %v991, %v1159
  %v1161 = vpop.f32.mrf.mxu0
  %v1162 = vadd.f32 %v993, %v1161
  %1163 = vmatmul.bf16.gmra.mxu0 %v572
  %v1164 = vpop.f32.mrf.mxu0
  %v1165 = vadd.f32 %v996, %v1164
  %v1166 = vpop.f32.mrf.mxu0
  %v1167 = vadd.f32 %v998, %v1166
  %1168 = vmatmul.bf16.gmra.mxu0 %v575
  %v1169 = vpop.f32.mrf.mxu0
  %v1170 = vadd.f32 %v1001, %v1169
  %v1171 = vpop.f32.mrf.mxu0
  %v1172 = vadd.f32 %v1003, %v1171
  %1173 = vmatmul.bf16.gmra.mxu0 %v578
  %v1174 = vpop.f32.mrf.mxu0
  %v1175 = vadd.f32 %v1006, %v1174
  %v1176 = vpop.f32.mrf.mxu0
  %v1177 = vadd.f32 %v1008, %v1176
  %1178 = vmatmul.bf16.gmra.mxu0 %v581
  %v1179 = vpop.f32.mrf.mxu0
  %v1180 = vadd.f32 %v1011, %v1179
  %v1181 = vpop.f32.mrf.mxu0
  %v1182 = vadd.f32 %v1013, %v1181
  %1183 = vmatmul.bf16.gmra.mxu0 %v584
  %v1184 = vpop.f32.mrf.mxu0
  %v1185 = vadd.f32 %v1016, %v1184
  %v1186 = vpop.f32.mrf.mxu0
  %v1187 = vadd.f32 %v1018, %v1186
  %1188 = vmatmul.bf16.gmra.mxu0 %v587
  %v1189 = vpop.f32.mrf.mxu0
  %v1190 = vadd.f32 %v1021, %v1189
  %v1191 = vpop.f32.mrf.mxu0
  %v1192 = vadd.f32 %v1023, %v1191
  %1193 = vmatmul.bf16.gmra.mxu0 %v590
  %v1194 = vpop.f32.mrf.mxu0
  %v1195 = vadd.f32 %v1026, %v1194
  %v1196 = vpop.f32.mrf.mxu0
  %v1197 = vadd.f32 %v1028, %v1196
  %1198 = vdwg.mxu0
  %1199 = vmatpush.bf16.msra.mxu0 0
  %1200 = vmatpush.bf16.msra.mxu0 0
  %1201 = vmatpush.bf16.msra.mxu0 0
  %1202 = vmatpush.bf16.msra.mxu0 0
  %1203 = vmatpush.bf16.msra.mxu0 0
  %1204 = vmatpush.bf16.msra.mxu0 0
  %1205 = vmatpush.bf16.msra.mxu0 %v745
  %1206 = vmatpush.bf16.msra.mxu0 %v744
  %1207 = vmatmul.bf16.gmra.mxu0 %v766
  %v1208 = vpop.f32.mrf.mxu0
  %v1209 = vadd.f32 %v1040, %v1208
  %v1210 = vpop.f32.mrf.mxu0
  %v1211 = vadd.f32 %v1042, %v1210
  %1212 = vmatmul.bf16.gmra.mxu0 %v769
  %v1213 = vpop.f32.mrf.mxu0
  %v1214 = vadd.f32 %v1045, %v1213
  %v1215 = vpop.f32.mrf.mxu0
  %v1216 = vadd.f32 %v1047, %v1215
  %1217 = vmatmul.bf16.gmra.mxu0 %v772
  %v1218 = vpop.f32.mrf.mxu0
  %v1219 = vadd.f32 %v1050, %v1218
  %v1220 = vpop.f32.mrf.mxu0
  %v1221 = vadd.f32 %v1052, %v1220
  %1222 = vmatmul.bf16.gmra.mxu0 %v775
  %v1223 = vpop.f32.mrf.mxu0
  %v1224 = vadd.f32 %v1055, %v1223
  %v1225 = vpop.f32.mrf.mxu0
  %v1226 = vadd.f32 %v1057, %v1225
  %1227 = vmatmul.bf16.gmra.mxu0 %v778
  %v1228 = vpop.f32.mrf.mxu0
  %v1229 = vadd.f32 %v1060, %v1228
  %v1230 = vpop.f32.mrf.mxu0
  %v1231 = vadd.f32 %v1062, %v1230
  %1232 = vmatmul.bf16.gmra.mxu0 %v781
  %v1233 = vpop.f32.mrf.mxu0
  %v1234 = vadd.f32 %v1065, %v1233
  %v1235 = vpop.f32.mrf.mxu0
  %v1236 = vadd.f32 %v1067, %v1235
  %1237 = vmatmul.bf16.gmra.mxu0 %v784
  %v1238 = vpop.f32.mrf.mxu0
  %v1239 = vadd.f32 %v1070, %v1238
  %v1240 = vpop.f32.mrf.mxu0
  %v1241 = vadd.f32 %v1072, %v1240
  %1242 = vmatmul.bf16.gmra.mxu0 %v787
  %v1243 = vpop.f32.mrf.mxu0
  %v1244 = vadd.f32 %v1075, %v1243
  %v1245 = vpop.f32.mrf.mxu0
  %v1246 = vadd.f32 %v1077, %v1245
  %1247 = vmatmul.bf16.gmra.mxu0 %v790
  %v1248 = vpop.f32.mrf.mxu0
  %v1249 = vadd.f32 %v1080, %v1248
  %v1250 = vpop.f32.mrf.mxu0
  %v1251 = vadd.f32 %v1082, %v1250
  %1252 = vmatmul.bf16.gmra.mxu0 %v793
  %v1253 = vpop.f32.mrf.mxu0
  %v1254 = vadd.f32 %v1085, %v1253
  %v1255 = vpop.f32.mrf.mxu0
  %v1256 = vadd.f32 %v1087, %v1255
  %1257 = vmatmul.bf16.gmra.mxu0 %v796
  %v1258 = vpop.f32.mrf.mxu0
  %v1259 = vadd.f32 %v1090, %v1258
  %v1260 = vpop.f32.mrf.mxu0
  %v1261 = vadd.f32 %v1092, %v1260
  %1262 = vmatmul.bf16.gmra.mxu0 %v799
  %v1263 = vpop.f32.mrf.mxu0
  %v1264 = vadd.f32 %v1095, %v1263
  %v1265 = vpop.f32.mrf.mxu0
  %v1266 = vadd.f32 %v1097, %v1265
  %1267 = vmatmul.bf16.gmra.mxu0 %v802
  %v1268 = vpop.f32.mrf.mxu0
  %v1269 = vadd.f32 %v1100, %v1268
  %v1270 = vpop.f32.mrf.mxu0
  %v1271 = vadd.f32 %v1102, %v1270
  %1272 = vmatmul.bf16.gmra.mxu0 %v805
  %v1273 = vpop.f32.mrf.mxu0
  %v1274 = vadd.f32 %v1105, %v1273
  %v1275 = vpop.f32.mrf.mxu0
  %v1276 = vadd.f32 %v1107, %v1275
  %1277 = vmatmul.bf16.gmra.mxu0 %v808
  %v1278 = vpop.f32.mrf.mxu0
  %v1279 = vadd.f32 %v1110, %v1278
  %v1280 = vpop.f32.mrf.mxu0
  %v1281 = vadd.f32 %v1112, %v1280
  %1282 = vmatmul.bf16.gmra.mxu0 %v811
  %v1283 = vpop.f32.mrf.mxu0
  %v1284 = vadd.f32 %v1115, %v1283
  %v1285 = vpop.f32.mrf.mxu0
  %v1286 = vadd.f32 %v1117, %v1285
  %1287 = vmatmul.bf16.gmra.mxu0 %v814
  %v1288 = vpop.f32.mrf.mxu0
  %v1289 = vadd.f32 %v1120, %v1288
  %v1290 = vpop.f32.mrf.mxu0
  %v1291 = vadd.f32 %v1122, %v1290
  %1292 = vmatmul.bf16.gmra.mxu0 %v817
  %v1293 = vpop.f32.mrf.mxu0
  %v1294 = vadd.f32 %v1125, %v1293
  %v1295 = vpop.f32.mrf.mxu0
  %v1296 = vadd.f32 %v1127, %v1295
  %1297 = vmatmul.bf16.gmra.mxu0 %v820
  %v1298 = vpop.f32.mrf.mxu0
  %v1299 = vadd.f32 %v1130, %v1298
  %v1300 = vpop.f32.mrf.mxu0
  %v1301 = vadd.f32 %v1132, %v1300
  %1302 = vmatmul.bf16.gmra.mxu0 %v823
  %v1303 = vpop.f32.mrf.mxu0
  %v1304 = vadd.f32 %v1135, %v1303
  %v1305 = vpop.f32.mrf.mxu0
  %v1306 = vadd.f32 %v1137, %v1305
  %1307 = vmatmul.bf16.gmra.mxu0 %v826
  %v1308 = vpop.f32.mrf.mxu0
  %v1309 = vadd.f32 %v1140, %v1308
  %v1310 = vpop.f32.mrf.mxu0
  %v1311 = vadd.f32 %v1142, %v1310
  %1312 = vmatmul.bf16.gmra.mxu0 %v829
  %v1313 = vpop.f32.mrf.mxu0
  %v1314 = vadd.f32 %v1145, %v1313
  %v1315 = vpop.f32.mrf.mxu0
  %v1316 = vadd.f32 %v1147, %v1315
  %1317 = vmatmul.bf16.gmra.mxu0 %v832
  %v1318 = vpop.f32.mrf.mxu0
  %v1319 = vadd.f32 %v1150, %v1318
  %v1320 = vpop.f32.mrf.mxu0
  %v1321 = vadd.f32 %v1152, %v1320
  %1322 = vmatmul.bf16.gmra.mxu0 %v835
  %v1323 = vpop.f32.mrf.mxu0
  %v1324 = vadd.f32 %v1155, %v1323
  %v1325 = vpop.f32.mrf.mxu0
  %v1326 = vadd.f32 %v1157, %v1325
  %1327 = vmatmul.bf16.gmra.mxu0 %v838
  %v1328 = vpop.f32.mrf.mxu0
  %v1329 = vadd.f32 %v1160, %v1328
  %v1330 = vpop.f32.mrf.mxu0
  %v1331 = vadd.f32 %v1162, %v1330
  %1332 = vmatmul.bf16.gmra.mxu0 %v841
  %v1333 = vpop.f32.mrf.mxu0
  %v1334 = vadd.f32 %v1165, %v1333
  %v1335 = vpop.f32.mrf.mxu0
  %v1336 = vadd.f32 %v1167, %v1335
  %1337 = vmatmul.bf16.gmra.mxu0 %v844
  %v1338 = vpop.f32.mrf.mxu0
  %v1339 = vadd.f32 %v1170, %v1338
  %v1340 = vpop.f32.mrf.mxu0
  %v1341 = vadd.f32 %v1172, %v1340
  %1342 = vmatmul.bf16.gmra.mxu0 %v847
  %v1343 = vpop.f32.mrf.mxu0
  %v1344 = vadd.f32 %v1175, %v1343
  %v1345 = vpop.f32.mrf.mxu0
  %v1346 = vadd.f32 %v1177, %v1345
  %1347 = vmatmul.bf16.gmra.mxu0 %v850
  %v1348 = vpop.f32.mrf.mxu0
  %v1349 = vadd.f32 %v1180, %v1348
  %v1350 = vpop.f32.mrf.mxu0
  %v1351 = vadd.f32 %v1182, %v1350
  %1352 = vmatmul.bf16.gmra.mxu0 %v853
  %v1353 = vpop.f32.mrf.mxu0
  %v1354 = vadd.f32 %v1185, %v1353
  %v1355 = vpop.f32.mrf.mxu0
  %v1356 = vadd.f32 %v1187, %v1355
  %1357 = vmatmul.bf16.gmra.mxu0 %v856
  %v1358 = vpop.f32.mrf.mxu0
  %v1359 = vadd.f32 %v1190, %v1358
  %v1360 = vpop.f32.mrf.mxu0
  %v1361 = vadd.f32 %v1192, %v1360
  %1362 = vmatmul.bf16.gmra.mxu0 %v859
  %v1363 = vpop.f32.mrf.mxu0
  %v1364 = vadd.f32 %v1195, %v1363
  %v1365 = vpop.f32.mrf.mxu0
  %v1366 = vadd.f32 %v1197, %v1365
  %1367 = vdwg.mxu0
  %vm1368 = vcmp.gt.f32.partialorder %v1209, 0.0
  %vm1369 = vcmp.gt.f32.partialorder %v1211, 0.0
  %vm1370 = vcmp.gt.f32.partialorder %v1214, 0.0
  %vm1371 = vcmp.gt.f32.partialorder %v1216, 0.0
  %vm1372 = vcmp.gt.f32.partialorder %v1219, 0.0
  %vm1373 = vcmp.gt.f32.partialorder %v1221, 0.0
  %vm1374 = vcmp.gt.f32.partialorder %v1224, 0.0
  %vm1375 = vcmp.gt.f32.partialorder %v1226, 0.0
  %vm1376 = vcmp.gt.f32.partialorder %v1229, 0.0
  %vm1377 = vcmp.gt.f32.partialorder %v1231, 0.0
  %vm1378 = vcmp.gt.f32.partialorder %v1234, 0.0
  %vm1379 = vcmp.gt.f32.partialorder %v1236, 0.0
  %vm1380 = vcmp.gt.f32.partialorder %v1239, 0.0
  %vm1381 = vcmp.gt.f32.partialorder %v1241, 0.0
  %vm1382 = vcmp.gt.f32.partialorder %v1244, 0.0
  %vm1383 = vcmp.gt.f32.partialorder %v1246, 0.0
  %vm1384 = vcmp.gt.f32.partialorder %v1249, 0.0
  %vm1385 = vcmp.gt.f32.partialorder %v1251, 0.0
  %vm1386 = vcmp.gt.f32.partialorder %v1254, 0.0
  %vm1387 = vcmp.gt.f32.partialorder %v1256, 0.0
  %vm1388 = vcmp.gt.f32.partialorder %v1259, 0.0
  %vm1389 = vcmp.gt.f32.partialorder %v1261, 0.0
  %vm1390 = vcmp.gt.f32.partialorder %v1264, 0.0
  %vm1391 = vcmp.gt.f32.partialorder %v1266, 0.0
  %vm1392 = vcmp.gt.f32.partialorder %v1269, 0.0
  %vm1393 = vcmp.gt.f32.partialorder %v1271, 0.0
  %vm1394 = vcmp.gt.f32.partialorder %v1274, 0.0
  %vm1395 = vcmp.gt.f32.partialorder %v1276, 0.0
  %vm1396 = vcmp.gt.f32.partialorder %v1279, 0.0
  %vm1397 = vcmp.gt.f32.partialorder %v1281, 0.0
  %vm1398 = vcmp.gt.f32.partialorder %v1284, 0.0
  %vm1399 = vcmp.gt.f32.partialorder %v1286, 0.0
  %vm1400 = vcmp.gt.f32.partialorder %v1289, 0.0
  %vm1401 = vcmp.gt.f32.partialorder %v1291, 0.0
  %vm1402 = vcmp.gt.f32.partialorder %v1294, 0.0
  %vm1403 = vcmp.gt.f32.partialorder %v1296, 0.0
  %vm1404 = vcmp.gt.f32.partialorder %v1299, 0.0
  %vm1405 = vcmp.gt.f32.partialorder %v1301, 0.0
  %vm1406 = vcmp.gt.f32.partialorder %v1304, 0.0
  %vm1407 = vcmp.gt.f32.partialorder %v1306, 0.0
  %vm1408 = vcmp.gt.f32.partialorder %v1309, 0.0
  %vm1409 = vcmp.gt.f32.partialorder %v1311, 0.0
  %vm1410 = vcmp.gt.f32.partialorder %v1314, 0.0
  %vm1411 = vcmp.gt.f32.partialorder %v1316, 0.0
  %vm1412 = vcmp.gt.f32.partialorder %v1319, 0.0
  %vm1413 = vcmp.gt.f32.partialorder %v1321, 0.0
  %vm1414 = vcmp.gt.f32.partialorder %v1324, 0.0
  %vm1415 = vcmp.gt.f32.partialorder %v1326, 0.0
  %vm1416 = vcmp.gt.f32.partialorder %v1329, 0.0
  %vm1417 = vcmp.gt.f32.partialorder %v1331, 0.0
  %vm1418 = vcmp.gt.f32.partialorder %v1334, 0.0
  %vm1419 = vcmp.gt.f32.partialorder %v1336, 0.0
  %vm1420 = vcmp.gt.f32.partialorder %v1339, 0.0
  %vm1421 = vcmp.gt.f32.partialorder %v1341, 0.0
  %vm1422 = vcmp.gt.f32.partialorder %v1344, 0.0
  %vm1423 = vcmp.gt.f32.partialorder %v1346, 0.0
  %vm1424 = vcmp.gt.f32.partialorder %v1349, 0.0
  %vm1425 = vcmp.gt.f32.partialorder %v1351, 0.0
  %vm1426 = vcmp.gt.f32.partialorder %v1354, 0.0
  %vm1427 = vcmp.gt.f32.partialorder %v1356, 0.0
  %vm1428 = vcmp.gt.f32.partialorder %v1359, 0.0
  %vm1429 = vcmp.gt.f32.partialorder %v1361, 0.0
  %vm1430 = vcmp.gt.f32.partialorder %v1364, 0.0
  %vm1431 = vcmp.gt.f32.partialorder %v1366, 0.0
  %v1432 = vmul.f32 %v1209, 0.2
  %v1433 = vmul.f32 %v1211, 0.2
  %v1434 = vmul.f32 %v1214, 0.2
  %v1435 = vmul.f32 %v1216, 0.2
  %v1436 = vmul.f32 %v1219, 0.2
  %v1437 = vmul.f32 %v1221, 0.2
  %v1438 = vmul.f32 %v1224, 0.2
  %v1439 = vmul.f32 %v1226, 0.2
  %v1440 = vmul.f32 %v1229, 0.2
  %v1441 = vmul.f32 %v1231, 0.2
  %v1442 = vmul.f32 %v1234, 0.2
  %v1443 = vmul.f32 %v1236, 0.2
  %v1444 = vmul.f32 %v1239, 0.2
  %v1445 = vmul.f32 %v1241, 0.2
  %v1446 = vmul.f32 %v1244, 0.2
  %v1447 = vmul.f32 %v1246, 0.2
  %v1448 = vmul.f32 %v1249, 0.2
  %v1449 = vmul.f32 %v1251, 0.2
  %v1450 = vmul.f32 %v1254, 0.2
  %v1451 = vmul.f32 %v1256, 0.2
  %v1452 = vmul.f32 %v1259, 0.2
  %v1453 = vmul.f32 %v1261, 0.2
  %v1454 = vmul.f32 %v1264, 0.2
  %v1455 = vmul.f32 %v1266, 0.2
  %v1456 = vmul.f32 %v1269, 0.2
  %v1457 = vmul.f32 %v1271, 0.2
  %v1458 = vmul.f32 %v1274, 0.2
  %v1459 = vmul.f32 %v1276, 0.2
  %v1460 = vmul.f32 %v1279, 0.2
  %v1461 = vmul.f32 %v1281, 0.2
  %v1462 = vmul.f32 %v1284, 0.2
  %v1463 = vmul.f32 %v1286, 0.2
  %v1464 = vmul.f32 %v1289, 0.2
  %v1465 = vmul.f32 %v1291, 0.2
  %v1466 = vmul.f32 %v1294, 0.2
  %v1467 = vmul.f32 %v1296, 0.2
  %v1468 = vmul.f32 %v1299, 0.2
  %v1469 = vmul.f32 %v1301, 0.2
  %v1470 = vmul.f32 %v1304, 0.2
  %v1471 = vmul.f32 %v1306, 0.2
  %v1472 = vmul.f32 %v1309, 0.2
  %v1473 = vmul.f32 %v1311, 0.2
  %v1474 = vmul.f32 %v1314, 0.2
  %v1475 = vmul.f32 %v1316, 0.2
  %v1476 = vmul.f32 %v1319, 0.2
  %v1477 = vmul.f32 %v1321, 0.2
  %v1478 = vmul.f32 %v1324, 0.2
  %v1479 = vmul.f32 %v1326, 0.2
  %v1480 = vmul.f32 %v1329, 0.2
  %v1481 = vmul.f32 %v1331, 0.2
  %v1482 = vmul.f32 %v1334, 0.2
  %v1483 = vmul.f32 %v1336, 0.2
  %v1484 = vmul.f32 %v1339, 0.2
  %v1485 = vmul.f32 %v1341, 0.2
  %v1486 = vmul.f32 %v1344, 0.2
  %v1487 = vmul.f32 %v1346, 0.2
  %v1488 = vmul.f32 %v1349, 0.2
  %v1489 = vmul.f32 %v1351, 0.2
  %v1490 = vmul.f32 %v1354, 0.2
  %v1491 = vmul.f32 %v1356, 0.2
  %v1492 = vmul.f32 %v1359, 0.2
  %v1493 = vmul.f32 %v1361, 0.2
  %v1494 = vmul.f32 %v1364, 0.2
  %v1495 = vmul.f32 %v1366, 0.2
  %v1496 = vsel %vm1368, %v1209, %v1432
  %v1497 = vsel %vm1369, %v1211, %v1433
  %v1498 = vsel %vm1370, %v1214, %v1434
  %v1499 = vsel %vm1371, %v1216, %v1435
  %v1500 = vsel %vm1372, %v1219, %v1436
  %v1501 = vsel %vm1373, %v1221, %v1437
  %v1502 = vsel %vm1374, %v1224, %v1438
  %v1503 = vsel %vm1375, %v1226, %v1439
  %v1504 = vsel %vm1376, %v1229, %v1440
  %v1505 = vsel %vm1377, %v1231, %v1441
  %v1506 = vsel %vm1378, %v1234, %v1442
  %v1507 = vsel %vm1379, %v1236, %v1443
  %v1508 = vsel %vm1380, %v1239, %v1444
  %v1509 = vsel %vm1381, %v1241, %v1445
  %v1510 = vsel %vm1382, %v1244, %v1446
  %v1511 = vsel %vm1383, %v1246, %v1447
  %v1512 = vsel %vm1384, %v1249, %v1448
  %v1513 = vsel %vm1385, %v1251, %v1449
  %v1514 = vsel %vm1386, %v1254, %v1450
  %v1515 = vsel %vm1387, %v1256, %v1451
  %v1516 = vsel %vm1388, %v1259, %v1452
  %v1517 = vsel %vm1389, %v1261, %v1453
  %v1518 = vsel %vm1390, %v1264, %v1454
  %v1519 = vsel %vm1391, %v1266, %v1455
  %v1520 = vsel %vm1392, %v1269, %v1456
  %v1521 = vsel %vm1393, %v1271, %v1457
  %v1522 = vsel %vm1394, %v1274, %v1458
  %v1523 = vsel %vm1395, %v1276, %v1459
  %v1524 = vsel %vm1396, %v1279, %v1460
  %v1525 = vsel %vm1397, %v1281, %v1461
  %v1526 = vsel %vm1398, %v1284, %v1462
  %v1527 = vsel %vm1399, %v1286, %v1463
  %v1528 = vsel %vm1400, %v1289, %v1464
  %v1529 = vsel %vm1401, %v1291, %v1465
  %v1530 = vsel %vm1402, %v1294, %v1466
  %v1531 = vsel %vm1403, %v1296, %v1467
  %v1532 = vsel %vm1404, %v1299, %v1468
  %v1533 = vsel %vm1405, %v1301, %v1469
  %v1534 = vsel %vm1406, %v1304, %v1470
  %v1535 = vsel %vm1407, %v1306, %v1471
  %v1536 = vsel %vm1408, %v1309, %v1472
  %v1537 = vsel %vm1409, %v1311, %v1473
  %v1538 = vsel %vm1410, %v1314, %v1474
  %v1539 = vsel %vm1411, %v1316, %v1475
  %v1540 = vsel %vm1412, %v1319, %v1476
  %v1541 = vsel %vm1413, %v1321, %v1477
  %v1542 = vsel %vm1414, %v1324, %v1478
  %v1543 = vsel %vm1415, %v1326, %v1479
  %v1544 = vsel %vm1416, %v1329, %v1480
  %v1545 = vsel %vm1417, %v1331, %v1481
  %v1546 = vsel %vm1418, %v1334, %v1482
  %v1547 = vsel %vm1419, %v1336, %v1483
  %v1548 = vsel %vm1420, %v1339, %v1484
  %v1549 = vsel %vm1421, %v1341, %v1485
  %v1550 = vsel %vm1422, %v1344, %v1486
  %v1551 = vsel %vm1423, %v1346, %v1487
  %v1552 = vsel %vm1424, %v1349, %v1488
  %v1553 = vsel %vm1425, %v1351, %v1489
  %v1554 = vsel %vm1426, %v1354, %v1490
  %v1555 = vsel %vm1427, %v1356, %v1491
  %v1556 = vsel %vm1428, %v1359, %v1492
  %v1557 = vsel %vm1429, %v1361, %v1493
  %v1558 = vsel %vm1430, %v1364, %v1494
  %v1559 = vsel %vm1431, %v1366, %v1495
  %v1560 = vpack.c.bf16 %v1496, %v1496
  %v1561 = vpack.c.bf16 %v1497, %v1497
  %v1562 = vpack.c.bf16 %v1498, %v1498
  %v1563 = vpack.c.bf16 %v1499, %v1499
  %v1564 = vpack.c.bf16 %v1500, %v1500
  %v1565 = vpack.c.bf16 %v1501, %v1501
  %v1566 = vpack.c.bf16 %v1502, %v1502
  %v1567 = vpack.c.bf16 %v1503, %v1503
  %v1568 = vpack.c.bf16 %v1504, %v1504
  %v1569 = vpack.c.bf16 %v1505, %v1505
  %v1570 = vpack.c.bf16 %v1506, %v1506
  %v1571 = vpack.c.bf16 %v1507, %v1507
  %v1572 = vpack.c.bf16 %v1508, %v1508
  %v1573 = vpack.c.bf16 %v1509, %v1509
  %v1574 = vpack.c.bf16 %v1510, %v1510
  %v1575 = vpack.c.bf16 %v1511, %v1511
  %v1576 = vpack.c.bf16 %v1512, %v1512
  %v1577 = vpack.c.bf16 %v1513, %v1513
  %v1578 = vpack.c.bf16 %v1514, %v1514
  %v1579 = vpack.c.bf16 %v1515, %v1515
  %v1580 = vpack.c.bf16 %v1516, %v1516
  %v1581 = vpack.c.bf16 %v1517, %v1517
  %v1582 = vpack.c.bf16 %v1518, %v1518
  %v1583 = vpack.c.bf16 %v1519, %v1519
  %v1584 = vpack.c.bf16 %v1520, %v1520
  %v1585 = vpack.c.bf16 %v1521, %v1521
  %v1586 = vpack.c.bf16 %v1522, %v1522
  %v1587 = vpack.c.bf16 %v1523, %v1523
  %v1588 = vpack.c.bf16 %v1524, %v1524
  %v1589 = vpack.c.bf16 %v1525, %v1525
  %v1590 = vpack.c.bf16 %v1526, %v1526
  %v1591 = vpack.c.bf16 %v1527, %v1527
  %v1592 = vpack.c.bf16 %v1528, %v1528
  %v1593 = vpack.c.bf16 %v1529, %v1529
  %v1594 = vpack.c.bf16 %v1530, %v1530
  %v1595 = vpack.c.bf16 %v1531, %v1531
  %v1596 = vpack.c.bf16 %v1532, %v1532
  %v1597 = vpack.c.bf16 %v1533, %v1533
  %v1598 = vpack.c.bf16 %v1534, %v1534
  %v1599 = vpack.c.bf16 %v1535, %v1535
  %v1600 = vpack.c.bf16 %v1536, %v1536
  %v1601 = vpack.c.bf16 %v1537, %v1537
  %v1602 = vpack.c.bf16 %v1538, %v1538
  %v1603 = vpack.c.bf16 %v1539, %v1539
  %v1604 = vpack.c.bf16 %v1540, %v1540
  %v1605 = vpack.c.bf16 %v1541, %v1541
  %v1606 = vpack.c.bf16 %v1542, %v1542
  %v1607 = vpack.c.bf16 %v1543, %v1543
  %v1608 = vpack.c.bf16 %v1544, %v1544
  %v1609 = vpack.c.bf16 %v1545, %v1545
  %v1610 = vpack.c.bf16 %v1546, %v1546
  %v1611 = vpack.c.bf16 %v1547, %v1547
  %v1612 = vpack.c.bf16 %v1548, %v1548
  %v1613 = vpack.c.bf16 %v1549, %v1549
  %v1614 = vpack.c.bf16 %v1550, %v1550
  %v1615 = vpack.c.bf16 %v1551, %v1551
  %v1616 = vpack.c.bf16 %v1552, %v1552
  %v1617 = vpack.c.bf16 %v1553, %v1553
  %v1618 = vpack.c.bf16 %v1554, %v1554
  %v1619 = vpack.c.bf16 %v1555, %v1555
  %v1620 = vpack.c.bf16 %v1556, %v1556
  %v1621 = vpack.c.bf16 %v1557, %v1557
  %v1622 = vpack.c.bf16 %v1558, %v1558
  %v1623 = vpack.c.bf16 %v1559, %v1559
  %1624 = vst [vmem:[%s2] sm:$0xf] %v1560
  %1625 = vst [vmem:[%s2 + $0x4] sm:$0xf] %v1561
  %1626 = vst [vmem:[%s2 + $0x8] sm:$0xf] %v1562
  %1627 = vst [vmem:[%s2 + $0xc] sm:$0xf] %v1563
  %1628 = vst [vmem:[%s2 + $0x10] sm:$0xf] %v1564
  %1629 = vst [vmem:[%s2 + $0x14] sm:$0xf] %v1565
  %1630 = vst [vmem:[%s2 + $0x18] sm:$0xf] %v1566
  %1631 = vst [vmem:[%s2 + $0x1c] sm:$0xf] %v1567
  %1632 = vst [vmem:[%s2 + $0x20] sm:$0xf] %v1568
  %1633 = vst [vmem:[%s2 + $0x24] sm:$0xf] %v1569
  %1634 = vst [vmem:[%s2 + $0x28] sm:$0xf] %v1570
  %1635 = vst [vmem:[%s2 + $0x2c] sm:$0xf] %v1571
  %1636 = vst [vmem:[%s2 + $0x30] sm:$0xf] %v1572
  %1637 = vst [vmem:[%s2 + $0x34] sm:$0xf] %v1573
  %1638 = vst [vmem:[%s2 + $0x38] sm:$0xf] %v1574
  %1639 = vst [vmem:[%s2 + $0x3c] sm:$0xf] %v1575
  %1640 = vst [vmem:[%s2 + $0x40] sm:$0xf] %v1576
  %1641 = vst [vmem:[%s2 + $0x44] sm:$0xf] %v1577
  %1642 = vst [vmem:[%s2 + $0x48] sm:$0xf] %v1578
  %1643 = vst [vmem:[%s2 + $0x4c] sm:$0xf] %v1579
  %1644 = vst [vmem:[%s2 + $0x50] sm:$0xf] %v1580
  %1645 = vst [vmem:[%s2 + $0x54] sm:$0xf] %v1581
  %1646 = vst [vmem:[%s2 + $0x58] sm:$0xf] %v1582
  %1647 = vst [vmem:[%s2 + $0x5c] sm:$0xf] %v1583
  %1648 = vst [vmem:[%s2 + $0x60] sm:$0xf] %v1584
  %1649 = vst [vmem:[%s2 + $0x64] sm:$0xf] %v1585
  %1650 = vst [vmem:[%s2 + $0x68] sm:$0xf] %v1586
  %1651 = vst [vmem:[%s2 + $0x6c] sm:$0xf] %v1587
  %1652 = vst [vmem:[%s2 + $0x70] sm:$0xf] %v1588
  %1653 = vst [vmem:[%s2 + $0x74] sm:$0xf] %v1589
  %1654 = vst [vmem:[%s2 + $0x78] sm:$0xf] %v1590
  %1655 = vst [vmem:[%s2 + $0x7c] sm:$0xf] %v1591
  %1656 = vst [vmem:[%s2 + $0x80] sm:$0xf] %v1592
  %1657 = vst [vmem:[%s2 + $0x84] sm:$0xf] %v1593
  %1658 = vst [vmem:[%s2 + $0x88] sm:$0xf] %v1594
  %1659 = vst [vmem:[%s2 + $0x8c] sm:$0xf] %v1595
  %1660 = vst [vmem:[%s2 + $0x90] sm:$0xf] %v1596
  %1661 = vst [vmem:[%s2 + $0x94] sm:$0xf] %v1597
  %1662 = vst [vmem:[%s2 + $0x98] sm:$0xf] %v1598
  %1663 = vst [vmem:[%s2 + $0x9c] sm:$0xf] %v1599
  %1664 = vst [vmem:[%s2 + $0xa0] sm:$0xf] %v1600
  %1665 = vst [vmem:[%s2 + $0xa4] sm:$0xf] %v1601
  %1666 = vst [vmem:[%s2 + $0xa8] sm:$0xf] %v1602
  %1667 = vst [vmem:[%s2 + $0xac] sm:$0xf] %v1603
  %1668 = vst [vmem:[%s2 + $0xb0] sm:$0xf] %v1604
  %1669 = vst [vmem:[%s2 + $0xb4] sm:$0xf] %v1605
  %1670 = vst [vmem:[%s2 + $0xb8] sm:$0xf] %v1606
  %1671 = vst [vmem:[%s2 + $0xbc] sm:$0xf] %v1607
  %1672 = vst [vmem:[%s2 + $0xc0] sm:$0xf] %v1608
  %1673 = vst [vmem:[%s2 + $0xc4] sm:$0xf] %v1609
  %1674 = vst [vmem:[%s2 + $0xc8] sm:$0xf] %v1610
  %1675 = vst [vmem:[%s2 + $0xcc] sm:$0xf] %v1611
  %1676 = vst [vmem:[%s2 + $0xd0] sm:$0xf] %v1612
  %1677 = vst [vmem:[%s2 + $0xd4] sm:$0xf] %v1613
  %1678 = vst [vmem:[%s2 + $0xd8] sm:$0xf] %v1614
  %1679 = vst [vmem:[%s2 + $0xdc] sm:$0xf] %v1615
  %1680 = vst [vmem:[%s2 + $0xe0] sm:$0xf] %v1616
  %1681 = vst [vmem:[%s2 + $0xe4] sm:$0xf] %v1617
  %1682 = vst [vmem:[%s2 + $0xe8] sm:$0xf] %v1618
  %1683 = vst [vmem:[%s2 + $0xec] sm:$0xf] %v1619
  %1684 = vst [vmem:[%s2 + $0xf0] sm:$0xf] %v1620
  %1685 = vst [vmem:[%s2 + $0xf4] sm:$0xf] %v1621
  %1686 = vst [vmem:[%s2 + $0xf8] sm:$0xf] %v1622
  %1687 = vst [vmem:[%s2 + $0xfc] sm:$0xf] %v1623
  // Predicated region
  $region10: #{discriminator.8} parent=0 // pred_check
    _
  $region11: #{discriminator.8} parent=0 // pred_check_branch
    %1689 = sbr.rel (0) target = $region13
  $region12: #{discriminator.8} parent=0 // pred_region
    _
  $region13: #{discriminator.8} parent=0 // pred_fallthru
    _
  // Predicated region
  $region14: #{discriminator.8} parent=0 // pred_check
    _
  $region15: #{discriminator.8} parent=0 // pred_check_branch
    %1691 = sbr.rel (0) target = $region17
  $region16: #{discriminator.8} parent=0 // pred_region
    _
  $region17: #{discriminator.8} parent=0 // pred_fallthru
    _

// kernel: discriminator.9
$region0: #{discriminator.9}
  #allocation0 [shape = 'u32[]', space=smem, size = 0x4, offset = 0x4, fixed_abs, tag = 'smem constant byte address 0x4 - core index']
  #allocation1 [shape = 'u32[72,128]{1,0:T(1,128)}', space=vmem, size = 0x9000, scoped, tag = 'internal scratch']
  %s0 = inlined_call_operand.vmem [shape: bf16[512,576], index: 0, kind: input, shape index: {}]
  %s1 = inlined_call_operand.vmem [shape: bf16[576,128], index: 1, kind: input, shape index: {}]
  %s2 = inlined_call_operand.vmem [shape: f32[1,128], index: 2, kind: input, shape index: {}]
  %s3 = inlined_call_operand.vmem [shape: f32[1,128], index: 3, kind: input, shape index: {}]
  %s4 = inlined_call_operand.vmem [shape: bf16[512,128], index: 4, kind: output, shape index: {}]
  %s5 = sld [smem:[#allocation0]]
  $region26: #{discriminator.9} parent=0
    _
  %s7 = ssub.s32 1, %s5
  %s8 = scalar_select 0, %s7, %s5
  // Predicated region
  $region2: #{discriminator.9} parent=0 // pred_check
    _
  $region3: #{discriminator.9} parent=0 // pred_check_branch
    %10 = sbr.rel (0) target = $region5
  $region4: #{discriminator.9} parent=0 // pred_region
    _
  $region5: #{discriminator.9} parent=0 // pred_fallthru
    _
  // Predicated region
  $region6: #{discriminator.9} parent=0 // pred_check
    _
  $region7: #{discriminator.9} parent=0 // pred_check_branch
    %12 = sbr.rel (0) target = $region9
  $region8: #{discriminator.9} parent=0 // pred_region
    _
  $region9: #{discriminator.9} parent=0 // pred_fallthru
    _
  // Predicated region
  $region10: #{discriminator.9} parent=0 // pred_check
    _
  $region11: #{discriminator.9} parent=0 // pred_check_branch
    %14 = sbr.rel (0) target = $region13
  $region12: #{discriminator.9} parent=0 // pred_region
    _
  $region13: #{discriminator.9} parent=0 // pred_fallthru
    _
  // Predicated region
  $region14: #{discriminator.9} parent=0 // pred_check
    _
  $region15: #{discriminator.9} parent=0 // pred_check_branch
    %16 = sbr.rel (0) target = $region17
  $region16: #{discriminator.9} parent=0 // pred_region
    _
  $region17: #{discriminator.9} parent=0 // pred_fallthru
    _
  %v18 = vld [vmem:[%s0] sm:$0xff]
  %v19 = vld [vmem:[%s0 + $0x8] sm:$0xff]
  %v20 = vld [vmem:[%s0 + $0x10] sm:$0xf]
  %v21 = vld [vmem:[%s0 + $0x14] sm:$0xff]
  %v22 = vld [vmem:[%s0 + $0x1c] sm:$0xff]
  %v23 = vld [vmem:[%s0 + $0x24] sm:$0xf]
  %v24 = vld [vmem:[%s0 + $0x28] sm:$0xff]
  %v25 = vld [vmem:[%s0 + $0x30] sm:$0xff]
  %v26 = vld [vmem:[%s0 + $0x38] sm:$0xf]
  %v27 = vld [vmem:[%s0 + $0x3c] sm:$0xff]
  %v28 = vld [vmem:[%s0 + $0x44] sm:$0xff]
  %v29 = vld [vmem:[%s0 + $0x4c] sm:$0xf]
  %v30 = vld [vmem:[%s0 + $0x50] sm:$0xff]
  %v31 = vld [vmem:[%s0 + $0x58] sm:$0xff]
  %v32 = vld [vmem:[%s0 + $0x60] sm:$0xf]
  %v33 = vld [vmem:[%s0 + $0x64] sm:$0xff]
  %v34 = vld [vmem:[%s0 + $0x6c] sm:$0xff]
  %v35 = vld [vmem:[%s0 + $0x74] sm:$0xf]
  %v36 = vld [vmem:[%s0 + $0x78] sm:$0xff]
  %v37 = vld [vmem:[%s0 + $0x80] sm:$0xff]
  %v38 = vld [vmem:[%s0 + $0x88] sm:$0xf]
  %v39 = vld [vmem:[%s0 + $0x8c] sm:$0xff]
  %v40 = vld [vmem:[%s0 + $0x94] sm:$0xff]
  %v41 = vld [vmem:[%s0 + $0x9c] sm:$0xf]
  %v42 = vld [vmem:[%s0 + $0xa0] sm:$0xff]
  %v43 = vld [vmem:[%s0 + $0xa8] sm:$0xff]
  %v44 = vld [vmem:[%s0 + $0xb0] sm:$0xf]
  %v45 = vld [vmem:[%s0 + $0xb4] sm:$0xff]
  %v46 = vld [vmem:[%s0 + $0xbc] sm:$0xff]
  %v47 = vld [vmem:[%s0 + $0xc4] sm:$0xf]
  %v48 = vld [vmem:[%s0 + $0xc8] sm:$0xff]
  %v49 = vld [vmem:[%s0 + $0xd0] sm:$0xff]
  %v50 = vld [vmem:[%s0 + $0xd8] sm:$0xf]
  %v51 = vld [vmem:[%s0 + $0xdc] sm:$0xff]
  %v52 = vld [vmem:[%s0 + $0xe4] sm:$0xff]
  %v53 = vld [vmem:[%s0 + $0xec] sm:$0xf]
  %v54 = vld [vmem:[%s0 + $0xf0] sm:$0xff]
  %v55 = vld [vmem:[%s0 + $0xf8] sm:$0xff]
  %v56 = vld [vmem:[%s0 + $0x100] sm:$0xf]
  %v57 = vld [vmem:[%s0 + $0x104] sm:$0xff]
  %v58 = vld [vmem:[%s0 + $0x10c] sm:$0xff]
  %v59 = vld [vmem:[%s0 + $0x114] sm:$0xf]
  %v60 = vld [vmem:[%s0 + $0x118] sm:$0xff]
  %v61 = vld [vmem:[%s0 + $0x120] sm:$0xff]
  %v62 = vld [vmem:[%s0 + $0x128] sm:$0xf]
  %v63 = vld [vmem:[%s0 + $0x12c] sm:$0xff]
  %v64 = vld [vmem:[%s0 + $0x134] sm:$0xff]
  %v65 = vld [vmem:[%s0 + $0x13c] sm:$0xf]
  %v66 = vld [vmem:[%s0 + $0x140] sm:$0xff]
  %v67 = vld [vmem:[%s0 + $0x148] sm:$0xff]
  %v68 = vld [vmem:[%s0 + $0x150] sm:$0xf]
  %v69 = vld [vmem:[%s0 + $0x154] sm:$0xff]
  %v70 = vld [vmem:[%s0 + $0x15c] sm:$0xff]
  %v71 = vld [vmem:[%s0 + $0x164] sm:$0xf]
  %v72 = vld [vmem:[%s0 + $0x168] sm:$0xff]
  %v73 = vld [vmem:[%s0 + $0x170] sm:$0xff]
  %v74 = vld [vmem:[%s0 + $0x178] sm:$0xf]
  %v75 = vld [vmem:[%s0 + $0x17c] sm:$0xff]
  %v76 = vld [vmem:[%s0 + $0x184] sm:$0xff]
  %v77 = vld [vmem:[%s0 + $0x18c] sm:$0xf]
  %v78 = vld [vmem:[%s0 + $0x190] sm:$0xff]
  %v79 = vld [vmem:[%s0 + $0x198] sm:$0xff]
  %v80 = vld [vmem:[%s0 + $0x1a0] sm:$0xf]
  %v81 = vld [vmem:[%s0 + $0x1a4] sm:$0xff]
  %v82 = vld [vmem:[%s0 + $0x1ac] sm:$0xff]
  %v83 = vld [vmem:[%s0 + $0x1b4] sm:$0xf]
  %v84 = vld [vmem:[%s0 + $0x1b8] sm:$0xff]
  %v85 = vld [vmem:[%s0 + $0x1c0] sm:$0xff]
  %v86 = vld [vmem:[%s0 + $0x1c8] sm:$0xf]
  %v87 = vld [vmem:[%s0 + $0x1cc] sm:$0xff]
  %v88 = vld [vmem:[%s0 + $0x1d4] sm:$0xff]
  %v89 = vld [vmem:[%s0 + $0x1dc] sm:$0xf]
  %v90 = vld [vmem:[%s0 + $0x1e0] sm:$0xff]
  %v91 = vld [vmem:[%s0 + $0x1e8] sm:$0xff]
  %v92 = vld [vmem:[%s0 + $0x1f0] sm:$0xf]
  %v93 = vld [vmem:[%s0 + $0x1f4] sm:$0xff]
  %v94 = vld [vmem:[%s0 + $0x1fc] sm:$0xff]
  %v95 = vld [vmem:[%s0 + $0x204] sm:$0xf]
  %v96 = vld [vmem:[%s0 + $0x208] sm:$0xff]
  %v97 = vld [vmem:[%s0 + $0x210] sm:$0xff]
  %v98 = vld [vmem:[%s0 + $0x218] sm:$0xf]
  %v99 = vld [vmem:[%s0 + $0x21c] sm:$0xff]
  %v100 = vld [vmem:[%s0 + $0x224] sm:$0xff]
  %v101 = vld [vmem:[%s0 + $0x22c] sm:$0xf]
  %v102 = vld [vmem:[%s0 + $0x230] sm:$0xff]
  %v103 = vld [vmem:[%s0 + $0x238] sm:$0xff]
  %v104 = vld [vmem:[%s0 + $0x240] sm:$0xf]
  %v105 = vld [vmem:[%s0 + $0x244] sm:$0xff]
  %v106 = vld [vmem:[%s0 + $0x24c] sm:$0xff]
  %v107 = vld [vmem:[%s0 + $0x254] sm:$0xf]
  %v108 = vld [vmem:[%s0 + $0x258] sm:$0xff]
  %v109 = vld [vmem:[%s0 + $0x260] sm:$0xff]
  %v110 = vld [vmem:[%s0 + $0x268] sm:$0xf]
  %v111 = vld [vmem:[%s0 + $0x26c] sm:$0xff]
  %v112 = vld [vmem:[%s0 + $0x274] sm:$0xff]
  %v113 = vld [vmem:[%s0 + $0x27c] sm:$0xf]
  %v114 = vld [vmem:[%s0 + $0x280] sm:$0xff]
  %v115 = vld [vmem:[%s0 + $0x288] sm:$0xff]
  %v116 = vld [vmem:[%s0 + $0x290] sm:$0xf]
  %v117 = vld [vmem:[%s0 + $0x294] sm:$0xff]
  %v118 = vld [vmem:[%s0 + $0x29c] sm:$0xff]
  %v119 = vld [vmem:[%s0 + $0x2a4] sm:$0xf]
  %v120 = vld [vmem:[%s0 + $0x2a8] sm:$0xff]
  %v121 = vld [vmem:[%s0 + $0x2b0] sm:$0xff]
  %v122 = vld [vmem:[%s0 + $0x2b8] sm:$0xf]
  %v123 = vld [vmem:[%s0 + $0x2bc] sm:$0xff]
  %v124 = vld [vmem:[%s0 + $0x2c4] sm:$0xff]
  %v125 = vld [vmem:[%s0 + $0x2cc] sm:$0xf]
  %v126 = vld [vmem:[%s0 + $0x2d0] sm:$0xff]
  %v127 = vld [vmem:[%s0 + $0x2d8] sm:$0xff]
  %v128 = vld [vmem:[%s0 + $0x2e0] sm:$0xf]
  %v129 = vld [vmem:[%s0 + $0x2e4] sm:$0xff]
  %v130 = vld [vmem:[%s0 + $0x2ec] sm:$0xff]
  %v131 = vld [vmem:[%s0 + $0x2f4] sm:$0xf]
  %v132 = vld [vmem:[%s0 + $0x2f8] sm:$0xff]
  %v133 = vld [vmem:[%s0 + $0x300] sm:$0xff]
  %v134 = vld [vmem:[%s0 + $0x308] sm:$0xf]
  %v135 = vld [vmem:[%s0 + $0x30c] sm:$0xff]
  %v136 = vld [vmem:[%s0 + $0x314] sm:$0xff]
  %v137 = vld [vmem:[%s0 + $0x31c] sm:$0xf]
  %v138 = vld [vmem:[%s0 + $0x320] sm:$0xff]
  %v139 = vld [vmem:[%s0 + $0x328] sm:$0xff]
  %v140 = vld [vmem:[%s0 + $0x330] sm:$0xf]
  %v141 = vld [vmem:[%s0 + $0x334] sm:$0xff]
  %v142 = vld [vmem:[%s0 + $0x33c] sm:$0xff]
  %v143 = vld [vmem:[%s0 + $0x344] sm:$0xf]
  %v144 = vld [vmem:[%s0 + $0x348] sm:$0xff]
  %v145 = vld [vmem:[%s0 + $0x350] sm:$0xff]
  %v146 = vld [vmem:[%s0 + $0x358] sm:$0xf]
  %v147 = vld [vmem:[%s0 + $0x35c] sm:$0xff]
  %v148 = vld [vmem:[%s0 + $0x364] sm:$0xff]
  %v149 = vld [vmem:[%s0 + $0x36c] sm:$0xf]
  %v150 = vld [vmem:[%s0 + $0x370] sm:$0xff]
  %v151 = vld [vmem:[%s0 + $0x378] sm:$0xff]
  %v152 = vld [vmem:[%s0 + $0x380] sm:$0xf]
  %v153 = vld [vmem:[%s0 + $0x384] sm:$0xff]
  %v154 = vld [vmem:[%s0 + $0x38c] sm:$0xff]
  %v155 = vld [vmem:[%s0 + $0x394] sm:$0xf]
  %v156 = vld [vmem:[%s0 + $0x398] sm:$0xff]
  %v157 = vld [vmem:[%s0 + $0x3a0] sm:$0xff]
  %v158 = vld [vmem:[%s0 + $0x3a8] sm:$0xf]
  %v159 = vld [vmem:[%s0 + $0x3ac] sm:$0xff]
  %v160 = vld [vmem:[%s0 + $0x3b4] sm:$0xff]
  %v161 = vld [vmem:[%s0 + $0x3bc] sm:$0xf]
  %v162 = vld [vmem:[%s0 + $0x3c0] sm:$0xff]
  %v163 = vld [vmem:[%s0 + $0x3c8] sm:$0xff]
  %v164 = vld [vmem:[%s0 + $0x3d0] sm:$0xf]
  %v165 = vld [vmem:[%s0 + $0x3d4] sm:$0xff]
  %v166 = vld [vmem:[%s0 + $0x3dc] sm:$0xff]
  %v167 = vld [vmem:[%s0 + $0x3e4] sm:$0xf]
  %v168 = vld [vmem:[%s0 + $0x3e8] sm:$0xff]
  %v169 = vld [vmem:[%s0 + $0x3f0] sm:$0xff]
  %v170 = vld [vmem:[%s0 + $0x3f8] sm:$0xf]
  %v171 = vld [vmem:[%s0 + $0x3fc] sm:$0xff]
  %v172 = vld [vmem:[%s0 + $0x404] sm:$0xff]
  %v173 = vld [vmem:[%s0 + $0x40c] sm:$0xf]
  %v174 = vld [vmem:[%s0 + $0x410] sm:$0xff]
  %v175 = vld [vmem:[%s0 + $0x418] sm:$0xff]
  %v176 = vld [vmem:[%s0 + $0x420] sm:$0xf]
  %v177 = vld [vmem:[%s0 + $0x424] sm:$0xff]
  %v178 = vld [vmem:[%s0 + $0x42c] sm:$0xff]
  %v179 = vld [vmem:[%s0 + $0x434] sm:$0xf]
  %v180 = vld [vmem:[%s0 + $0x438] sm:$0xff]
  %v181 = vld [vmem:[%s0 + $0x440] sm:$0xff]
  %v182 = vld [vmem:[%s0 + $0x448] sm:$0xf]
  %v183 = vld [vmem:[%s0 + $0x44c] sm:$0xff]
  %v184 = vld [vmem:[%s0 + $0x454] sm:$0xff]
  %v185 = vld [vmem:[%s0 + $0x45c] sm:$0xf]
  %v186 = vld [vmem:[%s0 + $0x460] sm:$0xff]
  %v187 = vld [vmem:[%s0 + $0x468] sm:$0xff]
  %v188 = vld [vmem:[%s0 + $0x470] sm:$0xf]
  %v189 = vld [vmem:[%s0 + $0x474] sm:$0xff]
  %v190 = vld [vmem:[%s0 + $0x47c] sm:$0xff]
  %v191 = vld [vmem:[%s0 + $0x484] sm:$0xf]
  %v192 = vld [vmem:[%s0 + $0x488] sm:$0xff]
  %v193 = vld [vmem:[%s0 + $0x490] sm:$0xff]
  %v194 = vld [vmem:[%s0 + $0x498] sm:$0xf]
  %v195 = vld [vmem:[%s0 + $0x49c] sm:$0xff]
  %v196 = vld [vmem:[%s0 + $0x4a4] sm:$0xff]
  %v197 = vld [vmem:[%s0 + $0x4ac] sm:$0xf]
  %v198 = vld [vmem:[%s0 + $0x4b0] sm:$0xff]
  %v199 = vld [vmem:[%s0 + $0x4b8] sm:$0xff]
  %v200 = vld [vmem:[%s0 + $0x4c0] sm:$0xf]
  %v201 = vld [vmem:[%s0 + $0x4c4] sm:$0xff]
  %v202 = vld [vmem:[%s0 + $0x4cc] sm:$0xff]
  %v203 = vld [vmem:[%s0 + $0x4d4] sm:$0xf]
  %v204 = vld [vmem:[%s0 + $0x4d8] sm:$0xff]
  %v205 = vld [vmem:[%s0 + $0x4e0] sm:$0xff]
  %v206 = vld [vmem:[%s0 + $0x4e8] sm:$0xf]
  %v207 = vld [vmem:[%s0 + $0x4ec] sm:$0xff]
  %v208 = vld [vmem:[%s0 + $0x4f4] sm:$0xff]
  %v209 = vld [vmem:[%s0 + $0x4fc] sm:$0xf]
  %v210 = vld [vmem:[%s1] sm:$0xf]
  %v211 = vld [vmem:[%s1 + $0x4] sm:$0xf]
  %v212 = vld [vmem:[%s1 + $0x8] sm:$0xf]
  %v213 = vld [vmem:[%s1 + $0xc] sm:$0xf]
  %v214 = vld [vmem:[%s1 + $0x10] sm:$0xf]
  %v215 = vld [vmem:[%s1 + $0x14] sm:$0xf]
  %v216 = vld [vmem:[%s1 + $0x18] sm:$0xf]
  %v217 = vld [vmem:[%s1 + $0x1c] sm:$0xf]
  %v218 = vld [vmem:[%s1 + $0x20] sm:$0xf]
  %v219 = vld [vmem:[%s1 + $0x24] sm:$0xf]
  %v220 = vld [vmem:[%s1 + $0x28] sm:$0xf]
  %v221 = vld [vmem:[%s1 + $0x2c] sm:$0xf]
  %v222 = vld [vmem:[%s1 + $0x30] sm:$0xf]
  %v223 = vld [vmem:[%s1 + $0x34] sm:$0xf]
  %v224 = vld [vmem:[%s1 + $0x38] sm:$0xf]
  %v225 = vld [vmem:[%s1 + $0x3c] sm:$0xf]
  %v226 = vld [vmem:[%s1 + $0x40] sm:$0xf]
  %v227 = vld [vmem:[%s1 + $0x44] sm:$0xf]
  %v228 = vld [vmem:[%s1 + $0x48] sm:$0xf]
  %v229 = vld [vmem:[%s1 + $0x4c] sm:$0xf]
  %v230 = vld [vmem:[%s1 + $0x50] sm:$0xf]
  %v231 = vld [vmem:[%s1 + $0x54] sm:$0xf]
  %v232 = vld [vmem:[%s1 + $0x58] sm:$0xf]
  %v233 = vld [vmem:[%s1 + $0x5c] sm:$0xf]
  %v234 = vld [vmem:[%s1 + $0x60] sm:$0xf]
  %v235 = vld [vmem:[%s1 + $0x64] sm:$0xf]
  %v236 = vld [vmem:[%s1 + $0x68] sm:$0xf]
  %v237 = vld [vmem:[%s1 + $0x6c] sm:$0xf]
  %v238 = vld [vmem:[%s1 + $0x70] sm:$0xf]
  %v239 = vld [vmem:[%s1 + $0x74] sm:$0xf]
  %v240 = vld [vmem:[%s1 + $0x78] sm:$0xf]
  %v241 = vld [vmem:[%s1 + $0x7c] sm:$0xf]
  %v242 = vld [vmem:[%s1 + $0x80] sm:$0xf]
  %v243 = vld [vmem:[%s1 + $0x84] sm:$0xf]
  %v244 = vld [vmem:[%s1 + $0x88] sm:$0xf]
  %v245 = vld [vmem:[%s1 + $0x8c] sm:$0xf]
  %v246 = vld [vmem:[%s1 + $0x90] sm:$0xf]
  %v247 = vld [vmem:[%s1 + $0x94] sm:$0xf]
  %v248 = vld [vmem:[%s1 + $0x98] sm:$0xf]
  %v249 = vld [vmem:[%s1 + $0x9c] sm:$0xf]
  %v250 = vld [vmem:[%s1 + $0xa0] sm:$0xf]
  %v251 = vld [vmem:[%s1 + $0xa4] sm:$0xf]
  %v252 = vld [vmem:[%s1 + $0xa8] sm:$0xf]
  %v253 = vld [vmem:[%s1 + $0xac] sm:$0xf]
  %v254 = vld [vmem:[%s1 + $0xb0] sm:$0xf]
  %v255 = vld [vmem:[%s1 + $0xb4] sm:$0xf]
  %v256 = vld [vmem:[%s1 + $0xb8] sm:$0xf]
  %v257 = vld [vmem:[%s1 + $0xbc] sm:$0xf]
  %v258 = vld [vmem:[%s1 + $0xc0] sm:$0xf]
  %v259 = vld [vmem:[%s1 + $0xc4] sm:$0xf]
  %v260 = vld [vmem:[%s1 + $0xc8] sm:$0xf]
  %v261 = vld [vmem:[%s1 + $0xcc] sm:$0xf]
  %v262 = vld [vmem:[%s1 + $0xd0] sm:$0xf]
  %v263 = vld [vmem:[%s1 + $0xd4] sm:$0xf]
  %v264 = vld [vmem:[%s1 + $0xd8] sm:$0xf]
  %v265 = vld [vmem:[%s1 + $0xdc] sm:$0xf]
  %v266 = vld [vmem:[%s1 + $0xe0] sm:$0xf]
  %v267 = vld [vmem:[%s1 + $0xe4] sm:$0xf]
  %v268 = vld [vmem:[%s1 + $0xe8] sm:$0xf]
  %v269 = vld [vmem:[%s1 + $0xec] sm:$0xf]
  %v270 = vld [vmem:[%s1 + $0xf0] sm:$0xf]
  %v271 = vld [vmem:[%s1 + $0xf4] sm:$0xf]
  %v272 = vld [vmem:[%s1 + $0xf8] sm:$0xf]
  %v273 = vld [vmem:[%s1 + $0xfc] sm:$0xf]
  %v274 = vld [vmem:[%s1 + $0x100] sm:$0xf]
  %v275 = vld [vmem:[%s1 + $0x104] sm:$0xf]
  %v276 = vld [vmem:[%s1 + $0x108] sm:$0xf]
  %v277 = vld [vmem:[%s1 + $0x10c] sm:$0xf]
  %v278 = vld [vmem:[%s1 + $0x110] sm:$0xf]
  %v279 = vld [vmem:[%s1 + $0x114] sm:$0xf]
  %v280 = vld [vmem:[%s1 + $0x118] sm:$0xf]
  %v281 = vld [vmem:[%s1 + $0x11c] sm:$0xf]
  %v474 = vunpack.c.l.b16 %v18
  %v475 = vunpack.c.h.b16 %v18
  %v476 = vunpack.c.l.b16 %v19
  %v477 = vunpack.c.h.b16 %v19
  %v478 = vunpack.c.l.b16 %v20
  %v479 = vunpack.c.l.b16 %v21
  %v480 = vunpack.c.h.b16 %v21
  %v481 = vunpack.c.l.b16 %v22
  %v482 = vunpack.c.h.b16 %v22
  %v483 = vunpack.c.l.b16 %v23
  %v484 = vunpack.c.l.b16 %v24
  %v485 = vunpack.c.h.b16 %v24
  %v486 = vunpack.c.l.b16 %v25
  %v487 = vunpack.c.h.b16 %v25
  %v488 = vunpack.c.l.b16 %v26
  %v489 = vunpack.c.l.b16 %v27
  %v490 = vunpack.c.h.b16 %v27
  %v491 = vunpack.c.l.b16 %v28
  %v492 = vunpack.c.h.b16 %v28
  %v493 = vunpack.c.l.b16 %v29
  %v494 = vunpack.c.l.b16 %v30
  %v495 = vunpack.c.h.b16 %v30
  %v496 = vunpack.c.l.b16 %v31
  %v497 = vunpack.c.h.b16 %v31
  %v498 = vunpack.c.l.b16 %v32
  %v499 = vunpack.c.l.b16 %v33
  %v500 = vunpack.c.h.b16 %v33
  %v501 = vunpack.c.l.b16 %v34
  %v502 = vunpack.c.h.b16 %v34
  %v503 = vunpack.c.l.b16 %v35
  %v504 = vunpack.c.l.b16 %v36
  %v505 = vunpack.c.h.b16 %v36
  %v506 = vunpack.c.l.b16 %v37
  %v507 = vunpack.c.h.b16 %v37
  %v508 = vunpack.c.l.b16 %v38
  %v509 = vunpack.c.l.b16 %v39
  %v510 = vunpack.c.h.b16 %v39
  %v511 = vunpack.c.l.b16 %v40
  %v512 = vunpack.c.h.b16 %v40
  %v513 = vunpack.c.l.b16 %v41
  %v514 = vunpack.c.l.b16 %v42
  %v515 = vunpack.c.h.b16 %v42
  %v516 = vunpack.c.l.b16 %v43
  %v517 = vunpack.c.h.b16 %v43
  %v518 = vunpack.c.l.b16 %v44
  %v519 = vunpack.c.l.b16 %v45
  %v520 = vunpack.c.h.b16 %v45
  %v521 = vunpack.c.l.b16 %v46
  %v522 = vunpack.c.h.b16 %v46
  %v523 = vunpack.c.l.b16 %v47
  %v524 = vunpack.c.l.b16 %v48
  %v525 = vunpack.c.h.b16 %v48
  %v526 = vunpack.c.l.b16 %v49
  %v527 = vunpack.c.h.b16 %v49
  %v528 = vunpack.c.l.b16 %v50
  %v529 = vunpack.c.l.b16 %v51
  %v530 = vunpack.c.h.b16 %v51
  %v531 = vunpack.c.l.b16 %v52
  %v532 = vunpack.c.h.b16 %v52
  %v533 = vunpack.c.l.b16 %v53
  %v534 = vunpack.c.l.b16 %v54
  %v535 = vunpack.c.h.b16 %v54
  %v536 = vunpack.c.l.b16 %v55
  %v537 = vunpack.c.h.b16 %v55
  %v538 = vunpack.c.l.b16 %v56
  %v539 = vunpack.c.l.b16 %v57
  %v540 = vunpack.c.h.b16 %v57
  %v541 = vunpack.c.l.b16 %v58
  %v542 = vunpack.c.h.b16 %v58
  %v543 = vunpack.c.l.b16 %v59
  %v544 = vunpack.c.l.b16 %v60
  %v545 = vunpack.c.h.b16 %v60
  %v546 = vunpack.c.l.b16 %v61
  %v547 = vunpack.c.h.b16 %v61
  %v548 = vunpack.c.l.b16 %v62
  %v549 = vunpack.c.l.b16 %v63
  %v550 = vunpack.c.h.b16 %v63
  %v551 = vunpack.c.l.b16 %v64
  %v552 = vunpack.c.h.b16 %v64
  %v553 = vunpack.c.l.b16 %v65
  %v554 = vunpack.c.l.b16 %v66
  %v555 = vunpack.c.h.b16 %v66
  %v556 = vunpack.c.l.b16 %v67
  %v557 = vunpack.c.h.b16 %v67
  %v558 = vunpack.c.l.b16 %v68
  %v559 = vunpack.c.l.b16 %v69
  %v560 = vunpack.c.h.b16 %v69
  %v561 = vunpack.c.l.b16 %v70
  %v562 = vunpack.c.h.b16 %v70
  %v563 = vunpack.c.l.b16 %v71
  %v564 = vunpack.c.l.b16 %v72
  %v565 = vunpack.c.h.b16 %v72
  %v566 = vunpack.c.l.b16 %v73
  %v567 = vunpack.c.h.b16 %v73
  %v568 = vunpack.c.l.b16 %v74
  %v569 = vunpack.c.l.b16 %v75
  %v570 = vunpack.c.h.b16 %v75
  %v571 = vunpack.c.l.b16 %v76
  %v572 = vunpack.c.h.b16 %v76
  %v573 = vunpack.c.l.b16 %v77
  %v574 = vunpack.c.l.b16 %v78
  %v575 = vunpack.c.h.b16 %v78
  %v576 = vunpack.c.l.b16 %v79
  %v577 = vunpack.c.h.b16 %v79
  %v578 = vunpack.c.l.b16 %v80
  %v579 = vunpack.c.l.b16 %v81
  %v580 = vunpack.c.h.b16 %v81
  %v581 = vunpack.c.l.b16 %v82
  %v582 = vunpack.c.h.b16 %v82
  %v583 = vunpack.c.l.b16 %v83
  %v584 = vunpack.c.l.b16 %v84
  %v585 = vunpack.c.h.b16 %v84
  %v586 = vunpack.c.l.b16 %v85
  %v587 = vunpack.c.h.b16 %v85
  %v588 = vunpack.c.l.b16 %v86
  %v589 = vunpack.c.l.b16 %v87
  %v590 = vunpack.c.h.b16 %v87
  %v591 = vunpack.c.l.b16 %v88
  %v592 = vunpack.c.h.b16 %v88
  %v593 = vunpack.c.l.b16 %v89
  %v594 = vunpack.c.l.b16 %v90
  %v595 = vunpack.c.h.b16 %v90
  %v596 = vunpack.c.l.b16 %v91
  %v597 = vunpack.c.h.b16 %v91
  %v598 = vunpack.c.l.b16 %v92
  %v599 = vunpack.c.l.b16 %v93
  %v600 = vunpack.c.h.b16 %v93
  %v601 = vunpack.c.l.b16 %v94
  %v602 = vunpack.c.h.b16 %v94
  %v603 = vunpack.c.l.b16 %v95
  %v604 = vunpack.c.l.b16 %v96
  %v605 = vunpack.c.h.b16 %v96
  %v606 = vunpack.c.l.b16 %v97
  %v607 = vunpack.c.h.b16 %v97
  %v608 = vunpack.c.l.b16 %v98
  %v609 = vunpack.c.l.b16 %v99
  %v610 = vunpack.c.h.b16 %v99
  %v611 = vunpack.c.l.b16 %v100
  %v612 = vunpack.c.h.b16 %v100
  %v613 = vunpack.c.l.b16 %v101
  %v614 = vunpack.c.l.b16 %v102
  %v615 = vunpack.c.h.b16 %v102
  %v616 = vunpack.c.l.b16 %v103
  %v617 = vunpack.c.h.b16 %v103
  %v618 = vunpack.c.l.b16 %v104
  %v619 = vunpack.c.l.b16 %v105
  %v620 = vunpack.c.h.b16 %v105
  %v621 = vunpack.c.l.b16 %v106
  %v622 = vunpack.c.h.b16 %v106
  %v623 = vunpack.c.l.b16 %v107
  %v624 = vunpack.c.l.b16 %v108
  %v625 = vunpack.c.h.b16 %v108
  %v626 = vunpack.c.l.b16 %v109
  %v627 = vunpack.c.h.b16 %v109
  %v628 = vunpack.c.l.b16 %v110
  %v629 = vunpack.c.l.b16 %v111
  %v630 = vunpack.c.h.b16 %v111
  %v631 = vunpack.c.l.b16 %v112
  %v632 = vunpack.c.h.b16 %v112
  %v633 = vunpack.c.l.b16 %v113
  %v634 = vunpack.c.l.b16 %v114
  %v635 = vunpack.c.h.b16 %v114
  %v636 = vunpack.c.l.b16 %v115
  %v637 = vunpack.c.h.b16 %v115
  %v638 = vunpack.c.l.b16 %v116
  %v639 = vunpack.c.l.b16 %v117
  %v640 = vunpack.c.h.b16 %v117
  %v641 = vunpack.c.l.b16 %v118
  %v642 = vunpack.c.h.b16 %v118
  %v643 = vunpack.c.l.b16 %v119
  %v644 = vunpack.c.l.b16 %v120
  %v645 = vunpack.c.h.b16 %v120
  %v646 = vunpack.c.l.b16 %v121
  %v647 = vunpack.c.h.b16 %v121
  %v648 = vunpack.c.l.b16 %v122
  %v649 = vunpack.c.l.b16 %v123
  %v650 = vunpack.c.h.b16 %v123
  %v651 = vunpack.c.l.b16 %v124
  %v652 = vunpack.c.h.b16 %v124
  %v653 = vunpack.c.l.b16 %v125
  %v654 = vunpack.c.l.b16 %v126
  %v655 = vunpack.c.h.b16 %v126
  %v656 = vunpack.c.l.b16 %v127
  %v657 = vunpack.c.h.b16 %v127
  %v658 = vunpack.c.l.b16 %v128
  %v659 = vunpack.c.l.b16 %v129
  %v660 = vunpack.c.h.b16 %v129
  %v661 = vunpack.c.l.b16 %v130
  %v662 = vunpack.c.h.b16 %v130
  %v663 = vunpack.c.l.b16 %v131
  %v664 = vunpack.c.l.b16 %v132
  %v665 = vunpack.c.h.b16 %v132
  %v666 = vunpack.c.l.b16 %v133
  %v667 = vunpack.c.h.b16 %v133
  %v668 = vunpack.c.l.b16 %v134
  %v669 = vunpack.c.l.b16 %v135
  %v670 = vunpack.c.h.b16 %v135
  %v671 = vunpack.c.l.b16 %v136
  %v672 = vunpack.c.h.b16 %v136
  %v673 = vunpack.c.l.b16 %v137
  %v674 = vunpack.c.l.b16 %v138
  %v675 = vunpack.c.h.b16 %v138
  %v676 = vunpack.c.l.b16 %v139
  %v677 = vunpack.c.h.b16 %v139
  %v678 = vunpack.c.l.b16 %v140
  %v679 = vunpack.c.l.b16 %v141
  %v680 = vunpack.c.h.b16 %v141
  %v681 = vunpack.c.l.b16 %v142
  %v682 = vunpack.c.h.b16 %v142
  %v683 = vunpack.c.l.b16 %v143
  %v684 = vunpack.c.l.b16 %v144
  %v685 = vunpack.c.h.b16 %v144
  %v686 = vunpack.c.l.b16 %v145
  %v687 = vunpack.c.h.b16 %v145
  %v688 = vunpack.c.l.b16 %v146
  %v689 = vunpack.c.l.b16 %v147
  %v690 = vunpack.c.h.b16 %v147
  %v691 = vunpack.c.l.b16 %v148
  %v692 = vunpack.c.h.b16 %v148
  %v693 = vunpack.c.l.b16 %v149
  %v694 = vunpack.c.l.b16 %v150
  %v695 = vunpack.c.h.b16 %v150
  %v696 = vunpack.c.l.b16 %v151
  %v697 = vunpack.c.h.b16 %v151
  %v698 = vunpack.c.l.b16 %v152
  %v699 = vunpack.c.l.b16 %v153
  %v700 = vunpack.c.h.b16 %v153
  %v701 = vunpack.c.l.b16 %v154
  %v702 = vunpack.c.h.b16 %v154
  %v703 = vunpack.c.l.b16 %v155
  %v704 = vunpack.c.l.b16 %v156
  %v705 = vunpack.c.h.b16 %v156
  %v706 = vunpack.c.l.b16 %v157
  %v707 = vunpack.c.h.b16 %v157
  %v708 = vunpack.c.l.b16 %v158
  %v709 = vunpack.c.l.b16 %v159
  %v710 = vunpack.c.h.b16 %v159
  %v711 = vunpack.c.l.b16 %v160
  %v712 = vunpack.c.h.b16 %v160
  %v713 = vunpack.c.l.b16 %v161
  %v714 = vunpack.c.l.b16 %v162
  %v715 = vunpack.c.h.b16 %v162
  %v716 = vunpack.c.l.b16 %v163
  %v717 = vunpack.c.h.b16 %v163
  %v718 = vunpack.c.l.b16 %v164
  %v719 = vunpack.c.l.b16 %v165
  %v720 = vunpack.c.h.b16 %v165
  %v721 = vunpack.c.l.b16 %v166
  %v722 = vunpack.c.h.b16 %v166
  %v723 = vunpack.c.l.b16 %v167
  %v724 = vunpack.c.l.b16 %v168
  %v725 = vunpack.c.h.b16 %v168
  %v726 = vunpack.c.l.b16 %v169
  %v727 = vunpack.c.h.b16 %v169
  %v728 = vunpack.c.l.b16 %v170
  %v729 = vunpack.c.l.b16 %v171
  %v730 = vunpack.c.h.b16 %v171
  %v731 = vunpack.c.l.b16 %v172
  %v732 = vunpack.c.h.b16 %v172
  %v733 = vunpack.c.l.b16 %v173
  %v734 = vunpack.c.l.b16 %v174
  %v735 = vunpack.c.h.b16 %v174
  %v736 = vunpack.c.l.b16 %v175
  %v737 = vunpack.c.h.b16 %v175
  %v738 = vunpack.c.l.b16 %v176
  %v739 = vunpack.c.l.b16 %v177
  %v740 = vunpack.c.h.b16 %v177
  %v741 = vunpack.c.l.b16 %v178
  %v742 = vunpack.c.h.b16 %v178
  %v743 = vunpack.c.l.b16 %v179
  %v744 = vunpack.c.l.b16 %v180
  %v745 = vunpack.c.h.b16 %v180
  %v746 = vunpack.c.l.b16 %v181
  %v747 = vunpack.c.h.b16 %v181
  %v748 = vunpack.c.l.b16 %v182
  %v749 = vunpack.c.l.b16 %v183
  %v750 = vunpack.c.h.b16 %v183
  %v751 = vunpack.c.l.b16 %v184
  %v752 = vunpack.c.h.b16 %v184
  %v753 = vunpack.c.l.b16 %v185
  %v754 = vunpack.c.l.b16 %v186
  %v755 = vunpack.c.h.b16 %v186
  %v756 = vunpack.c.l.b16 %v187
  %v757 = vunpack.c.h.b16 %v187
  %v758 = vunpack.c.l.b16 %v188
  %v759 = vunpack.c.l.b16 %v189
  %v760 = vunpack.c.h.b16 %v189
  %v761 = vunpack.c.l.b16 %v190
  %v762 = vunpack.c.h.b16 %v190
  %v763 = vunpack.c.l.b16 %v191
  %v764 = vunpack.c.l.b16 %v192
  %v765 = vunpack.c.h.b16 %v192
  %v766 = vunpack.c.l.b16 %v193
  %v767 = vunpack.c.h.b16 %v193
  %v768 = vunpack.c.l.b16 %v194
  %v769 = vunpack.c.l.b16 %v195
  %v770 = vunpack.c.h.b16 %v195
  %v771 = vunpack.c.l.b16 %v196
  %v772 = vunpack.c.h.b16 %v196
  %v773 = vunpack.c.l.b16 %v197
  %v774 = vunpack.c.l.b16 %v198
  %v775 = vunpack.c.h.b16 %v198
  %v776 = vunpack.c.l.b16 %v199
  %v777 = vunpack.c.h.b16 %v199
  %v778 = vunpack.c.l.b16 %v200
  %v779 = vunpack.c.l.b16 %v201
  %v780 = vunpack.c.h.b16 %v201
  %v781 = vunpack.c.l.b16 %v202
  %v782 = vunpack.c.h.b16 %v202
  %v783 = vunpack.c.l.b16 %v203
  %v784 = vunpack.c.l.b16 %v204
  %v785 = vunpack.c.h.b16 %v204
  %v786 = vunpack.c.l.b16 %v205
  %v787 = vunpack.c.h.b16 %v205
  %v788 = vunpack.c.l.b16 %v206
  %v789 = vunpack.c.l.b16 %v207
  %v790 = vunpack.c.h.b16 %v207
  %v791 = vunpack.c.l.b16 %v208
  %v792 = vunpack.c.h.b16 %v208
  %v793 = vunpack.c.l.b16 %v209
  %v794 = vpack.c.b16 %v479, %v474
  %v795 = vpack.c.b16 %v480, %v475
  %v796 = vpack.c.b16 %v481, %v476
  %v797 = vpack.c.b16 %v482, %v477
  %v798 = vpack.c.b16 %v483, %v478
  %v799 = vpack.c.b16 %v489, %v484
  %v800 = vpack.c.b16 %v490, %v485
  %v801 = vpack.c.b16 %v491, %v486
  %v802 = vpack.c.b16 %v492, %v487
  %v803 = vpack.c.b16 %v493, %v488
  %v804 = vpack.c.b16 %v499, %v494
  %v805 = vpack.c.b16 %v500, %v495
  %v806 = vpack.c.b16 %v501, %v496
  %v807 = vpack.c.b16 %v502, %v497
  %v808 = vpack.c.b16 %v503, %v498
  %v809 = vpack.c.b16 %v509, %v504
  %v810 = vpack.c.b16 %v510, %v505
  %v811 = vpack.c.b16 %v511, %v506
  %v812 = vpack.c.b16 %v512, %v507
  %v813 = vpack.c.b16 %v513, %v508
  %v814 = vpack.c.b16 %v519, %v514
  %v815 = vpack.c.b16 %v520, %v515
  %v816 = vpack.c.b16 %v521, %v516
  %v817 = vpack.c.b16 %v522, %v517
  %v818 = vpack.c.b16 %v523, %v518
  %v819 = vpack.c.b16 %v529, %v524
  %v820 = vpack.c.b16 %v530, %v525
  %v821 = vpack.c.b16 %v531, %v526
  %v822 = vpack.c.b16 %v532, %v527
  %v823 = vpack.c.b16 %v533, %v528
  %v824 = vpack.c.b16 %v539, %v534
  %v825 = vpack.c.b16 %v540, %v535
  %v826 = vpack.c.b16 %v541, %v536
  %v827 = vpack.c.b16 %v542, %v537
  %v828 = vpack.c.b16 %v543, %v538
  %v829 = vpack.c.b16 %v549, %v544
  %v830 = vpack.c.b16 %v550, %v545
  %v831 = vpack.c.b16 %v551, %v546
  %v832 = vpack.c.b16 %v552, %v547
  %v833 = vpack.c.b16 %v553, %v548
  %v834 = vpack.c.b16 %v559, %v554
  %v835 = vpack.c.b16 %v560, %v555
  %v836 = vpack.c.b16 %v561, %v556
  %v837 = vpack.c.b16 %v562, %v557
  %v838 = vpack.c.b16 %v563, %v558
  %v839 = vpack.c.b16 %v569, %v564
  %v840 = vpack.c.b16 %v570, %v565
  %v841 = vpack.c.b16 %v571, %v566
  %v842 = vpack.c.b16 %v572, %v567
  %v843 = vpack.c.b16 %v573, %v568
  %v844 = vpack.c.b16 %v579, %v574
  %v845 = vpack.c.b16 %v580, %v575
  %v846 = vpack.c.b16 %v581, %v576
  %v847 = vpack.c.b16 %v582, %v577
  %v848 = vpack.c.b16 %v583, %v578
  %v849 = vpack.c.b16 %v589, %v584
  %v850 = vpack.c.b16 %v590, %v585
  %v851 = vpack.c.b16 %v591, %v586
  %v852 = vpack.c.b16 %v592, %v587
  %v853 = vpack.c.b16 %v593, %v588
  %v854 = vpack.c.b16 %v599, %v594
  %v855 = vpack.c.b16 %v600, %v595
  %v856 = vpack.c.b16 %v601, %v596
  %v857 = vpack.c.b16 %v602, %v597
  %v858 = vpack.c.b16 %v603, %v598
  %v859 = vpack.c.b16 %v609, %v604
  %v860 = vpack.c.b16 %v610, %v605
  %v861 = vpack.c.b16 %v611, %v606
  %v862 = vpack.c.b16 %v612, %v607
  %v863 = vpack.c.b16 %v613, %v608
  %v864 = vpack.c.b16 %v619, %v614
  %v865 = vpack.c.b16 %v620, %v615
  %v866 = vpack.c.b16 %v621, %v616
  %v867 = vpack.c.b16 %v622, %v617
  %v868 = vpack.c.b16 %v623, %v618
  %v869 = vpack.c.b16 %v629, %v624
  %v870 = vpack.c.b16 %v630, %v625
  %v871 = vpack.c.b16 %v631, %v626
  %v872 = vpack.c.b16 %v632, %v627
  %v873 = vpack.c.b16 %v633, %v628
  %v874 = vpack.c.b16 %v639, %v634
  %v875 = vpack.c.b16 %v640, %v635
  %v876 = vpack.c.b16 %v641, %v636
  %v877 = vpack.c.b16 %v642, %v637
  %v878 = vpack.c.b16 %v643, %v638
  %v879 = vpack.c.b16 %v649, %v644
  %v880 = vpack.c.b16 %v650, %v645
  %v881 = vpack.c.b16 %v651, %v646
  %v882 = vpack.c.b16 %v652, %v647
  %v883 = vpack.c.b16 %v653, %v648
  %v884 = vpack.c.b16 %v659, %v654
  %v885 = vpack.c.b16 %v660, %v655
  %v886 = vpack.c.b16 %v661, %v656
  %v887 = vpack.c.b16 %v662, %v657
  %v888 = vpack.c.b16 %v663, %v658
  %v889 = vpack.c.b16 %v669, %v664
  %v890 = vpack.c.b16 %v670, %v665
  %v891 = vpack.c.b16 %v671, %v666
  %v892 = vpack.c.b16 %v672, %v667
  %v893 = vpack.c.b16 %v673, %v668
  %v894 = vpack.c.b16 %v679, %v674
  %v895 = vpack.c.b16 %v680, %v675
  %v896 = vpack.c.b16 %v681, %v676
  %v897 = vpack.c.b16 %v682, %v677
  %v898 = vpack.c.b16 %v683, %v678
  %v899 = vpack.c.b16 %v689, %v684
  %v900 = vpack.c.b16 %v690, %v685
  %v901 = vpack.c.b16 %v691, %v686
  %v902 = vpack.c.b16 %v692, %v687
  %v903 = vpack.c.b16 %v693, %v688
  %v904 = vpack.c.b16 %v699, %v694
  %v905 = vpack.c.b16 %v700, %v695
  %v906 = vpack.c.b16 %v701, %v696
  %v907 = vpack.c.b16 %v702, %v697
  %v908 = vpack.c.b16 %v703, %v698
  %v909 = vpack.c.b16 %v709, %v704
  %v910 = vpack.c.b16 %v710, %v705
  %v911 = vpack.c.b16 %v711, %v706
  %v912 = vpack.c.b16 %v712, %v707
  %v913 = vpack.c.b16 %v713, %v708
  %v914 = vpack.c.b16 %v719, %v714
  %v915 = vpack.c.b16 %v720, %v715
  %v916 = vpack.c.b16 %v721, %v716
  %v917 = vpack.c.b16 %v722, %v717
  %v918 = vpack.c.b16 %v723, %v718
  %v919 = vpack.c.b16 %v729, %v724
  %v920 = vpack.c.b16 %v730, %v725
  %v921 = vpack.c.b16 %v731, %v726
  %v922 = vpack.c.b16 %v732, %v727
  %v923 = vpack.c.b16 %v733, %v728
  %v924 = vpack.c.b16 %v739, %v734
  %v925 = vpack.c.b16 %v740, %v735
  %v926 = vpack.c.b16 %v741, %v736
  %v927 = vpack.c.b16 %v742, %v737
  %v928 = vpack.c.b16 %v743, %v738
  %v929 = vpack.c.b16 %v749, %v744
  %v930 = vpack.c.b16 %v750, %v745
  %v931 = vpack.c.b16 %v751, %v746
  %v932 = vpack.c.b16 %v752, %v747
  %v933 = vpack.c.b16 %v753, %v748
  %v934 = vpack.c.b16 %v759, %v754
  %v935 = vpack.c.b16 %v760, %v755
  %v936 = vpack.c.b16 %v761, %v756
  %v937 = vpack.c.b16 %v762, %v757
  %v938 = vpack.c.b16 %v763, %v758
  %v939 = vpack.c.b16 %v769, %v764
  %v940 = vpack.c.b16 %v770, %v765
  %v941 = vpack.c.b16 %v771, %v766
  %v942 = vpack.c.b16 %v772, %v767
  %v943 = vpack.c.b16 %v773, %v768
  %v944 = vpack.c.b16 %v779, %v774
  %v945 = vpack.c.b16 %v780, %v775
  %v946 = vpack.c.b16 %v781, %v776
  %v947 = vpack.c.b16 %v782, %v777
  %v948 = vpack.c.b16 %v783, %v778
  %v949 = vpack.c.b16 %v789, %v784
  %v950 = vpack.c.b16 %v790, %v785
  %v951 = vpack.c.b16 %v791, %v786
  %v952 = vpack.c.b16 %v792, %v787
  %v953 = vpack.c.b16 %v793, %v788
  %v1154 = vunpack.c.l.b16 %v210
  %v1155 = vunpack.c.l.b16 %v211
  %v1156 = vunpack.c.l.b16 %v212
  %v1157 = vunpack.c.l.b16 %v213
  %v1158 = vunpack.c.l.b16 %v214
  %v1159 = vunpack.c.l.b16 %v215
  %v1160 = vunpack.c.l.b16 %v216
  %v1161 = vunpack.c.l.b16 %v217
  %v1162 = vunpack.c.l.b16 %v218
  %v1163 = vunpack.c.l.b16 %v219
  %v1164 = vunpack.c.l.b16 %v220
  %v1165 = vunpack.c.l.b16 %v221
  %v1166 = vunpack.c.l.b16 %v222
  %v1167 = vunpack.c.l.b16 %v223
  %v1168 = vunpack.c.l.b16 %v224
  %v1169 = vunpack.c.l.b16 %v225
  %v1170 = vunpack.c.l.b16 %v226
  %v1171 = vunpack.c.l.b16 %v227
  %v1172 = vunpack.c.l.b16 %v228
  %v1173 = vunpack.c.l.b16 %v229
  %v1174 = vunpack.c.l.b16 %v230
  %v1175 = vunpack.c.l.b16 %v231
  %v1176 = vunpack.c.l.b16 %v232
  %v1177 = vunpack.c.l.b16 %v233
  %v1178 = vunpack.c.l.b16 %v234
  %v1179 = vunpack.c.l.b16 %v235
  %v1180 = vunpack.c.l.b16 %v236
  %v1181 = vunpack.c.l.b16 %v237
  %v1182 = vunpack.c.l.b16 %v238
  %v1183 = vunpack.c.l.b16 %v239
  %v1184 = vunpack.c.l.b16 %v240
  %v1185 = vunpack.c.l.b16 %v241
  %v1186 = vunpack.c.l.b16 %v242
  %v1187 = vunpack.c.l.b16 %v243
  %v1188 = vunpack.c.l.b16 %v244
  %v1189 = vunpack.c.l.b16 %v245
  %v1190 = vunpack.c.l.b16 %v246
  %v1191 = vunpack.c.l.b16 %v247
  %v1192 = vunpack.c.l.b16 %v248
  %v1193 = vunpack.c.l.b16 %v249
  %v1194 = vunpack.c.l.b16 %v250
  %v1195 = vunpack.c.l.b16 %v251
  %v1196 = vunpack.c.l.b16 %v252
  %v1197 = vunpack.c.l.b16 %v253
  %v1198 = vunpack.c.l.b16 %v254
  %v1199 = vunpack.c.l.b16 %v255
  %v1200 = vunpack.c.l.b16 %v256
  %v1201 = vunpack.c.l.b16 %v257
  %v1202 = vunpack.c.l.b16 %v258
  %v1203 = vunpack.c.l.b16 %v259
  %v1204 = vunpack.c.l.b16 %v260
  %v1205 = vunpack.c.l.b16 %v261
  %v1206 = vunpack.c.l.b16 %v262
  %v1207 = vunpack.c.l.b16 %v263
  %v1208 = vunpack.c.l.b16 %v264
  %v1209 = vunpack.c.l.b16 %v265
  %v1210 = vunpack.c.l.b16 %v266
  %v1211 = vunpack.c.l.b16 %v267
  %v1212 = vunpack.c.l.b16 %v268
  %v1213 = vunpack.c.l.b16 %v269
  %v1214 = vunpack.c.l.b16 %v270
  %v1215 = vunpack.c.l.b16 %v271
  %v1216 = vunpack.c.l.b16 %v272
  %v1217 = vunpack.c.l.b16 %v273
  %v1218 = vunpack.c.l.b16 %v274
  %v1219 = vunpack.c.l.b16 %v275
  %v1220 = vunpack.c.l.b16 %v276
  %v1221 = vunpack.c.l.b16 %v277
  %v1222 = vunpack.c.l.b16 %v278
  %v1223 = vunpack.c.l.b16 %v279
  %v1224 = vunpack.c.l.b16 %v280
  %v1225 = vunpack.c.l.b16 %v281
  %v1226 = vpack.c.b16 %v1155, %v1154
  %v1227 = vpack.c.b16 %v1157, %v1156
  %v1228 = vpack.c.b16 %v1159, %v1158
  %v1229 = vpack.c.b16 %v1161, %v1160
  %v1230 = vpack.c.b16 %v1163, %v1162
  %v1231 = vpack.c.b16 %v1165, %v1164
  %v1232 = vpack.c.b16 %v1167, %v1166
  %v1233 = vpack.c.b16 %v1169, %v1168
  %v1234 = vpack.c.b16 %v1171, %v1170
  %v1235 = vpack.c.b16 %v1173, %v1172
  %v1236 = vpack.c.b16 %v1175, %v1174
  %v1237 = vpack.c.b16 %v1177, %v1176
  %v1238 = vpack.c.b16 %v1179, %v1178
  %v1239 = vpack.c.b16 %v1181, %v1180
  %v1240 = vpack.c.b16 %v1183, %v1182
  %v1241 = vpack.c.b16 %v1185, %v1184
  %v1242 = vpack.c.b16 %v1187, %v1186
  %v1243 = vpack.c.b16 %v1189, %v1188
  %v1244 = vpack.c.b16 %v1191, %v1190
  %v1245 = vpack.c.b16 %v1193, %v1192
  %v1246 = vpack.c.b16 %v1195, %v1194
  %v1247 = vpack.c.b16 %v1197, %v1196
  %v1248 = vpack.c.b16 %v1199, %v1198
  %v1249 = vpack.c.b16 %v1201, %v1200
  %v1250 = vpack.c.b16 %v1203, %v1202
  %v1251 = vpack.c.b16 %v1205, %v1204
  %v1252 = vpack.c.b16 %v1207, %v1206
  %v1253 = vpack.c.b16 %v1209, %v1208
  %v1254 = vpack.c.b16 %v1211, %v1210
  %v1255 = vpack.c.b16 %v1213, %v1212
  %v1256 = vpack.c.b16 %v1215, %v1214
  %v1257 = vpack.c.b16 %v1217, %v1216
  %v1258 = vpack.c.b16 %v1219, %v1218
  %v1259 = vpack.c.b16 %v1221, %v1220
  %v1260 = vpack.c.b16 %v1223, %v1222
  %v1261 = vpack.c.b16 %v1225, %v1224
  %vm1298 = vcmask 523264
  %v1300 = vsel %vm1298, %v798, 0
  %v1303 = vsel %vm1298, %v803, 0
  %v1306 = vsel %vm1298, %v808, 0
  %v1309 = vsel %vm1298, %v813, 0
  %v1312 = vsel %vm1298, %v818, 0
  %v1315 = vsel %vm1298, %v823, 0
  %v1318 = vsel %vm1298, %v828, 0
  %v1321 = vsel %vm1298, %v833, 0
  %v1324 = vsel %vm1298, %v838, 0
  %v1327 = vsel %vm1298, %v843, 0
  %v1330 = vsel %vm1298, %v848, 0
  %v1333 = vsel %vm1298, %v853, 0
  %v1336 = vsel %vm1298, %v858, 0
  %v1339 = vsel %vm1298, %v863, 0
  %v1342 = vsel %vm1298, %v868, 0
  %v1345 = vsel %vm1298, %v873, 0
  %v1348 = vsel %vm1298, %v878, 0
  %v1351 = vsel %vm1298, %v883, 0
  %v1354 = vsel %vm1298, %v888, 0
  %v1357 = vsel %vm1298, %v893, 0
  %v1360 = vsel %vm1298, %v898, 0
  %v1363 = vsel %vm1298, %v903, 0
  %v1366 = vsel %vm1298, %v908, 0
  %v1369 = vsel %vm1298, %v913, 0
  %v1372 = vsel %vm1298, %v918, 0
  %v1375 = vsel %vm1298, %v923, 0
  %v1378 = vsel %vm1298, %v928, 0
  %v1381 = vsel %vm1298, %v933, 0
  %v1384 = vsel %vm1298, %v938, 0
  %v1387 = vsel %vm1298, %v943, 0
  %v1390 = vsel %vm1298, %v948, 0
  %v1393 = vsel %vm1298, %v953, 0
  %1395 = vmatpush.bf16.msra.mxu0 %v1233
  %1396 = vmatpush.bf16.msra.mxu0 %v1232
  %1397 = vmatpush.bf16.msra.mxu0 %v1231
  %1398 = vmatpush.bf16.msra.mxu0 %v1230
  %1399 = vmatpush.bf16.msra.mxu0 %v1229
  %1400 = vmatpush.bf16.msra.mxu0 %v1228
  %1401 = vmatpush.bf16.msra.mxu0 %v1227
  %1402 = vmatpush.bf16.msra.mxu0 %v1226
  %1403 = vmatmul.bf16.gmra.mxu0 %v794
  %v1404 = vpop.f32.mrf.mxu0
  %v1405 = vadd.f32 0.0, %v1404
  %v1406 = vpop.f32.mrf.mxu0
  %v1407 = vadd.f32 0.0, %v1406
  %1408 = vmatmul.bf16.gmra.mxu0 %v799
  %v1409 = vpop.f32.mrf.mxu0
  %v1410 = vadd.f32 0.0, %v1409
  %v1411 = vpop.f32.mrf.mxu0
  %v1412 = vadd.f32 0.0, %v1411
  %1413 = vmatmul.bf16.gmra.mxu0 %v804
  %v1414 = vpop.f32.mrf.mxu0
  %v1415 = vadd.f32 0.0, %v1414
  %v1416 = vpop.f32.mrf.mxu0
  %v1417 = vadd.f32 0.0, %v1416
  %1418 = vmatmul.bf16.gmra.mxu0 %v809
  %v1419 = vpop.f32.mrf.mxu0
  %v1420 = vadd.f32 0.0, %v1419
  %v1421 = vpop.f32.mrf.mxu0
  %v1422 = vadd.f32 0.0, %v1421
  %1423 = vmatmul.bf16.gmra.mxu0 %v814
  %v1424 = vpop.f32.mrf.mxu0
  %v1425 = vadd.f32 0.0, %v1424
  %v1426 = vpop.f32.mrf.mxu0
  %v1427 = vadd.f32 0.0, %v1426
  %1428 = vmatmul.bf16.gmra.mxu0 %v819
  %v1429 = vpop.f32.mrf.mxu0
  %v1430 = vadd.f32 0.0, %v1429
  %v1431 = vpop.f32.mrf.mxu0
  %v1432 = vadd.f32 0.0, %v1431
  %1433 = vmatmul.bf16.gmra.mxu0 %v824
  %v1434 = vpop.f32.mrf.mxu0
  %v1435 = vadd.f32 0.0, %v1434
  %v1436 = vpop.f32.mrf.mxu0
  %v1437 = vadd.f32 0.0, %v1436
  %1438 = vmatmul.bf16.gmra.mxu0 %v829
  %v1439 = vpop.f32.mrf.mxu0
  %v1440 = vadd.f32 0.0, %v1439
  %v1441 = vpop.f32.mrf.mxu0
  %v1442 = vadd.f32 0.0, %v1441
  %1443 = vmatmul.bf16.gmra.mxu0 %v834
  %v1444 = vpop.f32.mrf.mxu0
  %v1445 = vadd.f32 0.0, %v1444
  %v1446 = vpop.f32.mrf.mxu0
  %v1447 = vadd.f32 0.0, %v1446
  %1448 = vmatmul.bf16.gmra.mxu0 %v839
  %v1449 = vpop.f32.mrf.mxu0
  %v1450 = vadd.f32 0.0, %v1449
  %v1451 = vpop.f32.mrf.mxu0
  %v1452 = vadd.f32 0.0, %v1451
  %1453 = vmatmul.bf16.gmra.mxu0 %v844
  %v1454 = vpop.f32.mrf.mxu0
  %v1455 = vadd.f32 0.0, %v1454
  %v1456 = vpop.f32.mrf.mxu0
  %v1457 = vadd.f32 0.0, %v1456
  %1458 = vmatmul.bf16.gmra.mxu0 %v849
  %v1459 = vpop.f32.mrf.mxu0
  %v1460 = vadd.f32 0.0, %v1459
  %v1461 = vpop.f32.mrf.mxu0
  %v1462 = vadd.f32 0.0, %v1461
  %1463 = vmatmul.bf16.gmra.mxu0 %v854
  %v1464 = vpop.f32.mrf.mxu0
  %v1465 = vadd.f32 0.0, %v1464
  %v1466 = vpop.f32.mrf.mxu0
  %v1467 = vadd.f32 0.0, %v1466
  %1468 = vmatmul.bf16.gmra.mxu0 %v859
  %v1469 = vpop.f32.mrf.mxu0
  %v1470 = vadd.f32 0.0, %v1469
  %v1471 = vpop.f32.mrf.mxu0
  %v1472 = vadd.f32 0.0, %v1471
  %1473 = vmatmul.bf16.gmra.mxu0 %v864
  %v1474 = vpop.f32.mrf.mxu0
  %v1475 = vadd.f32 0.0, %v1474
  %v1476 = vpop.f32.mrf.mxu0
  %v1477 = vadd.f32 0.0, %v1476
  %1478 = vmatmul.bf16.gmra.mxu0 %v869
  %v1479 = vpop.f32.mrf.mxu0
  %v1480 = vadd.f32 0.0, %v1479
  %v1481 = vpop.f32.mrf.mxu0
  %v1482 = vadd.f32 0.0, %v1481
  %1483 = vmatmul.bf16.gmra.mxu0 %v874
  %v1484 = vpop.f32.mrf.mxu0
  %v1485 = vadd.f32 0.0, %v1484
  %v1486 = vpop.f32.mrf.mxu0
  %v1487 = vadd.f32 0.0, %v1486
  %1488 = vmatmul.bf16.gmra.mxu0 %v879
  %v1489 = vpop.f32.mrf.mxu0
  %v1490 = vadd.f32 0.0, %v1489
  %v1491 = vpop.f32.mrf.mxu0
  %v1492 = vadd.f32 0.0, %v1491
  %1493 = vmatmul.bf16.gmra.mxu0 %v884
  %v1494 = vpop.f32.mrf.mxu0
  %v1495 = vadd.f32 0.0, %v1494
  %v1496 = vpop.f32.mrf.mxu0
  %v1497 = vadd.f32 0.0, %v1496
  %1498 = vmatmul.bf16.gmra.mxu0 %v889
  %v1499 = vpop.f32.mrf.mxu0
  %v1500 = vadd.f32 0.0, %v1499
  %v1501 = vpop.f32.mrf.mxu0
  %v1502 = vadd.f32 0.0, %v1501
  %1503 = vmatmul.bf16.gmra.mxu0 %v894
  %v1504 = vpop.f32.mrf.mxu0
  %v1505 = vadd.f32 0.0, %v1504
  %v1506 = vpop.f32.mrf.mxu0
  %v1507 = vadd.f32 0.0, %v1506
  %1508 = vmatmul.bf16.gmra.mxu0 %v899
  %v1509 = vpop.f32.mrf.mxu0
  %v1510 = vadd.f32 0.0, %v1509
  %v1511 = vpop.f32.mrf.mxu0
  %v1512 = vadd.f32 0.0, %v1511
  %1513 = vmatmul.bf16.gmra.mxu0 %v904
  %v1514 = vpop.f32.mrf.mxu0
  %v1515 = vadd.f32 0.0, %v1514
  %v1516 = vpop.f32.mrf.mxu0
  %v1517 = vadd.f32 0.0, %v1516
  %1518 = vmatmul.bf16.gmra.mxu0 %v909
  %v1519 = vpop.f32.mrf.mxu0
  %v1520 = vadd.f32 0.0, %v1519
  %v1521 = vpop.f32.mrf.mxu0
  %v1522 = vadd.f32 0.0, %v1521
  %1523 = vmatmul.bf16.gmra.mxu0 %v914
  %v1524 = vpop.f32.mrf.mxu0
  %v1525 = vadd.f32 0.0, %v1524
  %v1526 = vpop.f32.mrf.mxu0
  %v1527 = vadd.f32 0.0, %v1526
  %1528 = vmatmul.bf16.gmra.mxu0 %v919
  %v1529 = vpop.f32.mrf.mxu0
  %v1530 = vadd.f32 0.0, %v1529
  %v1531 = vpop.f32.mrf.mxu0
  %v1532 = vadd.f32 0.0, %v1531
  %1533 = vmatmul.bf16.gmra.mxu0 %v924
  %v1534 = vpop.f32.mrf.mxu0
  %v1535 = vadd.f32 0.0, %v1534
  %v1536 = vpop.f32.mrf.mxu0
  %v1537 = vadd.f32 0.0, %v1536
  %1538 = vmatmul.bf16.gmra.mxu0 %v929
  %v1539 = vpop.f32.mrf.mxu0
  %v1540 = vadd.f32 0.0, %v1539
  %v1541 = vpop.f32.mrf.mxu0
  %v1542 = vadd.f32 0.0, %v1541
  %1543 = vmatmul.bf16.gmra.mxu0 %v934
  %v1544 = vpop.f32.mrf.mxu0
  %v1545 = vadd.f32 0.0, %v1544
  %v1546 = vpop.f32.mrf.mxu0
  %v1547 = vadd.f32 0.0, %v1546
  %1548 = vmatmul.bf16.gmra.mxu0 %v939
  %v1549 = vpop.f32.mrf.mxu0
  %v1550 = vadd.f32 0.0, %v1549
  %v1551 = vpop.f32.mrf.mxu0
  %v1552 = vadd.f32 0.0, %v1551
  %1553 = vmatmul.bf16.gmra.mxu0 %v944
  %v1554 = vpop.f32.mrf.mxu0
  %v1555 = vadd.f32 0.0, %v1554
  %v1556 = vpop.f32.mrf.mxu0
  %v1557 = vadd.f32 0.0, %v1556
  %1558 = vmatmul.bf16.gmra.mxu0 %v949
  %v1559 = vpop.f32.mrf.mxu0
  %v1560 = vadd.f32 0.0, %v1559
  %v1561 = vpop.f32.mrf.mxu0
  %v1562 = vadd.f32 0.0, %v1561
  %1563 = vdwg.mxu0
  %1564 = vmatpush.bf16.msra.mxu0 %v1241
  %1565 = vmatpush.bf16.msra.mxu0 %v1240
  %1566 = vmatpush.bf16.msra.mxu0 %v1239
  %1567 = vmatpush.bf16.msra.mxu0 %v1238
  %1568 = vmatpush.bf16.msra.mxu0 %v1237
  %1569 = vmatpush.bf16.msra.mxu0 %v1236
  %1570 = vmatpush.bf16.msra.mxu0 %v1235
  %1571 = vmatpush.bf16.msra.mxu0 %v1234
  %1572 = vmatmul.bf16.gmra.mxu0 %v795
  %v1573 = vpop.f32.mrf.mxu0
  %v1574 = vadd.f32 %v1405, %v1573
  %v1575 = vpop.f32.mrf.mxu0
  %v1576 = vadd.f32 %v1407, %v1575
  %1577 = vmatmul.bf16.gmra.mxu0 %v800
  %v1578 = vpop.f32.mrf.mxu0
  %v1579 = vadd.f32 %v1410, %v1578
  %v1580 = vpop.f32.mrf.mxu0
  %v1581 = vadd.f32 %v1412, %v1580
  %1582 = vmatmul.bf16.gmra.mxu0 %v805
  %v1583 = vpop.f32.mrf.mxu0
  %v1584 = vadd.f32 %v1415, %v1583
  %v1585 = vpop.f32.mrf.mxu0
  %v1586 = vadd.f32 %v1417, %v1585
  %1587 = vmatmul.bf16.gmra.mxu0 %v810
  %v1588 = vpop.f32.mrf.mxu0
  %v1589 = vadd.f32 %v1420, %v1588
  %v1590 = vpop.f32.mrf.mxu0
  %v1591 = vadd.f32 %v1422, %v1590
  %1592 = vmatmul.bf16.gmra.mxu0 %v815
  %v1593 = vpop.f32.mrf.mxu0
  %v1594 = vadd.f32 %v1425, %v1593
  %v1595 = vpop.f32.mrf.mxu0
  %v1596 = vadd.f32 %v1427, %v1595
  %1597 = vmatmul.bf16.gmra.mxu0 %v820
  %v1598 = vpop.f32.mrf.mxu0
  %v1599 = vadd.f32 %v1430, %v1598
  %v1600 = vpop.f32.mrf.mxu0
  %v1601 = vadd.f32 %v1432, %v1600
  %1602 = vmatmul.bf16.gmra.mxu0 %v825
  %v1603 = vpop.f32.mrf.mxu0
  %v1604 = vadd.f32 %v1435, %v1603
  %v1605 = vpop.f32.mrf.mxu0
  %v1606 = vadd.f32 %v1437, %v1605
  %1607 = vmatmul.bf16.gmra.mxu0 %v830
  %v1608 = vpop.f32.mrf.mxu0
  %v1609 = vadd.f32 %v1440, %v1608
  %v1610 = vpop.f32.mrf.mxu0
  %v1611 = vadd.f32 %v1442, %v1610
  %1612 = vmatmul.bf16.gmra.mxu0 %v835
  %v1613 = vpop.f32.mrf.mxu0
  %v1614 = vadd.f32 %v1445, %v1613
  %v1615 = vpop.f32.mrf.mxu0
  %v1616 = vadd.f32 %v1447, %v1615
  %1617 = vmatmul.bf16.gmra.mxu0 %v840
  %v1618 = vpop.f32.mrf.mxu0
  %v1619 = vadd.f32 %v1450, %v1618
  %v1620 = vpop.f32.mrf.mxu0
  %v1621 = vadd.f32 %v1452, %v1620
  %1622 = vmatmul.bf16.gmra.mxu0 %v845
  %v1623 = vpop.f32.mrf.mxu0
  %v1624 = vadd.f32 %v1455, %v1623
  %v1625 = vpop.f32.mrf.mxu0
  %v1626 = vadd.f32 %v1457, %v1625
  %1627 = vmatmul.bf16.gmra.mxu0 %v850
  %v1628 = vpop.f32.mrf.mxu0
  %v1629 = vadd.f32 %v1460, %v1628
  %v1630 = vpop.f32.mrf.mxu0
  %v1631 = vadd.f32 %v1462, %v1630
  %1632 = vmatmul.bf16.gmra.mxu0 %v855
  %v1633 = vpop.f32.mrf.mxu0
  %v1634 = vadd.f32 %v1465, %v1633
  %v1635 = vpop.f32.mrf.mxu0
  %v1636 = vadd.f32 %v1467, %v1635
  %1637 = vmatmul.bf16.gmra.mxu0 %v860
  %v1638 = vpop.f32.mrf.mxu0
  %v1639 = vadd.f32 %v1470, %v1638
  %v1640 = vpop.f32.mrf.mxu0
  %v1641 = vadd.f32 %v1472, %v1640
  %1642 = vmatmul.bf16.gmra.mxu0 %v865
  %v1643 = vpop.f32.mrf.mxu0
  %v1644 = vadd.f32 %v1475, %v1643
  %v1645 = vpop.f32.mrf.mxu0
  %v1646 = vadd.f32 %v1477, %v1645
  %1647 = vmatmul.bf16.gmra.mxu0 %v870
  %v1648 = vpop.f32.mrf.mxu0
  %v1649 = vadd.f32 %v1480, %v1648
  %v1650 = vpop.f32.mrf.mxu0
  %v1651 = vadd.f32 %v1482, %v1650
  %1652 = vmatmul.bf16.gmra.mxu0 %v875
  %v1653 = vpop.f32.mrf.mxu0
  %v1654 = vadd.f32 %v1485, %v1653
  %v1655 = vpop.f32.mrf.mxu0
  %v1656 = vadd.f32 %v1487, %v1655
  %1657 = vmatmul.bf16.gmra.mxu0 %v880
  %v1658 = vpop.f32.mrf.mxu0
  %v1659 = vadd.f32 %v1490, %v1658
  %v1660 = vpop.f32.mrf.mxu0
  %v1661 = vadd.f32 %v1492, %v1660
  %1662 = vmatmul.bf16.gmra.mxu0 %v885
  %v1663 = vpop.f32.mrf.mxu0
  %v1664 = vadd.f32 %v1495, %v1663
  %v1665 = vpop.f32.mrf.mxu0
  %v1666 = vadd.f32 %v1497, %v1665
  %1667 = vmatmul.bf16.gmra.mxu0 %v890
  %v1668 = vpop.f32.mrf.mxu0
  %v1669 = vadd.f32 %v1500, %v1668
  %v1670 = vpop.f32.mrf.mxu0
  %v1671 = vadd.f32 %v1502, %v1670
  %1672 = vmatmul.bf16.gmra.mxu0 %v895
  %v1673 = vpop.f32.mrf.mxu0
  %v1674 = vadd.f32 %v1505, %v1673
  %v1675 = vpop.f32.mrf.mxu0
  %v1676 = vadd.f32 %v1507, %v1675
  %1677 = vmatmul.bf16.gmra.mxu0 %v900
  %v1678 = vpop.f32.mrf.mxu0
  %v1679 = vadd.f32 %v1510, %v1678
  %v1680 = vpop.f32.mrf.mxu0
  %v1681 = vadd.f32 %v1512, %v1680
  %1682 = vmatmul.bf16.gmra.mxu0 %v905
  %v1683 = vpop.f32.mrf.mxu0
  %v1684 = vadd.f32 %v1515, %v1683
  %v1685 = vpop.f32.mrf.mxu0
  %v1686 = vadd.f32 %v1517, %v1685
  %1687 = vmatmul.bf16.gmra.mxu0 %v910
  %v1688 = vpop.f32.mrf.mxu0
  %v1689 = vadd.f32 %v1520, %v1688
  %v1690 = vpop.f32.mrf.mxu0
  %v1691 = vadd.f32 %v1522, %v1690
  %1692 = vmatmul.bf16.gmra.mxu0 %v915
  %v1693 = vpop.f32.mrf.mxu0
  %v1694 = vadd.f32 %v1525, %v1693
  %v1695 = vpop.f32.mrf.mxu0
  %v1696 = vadd.f32 %v1527, %v1695
  %1697 = vmatmul.bf16.gmra.mxu0 %v920
  %v1698 = vpop.f32.mrf.mxu0
  %v1699 = vadd.f32 %v1530, %v1698
  %v1700 = vpop.f32.mrf.mxu0
  %v1701 = vadd.f32 %v1532, %v1700
  %1702 = vmatmul.bf16.gmra.mxu0 %v925
  %v1703 = vpop.f32.mrf.mxu0
  %v1704 = vadd.f32 %v1535, %v1703
  %v1705 = vpop.f32.mrf.mxu0
  %v1706 = vadd.f32 %v1537, %v1705
  %1707 = vmatmul.bf16.gmra.mxu0 %v930
  %v1708 = vpop.f32.mrf.mxu0
  %v1709 = vadd.f32 %v1540, %v1708
  %v1710 = vpop.f32.mrf.mxu0
  %v1711 = vadd.f32 %v1542, %v1710
  %1712 = vmatmul.bf16.gmra.mxu0 %v935
  %v1713 = vpop.f32.mrf.mxu0
  %v1714 = vadd.f32 %v1545, %v1713
  %v1715 = vpop.f32.mrf.mxu0
  %v1716 = vadd.f32 %v1547, %v1715
  %1717 = vmatmul.bf16.gmra.mxu0 %v940
  %v1718 = vpop.f32.mrf.mxu0
  %v1719 = vadd.f32 %v1550, %v1718
  %v1720 = vpop.f32.mrf.mxu0
  %v1721 = vadd.f32 %v1552, %v1720
  %1722 = vmatmul.bf16.gmra.mxu0 %v945
  %v1723 = vpop.f32.mrf.mxu0
  %v1724 = vadd.f32 %v1555, %v1723
  %v1725 = vpop.f32.mrf.mxu0
  %v1726 = vadd.f32 %v1557, %v1725
  %1727 = vmatmul.bf16.gmra.mxu0 %v950
  %v1728 = vpop.f32.mrf.mxu0
  %v1729 = vadd.f32 %v1560, %v1728
  %v1730 = vpop.f32.mrf.mxu0
  %v1731 = vadd.f32 %v1562, %v1730
  %1732 = vdwg.mxu0
  %1733 = vmatpush.bf16.msra.mxu0 %v1249
  %1734 = vmatpush.bf16.msra.mxu0 %v1248
  %1735 = vmatpush.bf16.msra.mxu0 %v1247
  %1736 = vmatpush.bf16.msra.mxu0 %v1246
  %1737 = vmatpush.bf16.msra.mxu0 %v1245
  %1738 = vmatpush.bf16.msra.mxu0 %v1244
  %1739 = vmatpush.bf16.msra.mxu0 %v1243
  %1740 = vmatpush.bf16.msra.mxu0 %v1242
  %1741 = vmatmul.bf16.gmra.mxu0 %v796
  %v1742 = vpop.f32.mrf.mxu0
  %v1743 = vadd.f32 %v1574, %v1742
  %v1744 = vpop.f32.mrf.mxu0
  %v1745 = vadd.f32 %v1576, %v1744
  %1746 = vmatmul.bf16.gmra.mxu0 %v801
  %v1747 = vpop.f32.mrf.mxu0
  %v1748 = vadd.f32 %v1579, %v1747
  %v1749 = vpop.f32.mrf.mxu0
  %v1750 = vadd.f32 %v1581, %v1749
  %1751 = vmatmul.bf16.gmra.mxu0 %v806
  %v1752 = vpop.f32.mrf.mxu0
  %v1753 = vadd.f32 %v1584, %v1752
  %v1754 = vpop.f32.mrf.mxu0
  %v1755 = vadd.f32 %v1586, %v1754
  %1756 = vmatmul.bf16.gmra.mxu0 %v811
  %v1757 = vpop.f32.mrf.mxu0
  %v1758 = vadd.f32 %v1589, %v1757
  %v1759 = vpop.f32.mrf.mxu0
  %v1760 = vadd.f32 %v1591, %v1759
  %1761 = vmatmul.bf16.gmra.mxu0 %v816
  %v1762 = vpop.f32.mrf.mxu0
  %v1763 = vadd.f32 %v1594, %v1762
  %v1764 = vpop.f32.mrf.mxu0
  %v1765 = vadd.f32 %v1596, %v1764
  %1766 = vmatmul.bf16.gmra.mxu0 %v821
  %v1767 = vpop.f32.mrf.mxu0
  %v1768 = vadd.f32 %v1599, %v1767
  %v1769 = vpop.f32.mrf.mxu0
  %v1770 = vadd.f32 %v1601, %v1769
  %1771 = vmatmul.bf16.gmra.mxu0 %v826
  %v1772 = vpop.f32.mrf.mxu0
  %v1773 = vadd.f32 %v1604, %v1772
  %v1774 = vpop.f32.mrf.mxu0
  %v1775 = vadd.f32 %v1606, %v1774
  %1776 = vmatmul.bf16.gmra.mxu0 %v831
  %v1777 = vpop.f32.mrf.mxu0
  %v1778 = vadd.f32 %v1609, %v1777
  %v1779 = vpop.f32.mrf.mxu0
  %v1780 = vadd.f32 %v1611, %v1779
  %1781 = vmatmul.bf16.gmra.mxu0 %v836
  %v1782 = vpop.f32.mrf.mxu0
  %v1783 = vadd.f32 %v1614, %v1782
  %v1784 = vpop.f32.mrf.mxu0
  %v1785 = vadd.f32 %v1616, %v1784
  %1786 = vmatmul.bf16.gmra.mxu0 %v841
  %v1787 = vpop.f32.mrf.mxu0
  %v1788 = vadd.f32 %v1619, %v1787
  %v1789 = vpop.f32.mrf.mxu0
  %v1790 = vadd.f32 %v1621, %v1789
  %1791 = vmatmul.bf16.gmra.mxu0 %v846
  %v1792 = vpop.f32.mrf.mxu0
  %v1793 = vadd.f32 %v1624, %v1792
  %v1794 = vpop.f32.mrf.mxu0
  %v1795 = vadd.f32 %v1626, %v1794
  %1796 = vmatmul.bf16.gmra.mxu0 %v851
  %v1797 = vpop.f32.mrf.mxu0
  %v1798 = vadd.f32 %v1629, %v1797
  %v1799 = vpop.f32.mrf.mxu0
  %v1800 = vadd.f32 %v1631, %v1799
  %1801 = vmatmul.bf16.gmra.mxu0 %v856
  %v1802 = vpop.f32.mrf.mxu0
  %v1803 = vadd.f32 %v1634, %v1802
  %v1804 = vpop.f32.mrf.mxu0
  %v1805 = vadd.f32 %v1636, %v1804
  %1806 = vmatmul.bf16.gmra.mxu0 %v861
  %v1807 = vpop.f32.mrf.mxu0
  %v1808 = vadd.f32 %v1639, %v1807
  %v1809 = vpop.f32.mrf.mxu0
  %v1810 = vadd.f32 %v1641, %v1809
  %1811 = vmatmul.bf16.gmra.mxu0 %v866
  %v1812 = vpop.f32.mrf.mxu0
  %v1813 = vadd.f32 %v1644, %v1812
  %v1814 = vpop.f32.mrf.mxu0
  %v1815 = vadd.f32 %v1646, %v1814
  %1816 = vmatmul.bf16.gmra.mxu0 %v871
  %v1817 = vpop.f32.mrf.mxu0
  %v1818 = vadd.f32 %v1649, %v1817
  %v1819 = vpop.f32.mrf.mxu0
  %v1820 = vadd.f32 %v1651, %v1819
  %1821 = vmatmul.bf16.gmra.mxu0 %v876
  %v1822 = vpop.f32.mrf.mxu0
  %v1823 = vadd.f32 %v1654, %v1822
  %v1824 = vpop.f32.mrf.mxu0
  %v1825 = vadd.f32 %v1656, %v1824
  %1826 = vmatmul.bf16.gmra.mxu0 %v881
  %v1827 = vpop.f32.mrf.mxu0
  %v1828 = vadd.f32 %v1659, %v1827
  %v1829 = vpop.f32.mrf.mxu0
  %v1830 = vadd.f32 %v1661, %v1829
  %1831 = vmatmul.bf16.gmra.mxu0 %v886
  %v1832 = vpop.f32.mrf.mxu0
  %v1833 = vadd.f32 %v1664, %v1832
  %v1834 = vpop.f32.mrf.mxu0
  %v1835 = vadd.f32 %v1666, %v1834
  %1836 = vmatmul.bf16.gmra.mxu0 %v891
  %v1837 = vpop.f32.mrf.mxu0
  %v1838 = vadd.f32 %v1669, %v1837
  %v1839 = vpop.f32.mrf.mxu0
  %v1840 = vadd.f32 %v1671, %v1839
  %1841 = vmatmul.bf16.gmra.mxu0 %v896
  %v1842 = vpop.f32.mrf.mxu0
  %v1843 = vadd.f32 %v1674, %v1842
  %v1844 = vpop.f32.mrf.mxu0
  %v1845 = vadd.f32 %v1676, %v1844
  %1846 = vmatmul.bf16.gmra.mxu0 %v901
  %v1847 = vpop.f32.mrf.mxu0
  %v1848 = vadd.f32 %v1679, %v1847
  %v1849 = vpop.f32.mrf.mxu0
  %v1850 = vadd.f32 %v1681, %v1849
  %1851 = vmatmul.bf16.gmra.mxu0 %v906
  %v1852 = vpop.f32.mrf.mxu0
  %v1853 = vadd.f32 %v1684, %v1852
  %v1854 = vpop.f32.mrf.mxu0
  %v1855 = vadd.f32 %v1686, %v1854
  %1856 = vmatmul.bf16.gmra.mxu0 %v911
  %v1857 = vpop.f32.mrf.mxu0
  %v1858 = vadd.f32 %v1689, %v1857
  %v1859 = vpop.f32.mrf.mxu0
  %v1860 = vadd.f32 %v1691, %v1859
  %1861 = vmatmul.bf16.gmra.mxu0 %v916
  %v1862 = vpop.f32.mrf.mxu0
  %v1863 = vadd.f32 %v1694, %v1862
  %v1864 = vpop.f32.mrf.mxu0
  %v1865 = vadd.f32 %v1696, %v1864
  %1866 = vmatmul.bf16.gmra.mxu0 %v921
  %v1867 = vpop.f32.mrf.mxu0
  %v1868 = vadd.f32 %v1699, %v1867
  %v1869 = vpop.f32.mrf.mxu0
  %v1870 = vadd.f32 %v1701, %v1869
  %1871 = vmatmul.bf16.gmra.mxu0 %v926
  %v1872 = vpop.f32.mrf.mxu0
  %v1873 = vadd.f32 %v1704, %v1872
  %v1874 = vpop.f32.mrf.mxu0
  %v1875 = vadd.f32 %v1706, %v1874
  %1876 = vmatmul.bf16.gmra.mxu0 %v931
  %v1877 = vpop.f32.mrf.mxu0
  %v1878 = vadd.f32 %v1709, %v1877
  %v1879 = vpop.f32.mrf.mxu0
  %v1880 = vadd.f32 %v1711, %v1879
  %1881 = vmatmul.bf16.gmra.mxu0 %v936
  %v1882 = vpop.f32.mrf.mxu0
  %v1883 = vadd.f32 %v1714, %v1882
  %v1884 = vpop.f32.mrf.mxu0
  %v1885 = vadd.f32 %v1716, %v1884
  %1886 = vmatmul.bf16.gmra.mxu0 %v941
  %v1887 = vpop.f32.mrf.mxu0
  %v1888 = vadd.f32 %v1719, %v1887
  %v1889 = vpop.f32.mrf.mxu0
  %v1890 = vadd.f32 %v1721, %v1889
  %1891 = vmatmul.bf16.gmra.mxu0 %v946
  %v1892 = vpop.f32.mrf.mxu0
  %v1893 = vadd.f32 %v1724, %v1892
  %v1894 = vpop.f32.mrf.mxu0
  %v1895 = vadd.f32 %v1726, %v1894
  %1896 = vmatmul.bf16.gmra.mxu0 %v951
  %v1897 = vpop.f32.mrf.mxu0
  %v1898 = vadd.f32 %v1729, %v1897
  %v1899 = vpop.f32.mrf.mxu0
  %v1900 = vadd.f32 %v1731, %v1899
  %1901 = vdwg.mxu0
  %1902 = vmatpush.bf16.msra.mxu0 %v1257
  %1903 = vmatpush.bf16.msra.mxu0 %v1256
  %1904 = vmatpush.bf16.msra.mxu0 %v1255
  %1905 = vmatpush.bf16.msra.mxu0 %v1254
  %1906 = vmatpush.bf16.msra.mxu0 %v1253
  %1907 = vmatpush.bf16.msra.mxu0 %v1252
  %1908 = vmatpush.bf16.msra.mxu0 %v1251
  %1909 = vmatpush.bf16.msra.mxu0 %v1250
  %1910 = vmatmul.bf16.gmra.mxu0 %v797
  %v1911 = vpop.f32.mrf.mxu0
  %v1912 = vadd.f32 %v1743, %v1911
  %v1913 = vpop.f32.mrf.mxu0
  %v1914 = vadd.f32 %v1745, %v1913
  %1915 = vmatmul.bf16.gmra.mxu0 %v802
  %v1916 = vpop.f32.mrf.mxu0
  %v1917 = vadd.f32 %v1748, %v1916
  %v1918 = vpop.f32.mrf.mxu0
  %v1919 = vadd.f32 %v1750, %v1918
  %1920 = vmatmul.bf16.gmra.mxu0 %v807
  %v1921 = vpop.f32.mrf.mxu0
  %v1922 = vadd.f32 %v1753, %v1921
  %v1923 = vpop.f32.mrf.mxu0
  %v1924 = vadd.f32 %v1755, %v1923
  %1925 = vmatmul.bf16.gmra.mxu0 %v812
  %v1926 = vpop.f32.mrf.mxu0
  %v1927 = vadd.f32 %v1758, %v1926
  %v1928 = vpop.f32.mrf.mxu0
  %v1929 = vadd.f32 %v1760, %v1928
  %1930 = vmatmul.bf16.gmra.mxu0 %v817
  %v1931 = vpop.f32.mrf.mxu0
  %v1932 = vadd.f32 %v1763, %v1931
  %v1933 = vpop.f32.mrf.mxu0
  %v1934 = vadd.f32 %v1765, %v1933
  %1935 = vmatmul.bf16.gmra.mxu0 %v822
  %v1936 = vpop.f32.mrf.mxu0
  %v1937 = vadd.f32 %v1768, %v1936
  %v1938 = vpop.f32.mrf.mxu0
  %v1939 = vadd.f32 %v1770, %v1938
  %1940 = vmatmul.bf16.gmra.mxu0 %v827
  %v1941 = vpop.f32.mrf.mxu0
  %v1942 = vadd.f32 %v1773, %v1941
  %v1943 = vpop.f32.mrf.mxu0
  %v1944 = vadd.f32 %v1775, %v1943
  %1945 = vmatmul.bf16.gmra.mxu0 %v832
  %v1946 = vpop.f32.mrf.mxu0
  %v1947 = vadd.f32 %v1778, %v1946
  %v1948 = vpop.f32.mrf.mxu0
  %v1949 = vadd.f32 %v1780, %v1948
  %1950 = vmatmul.bf16.gmra.mxu0 %v837
  %v1951 = vpop.f32.mrf.mxu0
  %v1952 = vadd.f32 %v1783, %v1951
  %v1953 = vpop.f32.mrf.mxu0
  %v1954 = vadd.f32 %v1785, %v1953
  %1955 = vmatmul.bf16.gmra.mxu0 %v842
  %v1956 = vpop.f32.mrf.mxu0
  %v1957 = vadd.f32 %v1788, %v1956
  %v1958 = vpop.f32.mrf.mxu0
  %v1959 = vadd.f32 %v1790, %v1958
  %1960 = vmatmul.bf16.gmra.mxu0 %v847
  %v1961 = vpop.f32.mrf.mxu0
  %v1962 = vadd.f32 %v1793, %v1961
  %v1963 = vpop.f32.mrf.mxu0
  %v1964 = vadd.f32 %v1795, %v1963
  %1965 = vmatmul.bf16.gmra.mxu0 %v852
  %v1966 = vpop.f32.mrf.mxu0
  %v1967 = vadd.f32 %v1798, %v1966
  %v1968 = vpop.f32.mrf.mxu0
  %v1969 = vadd.f32 %v1800, %v1968
  %1970 = vmatmul.bf16.gmra.mxu0 %v857
  %v1971 = vpop.f32.mrf.mxu0
  %v1972 = vadd.f32 %v1803, %v1971
  %v1973 = vpop.f32.mrf.mxu0
  %v1974 = vadd.f32 %v1805, %v1973
  %1975 = vmatmul.bf16.gmra.mxu0 %v862
  %v1976 = vpop.f32.mrf.mxu0
  %v1977 = vadd.f32 %v1808, %v1976
  %v1978 = vpop.f32.mrf.mxu0
  %v1979 = vadd.f32 %v1810, %v1978
  %1980 = vmatmul.bf16.gmra.mxu0 %v867
  %v1981 = vpop.f32.mrf.mxu0
  %v1982 = vadd.f32 %v1813, %v1981
  %v1983 = vpop.f32.mrf.mxu0
  %v1984 = vadd.f32 %v1815, %v1983
  %1985 = vmatmul.bf16.gmra.mxu0 %v872
  %v1986 = vpop.f32.mrf.mxu0
  %v1987 = vadd.f32 %v1818, %v1986
  %v1988 = vpop.f32.mrf.mxu0
  %v1989 = vadd.f32 %v1820, %v1988
  %1990 = vmatmul.bf16.gmra.mxu0 %v877
  %v1991 = vpop.f32.mrf.mxu0
  %v1992 = vadd.f32 %v1823, %v1991
  %v1993 = vpop.f32.mrf.mxu0
  %v1994 = vadd.f32 %v1825, %v1993
  %1995 = vmatmul.bf16.gmra.mxu0 %v882
  %v1996 = vpop.f32.mrf.mxu0
  %v1997 = vadd.f32 %v1828, %v1996
  %v1998 = vpop.f32.mrf.mxu0
  %v1999 = vadd.f32 %v1830, %v1998
  %2000 = vmatmul.bf16.gmra.mxu0 %v887
  %v2001 = vpop.f32.mrf.mxu0
  %v2002 = vadd.f32 %v1833, %v2001
  %v2003 = vpop.f32.mrf.mxu0
  %v2004 = vadd.f32 %v1835, %v2003
  %2005 = vmatmul.bf16.gmra.mxu0 %v892
  %v2006 = vpop.f32.mrf.mxu0
  %v2007 = vadd.f32 %v1838, %v2006
  %v2008 = vpop.f32.mrf.mxu0
  %v2009 = vadd.f32 %v1840, %v2008
  %2010 = vmatmul.bf16.gmra.mxu0 %v897
  %v2011 = vpop.f32.mrf.mxu0
  %v2012 = vadd.f32 %v1843, %v2011
  %v2013 = vpop.f32.mrf.mxu0
  %v2014 = vadd.f32 %v1845, %v2013
  %2015 = vmatmul.bf16.gmra.mxu0 %v902
  %v2016 = vpop.f32.mrf.mxu0
  %v2017 = vadd.f32 %v1848, %v2016
  %v2018 = vpop.f32.mrf.mxu0
  %v2019 = vadd.f32 %v1850, %v2018
  %2020 = vmatmul.bf16.gmra.mxu0 %v907
  %v2021 = vpop.f32.mrf.mxu0
  %v2022 = vadd.f32 %v1853, %v2021
  %v2023 = vpop.f32.mrf.mxu0
  %v2024 = vadd.f32 %v1855, %v2023
  %2025 = vmatmul.bf16.gmra.mxu0 %v912
  %v2026 = vpop.f32.mrf.mxu0
  %v2027 = vadd.f32 %v1858, %v2026
  %v2028 = vpop.f32.mrf.mxu0
  %v2029 = vadd.f32 %v1860, %v2028
  %2030 = vmatmul.bf16.gmra.mxu0 %v917
  %v2031 = vpop.f32.mrf.mxu0
  %v2032 = vadd.f32 %v1863, %v2031
  %v2033 = vpop.f32.mrf.mxu0
  %v2034 = vadd.f32 %v1865, %v2033
  %2035 = vmatmul.bf16.gmra.mxu0 %v922
  %v2036 = vpop.f32.mrf.mxu0
  %v2037 = vadd.f32 %v1868, %v2036
  %v2038 = vpop.f32.mrf.mxu0
  %v2039 = vadd.f32 %v1870, %v2038
  %2040 = vmatmul.bf16.gmra.mxu0 %v927
  %v2041 = vpop.f32.mrf.mxu0
  %v2042 = vadd.f32 %v1873, %v2041
  %v2043 = vpop.f32.mrf.mxu0
  %v2044 = vadd.f32 %v1875, %v2043
  %2045 = vmatmul.bf16.gmra.mxu0 %v932
  %v2046 = vpop.f32.mrf.mxu0
  %v2047 = vadd.f32 %v1878, %v2046
  %v2048 = vpop.f32.mrf.mxu0
  %v2049 = vadd.f32 %v1880, %v2048
  %2050 = vmatmul.bf16.gmra.mxu0 %v937
  %v2051 = vpop.f32.mrf.mxu0
  %v2052 = vadd.f32 %v1883, %v2051
  %v2053 = vpop.f32.mrf.mxu0
  %v2054 = vadd.f32 %v1885, %v2053
  %2055 = vmatmul.bf16.gmra.mxu0 %v942
  %v2056 = vpop.f32.mrf.mxu0
  %v2057 = vadd.f32 %v1888, %v2056
  %v2058 = vpop.f32.mrf.mxu0
  %v2059 = vadd.f32 %v1890, %v2058
  %2060 = vmatmul.bf16.gmra.mxu0 %v947
  %v2061 = vpop.f32.mrf.mxu0
  %v2062 = vadd.f32 %v1893, %v2061
  %v2063 = vpop.f32.mrf.mxu0
  %v2064 = vadd.f32 %v1895, %v2063
  %2065 = vmatmul.bf16.gmra.mxu0 %v952
  %v2066 = vpop.f32.mrf.mxu0
  %v2067 = vadd.f32 %v1898, %v2066
  %v2068 = vpop.f32.mrf.mxu0
  %v2069 = vadd.f32 %v1900, %v2068
  %2070 = vdwg.mxu0
  %2071 = vmatpush.bf16.msra.mxu0 0
  %2072 = vmatpush.bf16.msra.mxu0 0
  %2073 = vmatpush.bf16.msra.mxu0 0
  %2074 = vmatpush.bf16.msra.mxu0 0
  %2075 = vmatpush.bf16.msra.mxu0 %v1261
  %2076 = vmatpush.bf16.msra.mxu0 %v1260
  %2077 = vmatpush.bf16.msra.mxu0 %v1259
  %2078 = vmatpush.bf16.msra.mxu0 %v1258
  %2079 = vmatmul.bf16.gmra.mxu0 %v1300
  %v2080 = vpop.f32.mrf.mxu0
  %v2081 = vadd.f32 %v1912, %v2080
  %v2082 = vpop.f32.mrf.mxu0
  %v2083 = vadd.f32 %v1914, %v2082
  %2084 = vmatmul.bf16.gmra.mxu0 %v1303
  %v2085 = vpop.f32.mrf.mxu0
  %v2086 = vadd.f32 %v1917, %v2085
  %v2087 = vpop.f32.mrf.mxu0
  %v2088 = vadd.f32 %v1919, %v2087
  %2089 = vmatmul.bf16.gmra.mxu0 %v1306
  %v2090 = vpop.f32.mrf.mxu0
  %v2091 = vadd.f32 %v1922, %v2090
  %v2092 = vpop.f32.mrf.mxu0
  %v2093 = vadd.f32 %v1924, %v2092
  %2094 = vmatmul.bf16.gmra.mxu0 %v1309
  %v2095 = vpop.f32.mrf.mxu0
  %v2096 = vadd.f32 %v1927, %v2095
  %v2097 = vpop.f32.mrf.mxu0
  %v2098 = vadd.f32 %v1929, %v2097
  %2099 = vmatmul.bf16.gmra.mxu0 %v1312
  %v2100 = vpop.f32.mrf.mxu0
  %v2101 = vadd.f32 %v1932, %v2100
  %v2102 = vpop.f32.mrf.mxu0
  %v2103 = vadd.f32 %v1934, %v2102
  %2104 = vmatmul.bf16.gmra.mxu0 %v1315
  %v2105 = vpop.f32.mrf.mxu0
  %v2106 = vadd.f32 %v1937, %v2105
  %v2107 = vpop.f32.mrf.mxu0
  %v2108 = vadd.f32 %v1939, %v2107
  %2109 = vmatmul.bf16.gmra.mxu0 %v1318
  %v2110 = vpop.f32.mrf.mxu0
  %v2111 = vadd.f32 %v1942, %v2110
  %v2112 = vpop.f32.mrf.mxu0
  %v2113 = vadd.f32 %v1944, %v2112
  %2114 = vmatmul.bf16.gmra.mxu0 %v1321
  %v2115 = vpop.f32.mrf.mxu0
  %v2116 = vadd.f32 %v1947, %v2115
  %v2117 = vpop.f32.mrf.mxu0
  %v2118 = vadd.f32 %v1949, %v2117
  %2119 = vmatmul.bf16.gmra.mxu0 %v1324
  %v2120 = vpop.f32.mrf.mxu0
  %v2121 = vadd.f32 %v1952, %v2120
  %v2122 = vpop.f32.mrf.mxu0
  %v2123 = vadd.f32 %v1954, %v2122
  %2124 = vmatmul.bf16.gmra.mxu0 %v1327
  %v2125 = vpop.f32.mrf.mxu0
  %v2126 = vadd.f32 %v1957, %v2125
  %v2127 = vpop.f32.mrf.mxu0
  %v2128 = vadd.f32 %v1959, %v2127
  %2129 = vmatmul.bf16.gmra.mxu0 %v1330
  %v2130 = vpop.f32.mrf.mxu0
  %v2131 = vadd.f32 %v1962, %v2130
  %v2132 = vpop.f32.mrf.mxu0
  %v2133 = vadd.f32 %v1964, %v2132
  %2134 = vmatmul.bf16.gmra.mxu0 %v1333
  %v2135 = vpop.f32.mrf.mxu0
  %v2136 = vadd.f32 %v1967, %v2135
  %v2137 = vpop.f32.mrf.mxu0
  %v2138 = vadd.f32 %v1969, %v2137
  %2139 = vmatmul.bf16.gmra.mxu0 %v1336
  %v2140 = vpop.f32.mrf.mxu0
  %v2141 = vadd.f32 %v1972, %v2140
  %v2142 = vpop.f32.mrf.mxu0
  %v2143 = vadd.f32 %v1974, %v2142
  %2144 = vmatmul.bf16.gmra.mxu0 %v1339
  %v2145 = vpop.f32.mrf.mxu0
  %v2146 = vadd.f32 %v1977, %v2145
  %v2147 = vpop.f32.mrf.mxu0
  %v2148 = vadd.f32 %v1979, %v2147
  %2149 = vmatmul.bf16.gmra.mxu0 %v1342
  %v2150 = vpop.f32.mrf.mxu0
  %v2151 = vadd.f32 %v1982, %v2150
  %v2152 = vpop.f32.mrf.mxu0
  %v2153 = vadd.f32 %v1984, %v2152
  %2154 = vmatmul.bf16.gmra.mxu0 %v1345
  %v2155 = vpop.f32.mrf.mxu0
  %v2156 = vadd.f32 %v1987, %v2155
  %v2157 = vpop.f32.mrf.mxu0
  %v2158 = vadd.f32 %v1989, %v2157
  %2159 = vmatmul.bf16.gmra.mxu0 %v1348
  %v2160 = vpop.f32.mrf.mxu0
  %v2161 = vadd.f32 %v1992, %v2160
  %v2162 = vpop.f32.mrf.mxu0
  %v2163 = vadd.f32 %v1994, %v2162
  %2164 = vmatmul.bf16.gmra.mxu0 %v1351
  %v2165 = vpop.f32.mrf.mxu0
  %v2166 = vadd.f32 %v1997, %v2165
  %v2167 = vpop.f32.mrf.mxu0
  %v2168 = vadd.f32 %v1999, %v2167
  %2169 = vmatmul.bf16.gmra.mxu0 %v1354
  %v2170 = vpop.f32.mrf.mxu0
  %v2171 = vadd.f32 %v2002, %v2170
  %v2172 = vpop.f32.mrf.mxu0
  %v2173 = vadd.f32 %v2004, %v2172
  %2174 = vmatmul.bf16.gmra.mxu0 %v1357
  %v2175 = vpop.f32.mrf.mxu0
  %v2176 = vadd.f32 %v2007, %v2175
  %v2177 = vpop.f32.mrf.mxu0
  %v2178 = vadd.f32 %v2009, %v2177
  %2179 = vmatmul.bf16.gmra.mxu0 %v1360
  %v2180 = vpop.f32.mrf.mxu0
  %v2181 = vadd.f32 %v2012, %v2180
  %v2182 = vpop.f32.mrf.mxu0
  %v2183 = vadd.f32 %v2014, %v2182
  %2184 = vmatmul.bf16.gmra.mxu0 %v1363
  %v2185 = vpop.f32.mrf.mxu0
  %v2186 = vadd.f32 %v2017, %v2185
  %v2187 = vpop.f32.mrf.mxu0
  %v2188 = vadd.f32 %v2019, %v2187
  %2189 = vmatmul.bf16.gmra.mxu0 %v1366
  %v2190 = vpop.f32.mrf.mxu0
  %v2191 = vadd.f32 %v2022, %v2190
  %v2192 = vpop.f32.mrf.mxu0
  %v2193 = vadd.f32 %v2024, %v2192
  %2194 = vmatmul.bf16.gmra.mxu0 %v1369
  %v2195 = vpop.f32.mrf.mxu0
  %v2196 = vadd.f32 %v2027, %v2195
  %v2197 = vpop.f32.mrf.mxu0
  %v2198 = vadd.f32 %v2029, %v2197
  %2199 = vmatmul.bf16.gmra.mxu0 %v1372
  %v2200 = vpop.f32.mrf.mxu0
  %v2201 = vadd.f32 %v2032, %v2200
  %v2202 = vpop.f32.mrf.mxu0
  %v2203 = vadd.f32 %v2034, %v2202
  %2204 = vmatmul.bf16.gmra.mxu0 %v1375
  %v2205 = vpop.f32.mrf.mxu0
  %v2206 = vadd.f32 %v2037, %v2205
  %v2207 = vpop.f32.mrf.mxu0
  %v2208 = vadd.f32 %v2039, %v2207
  %2209 = vmatmul.bf16.gmra.mxu0 %v1378
  %v2210 = vpop.f32.mrf.mxu0
  %v2211 = vadd.f32 %v2042, %v2210
  %v2212 = vpop.f32.mrf.mxu0
  %v2213 = vadd.f32 %v2044, %v2212
  %2214 = vmatmul.bf16.gmra.mxu0 %v1381
  %v2215 = vpop.f32.mrf.mxu0
  %v2216 = vadd.f32 %v2047, %v2215
  %v2217 = vpop.f32.mrf.mxu0
  %v2218 = vadd.f32 %v2049, %v2217
  %2219 = vmatmul.bf16.gmra.mxu0 %v1384
  %v2220 = vpop.f32.mrf.mxu0
  %v2221 = vadd.f32 %v2052, %v2220
  %v2222 = vpop.f32.mrf.mxu0
  %v2223 = vadd.f32 %v2054, %v2222
  %2224 = vmatmul.bf16.gmra.mxu0 %v1387
  %v2225 = vpop.f32.mrf.mxu0
  %v2226 = vadd.f32 %v2057, %v2225
  %v2227 = vpop.f32.mrf.mxu0
  %v2228 = vadd.f32 %v2059, %v2227
  %2229 = vmatmul.bf16.gmra.mxu0 %v1390
  %v2230 = vpop.f32.mrf.mxu0
  %v2231 = vadd.f32 %v2062, %v2230
  %v2232 = vpop.f32.mrf.mxu0
  %v2233 = vadd.f32 %v2064, %v2232
  %2234 = vmatmul.bf16.gmra.mxu0 %v1393
  %v2235 = vpop.f32.mrf.mxu0
  %v2236 = vadd.f32 %v2067, %v2235
  %v2237 = vpop.f32.mrf.mxu0
  %v2238 = vadd.f32 %v2069, %v2237
  %2239 = vdwg.mxu0
  %v2240 = vadd.f32 %v2081, %v2083
  %v2241 = vadd.f32 %v2240, %v2086
  %v2242 = vadd.f32 %v2241, %v2088
  %v2243 = vadd.f32 %v2242, %v2091
  %v2244 = vadd.f32 %v2243, %v2093
  %v2245 = vadd.f32 %v2244, %v2096
  %v2246 = vadd.f32 %v2245, %v2098
  %v2247 = vadd.f32 %v2246, %v2101
  %v2248 = vadd.f32 %v2247, %v2103
  %v2249 = vadd.f32 %v2248, %v2106
  %v2250 = vadd.f32 %v2249, %v2108
  %v2251 = vadd.f32 %v2250, %v2111
  %v2252 = vadd.f32 %v2251, %v2113
  %v2253 = vadd.f32 %v2252, %v2116
  %v2254 = vadd.f32 %v2253, %v2118
  %v2255 = vadd.f32 %v2254, %v2121
  %v2256 = vadd.f32 %v2255, %v2123
  %v2257 = vadd.f32 %v2256, %v2126
  %v2258 = vadd.f32 %v2257, %v2128
  %v2259 = vadd.f32 %v2258, %v2131
  %v2260 = vadd.f32 %v2259, %v2133
  %v2261 = vadd.f32 %v2260, %v2136
  %v2262 = vadd.f32 %v2261, %v2138
  %v2263 = vadd.f32 %v2262, %v2141
  %v2264 = vadd.f32 %v2263, %v2143
  %v2265 = vadd.f32 %v2264, %v2146
  %v2266 = vadd.f32 %v2265, %v2148
  %v2267 = vadd.f32 %v2266, %v2151
  %v2268 = vadd.f32 %v2267, %v2153
  %v2269 = vadd.f32 %v2268, %v2156
  %v2270 = vadd.f32 %v2269, %v2158
  %v2271 = vadd.f32 %v2270, %v2161
  %v2272 = vadd.f32 %v2271, %v2163
  %v2273 = vadd.f32 %v2272, %v2166
  %v2274 = vadd.f32 %v2273, %v2168
  %v2275 = vadd.f32 %v2274, %v2171
  %v2276 = vadd.f32 %v2275, %v2173
  %v2277 = vadd.f32 %v2276, %v2176
  %v2278 = vadd.f32 %v2277, %v2178
  %v2279 = vadd.f32 %v2278, %v2181
  %v2280 = vadd.f32 %v2279, %v2183
  %v2281 = vadd.f32 %v2280, %v2186
  %v2282 = vadd.f32 %v2281, %v2188
  %v2283 = vadd.f32 %v2282, %v2191
  %v2284 = vadd.f32 %v2283, %v2193
  %v2285 = vadd.f32 %v2284, %v2196
  %v2286 = vadd.f32 %v2285, %v2198
  %v2287 = vadd.f32 %v2286, %v2201
  %v2288 = vadd.f32 %v2287, %v2203
  %v2289 = vadd.f32 %v2288, %v2206
  %v2290 = vadd.f32 %v2289, %v2208
  %v2291 = vadd.f32 %v2290, %v2211
  %v2292 = vadd.f32 %v2291, %v2213
  %v2293 = vadd.f32 %v2292, %v2216
  %v2294 = vadd.f32 %v2293, %v2218
  %v2295 = vadd.f32 %v2294, %v2221
  %v2296 = vadd.f32 %v2295, %v2223
  %v2297 = vadd.f32 %v2296, %v2226
  %v2298 = vadd.f32 %v2297, %v2228
  %v2299 = vadd.f32 %v2298, %v2231
  %v2300 = vadd.f32 %v2299, %v2233
  %v2301 = vadd.f32 %v2300, %v2236
  %v2302 = vadd.f32 %v2301, %v2238
  %v2303 = vrot.slane %v2302, 4
  %v2304 = vadd.f32 %v2302, %v2303
  %v2305 = vrot.slane %v2304, 2
  %v2306 = vadd.f32 %v2304, %v2305
  %v2307 = vrot.slane %v2306, 1
  %v2308 = vadd.f32 %v2306, %v2307
  %v2309 = vmul.f32 %v2308, 0.001953125
  %v2310 = vmul.f32 %v2081, %v2081
  %v2311 = vmul.f32 %v2083, %v2083
  %v2312 = vmul.f32 %v2086, %v2086
  %v2313 = vmul.f32 %v2088, %v2088
  %v2314 = vmul.f32 %v2091, %v2091
  %v2315 = vmul.f32 %v2093, %v2093
  %v2316 = vmul.f32 %v2096, %v2096
  %v2317 = vmul.f32 %v2098, %v2098
  %v2318 = vmul.f32 %v2101, %v2101
  %v2319 = vmul.f32 %v2103, %v2103
  %v2320 = vmul.f32 %v2106, %v2106
  %v2321 = vmul.f32 %v2108, %v2108
  %v2322 = vmul.f32 %v2111, %v2111
  %v2323 = vmul.f32 %v2113, %v2113
  %v2324 = vmul.f32 %v2116, %v2116
  %v2325 = vmul.f32 %v2118, %v2118
  %v2326 = vmul.f32 %v2121, %v2121
  %v2327 = vmul.f32 %v2123, %v2123
  %v2328 = vmul.f32 %v2126, %v2126
  %v2329 = vmul.f32 %v2128, %v2128
  %v2330 = vmul.f32 %v2131, %v2131
  %v2331 = vmul.f32 %v2133, %v2133
  %v2332 = vmul.f32 %v2136, %v2136
  %v2333 = vmul.f32 %v2138, %v2138
  %v2334 = vmul.f32 %v2141, %v2141
  %v2335 = vmul.f32 %v2143, %v2143
  %v2336 = vmul.f32 %v2146, %v2146
  %v2337 = vmul.f32 %v2148, %v2148
  %v2338 = vmul.f32 %v2151, %v2151
  %v2339 = vmul.f32 %v2153, %v2153
  %v2340 = vmul.f32 %v2156, %v2156
  %v2341 = vmul.f32 %v2158, %v2158
  %v2342 = vmul.f32 %v2161, %v2161
  %v2343 = vmul.f32 %v2163, %v2163
  %v2344 = vmul.f32 %v2166, %v2166
  %v2345 = vmul.f32 %v2168, %v2168
  %v2346 = vmul.f32 %v2171, %v2171
  %v2347 = vmul.f32 %v2173, %v2173
  %v2348 = vmul.f32 %v2176, %v2176
  %v2349 = vmul.f32 %v2178, %v2178
  %v2350 = vmul.f32 %v2181, %v2181
  %v2351 = vmul.f32 %v2183, %v2183
  %v2352 = vmul.f32 %v2186, %v2186
  %v2353 = vmul.f32 %v2188, %v2188
  %v2354 = vmul.f32 %v2191, %v2191
  %v2355 = vmul.f32 %v2193, %v2193
  %v2356 = vmul.f32 %v2196, %v2196
  %v2357 = vmul.f32 %v2198, %v2198
  %v2358 = vmul.f32 %v2201, %v2201
  %v2359 = vmul.f32 %v2203, %v2203
  %v2360 = vmul.f32 %v2206, %v2206
  %v2361 = vmul.f32 %v2208, %v2208
  %v2362 = vmul.f32 %v2211, %v2211
  %v2363 = vmul.f32 %v2213, %v2213
  %v2364 = vmul.f32 %v2216, %v2216
  %v2365 = vmul.f32 %v2218, %v2218
  %v2366 = vmul.f32 %v2221, %v2221
  %v2367 = vmul.f32 %v2223, %v2223
  %v2368 = vmul.f32 %v2226, %v2226
  %v2369 = vmul.f32 %v2228, %v2228
  %v2370 = vmul.f32 %v2231, %v2231
  %v2371 = vmul.f32 %v2233, %v2233
  %v2372 = vmul.f32 %v2236, %v2236
  %v2373 = vmul.f32 %v2238, %v2238
  %v2374 = vadd.f32 %v2310, %v2311
  %v2375 = vadd.f32 %v2374, %v2312
  %v2376 = vadd.f32 %v2375, %v2313
  %v2377 = vadd.f32 %v2376, %v2314
  %v2378 = vadd.f32 %v2377, %v2315
  %v2379 = vadd.f32 %v2378, %v2316
  %v2380 = vadd.f32 %v2379, %v2317
  %v2381 = vadd.f32 %v2380, %v2318
  %v2382 = vadd.f32 %v2381, %v2319
  %v2383 = vadd.f32 %v2382, %v2320
  %v2384 = vadd.f32 %v2383, %v2321
  %v2385 = vadd.f32 %v2384, %v2322
  %v2386 = vadd.f32 %v2385, %v2323
  %v2387 = vadd.f32 %v2386, %v2324
  %v2388 = vadd.f32 %v2387, %v2325
  %v2389 = vadd.f32 %v2388, %v2326
  %v2390 = vadd.f32 %v2389, %v2327
  %v2391 = vadd.f32 %v2390, %v2328
  %v2392 = vadd.f32 %v2391, %v2329
  %v2393 = vadd.f32 %v2392, %v2330
  %v2394 = vadd.f32 %v2393, %v2331
  %v2395 = vadd.f32 %v2394, %v2332
  %v2396 = vadd.f32 %v2395, %v2333
  %v2397 = vadd.f32 %v2396, %v2334
  %v2398 = vadd.f32 %v2397, %v2335
  %v2399 = vadd.f32 %v2398, %v2336
  %v2400 = vadd.f32 %v2399, %v2337
  %v2401 = vadd.f32 %v2400, %v2338
  %v2402 = vadd.f32 %v2401, %v2339
  %v2403 = vadd.f32 %v2402, %v2340
  %v2404 = vadd.f32 %v2403, %v2341
  %v2405 = vadd.f32 %v2404, %v2342
  %v2406 = vadd.f32 %v2405, %v2343
  %v2407 = vadd.f32 %v2406, %v2344
  %v2408 = vadd.f32 %v2407, %v2345
  %v2409 = vadd.f32 %v2408, %v2346
  %v2410 = vadd.f32 %v2409, %v2347
  %v2411 = vadd.f32 %v2410, %v2348
  %v2412 = vadd.f32 %v2411, %v2349
  %v2413 = vadd.f32 %v2412, %v2350
  %v2414 = vadd.f32 %v2413, %v2351
  %v2415 = vadd.f32 %v2414, %v2352
  %v2416 = vadd.f32 %v2415, %v2353
  %v2417 = vadd.f32 %v2416, %v2354
  %v2418 = vadd.f32 %v2417, %v2355
  %v2419 = vadd.f32 %v2418, %v2356
  %v2420 = vadd.f32 %v2419, %v2357
  %v2421 = vadd.f32 %v2420, %v2358
  %v2422 = vadd.f32 %v2421, %v2359
  %v2423 = vadd.f32 %v2422, %v2360
  %v2424 = vadd.f32 %v2423, %v2361
  %v2425 = vadd.f32 %v2424, %v2362
  %v2426 = vadd.f32 %v2425, %v2363
  %v2427 = vadd.f32 %v2426, %v2364
  %v2428 = vadd.f32 %v2427, %v2365
  %v2429 = vadd.f32 %v2428, %v2366
  %v2430 = vadd.f32 %v2429, %v2367
  %v2431 = vadd.f32 %v2430, %v2368
  %v2432 = vadd.f32 %v2431, %v2369
  %v2433 = vadd.f32 %v2432, %v2370
  %v2434 = vadd.f32 %v2433, %v2371
  %v2435 = vadd.f32 %v2434, %v2372
  %v2436 = vadd.f32 %v2435, %v2373
  %v2437 = vrot.slane %v2436, 4
  %v2438 = vadd.f32 %v2436, %v2437
  %v2439 = vrot.slane %v2438, 2
  %v2440 = vadd.f32 %v2438, %v2439
  %v2441 = vrot.slane %v2440, 1
  %v2442 = vadd.f32 %v2440, %v2441
  %v2443 = vmul.f32 %v2442, 0.001953125
  %v2444 = vmul.f32 %v2309, %v2309
  %v2445 = vsub.f32 %v2443, %v2444
  %v2446 = vmax.f32 %v2445, 0.0
  %v2447 = vadd.f32 %v2446, 1e-05
  %v2448 = vrsqrt.pop %v2447
  %v2449 = vmul.f32 %v2448, %v2447
  %v2450 = vmul.f32 %v2449, %v2448
  %v2451 = vmul.f32 0.5, %v2450
  %v2452 = vsub.f32 1.5, %v2451
  %v2453 = vmul.f32 %v2448, %v2452
  %vm2454 = vweird.f32 %v2447
  %vm2455 = vweird.f32 %v2448
  %vm2456 = vmor %vm2454, %vm2455
  %v2457 = vsel %vm2456, %v2448, %v2453
  %v2458 = vld [vmem:[%s2] sm:$0x1]
  %v2459 = vmul.f32 %v2457, %v2458
  %v2460 = vld [vmem:[%s3] sm:$0x1]
  %v2461 = vmul.f32 %v2309, %v2459
  %v2462 = vsub.f32 %v2460, %v2461
  %v2463 = vperm.slane %v2459, 0
  %v2464 = vmul.f32 %v2081, %v2463
  %v2465 = vmul.f32 %v2083, %v2463
  %v2466 = vmul.f32 %v2086, %v2463
  %v2467 = vmul.f32 %v2088, %v2463
  %v2468 = vmul.f32 %v2091, %v2463
  %v2469 = vmul.f32 %v2093, %v2463
  %v2470 = vmul.f32 %v2096, %v2463
  %v2471 = vmul.f32 %v2098, %v2463
  %v2472 = vmul.f32 %v2101, %v2463
  %v2473 = vmul.f32 %v2103, %v2463
  %v2474 = vmul.f32 %v2106, %v2463
  %v2475 = vmul.f32 %v2108, %v2463
  %v2476 = vmul.f32 %v2111, %v2463
  %v2477 = vmul.f32 %v2113, %v2463
  %v2478 = vmul.f32 %v2116, %v2463
  %v2479 = vmul.f32 %v2118, %v2463
  %v2480 = vmul.f32 %v2121, %v2463
  %v2481 = vmul.f32 %v2123, %v2463
  %v2482 = vmul.f32 %v2126, %v2463
  %v2483 = vmul.f32 %v2128, %v2463
  %v2484 = vmul.f32 %v2131, %v2463
  %v2485 = vmul.f32 %v2133, %v2463
  %v2486 = vmul.f32 %v2136, %v2463
  %v2487 = vmul.f32 %v2138, %v2463
  %v2488 = vmul.f32 %v2141, %v2463
  %v2489 = vmul.f32 %v2143, %v2463
  %v2490 = vmul.f32 %v2146, %v2463
  %v2491 = vmul.f32 %v2148, %v2463
  %v2492 = vmul.f32 %v2151, %v2463
  %v2493 = vmul.f32 %v2153, %v2463
  %v2494 = vmul.f32 %v2156, %v2463
  %v2495 = vmul.f32 %v2158, %v2463
  %v2496 = vmul.f32 %v2161, %v2463
  %v2497 = vmul.f32 %v2163, %v2463
  %v2498 = vmul.f32 %v2166, %v2463
  %v2499 = vmul.f32 %v2168, %v2463
  %v2500 = vmul.f32 %v2171, %v2463
  %v2501 = vmul.f32 %v2173, %v2463
  %v2502 = vmul.f32 %v2176, %v2463
  %v2503 = vmul.f32 %v2178, %v2463
  %v2504 = vmul.f32 %v2181, %v2463
  %v2505 = vmul.f32 %v2183, %v2463
  %v2506 = vmul.f32 %v2186, %v2463
  %v2507 = vmul.f32 %v2188, %v2463
  %v2508 = vmul.f32 %v2191, %v2463
  %v2509 = vmul.f32 %v2193, %v2463
  %v2510 = vmul.f32 %v2196, %v2463
  %v2511 = vmul.f32 %v2198, %v2463
  %v2512 = vmul.f32 %v2201, %v2463
  %v2513 = vmul.f32 %v2203, %v2463
  %v2514 = vmul.f32 %v2206, %v2463
  %v2515 = vmul.f32 %v2208, %v2463
  %v2516 = vmul.f32 %v2211, %v2463
  %v2517 = vmul.f32 %v2213, %v2463
  %v2518 = vmul.f32 %v2216, %v2463
  %v2519 = vmul.f32 %v2218, %v2463
  %v2520 = vmul.f32 %v2221, %v2463
  %v2521 = vmul.f32 %v2223, %v2463
  %v2522 = vmul.f32 %v2226, %v2463
  %v2523 = vmul.f32 %v2228, %v2463
  %v2524 = vmul.f32 %v2231, %v2463
  %v2525 = vmul.f32 %v2233, %v2463
  %v2526 = vmul.f32 %v2236, %v2463
  %v2527 = vmul.f32 %v2238, %v2463
  %v2529 = vperm.slane %v2462, 0
  %v2531 = vadd.f32 %v2464, %v2529
  %v2532 = vadd.f32 %v2465, %v2529
  %v2533 = vadd.f32 %v2466, %v2529
  %v2534 = vadd.f32 %v2467, %v2529
  %v2535 = vadd.f32 %v2468, %v2529
  %v2536 = vadd.f32 %v2469, %v2529
  %v2537 = vadd.f32 %v2470, %v2529
  %v2538 = vadd.f32 %v2471, %v2529
  %v2539 = vadd.f32 %v2472, %v2529
  %v2540 = vadd.f32 %v2473, %v2529
  %v2541 = vadd.f32 %v2474, %v2529
  %v2542 = vadd.f32 %v2475, %v2529
  %v2543 = vadd.f32 %v2476, %v2529
  %v2544 = vadd.f32 %v2477, %v2529
  %v2545 = vadd.f32 %v2478, %v2529
  %v2546 = vadd.f32 %v2479, %v2529
  %v2547 = vadd.f32 %v2480, %v2529
  %v2548 = vadd.f32 %v2481, %v2529
  %v2549 = vadd.f32 %v2482, %v2529
  %v2550 = vadd.f32 %v2483, %v2529
  %v2551 = vadd.f32 %v2484, %v2529
  %v2552 = vadd.f32 %v2485, %v2529
  %v2553 = vadd.f32 %v2486, %v2529
  %v2554 = vadd.f32 %v2487, %v2529
  %v2555 = vadd.f32 %v2488, %v2529
  %v2556 = vadd.f32 %v2489, %v2529
  %v2557 = vadd.f32 %v2490, %v2529
  %v2558 = vadd.f32 %v2491, %v2529
  %v2559 = vadd.f32 %v2492, %v2529
  %v2560 = vadd.f32 %v2493, %v2529
  %v2561 = vadd.f32 %v2494, %v2529
  %v2562 = vadd.f32 %v2495, %v2529
  %v2563 = vadd.f32 %v2496, %v2529
  %v2564 = vadd.f32 %v2497, %v2529
  %v2565 = vadd.f32 %v2498, %v2529
  %v2566 = vadd.f32 %v2499, %v2529
  %v2567 = vadd.f32 %v2500, %v2529
  %v2568 = vadd.f32 %v2501, %v2529
  %v2569 = vadd.f32 %v2502, %v2529
  %v2570 = vadd.f32 %v2503, %v2529
  %v2571 = vadd.f32 %v2504, %v2529
  %v2572 = vadd.f32 %v2505, %v2529
  %v2573 = vadd.f32 %v2506, %v2529
  %v2574 = vadd.f32 %v2507, %v2529
  %v2575 = vadd.f32 %v2508, %v2529
  %v2576 = vadd.f32 %v2509, %v2529
  %v2577 = vadd.f32 %v2510, %v2529
  %v2578 = vadd.f32 %v2511, %v2529
  %v2579 = vadd.f32 %v2512, %v2529
  %v2580 = vadd.f32 %v2513, %v2529
  %v2581 = vadd.f32 %v2514, %v2529
  %v2582 = vadd.f32 %v2515, %v2529
  %v2583 = vadd.f32 %v2516, %v2529
  %v2584 = vadd.f32 %v2517, %v2529
  %v2585 = vadd.f32 %v2518, %v2529
  %v2586 = vadd.f32 %v2519, %v2529
  %v2587 = vadd.f32 %v2520, %v2529
  %v2588 = vadd.f32 %v2521, %v2529
  %v2589 = vadd.f32 %v2522, %v2529
  %v2590 = vadd.f32 %v2523, %v2529
  %v2591 = vadd.f32 %v2524, %v2529
  %v2592 = vadd.f32 %v2525, %v2529
  %v2593 = vadd.f32 %v2526, %v2529
  %v2594 = vadd.f32 %v2527, %v2529
  %vm2595 = vcmp.gt.f32.partialorder %v2531, 0.0
  %vm2596 = vcmp.gt.f32.partialorder %v2532, 0.0
  %vm2597 = vcmp.gt.f32.partialorder %v2533, 0.0
  %vm2598 = vcmp.gt.f32.partialorder %v2534, 0.0
  %vm2599 = vcmp.gt.f32.partialorder %v2535, 0.0
  %vm2600 = vcmp.gt.f32.partialorder %v2536, 0.0
  %vm2601 = vcmp.gt.f32.partialorder %v2537, 0.0
  %vm2602 = vcmp.gt.f32.partialorder %v2538, 0.0
  %vm2603 = vcmp.gt.f32.partialorder %v2539, 0.0
  %vm2604 = vcmp.gt.f32.partialorder %v2540, 0.0
  %vm2605 = vcmp.gt.f32.partialorder %v2541, 0.0
  %vm2606 = vcmp.gt.f32.partialorder %v2542, 0.0
  %vm2607 = vcmp.gt.f32.partialorder %v2543, 0.0
  %vm2608 = vcmp.gt.f32.partialorder %v2544, 0.0
  %vm2609 = vcmp.gt.f32.partialorder %v2545, 0.0
  %vm2610 = vcmp.gt.f32.partialorder %v2546, 0.0
  %vm2611 = vcmp.gt.f32.partialorder %v2547, 0.0
  %vm2612 = vcmp.gt.f32.partialorder %v2548, 0.0
  %vm2613 = vcmp.gt.f32.partialorder %v2549, 0.0
  %vm2614 = vcmp.gt.f32.partialorder %v2550, 0.0
  %vm2615 = vcmp.gt.f32.partialorder %v2551, 0.0
  %vm2616 = vcmp.gt.f32.partialorder %v2552, 0.0
  %vm2617 = vcmp.gt.f32.partialorder %v2553, 0.0
  %vm2618 = vcmp.gt.f32.partialorder %v2554, 0.0
  %vm2619 = vcmp.gt.f32.partialorder %v2555, 0.0
  %vm2620 = vcmp.gt.f32.partialorder %v2556, 0.0
  %vm2621 = vcmp.gt.f32.partialorder %v2557, 0.0
  %vm2622 = vcmp.gt.f32.partialorder %v2558, 0.0
  %vm2623 = vcmp.gt.f32.partialorder %v2559, 0.0
  %vm2624 = vcmp.gt.f32.partialorder %v2560, 0.0
  %vm2625 = vcmp.gt.f32.partialorder %v2561, 0.0
  %vm2626 = vcmp.gt.f32.partialorder %v2562, 0.0
  %vm2627 = vcmp.gt.f32.partialorder %v2563, 0.0
  %vm2628 = vcmp.gt.f32.partialorder %v2564, 0.0
  %vm2629 = vcmp.gt.f32.partialorder %v2565, 0.0
  %vm2630 = vcmp.gt.f32.partialorder %v2566, 0.0
  %vm2631 = vcmp.gt.f32.partialorder %v2567, 0.0
  %vm2632 = vcmp.gt.f32.partialorder %v2568, 0.0
  %vm2633 = vcmp.gt.f32.partialorder %v2569, 0.0
  %vm2634 = vcmp.gt.f32.partialorder %v2570, 0.0
  %vm2635 = vcmp.gt.f32.partialorder %v2571, 0.0
  %vm2636 = vcmp.gt.f32.partialorder %v2572, 0.0
  %vm2637 = vcmp.gt.f32.partialorder %v2573, 0.0
  %vm2638 = vcmp.gt.f32.partialorder %v2574, 0.0
  %vm2639 = vcmp.gt.f32.partialorder %v2575, 0.0
  %vm2640 = vcmp.gt.f32.partialorder %v2576, 0.0
  %vm2641 = vcmp.gt.f32.partialorder %v2577, 0.0
  %vm2642 = vcmp.gt.f32.partialorder %v2578, 0.0
  %vm2643 = vcmp.gt.f32.partialorder %v2579, 0.0
  %vm2644 = vcmp.gt.f32.partialorder %v2580, 0.0
  %vm2645 = vcmp.gt.f32.partialorder %v2581, 0.0
  %vm2646 = vcmp.gt.f32.partialorder %v2582, 0.0
  %vm2647 = vcmp.gt.f32.partialorder %v2583, 0.0
  %vm2648 = vcmp.gt.f32.partialorder %v2584, 0.0
  %vm2649 = vcmp.gt.f32.partialorder %v2585, 0.0
  %vm2650 = vcmp.gt.f32.partialorder %v2586, 0.0
  %vm2651 = vcmp.gt.f32.partialorder %v2587, 0.0
  %vm2652 = vcmp.gt.f32.partialorder %v2588, 0.0
  %vm2653 = vcmp.gt.f32.partialorder %v2589, 0.0
  %vm2654 = vcmp.gt.f32.partialorder %v2590, 0.0
  %vm2655 = vcmp.gt.f32.partialorder %v2591, 0.0
  %vm2656 = vcmp.gt.f32.partialorder %v2592, 0.0
  %vm2657 = vcmp.gt.f32.partialorder %v2593, 0.0
  %vm2658 = vcmp.gt.f32.partialorder %v2594, 0.0
  %v2659 = vmul.f32 %v2531, 0.2
  %v2660 = vmul.f32 %v2532, 0.2
  %v2661 = vmul.f32 %v2533, 0.2
  %v2662 = vmul.f32 %v2534, 0.2
  %v2663 = vmul.f32 %v2535, 0.2
  %v2664 = vmul.f32 %v2536, 0.2
  %v2665 = vmul.f32 %v2537, 0.2
  %v2666 = vmul.f32 %v2538, 0.2
  %v2667 = vmul.f32 %v2539, 0.2
  %v2668 = vmul.f32 %v2540, 0.2
  %v2669 = vmul.f32 %v2541, 0.2
  %v2670 = vmul.f32 %v2542, 0.2
  %v2671 = vmul.f32 %v2543, 0.2
  %v2672 = vmul.f32 %v2544, 0.2
  %v2673 = vmul.f32 %v2545, 0.2
  %v2674 = vmul.f32 %v2546, 0.2
  %v2675 = vmul.f32 %v2547, 0.2
  %v2676 = vmul.f32 %v2548, 0.2
  %v2677 = vmul.f32 %v2549, 0.2
  %v2678 = vmul.f32 %v2550, 0.2
  %v2679 = vmul.f32 %v2551, 0.2
  %v2680 = vmul.f32 %v2552, 0.2
  %v2681 = vmul.f32 %v2553, 0.2
  %v2682 = vmul.f32 %v2554, 0.2
  %v2683 = vmul.f32 %v2555, 0.2
  %v2684 = vmul.f32 %v2556, 0.2
  %v2685 = vmul.f32 %v2557, 0.2
  %v2686 = vmul.f32 %v2558, 0.2
  %v2687 = vmul.f32 %v2559, 0.2
  %v2688 = vmul.f32 %v2560, 0.2
  %v2689 = vmul.f32 %v2561, 0.2
  %v2690 = vmul.f32 %v2562, 0.2
  %v2691 = vmul.f32 %v2563, 0.2
  %v2692 = vmul.f32 %v2564, 0.2
  %v2693 = vmul.f32 %v2565, 0.2
  %v2694 = vmul.f32 %v2566, 0.2
  %v2695 = vmul.f32 %v2567, 0.2
  %v2696 = vmul.f32 %v2568, 0.2
  %v2697 = vmul.f32 %v2569, 0.2
  %v2698 = vmul.f32 %v2570, 0.2
  %v2699 = vmul.f32 %v2571, 0.2
  %v2700 = vmul.f32 %v2572, 0.2
  %v2701 = vmul.f32 %v2573, 0.2
  %v2702 = vmul.f32 %v2574, 0.2
  %v2703 = vmul.f32 %v2575, 0.2
  %v2704 = vmul.f32 %v2576, 0.2
  %v2705 = vmul.f32 %v2577, 0.2
  %v2706 = vmul.f32 %v2578, 0.2
  %v2707 = vmul.f32 %v2579, 0.2
  %v2708 = vmul.f32 %v2580, 0.2
  %v2709 = vmul.f32 %v2581, 0.2
  %v2710 = vmul.f32 %v2582, 0.2
  %v2711 = vmul.f32 %v2583, 0.2
  %v2712 = vmul.f32 %v2584, 0.2
  %v2713 = vmul.f32 %v2585, 0.2
  %v2714 = vmul.f32 %v2586, 0.2
  %v2715 = vmul.f32 %v2587, 0.2
  %v2716 = vmul.f32 %v2588, 0.2
  %v2717 = vmul.f32 %v2589, 0.2
  %v2718 = vmul.f32 %v2590, 0.2
  %v2719 = vmul.f32 %v2591, 0.2
  %v2720 = vmul.f32 %v2592, 0.2
  %v2721 = vmul.f32 %v2593, 0.2
  %v2722 = vmul.f32 %v2594, 0.2
  %v2723 = vsel %vm2595, %v2531, %v2659
  %v2724 = vsel %vm2596, %v2532, %v2660
  %v2725 = vsel %vm2597, %v2533, %v2661
  %v2726 = vsel %vm2598, %v2534, %v2662
  %v2727 = vsel %vm2599, %v2535, %v2663
  %v2728 = vsel %vm2600, %v2536, %v2664
  %v2729 = vsel %vm2601, %v2537, %v2665
  %v2730 = vsel %vm2602, %v2538, %v2666
  %v2731 = vsel %vm2603, %v2539, %v2667
  %v2732 = vsel %vm2604, %v2540, %v2668
  %v2733 = vsel %vm2605, %v2541, %v2669
  %v2734 = vsel %vm2606, %v2542, %v2670
  %v2735 = vsel %vm2607, %v2543, %v2671
  %v2736 = vsel %vm2608, %v2544, %v2672
  %v2737 = vsel %vm2609, %v2545, %v2673
  %v2738 = vsel %vm2610, %v2546, %v2674
  %v2739 = vsel %vm2611, %v2547, %v2675
  %v2740 = vsel %vm2612, %v2548, %v2676
  %v2741 = vsel %vm2613, %v2549, %v2677
  %v2742 = vsel %vm2614, %v2550, %v2678
  %v2743 = vsel %vm2615, %v2551, %v2679
  %v2744 = vsel %vm2616, %v2552, %v2680
  %v2745 = vsel %vm2617, %v2553, %v2681
  %v2746 = vsel %vm2618, %v2554, %v2682
  %v2747 = vsel %vm2619, %v2555, %v2683
  %v2748 = vsel %vm2620, %v2556, %v2684
  %v2749 = vsel %vm2621, %v2557, %v2685
  %v2750 = vsel %vm2622, %v2558, %v2686
  %v2751 = vsel %vm2623, %v2559, %v2687
  %v2752 = vsel %vm2624, %v2560, %v2688
  %v2753 = vsel %vm2625, %v2561, %v2689
  %v2754 = vsel %vm2626, %v2562, %v2690
  %v2755 = vsel %vm2627, %v2563, %v2691
  %v2756 = vsel %vm2628, %v2564, %v2692
  %v2757 = vsel %vm2629, %v2565, %v2693
  %v2758 = vsel %vm2630, %v2566, %v2694
  %v2759 = vsel %vm2631, %v2567, %v2695
  %v2760 = vsel %vm2632, %v2568, %v2696
  %v2761 = vsel %vm2633, %v2569, %v2697
  %v2762 = vsel %vm2634, %v2570, %v2698
  %v2763 = vsel %vm2635, %v2571, %v2699
  %v2764 = vsel %vm2636, %v2572, %v2700
  %v2765 = vsel %vm2637, %v2573, %v2701
  %v2766 = vsel %vm2638, %v2574, %v2702
  %v2767 = vsel %vm2639, %v2575, %v2703
  %v2768 = vsel %vm2640, %v2576, %v2704
  %v2769 = vsel %vm2641, %v2577, %v2705
  %v2770 = vsel %vm2642, %v2578, %v2706
  %v2771 = vsel %vm2643, %v2579, %v2707
  %v2772 = vsel %vm2644, %v2580, %v2708
  %v2773 = vsel %vm2645, %v2581, %v2709
  %v2774 = vsel %vm2646, %v2582, %v2710
  %v2775 = vsel %vm2647, %v2583, %v2711
  %v2776 = vsel %vm2648, %v2584, %v2712
  %v2777 = vsel %vm2649, %v2585, %v2713
  %v2778 = vsel %vm2650, %v2586, %v2714
  %v2779 = vsel %vm2651, %v2587, %v2715
  %v2780 = vsel %vm2652, %v2588, %v2716
  %v2781 = vsel %vm2653, %v2589, %v2717
  %v2782 = vsel %vm2654, %v2590, %v2718
  %v2783 = vsel %vm2655, %v2591, %v2719
  %v2784 = vsel %vm2656, %v2592, %v2720
  %v2785 = vsel %vm2657, %v2593, %v2721
  %v2786 = vsel %vm2658, %v2594, %v2722
  %v2787 = vpack.c.bf16 %v2723, %v2723
  %v2788 = vpack.c.bf16 %v2724, %v2724
  %v2789 = vpack.c.bf16 %v2725, %v2725
  %v2790 = vpack.c.bf16 %v2726, %v2726
  %v2791 = vpack.c.bf16 %v2727, %v2727
  %v2792 = vpack.c.bf16 %v2728, %v2728
  %v2793 = vpack.c.bf16 %v2729, %v2729
  %v2794 = vpack.c.bf16 %v2730, %v2730
  %v2795 = vpack.c.bf16 %v2731, %v2731
  %v2796 = vpack.c.bf16 %v2732, %v2732
  %v2797 = vpack.c.bf16 %v2733, %v2733
  %v2798 = vpack.c.bf16 %v2734, %v2734
  %v2799 = vpack.c.bf16 %v2735, %v2735
  %v2800 = vpack.c.bf16 %v2736, %v2736
  %v2801 = vpack.c.bf16 %v2737, %v2737
  %v2802 = vpack.c.bf16 %v2738, %v2738
  %v2803 = vpack.c.bf16 %v2739, %v2739
  %v2804 = vpack.c.bf16 %v2740, %v2740
  %v2805 = vpack.c.bf16 %v2741, %v2741
  %v2806 = vpack.c.bf16 %v2742, %v2742
  %v2807 = vpack.c.bf16 %v2743, %v2743
  %v2808 = vpack.c.bf16 %v2744, %v2744
  %v2809 = vpack.c.bf16 %v2745, %v2745
  %v2810 = vpack.c.bf16 %v2746, %v2746
  %v2811 = vpack.c.bf16 %v2747, %v2747
  %v2812 = vpack.c.bf16 %v2748, %v2748
  %v2813 = vpack.c.bf16 %v2749, %v2749
  %v2814 = vpack.c.bf16 %v2750, %v2750
  %v2815 = vpack.c.bf16 %v2751, %v2751
  %v2816 = vpack.c.bf16 %v2752, %v2752
  %v2817 = vpack.c.bf16 %v2753, %v2753
  %v2818 = vpack.c.bf16 %v2754, %v2754
  %v2819 = vpack.c.bf16 %v2755, %v2755
  %v2820 = vpack.c.bf16 %v2756, %v2756
  %v2821 = vpack.c.bf16 %v2757, %v2757
  %v2822 = vpack.c.bf16 %v2758, %v2758
  %v2823 = vpack.c.bf16 %v2759, %v2759
  %v2824 = vpack.c.bf16 %v2760, %v2760
  %v2825 = vpack.c.bf16 %v2761, %v2761
  %v2826 = vpack.c.bf16 %v2762, %v2762
  %v2827 = vpack.c.bf16 %v2763, %v2763
  %v2828 = vpack.c.bf16 %v2764, %v2764
  %v2829 = vpack.c.bf16 %v2765, %v2765
  %v2830 = vpack.c.bf16 %v2766, %v2766
  %v2831 = vpack.c.bf16 %v2767, %v2767
  %v2832 = vpack.c.bf16 %v2768, %v2768
  %v2833 = vpack.c.bf16 %v2769, %v2769
  %v2834 = vpack.c.bf16 %v2770, %v2770
  %v2835 = vpack.c.bf16 %v2771, %v2771
  %v2836 = vpack.c.bf16 %v2772, %v2772
  %v2837 = vpack.c.bf16 %v2773, %v2773
  %v2838 = vpack.c.bf16 %v2774, %v2774
  %v2839 = vpack.c.bf16 %v2775, %v2775
  %v2840 = vpack.c.bf16 %v2776, %v2776
  %v2841 = vpack.c.bf16 %v2777, %v2777
  %v2842 = vpack.c.bf16 %v2778, %v2778
  %v2843 = vpack.c.bf16 %v2779, %v2779
  %v2844 = vpack.c.bf16 %v2780, %v2780
  %v2845 = vpack.c.bf16 %v2781, %v2781
  %v2846 = vpack.c.bf16 %v2782, %v2782
  %v2847 = vpack.c.bf16 %v2783, %v2783
  %v2848 = vpack.c.bf16 %v2784, %v2784
  %v2849 = vpack.c.bf16 %v2785, %v2785
  %v2850 = vpack.c.bf16 %v2786, %v2786
  %2851 = vst [vmem:[%s4] sm:$0xf] %v2787
  %2852 = vst [vmem:[%s4 + $0x4] sm:$0xf] %v2788
  %2853 = vst [vmem:[%s4 + $0x8] sm:$0xf] %v2789
  %2854 = vst [vmem:[%s4 + $0xc] sm:$0xf] %v2790
  %2855 = vst [vmem:[%s4 + $0x10] sm:$0xf] %v2791
  %2856 = vst [vmem:[%s4 + $0x14] sm:$0xf] %v2792
  %2857 = vst [vmem:[%s4 + $0x18] sm:$0xf] %v2793
  %2858 = vst [vmem:[%s4 + $0x1c] sm:$0xf] %v2794
  %2859 = vst [vmem:[%s4 + $0x20] sm:$0xf] %v2795
  %2860 = vst [vmem:[%s4 + $0x24] sm:$0xf] %v2796
  %2861 = vst [vmem:[%s4 + $0x28] sm:$0xf] %v2797
  %2862 = vst [vmem:[%s4 + $0x2c] sm:$0xf] %v2798
  %2863 = vst [vmem:[%s4 + $0x30] sm:$0xf] %v2799
  %2864 = vst [vmem:[%s4 + $0x34] sm:$0xf] %v2800
  %2865 = vst [vmem:[%s4 + $0x38] sm:$0xf] %v2801
  %2866 = vst [vmem:[%s4 + $0x3c] sm:$0xf] %v2802
  %2867 = vst [vmem:[%s4 + $0x40] sm:$0xf] %v2803
  %2868 = vst [vmem:[%s4 + $0x44] sm:$0xf] %v2804
  %2869 = vst [vmem:[%s4 + $0x48] sm:$0xf] %v2805
  %2870 = vst [vmem:[%s4 + $0x4c] sm:$0xf] %v2806
  %2871 = vst [vmem:[%s4 + $0x50] sm:$0xf] %v2807
  %2872 = vst [vmem:[%s4 + $0x54] sm:$0xf] %v2808
  %2873 = vst [vmem:[%s4 + $0x58] sm:$0xf] %v2809
  %2874 = vst [vmem:[%s4 + $0x5c] sm:$0xf] %v2810
  %2875 = vst [vmem:[%s4 + $0x60] sm:$0xf] %v2811
  %2876 = vst [vmem:[%s4 + $0x64] sm:$0xf] %v2812
  %2877 = vst [vmem:[%s4 + $0x68] sm:$0xf] %v2813
  %2878 = vst [vmem:[%s4 + $0x6c] sm:$0xf] %v2814
  %2879 = vst [vmem:[%s4 + $0x70] sm:$0xf] %v2815
  %2880 = vst [vmem:[%s4 + $0x74] sm:$0xf] %v2816
  %2881 = vst [vmem:[%s4 + $0x78] sm:$0xf] %v2817
  %2882 = vst [vmem:[%s4 + $0x7c] sm:$0xf] %v2818
  %2883 = vst [vmem:[%s4 + $0x80] sm:$0xf] %v2819
  %2884 = vst [vmem:[%s4 + $0x84] sm:$0xf] %v2820
  %2885 = vst [vmem:[%s4 + $0x88] sm:$0xf] %v2821
  %2886 = vst [vmem:[%s4 + $0x8c] sm:$0xf] %v2822
  %2887 = vst [vmem:[%s4 + $0x90] sm:$0xf] %v2823
  %2888 = vst [vmem:[%s4 + $0x94] sm:$0xf] %v2824
  %2889 = vst [vmem:[%s4 + $0x98] sm:$0xf] %v2825
  %2890 = vst [vmem:[%s4 + $0x9c] sm:$0xf] %v2826
  %2891 = vst [vmem:[%s4 + $0xa0] sm:$0xf] %v2827
  %2892 = vst [vmem:[%s4 + $0xa4] sm:$0xf] %v2828
  %2893 = vst [vmem:[%s4 + $0xa8] sm:$0xf] %v2829
  %2894 = vst [vmem:[%s4 + $0xac] sm:$0xf] %v2830
  %2895 = vst [vmem:[%s4 + $0xb0] sm:$0xf] %v2831
  %2896 = vst [vmem:[%s4 + $0xb4] sm:$0xf] %v2832
  %2897 = vst [vmem:[%s4 + $0xb8] sm:$0xf] %v2833
  %2898 = vst [vmem:[%s4 + $0xbc] sm:$0xf] %v2834
  %2899 = vst [vmem:[%s4 + $0xc0] sm:$0xf] %v2835
  %2900 = vst [vmem:[%s4 + $0xc4] sm:$0xf] %v2836
  %2901 = vst [vmem:[%s4 + $0xc8] sm:$0xf] %v2837
  %2902 = vst [vmem:[%s4 + $0xcc] sm:$0xf] %v2838
  %2903 = vst [vmem:[%s4 + $0xd0] sm:$0xf] %v2839
  %2904 = vst [vmem:[%s4 + $0xd4] sm:$0xf] %v2840
  %2905 = vst [vmem:[%s4 + $0xd8] sm:$0xf] %v2841
  %2906 = vst [vmem:[%s4 + $0xdc] sm:$0xf] %v2842
  %2907 = vst [vmem:[%s4 + $0xe0] sm:$0xf] %v2843
  %2908 = vst [vmem:[%s4 + $0xe4] sm:$0xf] %v2844
  %2909 = vst [vmem:[%s4 + $0xe8] sm:$0xf] %v2845
  %2910 = vst [vmem:[%s4 + $0xec] sm:$0xf] %v2846
  %2911 = vst [vmem:[%s4 + $0xf0] sm:$0xf] %v2847
  %2912 = vst [vmem:[%s4 + $0xf4] sm:$0xf] %v2848
  %2913 = vst [vmem:[%s4 + $0xf8] sm:$0xf] %v2849
  %2914 = vst [vmem:[%s4 + $0xfc] sm:$0xf] %v2850
  // Predicated region
  $region18: #{discriminator.9} parent=0 // pred_check
    _
  $region19: #{discriminator.9} parent=0 // pred_check_branch
    %2916 = sbr.rel (0) target = $region21
  $region20: #{discriminator.9} parent=0 // pred_region
    _
  $region21: #{discriminator.9} parent=0 // pred_fallthru
    _
  // Predicated region
  $region22: #{discriminator.9} parent=0 // pred_check
    _
  $region23: #{discriminator.9} parent=0 // pred_check_branch
    %2918 = sbr.rel (0) target = $region25
  $region24: #{discriminator.9} parent=0 // pred_region
    _
  $region25: #{discriminator.9} parent=0 // pred_fallthru
    _

// kernel: discriminator.10
$region0: #{discriminator.10}
  #allocation0 [shape = 'u32[]', space=smem, size = 0x4, offset = 0x4, fixed_abs, tag = 'smem constant byte address 0x4 - core index']
  #allocation1 [shape = 'u32[72,128]{1,0:T(1,128)}', space=vmem, size = 0x9000, scoped, tag = 'internal scratch']
  %s0 = inlined_call_operand.vmem [shape: bf16[128,576], index: 0, kind: input, shape index: {}]
  %s1 = inlined_call_operand.vmem [shape: bf16[576,128], index: 1, kind: input, shape index: {}]
  %s2 = inlined_call_operand.vmem [shape: bf16[128,128], index: 2, kind: output, shape index: {}]
  %s3 = sld [smem:[#allocation0]]
  $region18: #{discriminator.10} parent=0
    _
  %s5 = ssub.s32 1, %s3
  %s6 = scalar_select 0, %s5, %s3
  // Predicated region
  $region2: #{discriminator.10} parent=0 // pred_check
    _
  $region3: #{discriminator.10} parent=0 // pred_check_branch
    %8 = sbr.rel (0) target = $region5
  $region4: #{discriminator.10} parent=0 // pred_region
    _
  $region5: #{discriminator.10} parent=0 // pred_fallthru
    _
  // Predicated region
  $region6: #{discriminator.10} parent=0 // pred_check
    _
  $region7: #{discriminator.10} parent=0 // pred_check_branch
    %10 = sbr.rel (0) target = $region9
  $region8: #{discriminator.10} parent=0 // pred_region
    _
  $region9: #{discriminator.10} parent=0 // pred_fallthru
    _
  %v12 = vld [vmem:[%s0] sm:$0xff]
  %v13 = vld [vmem:[%s0 + $0x8] sm:$0xff]
  %v14 = vld [vmem:[%s0 + $0x10] sm:$0xf]
  %v15 = vld [vmem:[%s0 + $0x14] sm:$0xff]
  %v16 = vld [vmem:[%s0 + $0x1c] sm:$0xff]
  %v17 = vld [vmem:[%s0 + $0x24] sm:$0xf]
  %v18 = vld [vmem:[%s0 + $0x28] sm:$0xff]
  %v19 = vld [vmem:[%s0 + $0x30] sm:$0xff]
  %v20 = vld [vmem:[%s0 + $0x38] sm:$0xf]
  %v21 = vld [vmem:[%s0 + $0x3c] sm:$0xff]
  %v22 = vld [vmem:[%s0 + $0x44] sm:$0xff]
  %v23 = vld [vmem:[%s0 + $0x4c] sm:$0xf]
  %v24 = vld [vmem:[%s0 + $0x50] sm:$0xff]
  %v25 = vld [vmem:[%s0 + $0x58] sm:$0xff]
  %v26 = vld [vmem:[%s0 + $0x60] sm:$0xf]
  %v27 = vld [vmem:[%s0 + $0x64] sm:$0xff]
  %v28 = vld [vmem:[%s0 + $0x6c] sm:$0xff]
  %v29 = vld [vmem:[%s0 + $0x74] sm:$0xf]
  %v30 = vld [vmem:[%s0 + $0x78] sm:$0xff]
  %v31 = vld [vmem:[%s0 + $0x80] sm:$0xff]
  %v32 = vld [vmem:[%s0 + $0x88] sm:$0xf]
  %v33 = vld [vmem:[%s0 + $0x8c] sm:$0xff]
  %v34 = vld [vmem:[%s0 + $0x94] sm:$0xff]
  %v35 = vld [vmem:[%s0 + $0x9c] sm:$0xf]
  %v36 = vld [vmem:[%s0 + $0xa0] sm:$0xff]
  %v37 = vld [vmem:[%s0 + $0xa8] sm:$0xff]
  %v38 = vld [vmem:[%s0 + $0xb0] sm:$0xf]
  %v39 = vld [vmem:[%s0 + $0xb4] sm:$0xff]
  %v40 = vld [vmem:[%s0 + $0xbc] sm:$0xff]
  %v41 = vld [vmem:[%s0 + $0xc4] sm:$0xf]
  %v42 = vld [vmem:[%s0 + $0xc8] sm:$0xff]
  %v43 = vld [vmem:[%s0 + $0xd0] sm:$0xff]
  %v44 = vld [vmem:[%s0 + $0xd8] sm:$0xf]
  %v45 = vld [vmem:[%s0 + $0xdc] sm:$0xff]
  %v46 = vld [vmem:[%s0 + $0xe4] sm:$0xff]
  %v47 = vld [vmem:[%s0 + $0xec] sm:$0xf]
  %v48 = vld [vmem:[%s0 + $0xf0] sm:$0xff]
  %v49 = vld [vmem:[%s0 + $0xf8] sm:$0xff]
  %v50 = vld [vmem:[%s0 + $0x100] sm:$0xf]
  %v51 = vld [vmem:[%s0 + $0x104] sm:$0xff]
  %v52 = vld [vmem:[%s0 + $0x10c] sm:$0xff]
  %v53 = vld [vmem:[%s0 + $0x114] sm:$0xf]
  %v54 = vld [vmem:[%s0 + $0x118] sm:$0xff]
  %v55 = vld [vmem:[%s0 + $0x120] sm:$0xff]
  %v56 = vld [vmem:[%s0 + $0x128] sm:$0xf]
  %v57 = vld [vmem:[%s0 + $0x12c] sm:$0xff]
  %v58 = vld [vmem:[%s0 + $0x134] sm:$0xff]
  %v59 = vld [vmem:[%s0 + $0x13c] sm:$0xf]
  %v60 = vld [vmem:[%s1] sm:$0xf]
  %v61 = vld [vmem:[%s1 + $0x4] sm:$0xf]
  %v62 = vld [vmem:[%s1 + $0x8] sm:$0xf]
  %v63 = vld [vmem:[%s1 + $0xc] sm:$0xf]
  %v64 = vld [vmem:[%s1 + $0x10] sm:$0xf]
  %v65 = vld [vmem:[%s1 + $0x14] sm:$0xf]
  %v66 = vld [vmem:[%s1 + $0x18] sm:$0xf]
  %v67 = vld [vmem:[%s1 + $0x1c] sm:$0xf]
  %v68 = vld [vmem:[%s1 + $0x20] sm:$0xf]
  %v69 = vld [vmem:[%s1 + $0x24] sm:$0xf]
  %v70 = vld [vmem:[%s1 + $0x28] sm:$0xf]
  %v71 = vld [vmem:[%s1 + $0x2c] sm:$0xf]
  %v72 = vld [vmem:[%s1 + $0x30] sm:$0xf]
  %v73 = vld [vmem:[%s1 + $0x34] sm:$0xf]
  %v74 = vld [vmem:[%s1 + $0x38] sm:$0xf]
  %v75 = vld [vmem:[%s1 + $0x3c] sm:$0xf]
  %v76 = vld [vmem:[%s1 + $0x40] sm:$0xf]
  %v77 = vld [vmem:[%s1 + $0x44] sm:$0xf]
  %v78 = vld [vmem:[%s1 + $0x48] sm:$0xf]
  %v79 = vld [vmem:[%s1 + $0x4c] sm:$0xf]
  %v80 = vld [vmem:[%s1 + $0x50] sm:$0xf]
  %v81 = vld [vmem:[%s1 + $0x54] sm:$0xf]
  %v82 = vld [vmem:[%s1 + $0x58] sm:$0xf]
  %v83 = vld [vmem:[%s1 + $0x5c] sm:$0xf]
  %v84 = vld [vmem:[%s1 + $0x60] sm:$0xf]
  %v85 = vld [vmem:[%s1 + $0x64] sm:$0xf]
  %v86 = vld [vmem:[%s1 + $0x68] sm:$0xf]
  %v87 = vld [vmem:[%s1 + $0x6c] sm:$0xf]
  %v88 = vld [vmem:[%s1 + $0x70] sm:$0xf]
  %v89 = vld [vmem:[%s1 + $0x74] sm:$0xf]
  %v90 = vld [vmem:[%s1 + $0x78] sm:$0xf]
  %v91 = vld [vmem:[%s1 + $0x7c] sm:$0xf]
  %v92 = vld [vmem:[%s1 + $0x80] sm:$0xf]
  %v93 = vld [vmem:[%s1 + $0x84] sm:$0xf]
  %v94 = vld [vmem:[%s1 + $0x88] sm:$0xf]
  %v95 = vld [vmem:[%s1 + $0x8c] sm:$0xf]
  %v96 = vld [vmem:[%s1 + $0x90] sm:$0xf]
  %v97 = vld [vmem:[%s1 + $0x94] sm:$0xf]
  %v98 = vld [vmem:[%s1 + $0x98] sm:$0xf]
  %v99 = vld [vmem:[%s1 + $0x9c] sm:$0xf]
  %v100 = vld [vmem:[%s1 + $0xa0] sm:$0xf]
  %v101 = vld [vmem:[%s1 + $0xa4] sm:$0xf]
  %v102 = vld [vmem:[%s1 + $0xa8] sm:$0xf]
  %v103 = vld [vmem:[%s1 + $0xac] sm:$0xf]
  %v104 = vld [vmem:[%s1 + $0xb0] sm:$0xf]
  %v105 = vld [vmem:[%s1 + $0xb4] sm:$0xf]
  %v106 = vld [vmem:[%s1 + $0xb8] sm:$0xf]
  %v107 = vld [vmem:[%s1 + $0xbc] sm:$0xf]
  %v108 = vld [vmem:[%s1 + $0xc0] sm:$0xf]
  %v109 = vld [vmem:[%s1 + $0xc4] sm:$0xf]
  %v110 = vld [vmem:[%s1 + $0xc8] sm:$0xf]
  %v111 = vld [vmem:[%s1 + $0xcc] sm:$0xf]
  %v112 = vld [vmem:[%s1 + $0xd0] sm:$0xf]
  %v113 = vld [vmem:[%s1 + $0xd4] sm:$0xf]
  %v114 = vld [vmem:[%s1 + $0xd8] sm:$0xf]
  %v115 = vld [vmem:[%s1 + $0xdc] sm:$0xf]
  %v116 = vld [vmem:[%s1 + $0xe0] sm:$0xf]
  %v117 = vld [vmem:[%s1 + $0xe4] sm:$0xf]
  %v118 = vld [vmem:[%s1 + $0xe8] sm:$0xf]
  %v119 = vld [vmem:[%s1 + $0xec] sm:$0xf]
  %v120 = vld [vmem:[%s1 + $0xf0] sm:$0xf]
  %v121 = vld [vmem:[%s1 + $0xf4] sm:$0xf]
  %v122 = vld [vmem:[%s1 + $0xf8] sm:$0xf]
  %v123 = vld [vmem:[%s1 + $0xfc] sm:$0xf]
  %v124 = vld [vmem:[%s1 + $0x100] sm:$0xf]
  %v125 = vld [vmem:[%s1 + $0x104] sm:$0xf]
  %v126 = vld [vmem:[%s1 + $0x108] sm:$0xf]
  %v127 = vld [vmem:[%s1 + $0x10c] sm:$0xf]
  %v128 = vld [vmem:[%s1 + $0x110] sm:$0xf]
  %v129 = vld [vmem:[%s1 + $0x114] sm:$0xf]
  %v130 = vld [vmem:[%s1 + $0x118] sm:$0xf]
  %v131 = vld [vmem:[%s1 + $0x11c] sm:$0xf]
  %v180 = vunpack.c.l.b16 %v12
  %v181 = vunpack.c.h.b16 %v12
  %v182 = vunpack.c.l.b16 %v13
  %v183 = vunpack.c.h.b16 %v13
  %v184 = vunpack.c.l.b16 %v14
  %v185 = vunpack.c.l.b16 %v15
  %v186 = vunpack.c.h.b16 %v15
  %v187 = vunpack.c.l.b16 %v16
  %v188 = vunpack.c.h.b16 %v16
  %v189 = vunpack.c.l.b16 %v17
  %v190 = vunpack.c.l.b16 %v18
  %v191 = vunpack.c.h.b16 %v18
  %v192 = vunpack.c.l.b16 %v19
  %v193 = vunpack.c.h.b16 %v19
  %v194 = vunpack.c.l.b16 %v20
  %v195 = vunpack.c.l.b16 %v21
  %v196 = vunpack.c.h.b16 %v21
  %v197 = vunpack.c.l.b16 %v22
  %v198 = vunpack.c.h.b16 %v22
  %v199 = vunpack.c.l.b16 %v23
  %v200 = vunpack.c.l.b16 %v24
  %v201 = vunpack.c.h.b16 %v24
  %v202 = vunpack.c.l.b16 %v25
  %v203 = vunpack.c.h.b16 %v25
  %v204 = vunpack.c.l.b16 %v26
  %v205 = vunpack.c.l.b16 %v27
  %v206 = vunpack.c.h.b16 %v27
  %v207 = vunpack.c.l.b16 %v28
  %v208 = vunpack.c.h.b16 %v28
  %v209 = vunpack.c.l.b16 %v29
  %v210 = vunpack.c.l.b16 %v30
  %v211 = vunpack.c.h.b16 %v30
  %v212 = vunpack.c.l.b16 %v31
  %v213 = vunpack.c.h.b16 %v31
  %v214 = vunpack.c.l.b16 %v32
  %v215 = vunpack.c.l.b16 %v33
  %v216 = vunpack.c.h.b16 %v33
  %v217 = vunpack.c.l.b16 %v34
  %v218 = vunpack.c.h.b16 %v34
  %v219 = vunpack.c.l.b16 %v35
  %v220 = vunpack.c.l.b16 %v36
  %v221 = vunpack.c.h.b16 %v36
  %v222 = vunpack.c.l.b16 %v37
  %v223 = vunpack.c.h.b16 %v37
  %v224 = vunpack.c.l.b16 %v38
  %v225 = vunpack.c.l.b16 %v39
  %v226 = vunpack.c.h.b16 %v39
  %v227 = vunpack.c.l.b16 %v40
  %v228 = vunpack.c.h.b16 %v40
  %v229 = vunpack.c.l.b16 %v41
  %v230 = vunpack.c.l.b16 %v42
  %v231 = vunpack.c.h.b16 %v42
  %v232 = vunpack.c.l.b16 %v43
  %v233 = vunpack.c.h.b16 %v43
  %v234 = vunpack.c.l.b16 %v44
  %v235 = vunpack.c.l.b16 %v45
  %v236 = vunpack.c.h.b16 %v45
  %v237 = vunpack.c.l.b16 %v46
  %v238 = vunpack.c.h.b16 %v46
  %v239 = vunpack.c.l.b16 %v47
  %v240 = vunpack.c.l.b16 %v48
  %v241 = vunpack.c.h.b16 %v48
  %v242 = vunpack.c.l.b16 %v49
  %v243 = vunpack.c.h.b16 %v49
  %v244 = vunpack.c.l.b16 %v50
  %v245 = vunpack.c.l.b16 %v51
  %v246 = vunpack.c.h.b16 %v51
  %v247 = vunpack.c.l.b16 %v52
  %v248 = vunpack.c.h.b16 %v52
  %v249 = vunpack.c.l.b16 %v53
  %v250 = vunpack.c.l.b16 %v54
  %v251 = vunpack.c.h.b16 %v54
  %v252 = vunpack.c.l.b16 %v55
  %v253 = vunpack.c.h.b16 %v55
  %v254 = vunpack.c.l.b16 %v56
  %v255 = vunpack.c.l.b16 %v57
  %v256 = vunpack.c.h.b16 %v57
  %v257 = vunpack.c.l.b16 %v58
  %v258 = vunpack.c.h.b16 %v58
  %v259 = vunpack.c.l.b16 %v59
  %v260 = vpack.c.b16 %v185, %v180
  %v261 = vpack.c.b16 %v186, %v181
  %v262 = vpack.c.b16 %v187, %v182
  %v263 = vpack.c.b16 %v188, %v183
  %v264 = vpack.c.b16 %v189, %v184
  %v265 = vpack.c.b16 %v195, %v190
  %v266 = vpack.c.b16 %v196, %v191
  %v267 = vpack.c.b16 %v197, %v192
  %v268 = vpack.c.b16 %v198, %v193
  %v269 = vpack.c.b16 %v199, %v194
  %v270 = vpack.c.b16 %v205, %v200
  %v271 = vpack.c.b16 %v206, %v201
  %v272 = vpack.c.b16 %v207, %v202
  %v273 = vpack.c.b16 %v208, %v203
  %v274 = vpack.c.b16 %v209, %v204
  %v275 = vpack.c.b16 %v215, %v210
  %v276 = vpack.c.b16 %v216, %v211
  %v277 = vpack.c.b16 %v217, %v212
  %v278 = vpack.c.b16 %v218, %v213
  %v279 = vpack.c.b16 %v219, %v214
  %v280 = vpack.c.b16 %v225, %v220
  %v281 = vpack.c.b16 %v226, %v221
  %v282 = vpack.c.b16 %v227, %v222
  %v283 = vpack.c.b16 %v228, %v223
  %v284 = vpack.c.b16 %v229, %v224
  %v285 = vpack.c.b16 %v235, %v230
  %v286 = vpack.c.b16 %v236, %v231
  %v287 = vpack.c.b16 %v237, %v232
  %v288 = vpack.c.b16 %v238, %v233
  %v289 = vpack.c.b16 %v239, %v234
  %v290 = vpack.c.b16 %v245, %v240
  %v291 = vpack.c.b16 %v246, %v241
  %v292 = vpack.c.b16 %v247, %v242
  %v293 = vpack.c.b16 %v248, %v243
  %v294 = vpack.c.b16 %v249, %v244
  %v295 = vpack.c.b16 %v255, %v250
  %v296 = vpack.c.b16 %v256, %v251
  %v297 = vpack.c.b16 %v257, %v252
  %v298 = vpack.c.b16 %v258, %v253
  %v299 = vpack.c.b16 %v259, %v254
  %v404 = vunpack.c.l.b16 %v60
  %v405 = vunpack.c.l.b16 %v61
  %v406 = vunpack.c.l.b16 %v62
  %v407 = vunpack.c.l.b16 %v63
  %v408 = vunpack.c.l.b16 %v64
  %v409 = vunpack.c.l.b16 %v65
  %v410 = vunpack.c.l.b16 %v66
  %v411 = vunpack.c.l.b16 %v67
  %v412 = vunpack.c.l.b16 %v68
  %v413 = vunpack.c.l.b16 %v69
  %v414 = vunpack.c.l.b16 %v70
  %v415 = vunpack.c.l.b16 %v71
  %v416 = vunpack.c.l.b16 %v72
  %v417 = vunpack.c.l.b16 %v73
  %v418 = vunpack.c.l.b16 %v74
  %v419 = vunpack.c.l.b16 %v75
  %v420 = vunpack.c.l.b16 %v76
  %v421 = vunpack.c.l.b16 %v77
  %v422 = vunpack.c.l.b16 %v78
  %v423 = vunpack.c.l.b16 %v79
  %v424 = vunpack.c.l.b16 %v80
  %v425 = vunpack.c.l.b16 %v81
  %v426 = vunpack.c.l.b16 %v82
  %v427 = vunpack.c.l.b16 %v83
  %v428 = vunpack.c.l.b16 %v84
  %v429 = vunpack.c.l.b16 %v85
  %v430 = vunpack.c.l.b16 %v86
  %v431 = vunpack.c.l.b16 %v87
  %v432 = vunpack.c.l.b16 %v88
  %v433 = vunpack.c.l.b16 %v89
  %v434 = vunpack.c.l.b16 %v90
  %v435 = vunpack.c.l.b16 %v91
  %v436 = vunpack.c.l.b16 %v92
  %v437 = vunpack.c.l.b16 %v93
  %v438 = vunpack.c.l.b16 %v94
  %v439 = vunpack.c.l.b16 %v95
  %v440 = vunpack.c.l.b16 %v96
  %v441 = vunpack.c.l.b16 %v97
  %v442 = vunpack.c.l.b16 %v98
  %v443 = vunpack.c.l.b16 %v99
  %v444 = vunpack.c.l.b16 %v100
  %v445 = vunpack.c.l.b16 %v101
  %v446 = vunpack.c.l.b16 %v102
  %v447 = vunpack.c.l.b16 %v103
  %v448 = vunpack.c.l.b16 %v104
  %v449 = vunpack.c.l.b16 %v105
  %v450 = vunpack.c.l.b16 %v106
  %v451 = vunpack.c.l.b16 %v107
  %v452 = vunpack.c.l.b16 %v108
  %v453 = vunpack.c.l.b16 %v109
  %v454 = vunpack.c.l.b16 %v110
  %v455 = vunpack.c.l.b16 %v111
  %v456 = vunpack.c.l.b16 %v112
  %v457 = vunpack.c.l.b16 %v113
  %v458 = vunpack.c.l.b16 %v114
  %v459 = vunpack.c.l.b16 %v115
  %v460 = vunpack.c.l.b16 %v116
  %v461 = vunpack.c.l.b16 %v117
  %v462 = vunpack.c.l.b16 %v118
  %v463 = vunpack.c.l.b16 %v119
  %v464 = vunpack.c.l.b16 %v120
  %v465 = vunpack.c.l.b16 %v121
  %v466 = vunpack.c.l.b16 %v122
  %v467 = vunpack.c.l.b16 %v123
  %v468 = vunpack.c.l.b16 %v124
  %v469 = vunpack.c.l.b16 %v125
  %v470 = vunpack.c.l.b16 %v126
  %v471 = vunpack.c.l.b16 %v127
  %v472 = vunpack.c.l.b16 %v128
  %v473 = vunpack.c.l.b16 %v129
  %v474 = vunpack.c.l.b16 %v130
  %v475 = vunpack.c.l.b16 %v131
  %v476 = vpack.c.b16 %v405, %v404
  %v477 = vpack.c.b16 %v407, %v406
  %v478 = vpack.c.b16 %v409, %v408
  %v479 = vpack.c.b16 %v411, %v410
  %v480 = vpack.c.b16 %v413, %v412
  %v481 = vpack.c.b16 %v415, %v414
  %v482 = vpack.c.b16 %v417, %v416
  %v483 = vpack.c.b16 %v419, %v418
  %v484 = vpack.c.b16 %v421, %v420
  %v485 = vpack.c.b16 %v423, %v422
  %v486 = vpack.c.b16 %v425, %v424
  %v487 = vpack.c.b16 %v427, %v426
  %v488 = vpack.c.b16 %v429, %v428
  %v489 = vpack.c.b16 %v431, %v430
  %v490 = vpack.c.b16 %v433, %v432
  %v491 = vpack.c.b16 %v435, %v434
  %v492 = vpack.c.b16 %v437, %v436
  %v493 = vpack.c.b16 %v439, %v438
  %v494 = vpack.c.b16 %v441, %v440
  %v495 = vpack.c.b16 %v443, %v442
  %v496 = vpack.c.b16 %v445, %v444
  %v497 = vpack.c.b16 %v447, %v446
  %v498 = vpack.c.b16 %v449, %v448
  %v499 = vpack.c.b16 %v451, %v450
  %v500 = vpack.c.b16 %v453, %v452
  %v501 = vpack.c.b16 %v455, %v454
  %v502 = vpack.c.b16 %v457, %v456
  %v503 = vpack.c.b16 %v459, %v458
  %v504 = vpack.c.b16 %v461, %v460
  %v505 = vpack.c.b16 %v463, %v462
  %v506 = vpack.c.b16 %v465, %v464
  %v507 = vpack.c.b16 %v467, %v466
  %v508 = vpack.c.b16 %v469, %v468
  %v509 = vpack.c.b16 %v471, %v470
  %v510 = vpack.c.b16 %v473, %v472
  %v511 = vpack.c.b16 %v475, %v474
  %vm548 = vcmask 523264
  %v550 = vsel %vm548, %v264, 0
  %v553 = vsel %vm548, %v269, 0
  %v556 = vsel %vm548, %v274, 0
  %v559 = vsel %vm548, %v279, 0
  %v562 = vsel %vm548, %v284, 0
  %v565 = vsel %vm548, %v289, 0
  %v568 = vsel %vm548, %v294, 0
  %v571 = vsel %vm548, %v299, 0
  %573 = vmatpush.bf16.msra.mxu0 %v483
  %574 = vmatpush.bf16.msra.mxu0 %v482
  %575 = vmatpush.bf16.msra.mxu0 %v481
  %576 = vmatpush.bf16.msra.mxu0 %v480
  %577 = vmatpush.bf16.msra.mxu0 %v479
  %578 = vmatpush.bf16.msra.mxu0 %v478
  %579 = vmatpush.bf16.msra.mxu0 %v477
  %580 = vmatpush.bf16.msra.mxu0 %v476
  %581 = vmatmul.bf16.gmra.mxu0 %v260
  %v582 = vpop.f32.mrf.mxu0
  %v583 = vadd.f32 0.0, %v582
  %v584 = vpop.f32.mrf.mxu0
  %v585 = vadd.f32 0.0, %v584
  %586 = vmatmul.bf16.gmra.mxu0 %v265
  %v587 = vpop.f32.mrf.mxu0
  %v588 = vadd.f32 0.0, %v587
  %v589 = vpop.f32.mrf.mxu0
  %v590 = vadd.f32 0.0, %v589
  %591 = vmatmul.bf16.gmra.mxu0 %v270
  %v592 = vpop.f32.mrf.mxu0
  %v593 = vadd.f32 0.0, %v592
  %v594 = vpop.f32.mrf.mxu0
  %v595 = vadd.f32 0.0, %v594
  %596 = vmatmul.bf16.gmra.mxu0 %v275
  %v597 = vpop.f32.mrf.mxu0
  %v598 = vadd.f32 0.0, %v597
  %v599 = vpop.f32.mrf.mxu0
  %v600 = vadd.f32 0.0, %v599
  %601 = vmatmul.bf16.gmra.mxu0 %v280
  %v602 = vpop.f32.mrf.mxu0
  %v603 = vadd.f32 0.0, %v602
  %v604 = vpop.f32.mrf.mxu0
  %v605 = vadd.f32 0.0, %v604
  %606 = vmatmul.bf16.gmra.mxu0 %v285
  %v607 = vpop.f32.mrf.mxu0
  %v608 = vadd.f32 0.0, %v607
  %v609 = vpop.f32.mrf.mxu0
  %v610 = vadd.f32 0.0, %v609
  %611 = vmatmul.bf16.gmra.mxu0 %v290
  %v612 = vpop.f32.mrf.mxu0
  %v613 = vadd.f32 0.0, %v612
  %v614 = vpop.f32.mrf.mxu0
  %v615 = vadd.f32 0.0, %v614
  %616 = vmatmul.bf16.gmra.mxu0 %v295
  %v617 = vpop.f32.mrf.mxu0
  %v618 = vadd.f32 0.0, %v617
  %v619 = vpop.f32.mrf.mxu0
  %v620 = vadd.f32 0.0, %v619
  %621 = vdwg.mxu0
  %622 = vmatpush.bf16.msra.mxu0 %v491
  %623 = vmatpush.bf16.msra.mxu0 %v490
  %624 = vmatpush.bf16.msra.mxu0 %v489
  %625 = vmatpush.bf16.msra.mxu0 %v488
  %626 = vmatpush.bf16.msra.mxu0 %v487
  %627 = vmatpush.bf16.msra.mxu0 %v486
  %628 = vmatpush.bf16.msra.mxu0 %v485
  %629 = vmatpush.bf16.msra.mxu0 %v484
  %630 = vmatmul.bf16.gmra.mxu0 %v261
  %v631 = vpop.f32.mrf.mxu0
  %v632 = vadd.f32 %v583, %v631
  %v633 = vpop.f32.mrf.mxu0
  %v634 = vadd.f32 %v585, %v633
  %635 = vmatmul.bf16.gmra.mxu0 %v266
  %v636 = vpop.f32.mrf.mxu0
  %v637 = vadd.f32 %v588, %v636
  %v638 = vpop.f32.mrf.mxu0
  %v639 = vadd.f32 %v590, %v638
  %640 = vmatmul.bf16.gmra.mxu0 %v271
  %v641 = vpop.f32.mrf.mxu0
  %v642 = vadd.f32 %v593, %v641
  %v643 = vpop.f32.mrf.mxu0
  %v644 = vadd.f32 %v595, %v643
  %645 = vmatmul.bf16.gmra.mxu0 %v276
  %v646 = vpop.f32.mrf.mxu0
  %v647 = vadd.f32 %v598, %v646
  %v648 = vpop.f32.mrf.mxu0
  %v649 = vadd.f32 %v600, %v648
  %650 = vmatmul.bf16.gmra.mxu0 %v281
  %v651 = vpop.f32.mrf.mxu0
  %v652 = vadd.f32 %v603, %v651
  %v653 = vpop.f32.mrf.mxu0
  %v654 = vadd.f32 %v605, %v653
  %655 = vmatmul.bf16.gmra.mxu0 %v286
  %v656 = vpop.f32.mrf.mxu0
  %v657 = vadd.f32 %v608, %v656
  %v658 = vpop.f32.mrf.mxu0
  %v659 = vadd.f32 %v610, %v658
  %660 = vmatmul.bf16.gmra.mxu0 %v291
  %v661 = vpop.f32.mrf.mxu0
  %v662 = vadd.f32 %v613, %v661
  %v663 = vpop.f32.mrf.mxu0
  %v664 = vadd.f32 %v615, %v663
  %665 = vmatmul.bf16.gmra.mxu0 %v296
  %v666 = vpop.f32.mrf.mxu0
  %v667 = vadd.f32 %v618, %v666
  %v668 = vpop.f32.mrf.mxu0
  %v669 = vadd.f32 %v620, %v668
  %670 = vdwg.mxu0
  %671 = vmatpush.bf16.msra.mxu0 %v499
  %672 = vmatpush.bf16.msra.mxu0 %v498
  %673 = vmatpush.bf16.msra.mxu0 %v497
  %674 = vmatpush.bf16.msra.mxu0 %v496
  %675 = vmatpush.bf16.msra.mxu0 %v495
  %676 = vmatpush.bf16.msra.mxu0 %v494
  %677 = vmatpush.bf16.msra.mxu0 %v493
  %678 = vmatpush.bf16.msra.mxu0 %v492
  %679 = vmatmul.bf16.gmra.mxu0 %v262
  %v680 = vpop.f32.mrf.mxu0
  %v681 = vadd.f32 %v632, %v680
  %v682 = vpop.f32.mrf.mxu0
  %v683 = vadd.f32 %v634, %v682
  %684 = vmatmul.bf16.gmra.mxu0 %v267
  %v685 = vpop.f32.mrf.mxu0
  %v686 = vadd.f32 %v637, %v685
  %v687 = vpop.f32.mrf.mxu0
  %v688 = vadd.f32 %v639, %v687
  %689 = vmatmul.bf16.gmra.mxu0 %v272
  %v690 = vpop.f32.mrf.mxu0
  %v691 = vadd.f32 %v642, %v690
  %v692 = vpop.f32.mrf.mxu0
  %v693 = vadd.f32 %v644, %v692
  %694 = vmatmul.bf16.gmra.mxu0 %v277
  %v695 = vpop.f32.mrf.mxu0
  %v696 = vadd.f32 %v647, %v695
  %v697 = vpop.f32.mrf.mxu0
  %v698 = vadd.f32 %v649, %v697
  %699 = vmatmul.bf16.gmra.mxu0 %v282
  %v700 = vpop.f32.mrf.mxu0
  %v701 = vadd.f32 %v652, %v700
  %v702 = vpop.f32.mrf.mxu0
  %v703 = vadd.f32 %v654, %v702
  %704 = vmatmul.bf16.gmra.mxu0 %v287
  %v705 = vpop.f32.mrf.mxu0
  %v706 = vadd.f32 %v657, %v705
  %v707 = vpop.f32.mrf.mxu0
  %v708 = vadd.f32 %v659, %v707
  %709 = vmatmul.bf16.gmra.mxu0 %v292
  %v710 = vpop.f32.mrf.mxu0
  %v711 = vadd.f32 %v662, %v710
  %v712 = vpop.f32.mrf.mxu0
  %v713 = vadd.f32 %v664, %v712
  %714 = vmatmul.bf16.gmra.mxu0 %v297
  %v715 = vpop.f32.mrf.mxu0
  %v716 = vadd.f32 %v667, %v715
  %v717 = vpop.f32.mrf.mxu0
  %v718 = vadd.f32 %v669, %v717
  %719 = vdwg.mxu0
  %720 = vmatpush.bf16.msra.mxu0 %v507
  %721 = vmatpush.bf16.msra.mxu0 %v506
  %722 = vmatpush.bf16.msra.mxu0 %v505
  %723 = vmatpush.bf16.msra.mxu0 %v504
  %724 = vmatpush.bf16.msra.mxu0 %v503
  %725 = vmatpush.bf16.msra.mxu0 %v502
  %726 = vmatpush.bf16.msra.mxu0 %v501
  %727 = vmatpush.bf16.msra.mxu0 %v500
  %728 = vmatmul.bf16.gmra.mxu0 %v263
  %v729 = vpop.f32.mrf.mxu0
  %v730 = vadd.f32 %v681, %v729
  %v731 = vpop.f32.mrf.mxu0
  %v732 = vadd.f32 %v683, %v731
  %733 = vmatmul.bf16.gmra.mxu0 %v268
  %v734 = vpop.f32.mrf.mxu0
  %v735 = vadd.f32 %v686, %v734
  %v736 = vpop.f32.mrf.mxu0
  %v737 = vadd.f32 %v688, %v736
  %738 = vmatmul.bf16.gmra.mxu0 %v273
  %v739 = vpop.f32.mrf.mxu0
  %v740 = vadd.f32 %v691, %v739
  %v741 = vpop.f32.mrf.mxu0
  %v742 = vadd.f32 %v693, %v741
  %743 = vmatmul.bf16.gmra.mxu0 %v278
  %v744 = vpop.f32.mrf.mxu0
  %v745 = vadd.f32 %v696, %v744
  %v746 = vpop.f32.mrf.mxu0
  %v747 = vadd.f32 %v698, %v746
  %748 = vmatmul.bf16.gmra.mxu0 %v283
  %v749 = vpop.f32.mrf.mxu0
  %v750 = vadd.f32 %v701, %v749
  %v751 = vpop.f32.mrf.mxu0
  %v752 = vadd.f32 %v703, %v751
  %753 = vmatmul.bf16.gmra.mxu0 %v288
  %v754 = vpop.f32.mrf.mxu0
  %v755 = vadd.f32 %v706, %v754
  %v756 = vpop.f32.mrf.mxu0
  %v757 = vadd.f32 %v708, %v756
  %758 = vmatmul.bf16.gmra.mxu0 %v293
  %v759 = vpop.f32.mrf.mxu0
  %v760 = vadd.f32 %v711, %v759
  %v761 = vpop.f32.mrf.mxu0
  %v762 = vadd.f32 %v713, %v761
  %763 = vmatmul.bf16.gmra.mxu0 %v298
  %v764 = vpop.f32.mrf.mxu0
  %v765 = vadd.f32 %v716, %v764
  %v766 = vpop.f32.mrf.mxu0
  %v767 = vadd.f32 %v718, %v766
  %768 = vdwg.mxu0
  %769 = vmatpush.bf16.msra.mxu0 0
  %770 = vmatpush.bf16.msra.mxu0 0
  %771 = vmatpush.bf16.msra.mxu0 0
  %772 = vmatpush.bf16.msra.mxu0 0
  %773 = vmatpush.bf16.msra.mxu0 %v511
  %774 = vmatpush.bf16.msra.mxu0 %v510
  %775 = vmatpush.bf16.msra.mxu0 %v509
  %776 = vmatpush.bf16.msra.mxu0 %v508
  %777 = vmatmul.bf16.gmra.mxu0 %v550
  %v778 = vpop.f32.mrf.mxu0
  %v779 = vadd.f32 %v730, %v778
  %v780 = vpop.f32.mrf.mxu0
  %v781 = vadd.f32 %v732, %v780
  %782 = vmatmul.bf16.gmra.mxu0 %v553
  %v783 = vpop.f32.mrf.mxu0
  %v784 = vadd.f32 %v735, %v783
  %v785 = vpop.f32.mrf.mxu0
  %v786 = vadd.f32 %v737, %v785
  %787 = vmatmul.bf16.gmra.mxu0 %v556
  %v788 = vpop.f32.mrf.mxu0
  %v789 = vadd.f32 %v740, %v788
  %v790 = vpop.f32.mrf.mxu0
  %v791 = vadd.f32 %v742, %v790
  %792 = vmatmul.bf16.gmra.mxu0 %v559
  %v793 = vpop.f32.mrf.mxu0
  %v794 = vadd.f32 %v745, %v793
  %v795 = vpop.f32.mrf.mxu0
  %v796 = vadd.f32 %v747, %v795
  %797 = vmatmul.bf16.gmra.mxu0 %v562
  %v798 = vpop.f32.mrf.mxu0
  %v799 = vadd.f32 %v750, %v798
  %v800 = vpop.f32.mrf.mxu0
  %v801 = vadd.f32 %v752, %v800
  %802 = vmatmul.bf16.gmra.mxu0 %v565
  %v803 = vpop.f32.mrf.mxu0
  %v804 = vadd.f32 %v755, %v803
  %v805 = vpop.f32.mrf.mxu0
  %v806 = vadd.f32 %v757, %v805
  %807 = vmatmul.bf16.gmra.mxu0 %v568
  %v808 = vpop.f32.mrf.mxu0
  %v809 = vadd.f32 %v760, %v808
  %v810 = vpop.f32.mrf.mxu0
  %v811 = vadd.f32 %v762, %v810
  %812 = vmatmul.bf16.gmra.mxu0 %v571
  %v813 = vpop.f32.mrf.mxu0
  %v814 = vadd.f32 %v765, %v813
  %v815 = vpop.f32.mrf.mxu0
  %v816 = vadd.f32 %v767, %v815
  %817 = vdwg.mxu0
  %vm818 = vcmp.gt.f32.partialorder %v779, 0.0
  %vm819 = vcmp.gt.f32.partialorder %v781, 0.0
  %vm820 = vcmp.gt.f32.partialorder %v784, 0.0
  %vm821 = vcmp.gt.f32.partialorder %v786, 0.0
  %vm822 = vcmp.gt.f32.partialorder %v789, 0.0
  %vm823 = vcmp.gt.f32.partialorder %v791, 0.0
  %vm824 = vcmp.gt.f32.partialorder %v794, 0.0
  %vm825 = vcmp.gt.f32.partialorder %v796, 0.0
  %vm826 = vcmp.gt.f32.partialorder %v799, 0.0
  %vm827 = vcmp.gt.f32.partialorder %v801, 0.0
  %vm828 = vcmp.gt.f32.partialorder %v804, 0.0
  %vm829 = vcmp.gt.f32.partialorder %v806, 0.0
  %vm830 = vcmp.gt.f32.partialorder %v809, 0.0
  %vm831 = vcmp.gt.f32.partialorder %v811, 0.0
  %vm832 = vcmp.gt.f32.partialorder %v814, 0.0
  %vm833 = vcmp.gt.f32.partialorder %v816, 0.0
  %v834 = vmul.f32 %v779, 0.2
  %v835 = vmul.f32 %v781, 0.2
  %v836 = vmul.f32 %v784, 0.2
  %v837 = vmul.f32 %v786, 0.2
  %v838 = vmul.f32 %v789, 0.2
  %v839 = vmul.f32 %v791, 0.2
  %v840 = vmul.f32 %v794, 0.2
  %v841 = vmul.f32 %v796, 0.2
  %v842 = vmul.f32 %v799, 0.2
  %v843 = vmul.f32 %v801, 0.2
  %v844 = vmul.f32 %v804, 0.2
  %v845 = vmul.f32 %v806, 0.2
  %v846 = vmul.f32 %v809, 0.2
  %v847 = vmul.f32 %v811, 0.2
  %v848 = vmul.f32 %v814, 0.2
  %v849 = vmul.f32 %v816, 0.2
  %v850 = vsel %vm818, %v779, %v834
  %v851 = vsel %vm819, %v781, %v835
  %v852 = vsel %vm820, %v784, %v836
  %v853 = vsel %vm821, %v786, %v837
  %v854 = vsel %vm822, %v789, %v838
  %v855 = vsel %vm823, %v791, %v839
  %v856 = vsel %vm824, %v794, %v840
  %v857 = vsel %vm825, %v796, %v841
  %v858 = vsel %vm826, %v799, %v842
  %v859 = vsel %vm827, %v801, %v843
  %v860 = vsel %vm828, %v804, %v844
  %v861 = vsel %vm829, %v806, %v845
  %v862 = vsel %vm830, %v809, %v846
  %v863 = vsel %vm831, %v811, %v847
  %v864 = vsel %vm832, %v814, %v848
  %v865 = vsel %vm833, %v816, %v849
  %v866 = vpack.c.bf16 %v850, %v850
  %v867 = vpack.c.bf16 %v851, %v851
  %v868 = vpack.c.bf16 %v852, %v852
  %v869 = vpack.c.bf16 %v853, %v853
  %v870 = vpack.c.bf16 %v854, %v854
  %v871 = vpack.c.bf16 %v855, %v855
  %v872 = vpack.c.bf16 %v856, %v856
  %v873 = vpack.c.bf16 %v857, %v857
  %v874 = vpack.c.bf16 %v858, %v858
  %v875 = vpack.c.bf16 %v859, %v859
  %v876 = vpack.c.bf16 %v860, %v860
  %v877 = vpack.c.bf16 %v861, %v861
  %v878 = vpack.c.bf16 %v862, %v862
  %v879 = vpack.c.bf16 %v863, %v863
  %v880 = vpack.c.bf16 %v864, %v864
  %v881 = vpack.c.bf16 %v865, %v865
  %882 = vst [vmem:[%s2] sm:$0xf] %v866
  %883 = vst [vmem:[%s2 + $0x4] sm:$0xf] %v867
  %884 = vst [vmem:[%s2 + $0x8] sm:$0xf] %v868
  %885 = vst [vmem:[%s2 + $0xc] sm:$0xf] %v869
  %886 = vst [vmem:[%s2 + $0x10] sm:$0xf] %v870
  %887 = vst [vmem:[%s2 + $0x14] sm:$0xf] %v871
  %888 = vst [vmem:[%s2 + $0x18] sm:$0xf] %v872
  %889 = vst [vmem:[%s2 + $0x1c] sm:$0xf] %v873
  %890 = vst [vmem:[%s2 + $0x20] sm:$0xf] %v874
  %891 = vst [vmem:[%s2 + $0x24] sm:$0xf] %v875
  %892 = vst [vmem:[%s2 + $0x28] sm:$0xf] %v876
  %893 = vst [vmem:[%s2 + $0x2c] sm:$0xf] %v877
  %894 = vst [vmem:[%s2 + $0x30] sm:$0xf] %v878
  %895 = vst [vmem:[%s2 + $0x34] sm:$0xf] %v879
  %896 = vst [vmem:[%s2 + $0x38] sm:$0xf] %v880
  %897 = vst [vmem:[%s2 + $0x3c] sm:$0xf] %v881
  // Predicated region
  $region10: #{discriminator.10} parent=0 // pred_check
    _
  $region11: #{discriminator.10} parent=0 // pred_check_branch
    %899 = sbr.rel (0) target = $region13
  $region12: #{discriminator.10} parent=0 // pred_region
    _
  $region13: #{discriminator.10} parent=0 // pred_fallthru
    _
  // Predicated region
  $region14: #{discriminator.10} parent=0 // pred_check
    _
  $region15: #{discriminator.10} parent=0 // pred_check_branch
    %901 = sbr.rel (0) target = $region17
  $region16: #{discriminator.10} parent=0 // pred_region
    _
  $region17: #{discriminator.10} parent=0 // pred_fallthru
    _

// kernel: discriminator.11
$region0: #{discriminator.11}
  #allocation0 [shape = 'u32[]', space=smem, size = 0x4, offset = 0x4, fixed_abs, tag = 'smem constant byte address 0x4 - core index']
  #allocation1 [shape = 'u32[72,128]{1,0:T(1,128)}', space=vmem, size = 0x9000, scoped, tag = 'internal scratch']
  %s0 = inlined_call_operand.vmem [shape: bf16[128,1152], index: 0, kind: input, shape index: {}]
  %s1 = inlined_call_operand.vmem [shape: bf16[1152,128], index: 1, kind: input, shape index: {}]
  %s2 = inlined_call_operand.vmem [shape: f32[1,128], index: 2, kind: input, shape index: {}]
  %s3 = inlined_call_operand.vmem [shape: f32[1,128], index: 3, kind: input, shape index: {}]
  %s4 = inlined_call_operand.vmem [shape: bf16[128,128], index: 4, kind: output, shape index: {}]
  %s5 = sld [smem:[#allocation0]]
  $region26: #{discriminator.11} parent=0
    _
  %s7 = ssub.s32 1, %s5
  %s8 = scalar_select 0, %s7, %s5
  // Predicated region
  $region2: #{discriminator.11} parent=0 // pred_check
    _
  $region3: #{discriminator.11} parent=0 // pred_check_branch
    %10 = sbr.rel (0) target = $region5
  $region4: #{discriminator.11} parent=0 // pred_region
    _
  $region5: #{discriminator.11} parent=0 // pred_fallthru
    _
  // Predicated region
  $region6: #{discriminator.11} parent=0 // pred_check
    _
  $region7: #{discriminator.11} parent=0 // pred_check_branch
    %12 = sbr.rel (0) target = $region9
  $region8: #{discriminator.11} parent=0 // pred_region
    _
  $region9: #{discriminator.11} parent=0 // pred_fallthru
    _
  // Predicated region
  $region10: #{discriminator.11} parent=0 // pred_check
    _
  $region11: #{discriminator.11} parent=0 // pred_check_branch
    %14 = sbr.rel (0) target = $region13
  $region12: #{discriminator.11} parent=0 // pred_region
    _
  $region13: #{discriminator.11} parent=0 // pred_fallthru
    _
  // Predicated region
  $region14: #{discriminator.11} parent=0 // pred_check
    _
  $region15: #{discriminator.11} parent=0 // pred_check_branch
    %16 = sbr.rel (0) target = $region17
  $region16: #{discriminator.11} parent=0 // pred_region
    _
  $region17: #{discriminator.11} parent=0 // pred_fallthru
    _
  %v17 = vld [vmem:[%s0] sm:$0xff]
  %v18 = vld [vmem:[%s0 + $0x8] sm:$0xff]
  %v19 = vld [vmem:[%s0 + $0x10] sm:$0xff]
  %v20 = vld [vmem:[%s0 + $0x18] sm:$0xff]
  %v21 = vld [vmem:[%s0 + $0x20] sm:$0xf]
  %v22 = vld [vmem:[%s0 + $0x24] sm:$0xff]
  %v23 = vld [vmem:[%s0 + $0x2c] sm:$0xff]
  %v24 = vld [vmem:[%s0 + $0x34] sm:$0xff]
  %v25 = vld [vmem:[%s0 + $0x3c] sm:$0xff]
  %v26 = vld [vmem:[%s0 + $0x44] sm:$0xf]
  %v27 = vld [vmem:[%s0 + $0x48] sm:$0xff]
  %v28 = vld [vmem:[%s0 + $0x50] sm:$0xff]
  %v29 = vld [vmem:[%s0 + $0x58] sm:$0xff]
  %v30 = vld [vmem:[%s0 + $0x60] sm:$0xff]
  %v31 = vld [vmem:[%s0 + $0x68] sm:$0xf]
  %v32 = vld [vmem:[%s0 + $0x6c] sm:$0xff]
  %v33 = vld [vmem:[%s0 + $0x74] sm:$0xff]
  %v34 = vld [vmem:[%s0 + $0x7c] sm:$0xff]
  %v35 = vld [vmem:[%s0 + $0x84] sm:$0xff]
  %v36 = vld [vmem:[%s0 + $0x8c] sm:$0xf]
  %v37 = vld [vmem:[%s0 + $0x90] sm:$0xff]
  %v38 = vld [vmem:[%s0 + $0x98] sm:$0xff]
  %v39 = vld [vmem:[%s0 + $0xa0] sm:$0xff]
  %v40 = vld [vmem:[%s0 + $0xa8] sm:$0xff]
  %v41 = vld [vmem:[%s0 + $0xb0] sm:$0xf]
  %v42 = vld [vmem:[%s0 + $0xb4] sm:$0xff]
  %v43 = vld [vmem:[%s0 + $0xbc] sm:$0xff]
  %v44 = vld [vmem:[%s0 + $0xc4] sm:$0xff]
  %v45 = vld [vmem:[%s0 + $0xcc] sm:$0xff]
  %v46 = vld [vmem:[%s0 + $0xd4] sm:$0xf]
  %v47 = vld [vmem:[%s0 + $0xd8] sm:$0xff]
  %v48 = vld [vmem:[%s0 + $0xe0] sm:$0xff]
  %v49 = vld [vmem:[%s0 + $0xe8] sm:$0xff]
  %v50 = vld [vmem:[%s0 + $0xf0] sm:$0xff]
  %v51 = vld [vmem:[%s0 + $0xf8] sm:$0xf]
  %v52 = vld [vmem:[%s0 + $0xfc] sm:$0xff]
  %v53 = vld [vmem:[%s0 + $0x104] sm:$0xff]
  %v54 = vld [vmem:[%s0 + $0x10c] sm:$0xff]
  %v55 = vld [vmem:[%s0 + $0x114] sm:$0xff]
  %v56 = vld [vmem:[%s0 + $0x11c] sm:$0xf]
  %v57 = vld [vmem:[%s0 + $0x120] sm:$0xff]
  %v58 = vld [vmem:[%s0 + $0x128] sm:$0xff]
  %v59 = vld [vmem:[%s0 + $0x130] sm:$0xff]
  %v60 = vld [vmem:[%s0 + $0x138] sm:$0xff]
  %v61 = vld [vmem:[%s0 + $0x140] sm:$0xf]
  %v62 = vld [vmem:[%s0 + $0x144] sm:$0xff]
  %v63 = vld [vmem:[%s0 + $0x14c] sm:$0xff]
  %v64 = vld [vmem:[%s0 + $0x154] sm:$0xff]
  %v65 = vld [vmem:[%s0 + $0x15c] sm:$0xff]
  %v66 = vld [vmem:[%s0 + $0x164] sm:$0xf]
  %v67 = vld [vmem:[%s0 + $0x168] sm:$0xff]
  %v68 = vld [vmem:[%s0 + $0x170] sm:$0xff]
  %v69 = vld [vmem:[%s0 + $0x178] sm:$0xff]
  %v70 = vld [vmem:[%s0 + $0x180] sm:$0xff]
  %v71 = vld [vmem:[%s0 + $0x188] sm:$0xf]
  %v72 = vld [vmem:[%s0 + $0x18c] sm:$0xff]
  %v73 = vld [vmem:[%s0 + $0x194] sm:$0xff]
  %v74 = vld [vmem:[%s0 + $0x19c] sm:$0xff]
  %v75 = vld [vmem:[%s0 + $0x1a4] sm:$0xff]
  %v76 = vld [vmem:[%s0 + $0x1ac] sm:$0xf]
  %v77 = vld [vmem:[%s0 + $0x1b0] sm:$0xff]
  %v78 = vld [vmem:[%s0 + $0x1b8] sm:$0xff]
  %v79 = vld [vmem:[%s0 + $0x1c0] sm:$0xff]
  %v80 = vld [vmem:[%s0 + $0x1c8] sm:$0xff]
  %v81 = vld [vmem:[%s0 + $0x1d0] sm:$0xf]
  %v82 = vld [vmem:[%s0 + $0x1d4] sm:$0xff]
  %v83 = vld [vmem:[%s0 + $0x1dc] sm:$0xff]
  %v84 = vld [vmem:[%s0 + $0x1e4] sm:$0xff]
  %v85 = vld [vmem:[%s0 + $0x1ec] sm:$0xff]
  %v86 = vld [vmem:[%s0 + $0x1f4] sm:$0xf]
  %v87 = vld [vmem:[%s0 + $0x1f8] sm:$0xff]
  %v88 = vld [vmem:[%s0 + $0x200] sm:$0xff]
  %v89 = vld [vmem:[%s0 + $0x208] sm:$0xff]
  %v90 = vld [vmem:[%s0 + $0x210] sm:$0xff]
  %v91 = vld [vmem:[%s0 + $0x218] sm:$0xf]
  %v92 = vld [vmem:[%s0 + $0x21c] sm:$0xff]
  %v93 = vld [vmem:[%s0 + $0x224] sm:$0xff]
  %v94 = vld [vmem:[%s0 + $0x22c] sm:$0xff]
  %v95 = vld [vmem:[%s0 + $0x234] sm:$0xff]
  %v96 = vld [vmem:[%s0 + $0x23c] sm:$0xf]
  %v97 = vld [vmem:[%s1] sm:$0xf]
  %v98 = vld [vmem:[%s1 + $0x4] sm:$0xf]
  %v99 = vld [vmem:[%s1 + $0x8] sm:$0xf]
  %v100 = vld [vmem:[%s1 + $0xc] sm:$0xf]
  %v101 = vld [vmem:[%s1 + $0x10] sm:$0xf]
  %v102 = vld [vmem:[%s1 + $0x14] sm:$0xf]
  %v103 = vld [vmem:[%s1 + $0x18] sm:$0xf]
  %v104 = vld [vmem:[%s1 + $0x1c] sm:$0xf]
  %v105 = vld [vmem:[%s1 + $0x20] sm:$0xf]
  %v106 = vld [vmem:[%s1 + $0x24] sm:$0xf]
  %v107 = vld [vmem:[%s1 + $0x28] sm:$0xf]
  %v108 = vld [vmem:[%s1 + $0x2c] sm:$0xf]
  %v109 = vld [vmem:[%s1 + $0x30] sm:$0xf]
  %v110 = vld [vmem:[%s1 + $0x34] sm:$0xf]
  %v111 = vld [vmem:[%s1 + $0x38] sm:$0xf]
  %v112 = vld [vmem:[%s1 + $0x3c] sm:$0xf]
  %v113 = vld [vmem:[%s1 + $0x40] sm:$0xf]
  %v114 = vld [vmem:[%s1 + $0x44] sm:$0xf]
  %v115 = vld [vmem:[%s1 + $0x48] sm:$0xf]
  %v116 = vld [vmem:[%s1 + $0x4c] sm:$0xf]
  %v117 = vld [vmem:[%s1 + $0x50] sm:$0xf]
  %v118 = vld [vmem:[%s1 + $0x54] sm:$0xf]
  %v119 = vld [vmem:[%s1 + $0x58] sm:$0xf]
  %v120 = vld [vmem:[%s1 + $0x5c] sm:$0xf]
  %v121 = vld [vmem:[%s1 + $0x60] sm:$0xf]
  %v122 = vld [vmem:[%s1 + $0x64] sm:$0xf]
  %v123 = vld [vmem:[%s1 + $0x68] sm:$0xf]
  %v124 = vld [vmem:[%s1 + $0x6c] sm:$0xf]
  %v125 = vld [vmem:[%s1 + $0x70] sm:$0xf]
  %v126 = vld [vmem:[%s1 + $0x74] sm:$0xf]
  %v127 = vld [vmem:[%s1 + $0x78] sm:$0xf]
  %v128 = vld [vmem:[%s1 + $0x7c] sm:$0xf]
  %v129 = vld [vmem:[%s1 + $0x80] sm:$0xf]
  %v130 = vld [vmem:[%s1 + $0x84] sm:$0xf]
  %v131 = vld [vmem:[%s1 + $0x88] sm:$0xf]
  %v132 = vld [vmem:[%s1 + $0x8c] sm:$0xf]
  %v133 = vld [vmem:[%s1 + $0x90] sm:$0xf]
  %v134 = vld [vmem:[%s1 + $0x94] sm:$0xf]
  %v135 = vld [vmem:[%s1 + $0x98] sm:$0xf]
  %v136 = vld [vmem:[%s1 + $0x9c] sm:$0xf]
  %v137 = vld [vmem:[%s1 + $0xa0] sm:$0xf]
  %v138 = vld [vmem:[%s1 + $0xa4] sm:$0xf]
  %v139 = vld [vmem:[%s1 + $0xa8] sm:$0xf]
  %v140 = vld [vmem:[%s1 + $0xac] sm:$0xf]
  %v141 = vld [vmem:[%s1 + $0xb0] sm:$0xf]
  %v142 = vld [vmem:[%s1 + $0xb4] sm:$0xf]
  %v143 = vld [vmem:[%s1 + $0xb8] sm:$0xf]
  %v144 = vld [vmem:[%s1 + $0xbc] sm:$0xf]
  %v145 = vld [vmem:[%s1 + $0xc0] sm:$0xf]
  %v146 = vld [vmem:[%s1 + $0xc4] sm:$0xf]
  %v147 = vld [vmem:[%s1 + $0xc8] sm:$0xf]
  %v148 = vld [vmem:[%s1 + $0xcc] sm:$0xf]
  %v149 = vld [vmem:[%s1 + $0xd0] sm:$0xf]
  %v150 = vld [vmem:[%s1 + $0xd4] sm:$0xf]
  %v151 = vld [vmem:[%s1 + $0xd8] sm:$0xf]
  %v152 = vld [vmem:[%s1 + $0xdc] sm:$0xf]
  %v153 = vld [vmem:[%s1 + $0xe0] sm:$0xf]
  %v154 = vld [vmem:[%s1 + $0xe4] sm:$0xf]
  %v155 = vld [vmem:[%s1 + $0xe8] sm:$0xf]
  %v156 = vld [vmem:[%s1 + $0xec] sm:$0xf]
  %v157 = vld [vmem:[%s1 + $0xf0] sm:$0xf]
  %v158 = vld [vmem:[%s1 + $0xf4] sm:$0xf]
  %v159 = vld [vmem:[%s1 + $0xf8] sm:$0xf]
  %v160 = vld [vmem:[%s1 + $0xfc] sm:$0xf]
  %v161 = vld [vmem:[%s1 + $0x100] sm:$0xf]
  %v162 = vld [vmem:[%s1 + $0x104] sm:$0xf]
  %v163 = vld [vmem:[%s1 + $0x108] sm:$0xf]
  %v164 = vld [vmem:[%s1 + $0x10c] sm:$0xf]
  %v165 = vld [vmem:[%s1 + $0x110] sm:$0xf]
  %v166 = vld [vmem:[%s1 + $0x114] sm:$0xf]
  %v167 = vld [vmem:[%s1 + $0x118] sm:$0xf]
  %v168 = vld [vmem:[%s1 + $0x11c] sm:$0xf]
  %v169 = vld [vmem:[%s1 + $0x120] sm:$0xf]
  %v170 = vld [vmem:[%s1 + $0x124] sm:$0xf]
  %v171 = vld [vmem:[%s1 + $0x128] sm:$0xf]
  %v172 = vld [vmem:[%s1 + $0x12c] sm:$0xf]
  %v173 = vld [vmem:[%s1 + $0x130] sm:$0xf]
  %v174 = vld [vmem:[%s1 + $0x134] sm:$0xf]
  %v175 = vld [vmem:[%s1 + $0x138] sm:$0xf]
  %v176 = vld [vmem:[%s1 + $0x13c] sm:$0xf]
  %v177 = vld [vmem:[%s1 + $0x140] sm:$0xf]
  %v178 = vld [vmem:[%s1 + $0x144] sm:$0xf]
  %v179 = vld [vmem:[%s1 + $0x148] sm:$0xf]
  %v180 = vld [vmem:[%s1 + $0x14c] sm:$0xf]
  %v181 = vld [vmem:[%s1 + $0x150] sm:$0xf]
  %v182 = vld [vmem:[%s1 + $0x154] sm:$0xf]
  %v183 = vld [vmem:[%s1 + $0x158] sm:$0xf]
  %v184 = vld [vmem:[%s1 + $0x15c] sm:$0xf]
  %v185 = vld [vmem:[%s1 + $0x160] sm:$0xf]
  %v186 = vld [vmem:[%s1 + $0x164] sm:$0xf]
  %v187 = vld [vmem:[%s1 + $0x168] sm:$0xf]
  %v188 = vld [vmem:[%s1 + $0x16c] sm:$0xf]
  %v189 = vld [vmem:[%s1 + $0x170] sm:$0xf]
  %v190 = vld [vmem:[%s1 + $0x174] sm:$0xf]
  %v191 = vld [vmem:[%s1 + $0x178] sm:$0xf]
  %v192 = vld [vmem:[%s1 + $0x17c] sm:$0xf]
  %v193 = vld [vmem:[%s1 + $0x180] sm:$0xf]
  %v194 = vld [vmem:[%s1 + $0x184] sm:$0xf]
  %v195 = vld [vmem:[%s1 + $0x188] sm:$0xf]
  %v196 = vld [vmem:[%s1 + $0x18c] sm:$0xf]
  %v197 = vld [vmem:[%s1 + $0x190] sm:$0xf]
  %v198 = vld [vmem:[%s1 + $0x194] sm:$0xf]
  %v199 = vld [vmem:[%s1 + $0x198] sm:$0xf]
  %v200 = vld [vmem:[%s1 + $0x19c] sm:$0xf]
  %v201 = vld [vmem:[%s1 + $0x1a0] sm:$0xf]
  %v202 = vld [vmem:[%s1 + $0x1a4] sm:$0xf]
  %v203 = vld [vmem:[%s1 + $0x1a8] sm:$0xf]
  %v204 = vld [vmem:[%s1 + $0x1ac] sm:$0xf]
  %v205 = vld [vmem:[%s1 + $0x1b0] sm:$0xf]
  %v206 = vld [vmem:[%s1 + $0x1b4] sm:$0xf]
  %v207 = vld [vmem:[%s1 + $0x1b8] sm:$0xf]
  %v208 = vld [vmem:[%s1 + $0x1bc] sm:$0xf]
  %v209 = vld [vmem:[%s1 + $0x1c0] sm:$0xf]
  %v210 = vld [vmem:[%s1 + $0x1c4] sm:$0xf]
  %v211 = vld [vmem:[%s1 + $0x1c8] sm:$0xf]
  %v212 = vld [vmem:[%s1 + $0x1cc] sm:$0xf]
  %v213 = vld [vmem:[%s1 + $0x1d0] sm:$0xf]
  %v214 = vld [vmem:[%s1 + $0x1d4] sm:$0xf]
  %v215 = vld [vmem:[%s1 + $0x1d8] sm:$0xf]
  %v216 = vld [vmem:[%s1 + $0x1dc] sm:$0xf]
  %v217 = vld [vmem:[%s1 + $0x1e0] sm:$0xf]
  %v218 = vld [vmem:[%s1 + $0x1e4] sm:$0xf]
  %v219 = vld [vmem:[%s1 + $0x1e8] sm:$0xf]
  %v220 = vld [vmem:[%s1 + $0x1ec] sm:$0xf]
  %v221 = vld [vmem:[%s1 + $0x1f0] sm:$0xf]
  %v222 = vld [vmem:[%s1 + $0x1f4] sm:$0xf]
  %v223 = vld [vmem:[%s1 + $0x1f8] sm:$0xf]
  %v224 = vld [vmem:[%s1 + $0x1fc] sm:$0xf]
  %v225 = vld [vmem:[%s1 + $0x200] sm:$0xf]
  %v226 = vld [vmem:[%s1 + $0x204] sm:$0xf]
  %v227 = vld [vmem:[%s1 + $0x208] sm:$0xf]
  %v228 = vld [vmem:[%s1 + $0x20c] sm:$0xf]
  %v229 = vld [vmem:[%s1 + $0x210] sm:$0xf]
  %v230 = vld [vmem:[%s1 + $0x214] sm:$0xf]
  %v231 = vld [vmem:[%s1 + $0x218] sm:$0xf]
  %v232 = vld [vmem:[%s1 + $0x21c] sm:$0xf]
  %v233 = vld [vmem:[%s1 + $0x220] sm:$0xf]
  %v234 = vld [vmem:[%s1 + $0x224] sm:$0xf]
  %v235 = vld [vmem:[%s1 + $0x228] sm:$0xf]
  %v236 = vld [vmem:[%s1 + $0x22c] sm:$0xf]
  %v237 = vld [vmem:[%s1 + $0x230] sm:$0xf]
  %v238 = vld [vmem:[%s1 + $0x234] sm:$0xf]
  %v239 = vld [vmem:[%s1 + $0x238] sm:$0xf]
  %v240 = vld [vmem:[%s1 + $0x23c] sm:$0xf]
  %v321 = vunpack.c.l.b16 %v17
  %v322 = vunpack.c.h.b16 %v17
  %v323 = vunpack.c.l.b16 %v18
  %v324 = vunpack.c.h.b16 %v18
  %v325 = vunpack.c.l.b16 %v19
  %v326 = vunpack.c.h.b16 %v19
  %v327 = vunpack.c.l.b16 %v20
  %v328 = vunpack.c.h.b16 %v20
  %v329 = vunpack.c.l.b16 %v21
  %v330 = vunpack.c.l.b16 %v22
  %v331 = vunpack.c.h.b16 %v22
  %v332 = vunpack.c.l.b16 %v23
  %v333 = vunpack.c.h.b16 %v23
  %v334 = vunpack.c.l.b16 %v24
  %v335 = vunpack.c.h.b16 %v24
  %v336 = vunpack.c.l.b16 %v25
  %v337 = vunpack.c.h.b16 %v25
  %v338 = vunpack.c.l.b16 %v26
  %v339 = vunpack.c.l.b16 %v27
  %v340 = vunpack.c.h.b16 %v27
  %v341 = vunpack.c.l.b16 %v28
  %v342 = vunpack.c.h.b16 %v28
  %v343 = vunpack.c.l.b16 %v29
  %v344 = vunpack.c.h.b16 %v29
  %v345 = vunpack.c.l.b16 %v30
  %v346 = vunpack.c.h.b16 %v30
  %v347 = vunpack.c.l.b16 %v31
  %v348 = vunpack.c.l.b16 %v32
  %v349 = vunpack.c.h.b16 %v32
  %v350 = vunpack.c.l.b16 %v33
  %v351 = vunpack.c.h.b16 %v33
  %v352 = vunpack.c.l.b16 %v34
  %v353 = vunpack.c.h.b16 %v34
  %v354 = vunpack.c.l.b16 %v35
  %v355 = vunpack.c.h.b16 %v35
  %v356 = vunpack.c.l.b16 %v36
  %v357 = vunpack.c.l.b16 %v37
  %v358 = vunpack.c.h.b16 %v37
  %v359 = vunpack.c.l.b16 %v38
  %v360 = vunpack.c.h.b16 %v38
  %v361 = vunpack.c.l.b16 %v39
  %v362 = vunpack.c.h.b16 %v39
  %v363 = vunpack.c.l.b16 %v40
  %v364 = vunpack.c.h.b16 %v40
  %v365 = vunpack.c.l.b16 %v41
  %v366 = vunpack.c.l.b16 %v42
  %v367 = vunpack.c.h.b16 %v42
  %v368 = vunpack.c.l.b16 %v43
  %v369 = vunpack.c.h.b16 %v43
  %v370 = vunpack.c.l.b16 %v44
  %v371 = vunpack.c.h.b16 %v44
  %v372 = vunpack.c.l.b16 %v45
  %v373 = vunpack.c.h.b16 %v45
  %v374 = vunpack.c.l.b16 %v46
  %v375 = vunpack.c.l.b16 %v47
  %v376 = vunpack.c.h.b16 %v47
  %v377 = vunpack.c.l.b16 %v48
  %v378 = vunpack.c.h.b16 %v48
  %v379 = vunpack.c.l.b16 %v49
  %v380 = vunpack.c.h.b16 %v49
  %v381 = vunpack.c.l.b16 %v50
  %v382 = vunpack.c.h.b16 %v50
  %v383 = vunpack.c.l.b16 %v51
  %v384 = vunpack.c.l.b16 %v52
  %v385 = vunpack.c.h.b16 %v52
  %v386 = vunpack.c.l.b16 %v53
  %v387 = vunpack.c.h.b16 %v53
  %v388 = vunpack.c.l.b16 %v54
  %v389 = vunpack.c.h.b16 %v54
  %v390 = vunpack.c.l.b16 %v55
  %v391 = vunpack.c.h.b16 %v55
  %v392 = vunpack.c.l.b16 %v56
  %v393 = vunpack.c.l.b16 %v57
  %v394 = vunpack.c.h.b16 %v57
  %v395 = vunpack.c.l.b16 %v58
  %v396 = vunpack.c.h.b16 %v58
  %v397 = vunpack.c.l.b16 %v59
  %v398 = vunpack.c.h.b16 %v59
  %v399 = vunpack.c.l.b16 %v60
  %v400 = vunpack.c.h.b16 %v60
  %v401 = vunpack.c.l.b16 %v61
  %v402 = vunpack.c.l.b16 %v62
  %v403 = vunpack.c.h.b16 %v62
  %v404 = vunpack.c.l.b16 %v63
  %v405 = vunpack.c.h.b16 %v63
  %v406 = vunpack.c.l.b16 %v64
  %v407 = vunpack.c.h.b16 %v64
  %v408 = vunpack.c.l.b16 %v65
  %v409 = vunpack.c.h.b16 %v65
  %v410 = vunpack.c.l.b16 %v66
  %v411 = vunpack.c.l.b16 %v67
  %v412 = vunpack.c.h.b16 %v67
  %v413 = vunpack.c.l.b16 %v68
  %v414 = vunpack.c.h.b16 %v68
  %v415 = vunpack.c.l.b16 %v69
  %v416 = vunpack.c.h.b16 %v69
  %v417 = vunpack.c.l.b16 %v70
  %v418 = vunpack.c.h.b16 %v70
  %v419 = vunpack.c.l.b16 %v71
  %v420 = vunpack.c.l.b16 %v72
  %v421 = vunpack.c.h.b16 %v72
  %v422 = vunpack.c.l.b16 %v73
  %v423 = vunpack.c.h.b16 %v73
  %v424 = vunpack.c.l.b16 %v74
  %v425 = vunpack.c.h.b16 %v74
  %v426 = vunpack.c.l.b16 %v75
  %v427 = vunpack.c.h.b16 %v75
  %v428 = vunpack.c.l.b16 %v76
  %v429 = vunpack.c.l.b16 %v77
  %v430 = vunpack.c.h.b16 %v77
  %v431 = vunpack.c.l.b16 %v78
  %v432 = vunpack.c.h.b16 %v78
  %v433 = vunpack.c.l.b16 %v79
  %v434 = vunpack.c.h.b16 %v79
  %v435 = vunpack.c.l.b16 %v80
  %v436 = vunpack.c.h.b16 %v80
  %v437 = vunpack.c.l.b16 %v81
  %v438 = vunpack.c.l.b16 %v82
  %v439 = vunpack.c.h.b16 %v82
  %v440 = vunpack.c.l.b16 %v83
  %v441 = vunpack.c.h.b16 %v83
  %v442 = vunpack.c.l.b16 %v84
  %v443 = vunpack.c.h.b16 %v84
  %v444 = vunpack.c.l.b16 %v85
  %v445 = vunpack.c.h.b16 %v85
  %v446 = vunpack.c.l.b16 %v86
  %v447 = vunpack.c.l.b16 %v87
  %v448 = vunpack.c.h.b16 %v87
  %v449 = vunpack.c.l.b16 %v88
  %v450 = vunpack.c.h.b16 %v88
  %v451 = vunpack.c.l.b16 %v89
  %v452 = vunpack.c.h.b16 %v89
  %v453 = vunpack.c.l.b16 %v90
  %v454 = vunpack.c.h.b16 %v90
  %v455 = vunpack.c.l.b16 %v91
  %v456 = vunpack.c.l.b16 %v92
  %v457 = vunpack.c.h.b16 %v92
  %v458 = vunpack.c.l.b16 %v93
  %v459 = vunpack.c.h.b16 %v93
  %v460 = vunpack.c.l.b16 %v94
  %v461 = vunpack.c.h.b16 %v94
  %v462 = vunpack.c.l.b16 %v95
  %v463 = vunpack.c.h.b16 %v95
  %v464 = vunpack.c.l.b16 %v96
  %v465 = vpack.c.b16 %v330, %v321
  %v466 = vpack.c.b16 %v331, %v322
  %v467 = vpack.c.b16 %v332, %v323
  %v468 = vpack.c.b16 %v333, %v324
  %v469 = vpack.c.b16 %v334, %v325
  %v470 = vpack.c.b16 %v335, %v326
  %v471 = vpack.c.b16 %v336, %v327
  %v472 = vpack.c.b16 %v337, %v328
  %v473 = vpack.c.b16 %v338, %v329
  %v474 = vpack.c.b16 %v348, %v339
  %v475 = vpack.c.b16 %v349, %v340
  %v476 = vpack.c.b16 %v350, %v341
  %v477 = vpack.c.b16 %v351, %v342
  %v478 = vpack.c.b16 %v352, %v343
  %v479 = vpack.c.b16 %v353, %v344
  %v480 = vpack.c.b16 %v354, %v345
  %v481 = vpack.c.b16 %v355, %v346
  %v482 = vpack.c.b16 %v356, %v347
  %v483 = vpack.c.b16 %v366, %v357
  %v484 = vpack.c.b16 %v367, %v358
  %v485 = vpack.c.b16 %v368, %v359
  %v486 = vpack.c.b16 %v369, %v360
  %v487 = vpack.c.b16 %v370, %v361
  %v488 = vpack.c.b16 %v371, %v362
  %v489 = vpack.c.b16 %v372, %v363
  %v490 = vpack.c.b16 %v373, %v364
  %v491 = vpack.c.b16 %v374, %v365
  %v492 = vpack.c.b16 %v384, %v375
  %v493 = vpack.c.b16 %v385, %v376
  %v494 = vpack.c.b16 %v386, %v377
  %v495 = vpack.c.b16 %v387, %v378
  %v496 = vpack.c.b16 %v388, %v379
  %v497 = vpack.c.b16 %v389, %v380
  %v498 = vpack.c.b16 %v390, %v381
  %v499 = vpack.c.b16 %v391, %v382
  %v500 = vpack.c.b16 %v392, %v383
  %v501 = vpack.c.b16 %v402, %v393
  %v502 = vpack.c.b16 %v403, %v394
  %v503 = vpack.c.b16 %v404, %v395
  %v504 = vpack.c.b16 %v405, %v396
  %v505 = vpack.c.b16 %v406, %v397
  %v506 = vpack.c.b16 %v407, %v398
  %v507 = vpack.c.b16 %v408, %v399
  %v508 = vpack.c.b16 %v409, %v400
  %v509 = vpack.c.b16 %v410, %v401
  %v510 = vpack.c.b16 %v420, %v411
  %v511 = vpack.c.b16 %v421, %v412
  %v512 = vpack.c.b16 %v422, %v413
  %v513 = vpack.c.b16 %v423, %v414
  %v514 = vpack.c.b16 %v424, %v415
  %v515 = vpack.c.b16 %v425, %v416
  %v516 = vpack.c.b16 %v426, %v417
  %v517 = vpack.c.b16 %v427, %v418
  %v518 = vpack.c.b16 %v428, %v419
  %v519 = vpack.c.b16 %v438, %v429
  %v520 = vpack.c.b16 %v439, %v430
  %v521 = vpack.c.b16 %v440, %v431
  %v522 = vpack.c.b16 %v441, %v432
  %v523 = vpack.c.b16 %v442, %v433
  %v524 = vpack.c.b16 %v443, %v434
  %v525 = vpack.c.b16 %v444, %v435
  %v526 = vpack.c.b16 %v445, %v436
  %v527 = vpack.c.b16 %v446, %v437
  %v528 = vpack.c.b16 %v456, %v447
  %v529 = vpack.c.b16 %v457, %v448
  %v530 = vpack.c.b16 %v458, %v449
  %v531 = vpack.c.b16 %v459, %v450
  %v532 = vpack.c.b16 %v460, %v451
  %v533 = vpack.c.b16 %v461, %v452
  %v534 = vpack.c.b16 %v462, %v453
  %v535 = vpack.c.b16 %v463, %v454
  %v536 = vpack.c.b16 %v464, %v455
  %v753 = vunpack.c.l.b16 %v97
  %v754 = vunpack.c.l.b16 %v98
  %v755 = vunpack.c.l.b16 %v99
  %v756 = vunpack.c.l.b16 %v100
  %v757 = vunpack.c.l.b16 %v101
  %v758 = vunpack.c.l.b16 %v102
  %v759 = vunpack.c.l.b16 %v103
  %v760 = vunpack.c.l.b16 %v104
  %v761 = vunpack.c.l.b16 %v105
  %v762 = vunpack.c.l.b16 %v106
  %v763 = vunpack.c.l.b16 %v107
  %v764 = vunpack.c.l.b16 %v108
  %v765 = vunpack.c.l.b16 %v109
  %v766 = vunpack.c.l.b16 %v110
  %v767 = vunpack.c.l.b16 %v111
  %v768 = vunpack.c.l.b16 %v112
  %v769 = vunpack.c.l.b16 %v113
  %v770 = vunpack.c.l.b16 %v114
  %v771 = vunpack.c.l.b16 %v115
  %v772 = vunpack.c.l.b16 %v116
  %v773 = vunpack.c.l.b16 %v117
  %v774 = vunpack.c.l.b16 %v118
  %v775 = vunpack.c.l.b16 %v119
  %v776 = vunpack.c.l.b16 %v120
  %v777 = vunpack.c.l.b16 %v121
  %v778 = vunpack.c.l.b16 %v122
  %v779 = vunpack.c.l.b16 %v123
  %v780 = vunpack.c.l.b16 %v124
  %v781 = vunpack.c.l.b16 %v125
  %v782 = vunpack.c.l.b16 %v126
  %v783 = vunpack.c.l.b16 %v127
  %v784 = vunpack.c.l.b16 %v128
  %v785 = vunpack.c.l.b16 %v129
  %v786 = vunpack.c.l.b16 %v130
  %v787 = vunpack.c.l.b16 %v131
  %v788 = vunpack.c.l.b16 %v132
  %v789 = vunpack.c.l.b16 %v133
  %v790 = vunpack.c.l.b16 %v134
  %v791 = vunpack.c.l.b16 %v135
  %v792 = vunpack.c.l.b16 %v136
  %v793 = vunpack.c.l.b16 %v137
  %v794 = vunpack.c.l.b16 %v138
  %v795 = vunpack.c.l.b16 %v139
  %v796 = vunpack.c.l.b16 %v140
  %v797 = vunpack.c.l.b16 %v141
  %v798 = vunpack.c.l.b16 %v142
  %v799 = vunpack.c.l.b16 %v143
  %v800 = vunpack.c.l.b16 %v144
  %v801 = vunpack.c.l.b16 %v145
  %v802 = vunpack.c.l.b16 %v146
  %v803 = vunpack.c.l.b16 %v147
  %v804 = vunpack.c.l.b16 %v148
  %v805 = vunpack.c.l.b16 %v149
  %v806 = vunpack.c.l.b16 %v150
  %v807 = vunpack.c.l.b16 %v151
  %v808 = vunpack.c.l.b16 %v152
  %v809 = vunpack.c.l.b16 %v153
  %v810 = vunpack.c.l.b16 %v154
  %v811 = vunpack.c.l.b16 %v155
  %v812 = vunpack.c.l.b16 %v156
  %v813 = vunpack.c.l.b16 %v157
  %v814 = vunpack.c.l.b16 %v158
  %v815 = vunpack.c.l.b16 %v159
  %v816 = vunpack.c.l.b16 %v160
  %v817 = vunpack.c.l.b16 %v161
  %v818 = vunpack.c.l.b16 %v162
  %v819 = vunpack.c.l.b16 %v163
  %v820 = vunpack.c.l.b16 %v164
  %v821 = vunpack.c.l.b16 %v165
  %v822 = vunpack.c.l.b16 %v166
  %v823 = vunpack.c.l.b16 %v167
  %v824 = vunpack.c.l.b16 %v168
  %v825 = vunpack.c.l.b16 %v169
  %v826 = vunpack.c.l.b16 %v170
  %v827 = vunpack.c.l.b16 %v171
  %v828 = vunpack.c.l.b16 %v172
  %v829 = vunpack.c.l.b16 %v173
  %v830 = vunpack.c.l.b16 %v174
  %v831 = vunpack.c.l.b16 %v175
  %v832 = vunpack.c.l.b16 %v176
  %v833 = vunpack.c.l.b16 %v177
  %v834 = vunpack.c.l.b16 %v178
  %v835 = vunpack.c.l.b16 %v179
  %v836 = vunpack.c.l.b16 %v180
  %v837 = vunpack.c.l.b16 %v181
  %v838 = vunpack.c.l.b16 %v182
  %v839 = vunpack.c.l.b16 %v183
  %v840 = vunpack.c.l.b16 %v184
  %v841 = vunpack.c.l.b16 %v185
  %v842 = vunpack.c.l.b16 %v186
  %v843 = vunpack.c.l.b16 %v187
  %v844 = vunpack.c.l.b16 %v188
  %v845 = vunpack.c.l.b16 %v189
  %v846 = vunpack.c.l.b16 %v190
  %v847 = vunpack.c.l.b16 %v191
  %v848 = vunpack.c.l.b16 %v192
  %v849 = vunpack.c.l.b16 %v193
  %v850 = vunpack.c.l.b16 %v194
  %v851 = vunpack.c.l.b16 %v195
  %v852 = vunpack.c.l.b16 %v196
  %v853 = vunpack.c.l.b16 %v197
  %v854 = vunpack.c.l.b16 %v198
  %v855 = vunpack.c.l.b16 %v199
  %v856 = vunpack.c.l.b16 %v200
  %v857 = vunpack.c.l.b16 %v201
  %v858 = vunpack.c.l.b16 %v202
  %v859 = vunpack.c.l.b16 %v203
  %v860 = vunpack.c.l.b16 %v204
  %v861 = vunpack.c.l.b16 %v205
  %v862 = vunpack.c.l.b16 %v206
  %v863 = vunpack.c.l.b16 %v207
  %v864 = vunpack.c.l.b16 %v208
  %v865 = vunpack.c.l.b16 %v209
  %v866 = vunpack.c.l.b16 %v210
  %v867 = vunpack.c.l.b16 %v211
  %v868 = vunpack.c.l.b16 %v212
  %v869 = vunpack.c.l.b16 %v213
  %v870 = vunpack.c.l.b16 %v214
  %v871 = vunpack.c.l.b16 %v215
  %v872 = vunpack.c.l.b16 %v216
  %v873 = vunpack.c.l.b16 %v217
  %v874 = vunpack.c.l.b16 %v218
  %v875 = vunpack.c.l.b16 %v219
  %v876 = vunpack.c.l.b16 %v220
  %v877 = vunpack.c.l.b16 %v221
  %v878 = vunpack.c.l.b16 %v222
  %v879 = vunpack.c.l.b16 %v223
  %v880 = vunpack.c.l.b16 %v224
  %v881 = vunpack.c.l.b16 %v225
  %v882 = vunpack.c.l.b16 %v226
  %v883 = vunpack.c.l.b16 %v227
  %v884 = vunpack.c.l.b16 %v228
  %v885 = vunpack.c.l.b16 %v229
  %v886 = vunpack.c.l.b16 %v230
  %v887 = vunpack.c.l.b16 %v231
  %v888 = vunpack.c.l.b16 %v232
  %v889 = vunpack.c.l.b16 %v233
  %v890 = vunpack.c.l.b16 %v234
  %v891 = vunpack.c.l.b16 %v235
  %v892 = vunpack.c.l.b16 %v236
  %v893 = vunpack.c.l.b16 %v237
  %v894 = vunpack.c.l.b16 %v238
  %v895 = vunpack.c.l.b16 %v239
  %v896 = vunpack.c.l.b16 %v240
  %v897 = vpack.c.b16 %v754, %v753
  %v898 = vpack.c.b16 %v756, %v755
  %v899 = vpack.c.b16 %v758, %v757
  %v900 = vpack.c.b16 %v760, %v759
  %v901 = vpack.c.b16 %v762, %v761
  %v902 = vpack.c.b16 %v764, %v763
  %v903 = vpack.c.b16 %v766, %v765
  %v904 = vpack.c.b16 %v768, %v767
  %v905 = vpack.c.b16 %v770, %v769
  %v906 = vpack.c.b16 %v772, %v771
  %v907 = vpack.c.b16 %v774, %v773
  %v908 = vpack.c.b16 %v776, %v775
  %v909 = vpack.c.b16 %v778, %v777
  %v910 = vpack.c.b16 %v780, %v779
  %v911 = vpack.c.b16 %v782, %v781
  %v912 = vpack.c.b16 %v784, %v783
  %v913 = vpack.c.b16 %v786, %v785
  %v914 = vpack.c.b16 %v788, %v787
  %v915 = vpack.c.b16 %v790, %v789
  %v916 = vpack.c.b16 %v792, %v791
  %v917 = vpack.c.b16 %v794, %v793
  %v918 = vpack.c.b16 %v796, %v795
  %v919 = vpack.c.b16 %v798, %v797
  %v920 = vpack.c.b16 %v800, %v799
  %v921 = vpack.c.b16 %v802, %v801
  %v922 = vpack.c.b16 %v804, %v803
  %v923 = vpack.c.b16 %v806, %v805
  %v924 = vpack.c.b16 %v808, %v807
  %v925 = vpack.c.b16 %v810, %v809
  %v926 = vpack.c.b16 %v812, %v811
  %v927 = vpack.c.b16 %v814, %v813
  %v928 = vpack.c.b16 %v816, %v815
  %v929 = vpack.c.b16 %v818, %v817
  %v930 = vpack.c.b16 %v820, %v819
  %v931 = vpack.c.b16 %v822, %v821
  %v932 = vpack.c.b16 %v824, %v823
  %v933 = vpack.c.b16 %v826, %v825
  %v934 = vpack.c.b16 %v828, %v827
  %v935 = vpack.c.b16 %v830, %v829
  %v936 = vpack.c.b16 %v832, %v831
  %v937 = vpack.c.b16 %v834, %v833
  %v938 = vpack.c.b16 %v836, %v835
  %v939 = vpack.c.b16 %v838, %v837
  %v940 = vpack.c.b16 %v840, %v839
  %v941 = vpack.c.b16 %v842, %v841
  %v942 = vpack.c.b16 %v844, %v843
  %v943 = vpack.c.b16 %v846, %v845
  %v944 = vpack.c.b16 %v848, %v847
  %v945 = vpack.c.b16 %v850, %v849
  %v946 = vpack.c.b16 %v852, %v851
  %v947 = vpack.c.b16 %v854, %v853
  %v948 = vpack.c.b16 %v856, %v855
  %v949 = vpack.c.b16 %v858, %v857
  %v950 = vpack.c.b16 %v860, %v859
  %v951 = vpack.c.b16 %v862, %v861
  %v952 = vpack.c.b16 %v864, %v863
  %v953 = vpack.c.b16 %v866, %v865
  %v954 = vpack.c.b16 %v868, %v867
  %v955 = vpack.c.b16 %v870, %v869
  %v956 = vpack.c.b16 %v872, %v871
  %v957 = vpack.c.b16 %v874, %v873
  %v958 = vpack.c.b16 %v876, %v875
  %v959 = vpack.c.b16 %v878, %v877
  %v960 = vpack.c.b16 %v880, %v879
  %v961 = vpack.c.b16 %v882, %v881
  %v962 = vpack.c.b16 %v884, %v883
  %v963 = vpack.c.b16 %v886, %v885
  %v964 = vpack.c.b16 %v888, %v887
  %v965 = vpack.c.b16 %v890, %v889
  %v966 = vpack.c.b16 %v892, %v891
  %v967 = vpack.c.b16 %v894, %v893
  %v968 = vpack.c.b16 %v896, %v895
  %1041 = vmatpush.bf16.msra.mxu0 %v904
  %1042 = vmatpush.bf16.msra.mxu0 %v903
  %1043 = vmatpush.bf16.msra.mxu0 %v902
  %1044 = vmatpush.bf16.msra.mxu0 %v901
  %1045 = vmatpush.bf16.msra.mxu0 %v900
  %1046 = vmatpush.bf16.msra.mxu0 %v899
  %1047 = vmatpush.bf16.msra.mxu0 %v898
  %1048 = vmatpush.bf16.msra.mxu0 %v897
  %1049 = vmatmul.bf16.gmra.mxu0 %v465
  %v1050 = vpop.f32.mrf.mxu0
  %v1051 = vadd.f32 0.0, %v1050
  %v1052 = vpop.f32.mrf.mxu0
  %v1053 = vadd.f32 0.0, %v1052
  %1054 = vmatmul.bf16.gmra.mxu0 %v474
  %v1055 = vpop.f32.mrf.mxu0
  %v1056 = vadd.f32 0.0, %v1055
  %v1057 = vpop.f32.mrf.mxu0
  %v1058 = vadd.f32 0.0, %v1057
  %1059 = vmatmul.bf16.gmra.mxu0 %v483
  %v1060 = vpop.f32.mrf.mxu0
  %v1061 = vadd.f32 0.0, %v1060
  %v1062 = vpop.f32.mrf.mxu0
  %v1063 = vadd.f32 0.0, %v1062
  %1064 = vmatmul.bf16.gmra.mxu0 %v492
  %v1065 = vpop.f32.mrf.mxu0
  %v1066 = vadd.f32 0.0, %v1065
  %v1067 = vpop.f32.mrf.mxu0
  %v1068 = vadd.f32 0.0, %v1067
  %1069 = vmatmul.bf16.gmra.mxu0 %v501
  %v1070 = vpop.f32.mrf.mxu0
  %v1071 = vadd.f32 0.0, %v1070
  %v1072 = vpop.f32.mrf.mxu0
  %v1073 = vadd.f32 0.0, %v1072
  %1074 = vmatmul.bf16.gmra.mxu0 %v510
  %v1075 = vpop.f32.mrf.mxu0
  %v1076 = vadd.f32 0.0, %v1075
  %v1077 = vpop.f32.mrf.mxu0
  %v1078 = vadd.f32 0.0, %v1077
  %1079 = vmatmul.bf16.gmra.mxu0 %v519
  %v1080 = vpop.f32.mrf.mxu0
  %v1081 = vadd.f32 0.0, %v1080
  %v1082 = vpop.f32.mrf.mxu0
  %v1083 = vadd.f32 0.0, %v1082
  %1084 = vmatmul.bf16.gmra.mxu0 %v528
  %v1085 = vpop.f32.mrf.mxu0
  %v1086 = vadd.f32 0.0, %v1085
  %v1087 = vpop.f32.mrf.mxu0
  %v1088 = vadd.f32 0.0, %v1087
  %1089 = vdwg.mxu0
  %1090 = vmatpush.bf16.msra.mxu0 %v912
  %1091 = vmatpush.bf16.msra.mxu0 %v911
  %1092 = vmatpush.bf16.msra.mxu0 %v910
  %1093 = vmatpush.bf16.msra.mxu0 %v909
  %1094 = vmatpush.bf16.msra.mxu0 %v908
  %1095 = vmatpush.bf16.msra.mxu0 %v907
  %1096 = vmatpush.bf16.msra.mxu0 %v906
  %1097 = vmatpush.bf16.msra.mxu0 %v905
  %1098 = vmatmul.bf16.gmra.mxu0 %v466
  %v1099 = vpop.f32.mrf.mxu0
  %v1100 = vadd.f32 %v1051, %v1099
  %v1101 = vpop.f32.mrf.mxu0
  %v1102 = vadd.f32 %v1053, %v1101
  %1103 = vmatmul.bf16.gmra.mxu0 %v475
  %v1104 = vpop.f32.mrf.mxu0
  %v1105 = vadd.f32 %v1056, %v1104
  %v1106 = vpop.f32.mrf.mxu0
  %v1107 = vadd.f32 %v1058, %v1106
  %1108 = vmatmul.bf16.gmra.mxu0 %v484
  %v1109 = vpop.f32.mrf.mxu0
  %v1110 = vadd.f32 %v1061, %v1109
  %v1111 = vpop.f32.mrf.mxu0
  %v1112 = vadd.f32 %v1063, %v1111
  %1113 = vmatmul.bf16.gmra.mxu0 %v493
  %v1114 = vpop.f32.mrf.mxu0
  %v1115 = vadd.f32 %v1066, %v1114
  %v1116 = vpop.f32.mrf.mxu0
  %v1117 = vadd.f32 %v1068, %v1116
  %1118 = vmatmul.bf16.gmra.mxu0 %v502
  %v1119 = vpop.f32.mrf.mxu0
  %v1120 = vadd.f32 %v1071, %v1119
  %v1121 = vpop.f32.mrf.mxu0
  %v1122 = vadd.f32 %v1073, %v1121
  %1123 = vmatmul.bf16.gmra.mxu0 %v511
  %v1124 = vpop.f32.mrf.mxu0
  %v1125 = vadd.f32 %v1076, %v1124
  %v1126 = vpop.f32.mrf.mxu0
  %v1127 = vadd.f32 %v1078, %v1126
  %1128 = vmatmul.bf16.gmra.mxu0 %v520
  %v1129 = vpop.f32.mrf.mxu0
  %v1130 = vadd.f32 %v1081, %v1129
  %v1131 = vpop.f32.mrf.mxu0
  %v1132 = vadd.f32 %v1083, %v1131
  %1133 = vmatmul.bf16.gmra.mxu0 %v529
  %v1134 = vpop.f32.mrf.mxu0
  %v1135 = vadd.f32 %v1086, %v1134
  %v1136 = vpop.f32.mrf.mxu0
  %v1137 = vadd.f32 %v1088, %v1136
  %1138 = vdwg.mxu0
  %1139 = vmatpush.bf16.msra.mxu0 %v920
  %1140 = vmatpush.bf16.msra.mxu0 %v919
  %1141 = vmatpush.bf16.msra.mxu0 %v918
  %1142 = vmatpush.bf16.msra.mxu0 %v917
  %1143 = vmatpush.bf16.msra.mxu0 %v916
  %1144 = vmatpush.bf16.msra.mxu0 %v915
  %1145 = vmatpush.bf16.msra.mxu0 %v914
  %1146 = vmatpush.bf16.msra.mxu0 %v913
  %1147 = vmatmul.bf16.gmra.mxu0 %v467
  %v1148 = vpop.f32.mrf.mxu0
  %v1149 = vadd.f32 %v1100, %v1148
  %v1150 = vpop.f32.mrf.mxu0
  %v1151 = vadd.f32 %v1102, %v1150
  %1152 = vmatmul.bf16.gmra.mxu0 %v476
  %v1153 = vpop.f32.mrf.mxu0
  %v1154 = vadd.f32 %v1105, %v1153
  %v1155 = vpop.f32.mrf.mxu0
  %v1156 = vadd.f32 %v1107, %v1155
  %1157 = vmatmul.bf16.gmra.mxu0 %v485
  %v1158 = vpop.f32.mrf.mxu0
  %v1159 = vadd.f32 %v1110, %v1158
  %v1160 = vpop.f32.mrf.mxu0
  %v1161 = vadd.f32 %v1112, %v1160
  %1162 = vmatmul.bf16.gmra.mxu0 %v494
  %v1163 = vpop.f32.mrf.mxu0
  %v1164 = vadd.f32 %v1115, %v1163
  %v1165 = vpop.f32.mrf.mxu0
  %v1166 = vadd.f32 %v1117, %v1165
  %1167 = vmatmul.bf16.gmra.mxu0 %v503
  %v1168 = vpop.f32.mrf.mxu0
  %v1169 = vadd.f32 %v1120, %v1168
  %v1170 = vpop.f32.mrf.mxu0
  %v1171 = vadd.f32 %v1122, %v1170
  %1172 = vmatmul.bf16.gmra.mxu0 %v512
  %v1173 = vpop.f32.mrf.mxu0
  %v1174 = vadd.f32 %v1125, %v1173
  %v1175 = vpop.f32.mrf.mxu0
  %v1176 = vadd.f32 %v1127, %v1175
  %1177 = vmatmul.bf16.gmra.mxu0 %v521
  %v1178 = vpop.f32.mrf.mxu0
  %v1179 = vadd.f32 %v1130, %v1178
  %v1180 = vpop.f32.mrf.mxu0
  %v1181 = vadd.f32 %v1132, %v1180
  %1182 = vmatmul.bf16.gmra.mxu0 %v530
  %v1183 = vpop.f32.mrf.mxu0
  %v1184 = vadd.f32 %v1135, %v1183
  %v1185 = vpop.f32.mrf.mxu0
  %v1186 = vadd.f32 %v1137, %v1185
  %1187 = vdwg.mxu0
  %1188 = vmatpush.bf16.msra.mxu0 %v928
  %1189 = vmatpush.bf16.msra.mxu0 %v927
  %1190 = vmatpush.bf16.msra.mxu0 %v926
  %1191 = vmatpush.bf16.msra.mxu0 %v925
  %1192 = vmatpush.bf16.msra.mxu0 %v924
  %1193 = vmatpush.bf16.msra.mxu0 %v923
  %1194 = vmatpush.bf16.msra.mxu0 %v922
  %1195 = vmatpush.bf16.msra.mxu0 %v921
  %1196 = vmatmul.bf16.gmra.mxu0 %v468
  %v1197 = vpop.f32.mrf.mxu0
  %v1198 = vadd.f32 %v1149, %v1197
  %v1199 = vpop.f32.mrf.mxu0
  %v1200 = vadd.f32 %v1151, %v1199
  %1201 = vmatmul.bf16.gmra.mxu0 %v477
  %v1202 = vpop.f32.mrf.mxu0
  %v1203 = vadd.f32 %v1154, %v1202
  %v1204 = vpop.f32.mrf.mxu0
  %v1205 = vadd.f32 %v1156, %v1204
  %1206 = vmatmul.bf16.gmra.mxu0 %v486
  %v1207 = vpop.f32.mrf.mxu0
  %v1208 = vadd.f32 %v1159, %v1207
  %v1209 = vpop.f32.mrf.mxu0
  %v1210 = vadd.f32 %v1161, %v1209
  %1211 = vmatmul.bf16.gmra.mxu0 %v495
  %v1212 = vpop.f32.mrf.mxu0
  %v1213 = vadd.f32 %v1164, %v1212
  %v1214 = vpop.f32.mrf.mxu0
  %v1215 = vadd.f32 %v1166, %v1214
  %1216 = vmatmul.bf16.gmra.mxu0 %v504
  %v1217 = vpop.f32.mrf.mxu0
  %v1218 = vadd.f32 %v1169, %v1217
  %v1219 = vpop.f32.mrf.mxu0
  %v1220 = vadd.f32 %v1171, %v1219
  %1221 = vmatmul.bf16.gmra.mxu0 %v513
  %v1222 = vpop.f32.mrf.mxu0
  %v1223 = vadd.f32 %v1174, %v1222
  %v1224 = vpop.f32.mrf.mxu0
  %v1225 = vadd.f32 %v1176, %v1224
  %1226 = vmatmul.bf16.gmra.mxu0 %v522
  %v1227 = vpop.f32.mrf.mxu0
  %v1228 = vadd.f32 %v1179, %v1227
  %v1229 = vpop.f32.mrf.mxu0
  %v1230 = vadd.f32 %v1181, %v1229
  %1231 = vmatmul.bf16.gmra.mxu0 %v531
  %v1232 = vpop.f32.mrf.mxu0
  %v1233 = vadd.f32 %v1184, %v1232
  %v1234 = vpop.f32.mrf.mxu0
  %v1235 = vadd.f32 %v1186, %v1234
  %1236 = vdwg.mxu0
  %1237 = vmatpush.bf16.msra.mxu0 %v936
  %1238 = vmatpush.bf16.msra.mxu0 %v935
  %1239 = vmatpush.bf16.msra.mxu0 %v934
  %1240 = vmatpush.bf16.msra.mxu0 %v933
  %1241 = vmatpush.bf16.msra.mxu0 %v932
  %1242 = vmatpush.bf16.msra.mxu0 %v931
  %1243 = vmatpush.bf16.msra.mxu0 %v930
  %1244 = vmatpush.bf16.msra.mxu0 %v929
  %1245 = vmatmul.bf16.gmra.mxu0 %v469
  %v1246 = vpop.f32.mrf.mxu0
  %v1247 = vadd.f32 %v1198, %v1246
  %v1248 = vpop.f32.mrf.mxu0
  %v1249 = vadd.f32 %v1200, %v1248
  %1250 = vmatmul.bf16.gmra.mxu0 %v478
  %v1251 = vpop.f32.mrf.mxu0
  %v1252 = vadd.f32 %v1203, %v1251
  %v1253 = vpop.f32.mrf.mxu0
  %v1254 = vadd.f32 %v1205, %v1253
  %1255 = vmatmul.bf16.gmra.mxu0 %v487
  %v1256 = vpop.f32.mrf.mxu0
  %v1257 = vadd.f32 %v1208, %v1256
  %v1258 = vpop.f32.mrf.mxu0
  %v1259 = vadd.f32 %v1210, %v1258
  %1260 = vmatmul.bf16.gmra.mxu0 %v496
  %v1261 = vpop.f32.mrf.mxu0
  %v1262 = vadd.f32 %v1213, %v1261
  %v1263 = vpop.f32.mrf.mxu0
  %v1264 = vadd.f32 %v1215, %v1263
  %1265 = vmatmul.bf16.gmra.mxu0 %v505
  %v1266 = vpop.f32.mrf.mxu0
  %v1267 = vadd.f32 %v1218, %v1266
  %v1268 = vpop.f32.mrf.mxu0
  %v1269 = vadd.f32 %v1220, %v1268
  %1270 = vmatmul.bf16.gmra.mxu0 %v514
  %v1271 = vpop.f32.mrf.mxu0
  %v1272 = vadd.f32 %v1223, %v1271
  %v1273 = vpop.f32.mrf.mxu0
  %v1274 = vadd.f32 %v1225, %v1273
  %1275 = vmatmul.bf16.gmra.mxu0 %v523
  %v1276 = vpop.f32.mrf.mxu0
  %v1277 = vadd.f32 %v1228, %v1276
  %v1278 = vpop.f32.mrf.mxu0
  %v1279 = vadd.f32 %v1230, %v1278
  %1280 = vmatmul.bf16.gmra.mxu0 %v532
  %v1281 = vpop.f32.mrf.mxu0
  %v1282 = vadd.f32 %v1233, %v1281
  %v1283 = vpop.f32.mrf.mxu0
  %v1284 = vadd.f32 %v1235, %v1283
  %1285 = vdwg.mxu0
  %1286 = vmatpush.bf16.msra.mxu0 %v944
  %1287 = vmatpush.bf16.msra.mxu0 %v943
  %1288 = vmatpush.bf16.msra.mxu0 %v942
  %1289 = vmatpush.bf16.msra.mxu0 %v941
  %1290 = vmatpush.bf16.msra.mxu0 %v940
  %1291 = vmatpush.bf16.msra.mxu0 %v939
  %1292 = vmatpush.bf16.msra.mxu0 %v938
  %1293 = vmatpush.bf16.msra.mxu0 %v937
  %1294 = vmatmul.bf16.gmra.mxu0 %v470
  %v1295 = vpop.f32.mrf.mxu0
  %v1296 = vadd.f32 %v1247, %v1295
  %v1297 = vpop.f32.mrf.mxu0
  %v1298 = vadd.f32 %v1249, %v1297
  %1299 = vmatmul.bf16.gmra.mxu0 %v479
  %v1300 = vpop.f32.mrf.mxu0
  %v1301 = vadd.f32 %v1252, %v1300
  %v1302 = vpop.f32.mrf.mxu0
  %v1303 = vadd.f32 %v1254, %v1302
  %1304 = vmatmul.bf16.gmra.mxu0 %v488
  %v1305 = vpop.f32.mrf.mxu0
  %v1306 = vadd.f32 %v1257, %v1305
  %v1307 = vpop.f32.mrf.mxu0
  %v1308 = vadd.f32 %v1259, %v1307
  %1309 = vmatmul.bf16.gmra.mxu0 %v497
  %v1310 = vpop.f32.mrf.mxu0
  %v1311 = vadd.f32 %v1262, %v1310
  %v1312 = vpop.f32.mrf.mxu0
  %v1313 = vadd.f32 %v1264, %v1312
  %1314 = vmatmul.bf16.gmra.mxu0 %v506
  %v1315 = vpop.f32.mrf.mxu0
  %v1316 = vadd.f32 %v1267, %v1315
  %v1317 = vpop.f32.mrf.mxu0
  %v1318 = vadd.f32 %v1269, %v1317
  %1319 = vmatmul.bf16.gmra.mxu0 %v515
  %v1320 = vpop.f32.mrf.mxu0
  %v1321 = vadd.f32 %v1272, %v1320
  %v1322 = vpop.f32.mrf.mxu0
  %v1323 = vadd.f32 %v1274, %v1322
  %1324 = vmatmul.bf16.gmra.mxu0 %v524
  %v1325 = vpop.f32.mrf.mxu0
  %v1326 = vadd.f32 %v1277, %v1325
  %v1327 = vpop.f32.mrf.mxu0
  %v1328 = vadd.f32 %v1279, %v1327
  %1329 = vmatmul.bf16.gmra.mxu0 %v533
  %v1330 = vpop.f32.mrf.mxu0
  %v1331 = vadd.f32 %v1282, %v1330
  %v1332 = vpop.f32.mrf.mxu0
  %v1333 = vadd.f32 %v1284, %v1332
  %1334 = vdwg.mxu0
  %1335 = vmatpush.bf16.msra.mxu0 %v952
  %1336 = vmatpush.bf16.msra.mxu0 %v951
  %1337 = vmatpush.bf16.msra.mxu0 %v950
  %1338 = vmatpush.bf16.msra.mxu0 %v949
  %1339 = vmatpush.bf16.msra.mxu0 %v948
  %1340 = vmatpush.bf16.msra.mxu0 %v947
  %1341 = vmatpush.bf16.msra.mxu0 %v946
  %1342 = vmatpush.bf16.msra.mxu0 %v945
  %1343 = vmatmul.bf16.gmra.mxu0 %v471
  %v1344 = vpop.f32.mrf.mxu0
  %v1345 = vadd.f32 %v1296, %v1344
  %v1346 = vpop.f32.mrf.mxu0
  %v1347 = vadd.f32 %v1298, %v1346
  %1348 = vmatmul.bf16.gmra.mxu0 %v480
  %v1349 = vpop.f32.mrf.mxu0
  %v1350 = vadd.f32 %v1301, %v1349
  %v1351 = vpop.f32.mrf.mxu0
  %v1352 = vadd.f32 %v1303, %v1351
  %1353 = vmatmul.bf16.gmra.mxu0 %v489
  %v1354 = vpop.f32.mrf.mxu0
  %v1355 = vadd.f32 %v1306, %v1354
  %v1356 = vpop.f32.mrf.mxu0
  %v1357 = vadd.f32 %v1308, %v1356
  %1358 = vmatmul.bf16.gmra.mxu0 %v498
  %v1359 = vpop.f32.mrf.mxu0
  %v1360 = vadd.f32 %v1311, %v1359
  %v1361 = vpop.f32.mrf.mxu0
  %v1362 = vadd.f32 %v1313, %v1361
  %1363 = vmatmul.bf16.gmra.mxu0 %v507
  %v1364 = vpop.f32.mrf.mxu0
  %v1365 = vadd.f32 %v1316, %v1364
  %v1366 = vpop.f32.mrf.mxu0
  %v1367 = vadd.f32 %v1318, %v1366
  %1368 = vmatmul.bf16.gmra.mxu0 %v516
  %v1369 = vpop.f32.mrf.mxu0
  %v1370 = vadd.f32 %v1321, %v1369
  %v1371 = vpop.f32.mrf.mxu0
  %v1372 = vadd.f32 %v1323, %v1371
  %1373 = vmatmul.bf16.gmra.mxu0 %v525
  %v1374 = vpop.f32.mrf.mxu0
  %v1375 = vadd.f32 %v1326, %v1374
  %v1376 = vpop.f32.mrf.mxu0
  %v1377 = vadd.f32 %v1328, %v1376
  %1378 = vmatmul.bf16.gmra.mxu0 %v534
  %v1379 = vpop.f32.mrf.mxu0
  %v1380 = vadd.f32 %v1331, %v1379
  %v1381 = vpop.f32.mrf.mxu0
  %v1382 = vadd.f32 %v1333, %v1381
  %1383 = vdwg.mxu0
  %1384 = vmatpush.bf16.msra.mxu0 %v960
  %1385 = vmatpush.bf16.msra.mxu0 %v959
  %1386 = vmatpush.bf16.msra.mxu0 %v958
  %1387 = vmatpush.bf16.msra.mxu0 %v957
  %1388 = vmatpush.bf16.msra.mxu0 %v956
  %1389 = vmatpush.bf16.msra.mxu0 %v955
  %1390 = vmatpush.bf16.msra.mxu0 %v954
  %1391 = vmatpush.bf16.msra.mxu0 %v953
  %1392 = vmatmul.bf16.gmra.mxu0 %v472
  %v1393 = vpop.f32.mrf.mxu0
  %v1394 = vadd.f32 %v1345, %v1393
  %v1395 = vpop.f32.mrf.mxu0
  %v1396 = vadd.f32 %v1347, %v1395
  %1397 = vmatmul.bf16.gmra.mxu0 %v481
  %v1398 = vpop.f32.mrf.mxu0
  %v1399 = vadd.f32 %v1350, %v1398
  %v1400 = vpop.f32.mrf.mxu0
  %v1401 = vadd.f32 %v1352, %v1400
  %1402 = vmatmul.bf16.gmra.mxu0 %v490
  %v1403 = vpop.f32.mrf.mxu0
  %v1404 = vadd.f32 %v1355, %v1403
  %v1405 = vpop.f32.mrf.mxu0
  %v1406 = vadd.f32 %v1357, %v1405
  %1407 = vmatmul.bf16.gmra.mxu0 %v499
  %v1408 = vpop.f32.mrf.mxu0
  %v1409 = vadd.f32 %v1360, %v1408
  %v1410 = vpop.f32.mrf.mxu0
  %v1411 = vadd.f32 %v1362, %v1410
  %1412 = vmatmul.bf16.gmra.mxu0 %v508
  %v1413 = vpop.f32.mrf.mxu0
  %v1414 = vadd.f32 %v1365, %v1413
  %v1415 = vpop.f32.mrf.mxu0
  %v1416 = vadd.f32 %v1367, %v1415
  %1417 = vmatmul.bf16.gmra.mxu0 %v517
  %v1418 = vpop.f32.mrf.mxu0
  %v1419 = vadd.f32 %v1370, %v1418
  %v1420 = vpop.f32.mrf.mxu0
  %v1421 = vadd.f32 %v1372, %v1420
  %1422 = vmatmul.bf16.gmra.mxu0 %v526
  %v1423 = vpop.f32.mrf.mxu0
  %v1424 = vadd.f32 %v1375, %v1423
  %v1425 = vpop.f32.mrf.mxu0
  %v1426 = vadd.f32 %v1377, %v1425
  %1427 = vmatmul.bf16.gmra.mxu0 %v535
  %v1428 = vpop.f32.mrf.mxu0
  %v1429 = vadd.f32 %v1380, %v1428
  %v1430 = vpop.f32.mrf.mxu0
  %v1431 = vadd.f32 %v1382, %v1430
  %1432 = vdwg.mxu0
  %1433 = vmatpush.bf16.msra.mxu0 %v968
  %1434 = vmatpush.bf16.msra.mxu0 %v967
  %1435 = vmatpush.bf16.msra.mxu0 %v966
  %1436 = vmatpush.bf16.msra.mxu0 %v965
  %1437 = vmatpush.bf16.msra.mxu0 %v964
  %1438 = vmatpush.bf16.msra.mxu0 %v963
  %1439 = vmatpush.bf16.msra.mxu0 %v962
  %1440 = vmatpush.bf16.msra.mxu0 %v961
  %1441 = vmatmul.bf16.gmra.mxu0 %v473
  %v1442 = vpop.f32.mrf.mxu0
  %v1443 = vadd.f32 %v1394, %v1442
  %v1444 = vpop.f32.mrf.mxu0
  %v1445 = vadd.f32 %v1396, %v1444
  %1446 = vmatmul.bf16.gmra.mxu0 %v482
  %v1447 = vpop.f32.mrf.mxu0
  %v1448 = vadd.f32 %v1399, %v1447
  %v1449 = vpop.f32.mrf.mxu0
  %v1450 = vadd.f32 %v1401, %v1449
  %1451 = vmatmul.bf16.gmra.mxu0 %v491
  %v1452 = vpop.f32.mrf.mxu0
  %v1453 = vadd.f32 %v1404, %v1452
  %v1454 = vpop.f32.mrf.mxu0
  %v1455 = vadd.f32 %v1406, %v1454
  %1456 = vmatmul.bf16.gmra.mxu0 %v500
  %v1457 = vpop.f32.mrf.mxu0
  %v1458 = vadd.f32 %v1409, %v1457
  %v1459 = vpop.f32.mrf.mxu0
  %v1460 = vadd.f32 %v1411, %v1459
  %1461 = vmatmul.bf16.gmra.mxu0 %v509
  %v1462 = vpop.f32.mrf.mxu0
  %v1463 = vadd.f32 %v1414, %v1462
  %v1464 = vpop.f32.mrf.mxu0
  %v1465 = vadd.f32 %v1416, %v1464
  %1466 = vmatmul.bf16.gmra.mxu0 %v518
  %v1467 = vpop.f32.mrf.mxu0
  %v1468 = vadd.f32 %v1419, %v1467
  %v1469 = vpop.f32.mrf.mxu0
  %v1470 = vadd.f32 %v1421, %v1469
  %1471 = vmatmul.bf16.gmra.mxu0 %v527
  %v1472 = vpop.f32.mrf.mxu0
  %v1473 = vadd.f32 %v1424, %v1472
  %v1474 = vpop.f32.mrf.mxu0
  %v1475 = vadd.f32 %v1426, %v1474
  %1476 = vmatmul.bf16.gmra.mxu0 %v536
  %v1477 = vpop.f32.mrf.mxu0
  %v1478 = vadd.f32 %v1429, %v1477
  %v1479 = vpop.f32.mrf.mxu0
  %v1480 = vadd.f32 %v1431, %v1479
  %1481 = vdwg.mxu0
  %v1482 = vadd.f32 %v1443, %v1445
  %v1483 = vadd.f32 %v1482, %v1448
  %v1484 = vadd.f32 %v1483, %v1450
  %v1485 = vadd.f32 %v1484, %v1453
  %v1486 = vadd.f32 %v1485, %v1455
  %v1487 = vadd.f32 %v1486, %v1458
  %v1488 = vadd.f32 %v1487, %v1460
  %v1489 = vadd.f32 %v1488, %v1463
  %v1490 = vadd.f32 %v1489, %v1465
  %v1491 = vadd.f32 %v1490, %v1468
  %v1492 = vadd.f32 %v1491, %v1470
  %v1493 = vadd.f32 %v1492, %v1473
  %v1494 = vadd.f32 %v1493, %v1475
  %v1495 = vadd.f32 %v1494, %v1478
  %v1496 = vadd.f32 %v1495, %v1480
  %v1497 = vrot.slane %v1496, 4
  %v1498 = vadd.f32 %v1496, %v1497
  %v1499 = vrot.slane %v1498, 2
  %v1500 = vadd.f32 %v1498, %v1499
  %v1501 = vrot.slane %v1500, 1
  %v1502 = vadd.f32 %v1500, %v1501
  %v1503 = vmul.f32 %v1502, 0.0078125
  %v1504 = vmul.f32 %v1443, %v1443
  %v1505 = vmul.f32 %v1445, %v1445
  %v1506 = vmul.f32 %v1448, %v1448
  %v1507 = vmul.f32 %v1450, %v1450
  %v1508 = vmul.f32 %v1453, %v1453
  %v1509 = vmul.f32 %v1455, %v1455
  %v1510 = vmul.f32 %v1458, %v1458
  %v1511 = vmul.f32 %v1460, %v1460
  %v1512 = vmul.f32 %v1463, %v1463
  %v1513 = vmul.f32 %v1465, %v1465
  %v1514 = vmul.f32 %v1468, %v1468
  %v1515 = vmul.f32 %v1470, %v1470
  %v1516 = vmul.f32 %v1473, %v1473
  %v1517 = vmul.f32 %v1475, %v1475
  %v1518 = vmul.f32 %v1478, %v1478
  %v1519 = vmul.f32 %v1480, %v1480
  %v1520 = vadd.f32 %v1504, %v1505
  %v1521 = vadd.f32 %v1520, %v1506
  %v1522 = vadd.f32 %v1521, %v1507
  %v1523 = vadd.f32 %v1522, %v1508
  %v1524 = vadd.f32 %v1523, %v1509
  %v1525 = vadd.f32 %v1524, %v1510
  %v1526 = vadd.f32 %v1525, %v1511
  %v1527 = vadd.f32 %v1526, %v1512
  %v1528 = vadd.f32 %v1527, %v1513
  %v1529 = vadd.f32 %v1528, %v1514
  %v1530 = vadd.f32 %v1529, %v1515
  %v1531 = vadd.f32 %v1530, %v1516
  %v1532 = vadd.f32 %v1531, %v1517
  %v1533 = vadd.f32 %v1532, %v1518
  %v1534 = vadd.f32 %v1533, %v1519
  %v1535 = vrot.slane %v1534, 4
  %v1536 = vadd.f32 %v1534, %v1535
  %v1537 = vrot.slane %v1536, 2
  %v1538 = vadd.f32 %v1536, %v1537
  %v1539 = vrot.slane %v1538, 1
  %v1540 = vadd.f32 %v1538, %v1539
  %v1541 = vmul.f32 %v1540, 0.0078125
  %v1542 = vmul.f32 %v1503, %v1503
  %v1543 = vsub.f32 %v1541, %v1542
  %v1544 = vmax.f32 %v1543, 0.0
  %v1545 = vadd.f32 %v1544, 1e-05
  %v1546 = vrsqrt.pop %v1545
  %v1547 = vmul.f32 %v1546, %v1545
  %v1548 = vmul.f32 %v1547, %v1546
  %v1549 = vmul.f32 0.5, %v1548
  %v1550 = vsub.f32 1.5, %v1549
  %v1551 = vmul.f32 %v1546, %v1550
  %vm1552 = vweird.f32 %v1545
  %vm1553 = vweird.f32 %v1546
  %vm1554 = vmor %vm1552, %vm1553
  %v1555 = vsel %vm1554, %v1546, %v1551
  %v1556 = vld [vmem:[%s2] sm:$0x1]
  %v1557 = vmul.f32 %v1555, %v1556
  %v1558 = vld [vmem:[%s3] sm:$0x1]
  %v1559 = vmul.f32 %v1503, %v1557
  %v1560 = vsub.f32 %v1558, %v1559
  %v1561 = vperm.slane %v1557, 0
  %v1562 = vmul.f32 %v1443, %v1561
  %v1563 = vmul.f32 %v1445, %v1561
  %v1564 = vmul.f32 %v1448, %v1561
  %v1565 = vmul.f32 %v1450, %v1561
  %v1566 = vmul.f32 %v1453, %v1561
  %v1567 = vmul.f32 %v1455, %v1561
  %v1568 = vmul.f32 %v1458, %v1561
  %v1569 = vmul.f32 %v1460, %v1561
  %v1570 = vmul.f32 %v1463, %v1561
  %v1571 = vmul.f32 %v1465, %v1561
  %v1572 = vmul.f32 %v1468, %v1561
  %v1573 = vmul.f32 %v1470, %v1561
  %v1574 = vmul.f32 %v1473, %v1561
  %v1575 = vmul.f32 %v1475, %v1561
  %v1576 = vmul.f32 %v1478, %v1561
  %v1577 = vmul.f32 %v1480, %v1561
  %v1579 = vperm.slane %v1560, 0
  %v1581 = vadd.f32 %v1562, %v1579
  %v1582 = vadd.f32 %v1563, %v1579
  %v1583 = vadd.f32 %v1564, %v1579
  %v1584 = vadd.f32 %v1565, %v1579
  %v1585 = vadd.f32 %v1566, %v1579
  %v1586 = vadd.f32 %v1567, %v1579
  %v1587 = vadd.f32 %v1568, %v1579
  %v1588 = vadd.f32 %v1569, %v1579
  %v1589 = vadd.f32 %v1570, %v1579
  %v1590 = vadd.f32 %v1571, %v1579
  %v1591 = vadd.f32 %v1572, %v1579
  %v1592 = vadd.f32 %v1573, %v1579
  %v1593 = vadd.f32 %v1574, %v1579
  %v1594 = vadd.f32 %v1575, %v1579
  %v1595 = vadd.f32 %v1576, %v1579
  %v1596 = vadd.f32 %v1577, %v1579
  %vm1597 = vcmp.gt.f32.partialorder %v1581, 0.0
  %vm1598 = vcmp.gt.f32.partialorder %v1582, 0.0
  %vm1599 = vcmp.gt.f32.partialorder %v1583, 0.0
  %vm1600 = vcmp.gt.f32.partialorder %v1584, 0.0
  %vm1601 = vcmp.gt.f32.partialorder %v1585, 0.0
  %vm1602 = vcmp.gt.f32.partialorder %v1586, 0.0
  %vm1603 = vcmp.gt.f32.partialorder %v1587, 0.0
  %vm1604 = vcmp.gt.f32.partialorder %v1588, 0.0
  %vm1605 = vcmp.gt.f32.partialorder %v1589, 0.0
  %vm1606 = vcmp.gt.f32.partialorder %v1590, 0.0
  %vm1607 = vcmp.gt.f32.partialorder %v1591, 0.0
  %vm1608 = vcmp.gt.f32.partialorder %v1592, 0.0
  %vm1609 = vcmp.gt.f32.partialorder %v1593, 0.0
  %vm1610 = vcmp.gt.f32.partialorder %v1594, 0.0
  %vm1611 = vcmp.gt.f32.partialorder %v1595, 0.0
  %vm1612 = vcmp.gt.f32.partialorder %v1596, 0.0
  %v1613 = vmul.f32 %v1581, 0.2
  %v1614 = vmul.f32 %v1582, 0.2
  %v1615 = vmul.f32 %v1583, 0.2
  %v1616 = vmul.f32 %v1584, 0.2
  %v1617 = vmul.f32 %v1585, 0.2
  %v1618 = vmul.f32 %v1586, 0.2
  %v1619 = vmul.f32 %v1587, 0.2
  %v1620 = vmul.f32 %v1588, 0.2
  %v1621 = vmul.f32 %v1589, 0.2
  %v1622 = vmul.f32 %v1590, 0.2
  %v1623 = vmul.f32 %v1591, 0.2
  %v1624 = vmul.f32 %v1592, 0.2
  %v1625 = vmul.f32 %v1593, 0.2
  %v1626 = vmul.f32 %v1594, 0.2
  %v1627 = vmul.f32 %v1595, 0.2
  %v1628 = vmul.f32 %v1596, 0.2
  %v1629 = vsel %vm1597, %v1581, %v1613
  %v1630 = vsel %vm1598, %v1582, %v1614
  %v1631 = vsel %vm1599, %v1583, %v1615
  %v1632 = vsel %vm1600, %v1584, %v1616
  %v1633 = vsel %vm1601, %v1585, %v1617
  %v1634 = vsel %vm1602, %v1586, %v1618
  %v1635 = vsel %vm1603, %v1587, %v1619
  %v1636 = vsel %vm1604, %v1588, %v1620
  %v1637 = vsel %vm1605, %v1589, %v1621
  %v1638 = vsel %vm1606, %v1590, %v1622
  %v1639 = vsel %vm1607, %v1591, %v1623
  %v1640 = vsel %vm1608, %v1592, %v1624
  %v1641 = vsel %vm1609, %v1593, %v1625
  %v1642 = vsel %vm1610, %v1594, %v1626
  %v1643 = vsel %vm1611, %v1595, %v1627
  %v1644 = vsel %vm1612, %v1596, %v1628
  %v1645 = vpack.c.bf16 %v1629, %v1629
  %v1646 = vpack.c.bf16 %v1630, %v1630
  %v1647 = vpack.c.bf16 %v1631, %v1631
  %v1648 = vpack.c.bf16 %v1632, %v1632
  %v1649 = vpack.c.bf16 %v1633, %v1633
  %v1650 = vpack.c.bf16 %v1634, %v1634
  %v1651 = vpack.c.bf16 %v1635, %v1635
  %v1652 = vpack.c.bf16 %v1636, %v1636
  %v1653 = vpack.c.bf16 %v1637, %v1637
  %v1654 = vpack.c.bf16 %v1638, %v1638
  %v1655 = vpack.c.bf16 %v1639, %v1639
  %v1656 = vpack.c.bf16 %v1640, %v1640
  %v1657 = vpack.c.bf16 %v1641, %v1641
  %v1658 = vpack.c.bf16 %v1642, %v1642
  %v1659 = vpack.c.bf16 %v1643, %v1643
  %v1660 = vpack.c.bf16 %v1644, %v1644
  %1661 = vst [vmem:[%s4] sm:$0xf] %v1645
  %1662 = vst [vmem:[%s4 + $0x4] sm:$0xf] %v1646
  %1663 = vst [vmem:[%s4 + $0x8] sm:$0xf] %v1647
  %1664 = vst [vmem:[%s4 + $0xc] sm:$0xf] %v1648
  %1665 = vst [vmem:[%s4 + $0x10] sm:$0xf] %v1649
  %1666 = vst [vmem:[%s4 + $0x14] sm:$0xf] %v1650
  %1667 = vst [vmem:[%s4 + $0x18] sm:$0xf] %v1651
  %1668 = vst [vmem:[%s4 + $0x1c] sm:$0xf] %v1652
  %1669 = vst [vmem:[%s4 + $0x20] sm:$0xf] %v1653
  %1670 = vst [vmem:[%s4 + $0x24] sm:$0xf] %v1654
  %1671 = vst [vmem:[%s4 + $0x28] sm:$0xf] %v1655
  %1672 = vst [vmem:[%s4 + $0x2c] sm:$0xf] %v1656
  %1673 = vst [vmem:[%s4 + $0x30] sm:$0xf] %v1657
  %1674 = vst [vmem:[%s4 + $0x34] sm:$0xf] %v1658
  %1675 = vst [vmem:[%s4 + $0x38] sm:$0xf] %v1659
  %1676 = vst [vmem:[%s4 + $0x3c] sm:$0xf] %v1660
  // Predicated region
  $region18: #{discriminator.11} parent=0 // pred_check
    _
  $region19: #{discriminator.11} parent=0 // pred_check_branch
    %1678 = sbr.rel (0) target = $region21
  $region20: #{discriminator.11} parent=0 // pred_region
    _
  $region21: #{discriminator.11} parent=0 // pred_fallthru
    _
  // Predicated region
  $region22: #{discriminator.11} parent=0 // pred_check
    _
  $region23: #{discriminator.11} parent=0 // pred_check_branch
    %1680 = sbr.rel (0) target = $region25
  $region24: #{discriminator.11} parent=0 // pred_region
    _
  $region25: #{discriminator.11} parent=0 // pred_fallthru
    _

// kernel: discriminator.12
$region0: #{discriminator.12}
  #allocation0 [shape = 'u32[]', space=smem, size = 0x4, offset = 0x4, fixed_abs, tag = 'smem constant byte address 0x4 - core index']
  #allocation1 [shape = 'u32[72,128]{1,0:T(1,128)}', space=vmem, size = 0x9000, scoped, tag = 'internal scratch']
  %s0 = inlined_call_operand.vmem [shape: bf16[128,1152], index: 0, kind: input, shape index: {}]
  %s1 = inlined_call_operand.vmem [shape: bf16[1152,256], index: 1, kind: input, shape index: {}]
  %s2 = inlined_call_operand.vmem [shape: f32[1,256], index: 2, kind: input, shape index: {}]
  %s3 = inlined_call_operand.vmem [shape: f32[1,256], index: 3, kind: input, shape index: {}]
  %s4 = inlined_call_operand.vmem [shape: bf16[128,256], index: 4, kind: output, shape index: {}]
  %s5 = sld [smem:[#allocation0]]
  $region26: #{discriminator.12} parent=0
    _
  %s7 = ssub.s32 1, %s5
  %s8 = scalar_select 0, %s7, %s5
  // Predicated region
  $region2: #{discriminator.12} parent=0 // pred_check
    _
  $region3: #{discriminator.12} parent=0 // pred_check_branch
    %10 = sbr.rel (0) target = $region5
  $region4: #{discriminator.12} parent=0 // pred_region
    _
  $region5: #{discriminator.12} parent=0 // pred_fallthru
    _
  // Predicated region
  $region6: #{discriminator.12} parent=0 // pred_check
    _
  $region7: #{discriminator.12} parent=0 // pred_check_branch
    %12 = sbr.rel (0) target = $region9
  $region8: #{discriminator.12} parent=0 // pred_region
    _
  $region9: #{discriminator.12} parent=0 // pred_fallthru
    _
  // Predicated region
  $region10: #{discriminator.12} parent=0 // pred_check
    _
  $region11: #{discriminator.12} parent=0 // pred_check_branch
    %14 = sbr.rel (0) target = $region13
  $region12: #{discriminator.12} parent=0 // pred_region
    _
  $region13: #{discriminator.12} parent=0 // pred_fallthru
    _
  // Predicated region
  $region14: #{discriminator.12} parent=0 // pred_check
    _
  $region15: #{discriminator.12} parent=0 // pred_check_branch
    %16 = sbr.rel (0) target = $region17
  $region16: #{discriminator.12} parent=0 // pred_region
    _
  $region17: #{discriminator.12} parent=0 // pred_fallthru
    _
  %v17 = vld [vmem:[%s0] sm:$0xff]
  %v18 = vld [vmem:[%s0 + $0x8] sm:$0xff]
  %v19 = vld [vmem:[%s0 + $0x10] sm:$0xff]
  %v20 = vld [vmem:[%s0 + $0x18] sm:$0xff]
  %v21 = vld [vmem:[%s0 + $0x20] sm:$0xf]
  %v22 = vld [vmem:[%s0 + $0x24] sm:$0xff]
  %v23 = vld [vmem:[%s0 + $0x2c] sm:$0xff]
  %v24 = vld [vmem:[%s0 + $0x34] sm:$0xff]
  %v25 = vld [vmem:[%s0 + $0x3c] sm:$0xff]
  %v26 = vld [vmem:[%s0 + $0x44] sm:$0xf]
  %v27 = vld [vmem:[%s0 + $0x48] sm:$0xff]
  %v28 = vld [vmem:[%s0 + $0x50] sm:$0xff]
  %v29 = vld [vmem:[%s0 + $0x58] sm:$0xff]
  %v30 = vld [vmem:[%s0 + $0x60] sm:$0xff]
  %v31 = vld [vmem:[%s0 + $0x68] sm:$0xf]
  %v32 = vld [vmem:[%s0 + $0x6c] sm:$0xff]
  %v33 = vld [vmem:[%s0 + $0x74] sm:$0xff]
  %v34 = vld [vmem:[%s0 + $0x7c] sm:$0xff]
  %v35 = vld [vmem:[%s0 + $0x84] sm:$0xff]
  %v36 = vld [vmem:[%s0 + $0x8c] sm:$0xf]
  %v37 = vld [vmem:[%s0 + $0x90] sm:$0xff]
  %v38 = vld [vmem:[%s0 + $0x98] sm:$0xff]
  %v39 = vld [vmem:[%s0 + $0xa0] sm:$0xff]
  %v40 = vld [vmem:[%s0 + $0xa8] sm:$0xff]
  %v41 = vld [vmem:[%s0 + $0xb0] sm:$0xf]
  %v42 = vld [vmem:[%s0 + $0xb4] sm:$0xff]
  %v43 = vld [vmem:[%s0 + $0xbc] sm:$0xff]
  %v44 = vld [vmem:[%s0 + $0xc4] sm:$0xff]
  %v45 = vld [vmem:[%s0 + $0xcc] sm:$0xff]
  %v46 = vld [vmem:[%s0 + $0xd4] sm:$0xf]
  %v47 = vld [vmem:[%s0 + $0xd8] sm:$0xff]
  %v48 = vld [vmem:[%s0 + $0xe0] sm:$0xff]
  %v49 = vld [vmem:[%s0 + $0xe8] sm:$0xff]
  %v50 = vld [vmem:[%s0 + $0xf0] sm:$0xff]
  %v51 = vld [vmem:[%s0 + $0xf8] sm:$0xf]
  %v52 = vld [vmem:[%s0 + $0xfc] sm:$0xff]
  %v53 = vld [vmem:[%s0 + $0x104] sm:$0xff]
  %v54 = vld [vmem:[%s0 + $0x10c] sm:$0xff]
  %v55 = vld [vmem:[%s0 + $0x114] sm:$0xff]
  %v56 = vld [vmem:[%s0 + $0x11c] sm:$0xf]
  %v57 = vld [vmem:[%s0 + $0x120] sm:$0xff]
  %v58 = vld [vmem:[%s0 + $0x128] sm:$0xff]
  %v59 = vld [vmem:[%s0 + $0x130] sm:$0xff]
  %v60 = vld [vmem:[%s0 + $0x138] sm:$0xff]
  %v61 = vld [vmem:[%s0 + $0x140] sm:$0xf]
  %v62 = vld [vmem:[%s0 + $0x144] sm:$0xff]
  %v63 = vld [vmem:[%s0 + $0x14c] sm:$0xff]
  %v64 = vld [vmem:[%s0 + $0x154] sm:$0xff]
  %v65 = vld [vmem:[%s0 + $0x15c] sm:$0xff]
  %v66 = vld [vmem:[%s0 + $0x164] sm:$0xf]
  %v67 = vld [vmem:[%s0 + $0x168] sm:$0xff]
  %v68 = vld [vmem:[%s0 + $0x170] sm:$0xff]
  %v69 = vld [vmem:[%s0 + $0x178] sm:$0xff]
  %v70 = vld [vmem:[%s0 + $0x180] sm:$0xff]
  %v71 = vld [vmem:[%s0 + $0x188] sm:$0xf]
  %v72 = vld [vmem:[%s0 + $0x18c] sm:$0xff]
  %v73 = vld [vmem:[%s0 + $0x194] sm:$0xff]
  %v74 = vld [vmem:[%s0 + $0x19c] sm:$0xff]
  %v75 = vld [vmem:[%s0 + $0x1a4] sm:$0xff]
  %v76 = vld [vmem:[%s0 + $0x1ac] sm:$0xf]
  %v77 = vld [vmem:[%s0 + $0x1b0] sm:$0xff]
  %v78 = vld [vmem:[%s0 + $0x1b8] sm:$0xff]
  %v79 = vld [vmem:[%s0 + $0x1c0] sm:$0xff]
  %v80 = vld [vmem:[%s0 + $0x1c8] sm:$0xff]
  %v81 = vld [vmem:[%s0 + $0x1d0] sm:$0xf]
  %v82 = vld [vmem:[%s0 + $0x1d4] sm:$0xff]
  %v83 = vld [vmem:[%s0 + $0x1dc] sm:$0xff]
  %v84 = vld [vmem:[%s0 + $0x1e4] sm:$0xff]
  %v85 = vld [vmem:[%s0 + $0x1ec] sm:$0xff]
  %v86 = vld [vmem:[%s0 + $0x1f4] sm:$0xf]
  %v87 = vld [vmem:[%s0 + $0x1f8] sm:$0xff]
  %v88 = vld [vmem:[%s0 + $0x200] sm:$0xff]
  %v89 = vld [vmem:[%s0 + $0x208] sm:$0xff]
  %v90 = vld [vmem:[%s0 + $0x210] sm:$0xff]
  %v91 = vld [vmem:[%s0 + $0x218] sm:$0xf]
  %v92 = vld [vmem:[%s0 + $0x21c] sm:$0xff]
  %v93 = vld [vmem:[%s0 + $0x224] sm:$0xff]
  %v94 = vld [vmem:[%s0 + $0x22c] sm:$0xff]
  %v95 = vld [vmem:[%s0 + $0x234] sm:$0xff]
  %v96 = vld [vmem:[%s0 + $0x23c] sm:$0xf]
  %v97 = vld [vmem:[%s1] sm:$0xff]
  %v98 = vld [vmem:[%s1 + $0x8] sm:$0xff]
  %v99 = vld [vmem:[%s1 + $0x10] sm:$0xff]
  %v100 = vld [vmem:[%s1 + $0x18] sm:$0xff]
  %v101 = vld [vmem:[%s1 + $0x20] sm:$0xff]
  %v102 = vld [vmem:[%s1 + $0x28] sm:$0xff]
  %v103 = vld [vmem:[%s1 + $0x30] sm:$0xff]
  %v104 = vld [vmem:[%s1 + $0x38] sm:$0xff]
  %v105 = vld [vmem:[%s1 + $0x40] sm:$0xff]
  %v106 = vld [vmem:[%s1 + $0x48] sm:$0xff]
  %v107 = vld [vmem:[%s1 + $0x50] sm:$0xff]
  %v108 = vld [vmem:[%s1 + $0x58] sm:$0xff]
  %v109 = vld [vmem:[%s1 + $0x60] sm:$0xff]
  %v110 = vld [vmem:[%s1 + $0x68] sm:$0xff]
  %v111 = vld [vmem:[%s1 + $0x70] sm:$0xff]
  %v112 = vld [vmem:[%s1 + $0x78] sm:$0xff]
  %v113 = vld [vmem:[%s1 + $0x80] sm:$0xff]
  %v114 = vld [vmem:[%s1 + $0x88] sm:$0xff]
  %v115 = vld [vmem:[%s1 + $0x90] sm:$0xff]
  %v116 = vld [vmem:[%s1 + $0x98] sm:$0xff]
  %v117 = vld [vmem:[%s1 + $0xa0] sm:$0xff]
  %v118 = vld [vmem:[%s1 + $0xa8] sm:$0xff]
  %v119 = vld [vmem:[%s1 + $0xb0] sm:$0xff]
  %v120 = vld [vmem:[%s1 + $0xb8] sm:$0xff]
  %v121 = vld [vmem:[%s1 + $0xc0] sm:$0xff]
  %v122 = vld [vmem:[%s1 + $0xc8] sm:$0xff]
  %v123 = vld [vmem:[%s1 + $0xd0] sm:$0xff]
  %v124 = vld [vmem:[%s1 + $0xd8] sm:$0xff]
  %v125 = vld [vmem:[%s1 + $0xe0] sm:$0xff]
  %v126 = vld [vmem:[%s1 + $0xe8] sm:$0xff]
  %v127 = vld [vmem:[%s1 + $0xf0] sm:$0xff]
  %v128 = vld [vmem:[%s1 + $0xf8] sm:$0xff]
  %v129 = vld [vmem:[%s1 + $0x100] sm:$0xff]
  %v130 = vld [vmem:[%s1 + $0x108] sm:$0xff]
  %v131 = vld [vmem:[%s1 + $0x110] sm:$0xff]
  %v132 = vld [vmem:[%s1 + $0x118] sm:$0xff]
  %v133 = vld [vmem:[%s1 + $0x120] sm:$0xff]
  %v134 = vld [vmem:[%s1 + $0x128] sm:$0xff]
  %v135 = vld [vmem:[%s1 + $0x130] sm:$0xff]
  %v136 = vld [vmem:[%s1 + $0x138] sm:$0xff]
  %v137 = vld [vmem:[%s1 + $0x140] sm:$0xff]
  %v138 = vld [vmem:[%s1 + $0x148] sm:$0xff]
  %v139 = vld [vmem:[%s1 + $0x150] sm:$0xff]
  %v140 = vld [vmem:[%s1 + $0x158] sm:$0xff]
  %v141 = vld [vmem:[%s1 + $0x160] sm:$0xff]
  %v142 = vld [vmem:[%s1 + $0x168] sm:$0xff]
  %v143 = vld [vmem:[%s1 + $0x170] sm:$0xff]
  %v144 = vld [vmem:[%s1 + $0x178] sm:$0xff]
  %v145 = vld [vmem:[%s1 + $0x180] sm:$0xff]
  %v146 = vld [vmem:[%s1 + $0x188] sm:$0xff]
  %v147 = vld [vmem:[%s1 + $0x190] sm:$0xff]
  %v148 = vld [vmem:[%s1 + $0x198] sm:$0xff]
  %v149 = vld [vmem:[%s1 + $0x1a0] sm:$0xff]
  %v150 = vld [vmem:[%s1 + $0x1a8] sm:$0xff]
  %v151 = vld [vmem:[%s1 + $0x1b0] sm:$0xff]
  %v152 = vld [vmem:[%s1 + $0x1b8] sm:$0xff]
  %v153 = vld [vmem:[%s1 + $0x1c0] sm:$0xff]
  %v154 = vld [vmem:[%s1 + $0x1c8] sm:$0xff]
  %v155 = vld [vmem:[%s1 + $0x1d0] sm:$0xff]
  %v156 = vld [vmem:[%s1 + $0x1d8] sm:$0xff]
  %v157 = vld [vmem:[%s1 + $0x1e0] sm:$0xff]
  %v158 = vld [vmem:[%s1 + $0x1e8] sm:$0xff]
  %v159 = vld [vmem:[%s1 + $0x1f0] sm:$0xff]
  %v160 = vld [vmem:[%s1 + $0x1f8] sm:$0xff]
  %v161 = vld [vmem:[%s1 + $0x200] sm:$0xff]
  %v162 = vld [vmem:[%s1 + $0x208] sm:$0xff]
  %v163 = vld [vmem:[%s1 + $0x210] sm:$0xff]
  %v164 = vld [vmem:[%s1 + $0x218] sm:$0xff]
  %v165 = vld [vmem:[%s1 + $0x220] sm:$0xff]
  %v166 = vld [vmem:[%s1 + $0x228] sm:$0xff]
  %v167 = vld [vmem:[%s1 + $0x230] sm:$0xff]
  %v168 = vld [vmem:[%s1 + $0x238] sm:$0xff]
  %v169 = vld [vmem:[%s1 + $0x240] sm:$0xff]
  %v170 = vld [vmem:[%s1 + $0x248] sm:$0xff]
  %v171 = vld [vmem:[%s1 + $0x250] sm:$0xff]
  %v172 = vld [vmem:[%s1 + $0x258] sm:$0xff]
  %v173 = vld [vmem:[%s1 + $0x260] sm:$0xff]
  %v174 = vld [vmem:[%s1 + $0x268] sm:$0xff]
  %v175 = vld [vmem:[%s1 + $0x270] sm:$0xff]
  %v176 = vld [vmem:[%s1 + $0x278] sm:$0xff]
  %v177 = vld [vmem:[%s1 + $0x280] sm:$0xff]
  %v178 = vld [vmem:[%s1 + $0x288] sm:$0xff]
  %v179 = vld [vmem:[%s1 + $0x290] sm:$0xff]
  %v180 = vld [vmem:[%s1 + $0x298] sm:$0xff]
  %v181 = vld [vmem:[%s1 + $0x2a0] sm:$0xff]
  %v182 = vld [vmem:[%s1 + $0x2a8] sm:$0xff]
  %v183 = vld [vmem:[%s1 + $0x2b0] sm:$0xff]
  %v184 = vld [vmem:[%s1 + $0x2b8] sm:$0xff]
  %v185 = vld [vmem:[%s1 + $0x2c0] sm:$0xff]
  %v186 = vld [vmem:[%s1 + $0x2c8] sm:$0xff]
  %v187 = vld [vmem:[%s1 + $0x2d0] sm:$0xff]
  %v188 = vld [vmem:[%s1 + $0x2d8] sm:$0xff]
  %v189 = vld [vmem:[%s1 + $0x2e0] sm:$0xff]
  %v190 = vld [vmem:[%s1 + $0x2e8] sm:$0xff]
  %v191 = vld [vmem:[%s1 + $0x2f0] sm:$0xff]
  %v192 = vld [vmem:[%s1 + $0x2f8] sm:$0xff]
  %v193 = vld [vmem:[%s1 + $0x300] sm:$0xff]
  %v194 = vld [vmem:[%s1 + $0x308] sm:$0xff]
  %v195 = vld [vmem:[%s1 + $0x310] sm:$0xff]
  %v196 = vld [vmem:[%s1 + $0x318] sm:$0xff]
  %v197 = vld [vmem:[%s1 + $0x320] sm:$0xff]
  %v198 = vld [vmem:[%s1 + $0x328] sm:$0xff]
  %v199 = vld [vmem:[%s1 + $0x330] sm:$0xff]
  %v200 = vld [vmem:[%s1 + $0x338] sm:$0xff]
  %v201 = vld [vmem:[%s1 + $0x340] sm:$0xff]
  %v202 = vld [vmem:[%s1 + $0x348] sm:$0xff]
  %v203 = vld [vmem:[%s1 + $0x350] sm:$0xff]
  %v204 = vld [vmem:[%s1 + $0x358] sm:$0xff]
  %v205 = vld [vmem:[%s1 + $0x360] sm:$0xff]
  %v206 = vld [vmem:[%s1 + $0x368] sm:$0xff]
  %v207 = vld [vmem:[%s1 + $0x370] sm:$0xff]
  %v208 = vld [vmem:[%s1 + $0x378] sm:$0xff]
  %v209 = vld [vmem:[%s1 + $0x380] sm:$0xff]
  %v210 = vld [vmem:[%s1 + $0x388] sm:$0xff]
  %v211 = vld [vmem:[%s1 + $0x390] sm:$0xff]
  %v212 = vld [vmem:[%s1 + $0x398] sm:$0xff]
  %v213 = vld [vmem:[%s1 + $0x3a0] sm:$0xff]
  %v214 = vld [vmem:[%s1 + $0x3a8] sm:$0xff]
  %v215 = vld [vmem:[%s1 + $0x3b0] sm:$0xff]
  %v216 = vld [vmem:[%s1 + $0x3b8] sm:$0xff]
  %v217 = vld [vmem:[%s1 + $0x3c0] sm:$0xff]
  %v218 = vld [vmem:[%s1 + $0x3c8] sm:$0xff]
  %v219 = vld [vmem:[%s1 + $0x3d0] sm:$0xff]
  %v220 = vld [vmem:[%s1 + $0x3d8] sm:$0xff]
  %v221 = vld [vmem:[%s1 + $0x3e0] sm:$0xff]
  %v222 = vld [vmem:[%s1 + $0x3e8] sm:$0xff]
  %v223 = vld [vmem:[%s1 + $0x3f0] sm:$0xff]
  %v224 = vld [vmem:[%s1 + $0x3f8] sm:$0xff]
  %v225 = vld [vmem:[%s1 + $0x400] sm:$0xff]
  %v226 = vld [vmem:[%s1 + $0x408] sm:$0xff]
  %v227 = vld [vmem:[%s1 + $0x410] sm:$0xff]
  %v228 = vld [vmem:[%s1 + $0x418] sm:$0xff]
  %v229 = vld [vmem:[%s1 + $0x420] sm:$0xff]
  %v230 = vld [vmem:[%s1 + $0x428] sm:$0xff]
  %v231 = vld [vmem:[%s1 + $0x430] sm:$0xff]
  %v232 = vld [vmem:[%s1 + $0x438] sm:$0xff]
  %v233 = vld [vmem:[%s1 + $0x440] sm:$0xff]
  %v234 = vld [vmem:[%s1 + $0x448] sm:$0xff]
  %v235 = vld [vmem:[%s1 + $0x450] sm:$0xff]
  %v236 = vld [vmem:[%s1 + $0x458] sm:$0xff]
  %v237 = vld [vmem:[%s1 + $0x460] sm:$0xff]
  %v238 = vld [vmem:[%s1 + $0x468] sm:$0xff]
  %v239 = vld [vmem:[%s1 + $0x470] sm:$0xff]
  %v240 = vld [vmem:[%s1 + $0x478] sm:$0xff]
  %v321 = vunpack.c.l.b16 %v17
  %v322 = vunpack.c.h.b16 %v17
  %v323 = vunpack.c.l.b16 %v18
  %v324 = vunpack.c.h.b16 %v18
  %v325 = vunpack.c.l.b16 %v19
  %v326 = vunpack.c.h.b16 %v19
  %v327 = vunpack.c.l.b16 %v20
  %v328 = vunpack.c.h.b16 %v20
  %v329 = vunpack.c.l.b16 %v21
  %v330 = vunpack.c.l.b16 %v22
  %v331 = vunpack.c.h.b16 %v22
  %v332 = vunpack.c.l.b16 %v23
  %v333 = vunpack.c.h.b16 %v23
  %v334 = vunpack.c.l.b16 %v24
  %v335 = vunpack.c.h.b16 %v24
  %v336 = vunpack.c.l.b16 %v25
  %v337 = vunpack.c.h.b16 %v25
  %v338 = vunpack.c.l.b16 %v26
  %v339 = vunpack.c.l.b16 %v27
  %v340 = vunpack.c.h.b16 %v27
  %v341 = vunpack.c.l.b16 %v28
  %v342 = vunpack.c.h.b16 %v28
  %v343 = vunpack.c.l.b16 %v29
  %v344 = vunpack.c.h.b16 %v29
  %v345 = vunpack.c.l.b16 %v30
  %v346 = vunpack.c.h.b16 %v30
  %v347 = vunpack.c.l.b16 %v31
  %v348 = vunpack.c.l.b16 %v32
  %v349 = vunpack.c.h.b16 %v32
  %v350 = vunpack.c.l.b16 %v33
  %v351 = vunpack.c.h.b16 %v33
  %v352 = vunpack.c.l.b16 %v34
  %v353 = vunpack.c.h.b16 %v34
  %v354 = vunpack.c.l.b16 %v35
  %v355 = vunpack.c.h.b16 %v35
  %v356 = vunpack.c.l.b16 %v36
  %v357 = vunpack.c.l.b16 %v37
  %v358 = vunpack.c.h.b16 %v37
  %v359 = vunpack.c.l.b16 %v38
  %v360 = vunpack.c.h.b16 %v38
  %v361 = vunpack.c.l.b16 %v39
  %v362 = vunpack.c.h.b16 %v39
  %v363 = vunpack.c.l.b16 %v40
  %v364 = vunpack.c.h.b16 %v40
  %v365 = vunpack.c.l.b16 %v41
  %v366 = vunpack.c.l.b16 %v42
  %v367 = vunpack.c.h.b16 %v42
  %v368 = vunpack.c.l.b16 %v43
  %v369 = vunpack.c.h.b16 %v43
  %v370 = vunpack.c.l.b16 %v44
  %v371 = vunpack.c.h.b16 %v44
  %v372 = vunpack.c.l.b16 %v45
  %v373 = vunpack.c.h.b16 %v45
  %v374 = vunpack.c.l.b16 %v46
  %v375 = vunpack.c.l.b16 %v47
  %v376 = vunpack.c.h.b16 %v47
  %v377 = vunpack.c.l.b16 %v48
  %v378 = vunpack.c.h.b16 %v48
  %v379 = vunpack.c.l.b16 %v49
  %v380 = vunpack.c.h.b16 %v49
  %v381 = vunpack.c.l.b16 %v50
  %v382 = vunpack.c.h.b16 %v50
  %v383 = vunpack.c.l.b16 %v51
  %v384 = vunpack.c.l.b16 %v52
  %v385 = vunpack.c.h.b16 %v52
  %v386 = vunpack.c.l.b16 %v53
  %v387 = vunpack.c.h.b16 %v53
  %v388 = vunpack.c.l.b16 %v54
  %v389 = vunpack.c.h.b16 %v54
  %v390 = vunpack.c.l.b16 %v55
  %v391 = vunpack.c.h.b16 %v55
  %v392 = vunpack.c.l.b16 %v56
  %v393 = vunpack.c.l.b16 %v57
  %v394 = vunpack.c.h.b16 %v57
  %v395 = vunpack.c.l.b16 %v58
  %v396 = vunpack.c.h.b16 %v58
  %v397 = vunpack.c.l.b16 %v59
  %v398 = vunpack.c.h.b16 %v59
  %v399 = vunpack.c.l.b16 %v60
  %v400 = vunpack.c.h.b16 %v60
  %v401 = vunpack.c.l.b16 %v61
  %v402 = vunpack.c.l.b16 %v62
  %v403 = vunpack.c.h.b16 %v62
  %v404 = vunpack.c.l.b16 %v63
  %v405 = vunpack.c.h.b16 %v63
  %v406 = vunpack.c.l.b16 %v64
  %v407 = vunpack.c.h.b16 %v64
  %v408 = vunpack.c.l.b16 %v65
  %v409 = vunpack.c.h.b16 %v65
  %v410 = vunpack.c.l.b16 %v66
  %v411 = vunpack.c.l.b16 %v67
  %v412 = vunpack.c.h.b16 %v67
  %v413 = vunpack.c.l.b16 %v68
  %v414 = vunpack.c.h.b16 %v68
  %v415 = vunpack.c.l.b16 %v69
  %v416 = vunpack.c.h.b16 %v69
  %v417 = vunpack.c.l.b16 %v70
  %v418 = vunpack.c.h.b16 %v70
  %v419 = vunpack.c.l.b16 %v71
  %v420 = vunpack.c.l.b16 %v72
  %v421 = vunpack.c.h.b16 %v72
  %v422 = vunpack.c.l.b16 %v73
  %v423 = vunpack.c.h.b16 %v73
  %v424 = vunpack.c.l.b16 %v74
  %v425 = vunpack.c.h.b16 %v74
  %v426 = vunpack.c.l.b16 %v75
  %v427 = vunpack.c.h.b16 %v75
  %v428 = vunpack.c.l.b16 %v76
  %v429 = vunpack.c.l.b16 %v77
  %v430 = vunpack.c.h.b16 %v77
  %v431 = vunpack.c.l.b16 %v78
  %v432 = vunpack.c.h.b16 %v78
  %v433 = vunpack.c.l.b16 %v79
  %v434 = vunpack.c.h.b16 %v79
  %v435 = vunpack.c.l.b16 %v80
  %v436 = vunpack.c.h.b16 %v80
  %v437 = vunpack.c.l.b16 %v81
  %v438 = vunpack.c.l.b16 %v82
  %v439 = vunpack.c.h.b16 %v82
  %v440 = vunpack.c.l.b16 %v83
  %v441 = vunpack.c.h.b16 %v83
  %v442 = vunpack.c.l.b16 %v84
  %v443 = vunpack.c.h.b16 %v84
  %v444 = vunpack.c.l.b16 %v85
  %v445 = vunpack.c.h.b16 %v85
  %v446 = vunpack.c.l.b16 %v86
  %v447 = vunpack.c.l.b16 %v87
  %v448 = vunpack.c.h.b16 %v87
  %v449 = vunpack.c.l.b16 %v88
  %v450 = vunpack.c.h.b16 %v88
  %v451 = vunpack.c.l.b16 %v89
  %v452 = vunpack.c.h.b16 %v89
  %v453 = vunpack.c.l.b16 %v90
  %v454 = vunpack.c.h.b16 %v90
  %v455 = vunpack.c.l.b16 %v91
  %v456 = vunpack.c.l.b16 %v92
  %v457 = vunpack.c.h.b16 %v92
  %v458 = vunpack.c.l.b16 %v93
  %v459 = vunpack.c.h.b16 %v93
  %v460 = vunpack.c.l.b16 %v94
  %v461 = vunpack.c.h.b16 %v94
  %v462 = vunpack.c.l.b16 %v95
  %v463 = vunpack.c.h.b16 %v95
  %v464 = vunpack.c.l.b16 %v96
  %v465 = vpack.c.b16 %v330, %v321
  %v466 = vpack.c.b16 %v331, %v322
  %v467 = vpack.c.b16 %v332, %v323
  %v468 = vpack.c.b16 %v333, %v324
  %v469 = vpack.c.b16 %v334, %v325
  %v470 = vpack.c.b16 %v335, %v326
  %v471 = vpack.c.b16 %v336, %v327
  %v472 = vpack.c.b16 %v337, %v328
  %v473 = vpack.c.b16 %v338, %v329
  %v474 = vpack.c.b16 %v348, %v339
  %v475 = vpack.c.b16 %v349, %v340
  %v476 = vpack.c.b16 %v350, %v341
  %v477 = vpack.c.b16 %v351, %v342
  %v478 = vpack.c.b16 %v352, %v343
  %v479 = vpack.c.b16 %v353, %v344
  %v480 = vpack.c.b16 %v354, %v345
  %v481 = vpack.c.b16 %v355, %v346
  %v482 = vpack.c.b16 %v356, %v347
  %v483 = vpack.c.b16 %v366, %v357
  %v484 = vpack.c.b16 %v367, %v358
  %v485 = vpack.c.b16 %v368, %v359
  %v486 = vpack.c.b16 %v369, %v360
  %v487 = vpack.c.b16 %v370, %v361
  %v488 = vpack.c.b16 %v371, %v362
  %v489 = vpack.c.b16 %v372, %v363
  %v490 = vpack.c.b16 %v373, %v364
  %v491 = vpack.c.b16 %v374, %v365
  %v492 = vpack.c.b16 %v384, %v375
  %v493 = vpack.c.b16 %v385, %v376
  %v494 = vpack.c.b16 %v386, %v377
  %v495 = vpack.c.b16 %v387, %v378
  %v496 = vpack.c.b16 %v388, %v379
  %v497 = vpack.c.b16 %v389, %v380
  %v498 = vpack.c.b16 %v390, %v381
  %v499 = vpack.c.b16 %v391, %v382
  %v500 = vpack.c.b16 %v392, %v383
  %v501 = vpack.c.b16 %v402, %v393
  %v502 = vpack.c.b16 %v403, %v394
  %v503 = vpack.c.b16 %v404, %v395
  %v504 = vpack.c.b16 %v405, %v396
  %v505 = vpack.c.b16 %v406, %v397
  %v506 = vpack.c.b16 %v407, %v398
  %v507 = vpack.c.b16 %v408, %v399
  %v508 = vpack.c.b16 %v409, %v400
  %v509 = vpack.c.b16 %v410, %v401
  %v510 = vpack.c.b16 %v420, %v411
  %v511 = vpack.c.b16 %v421, %v412
  %v512 = vpack.c.b16 %v422, %v413
  %v513 = vpack.c.b16 %v423, %v414
  %v514 = vpack.c.b16 %v424, %v415
  %v515 = vpack.c.b16 %v425, %v416
  %v516 = vpack.c.b16 %v426, %v417
  %v517 = vpack.c.b16 %v427, %v418
  %v518 = vpack.c.b16 %v428, %v419
  %v519 = vpack.c.b16 %v438, %v429
  %v520 = vpack.c.b16 %v439, %v430
  %v521 = vpack.c.b16 %v440, %v431
  %v522 = vpack.c.b16 %v441, %v432
  %v523 = vpack.c.b16 %v442, %v433
  %v524 = vpack.c.b16 %v443, %v434
  %v525 = vpack.c.b16 %v444, %v435
  %v526 = vpack.c.b16 %v445, %v436
  %v527 = vpack.c.b16 %v446, %v437
  %v528 = vpack.c.b16 %v456, %v447
  %v529 = vpack.c.b16 %v457, %v448
  %v530 = vpack.c.b16 %v458, %v449
  %v531 = vpack.c.b16 %v459, %v450
  %v532 = vpack.c.b16 %v460, %v451
  %v533 = vpack.c.b16 %v461, %v452
  %v534 = vpack.c.b16 %v462, %v453
  %v535 = vpack.c.b16 %v463, %v454
  %v536 = vpack.c.b16 %v464, %v455
  %v753 = vunpack.c.l.b16 %v97
  %v754 = vunpack.c.h.b16 %v97
  %v755 = vunpack.c.l.b16 %v98
  %v756 = vunpack.c.h.b16 %v98
  %v757 = vunpack.c.l.b16 %v99
  %v758 = vunpack.c.h.b16 %v99
  %v759 = vunpack.c.l.b16 %v100
  %v760 = vunpack.c.h.b16 %v100
  %v761 = vunpack.c.l.b16 %v101
  %v762 = vunpack.c.h.b16 %v101
  %v763 = vunpack.c.l.b16 %v102
  %v764 = vunpack.c.h.b16 %v102
  %v765 = vunpack.c.l.b16 %v103
  %v766 = vunpack.c.h.b16 %v103
  %v767 = vunpack.c.l.b16 %v104
  %v768 = vunpack.c.h.b16 %v104
  %v769 = vunpack.c.l.b16 %v105
  %v770 = vunpack.c.h.b16 %v105
  %v771 = vunpack.c.l.b16 %v106
  %v772 = vunpack.c.h.b16 %v106
  %v773 = vunpack.c.l.b16 %v107
  %v774 = vunpack.c.h.b16 %v107
  %v775 = vunpack.c.l.b16 %v108
  %v776 = vunpack.c.h.b16 %v108
  %v777 = vunpack.c.l.b16 %v109
  %v778 = vunpack.c.h.b16 %v109
  %v779 = vunpack.c.l.b16 %v110
  %v780 = vunpack.c.h.b16 %v110
  %v781 = vunpack.c.l.b16 %v111
  %v782 = vunpack.c.h.b16 %v111
  %v783 = vunpack.c.l.b16 %v112
  %v784 = vunpack.c.h.b16 %v112
  %v785 = vunpack.c.l.b16 %v113
  %v786 = vunpack.c.h.b16 %v113
  %v787 = vunpack.c.l.b16 %v114
  %v788 = vunpack.c.h.b16 %v114
  %v789 = vunpack.c.l.b16 %v115
  %v790 = vunpack.c.h.b16 %v115
  %v791 = vunpack.c.l.b16 %v116
  %v792 = vunpack.c.h.b16 %v116
  %v793 = vunpack.c.l.b16 %v117
  %v794 = vunpack.c.h.b16 %v117
  %v795 = vunpack.c.l.b16 %v118
  %v796 = vunpack.c.h.b16 %v118
  %v797 = vunpack.c.l.b16 %v119
  %v798 = vunpack.c.h.b16 %v119
  %v799 = vunpack.c.l.b16 %v120
  %v800 = vunpack.c.h.b16 %v120
  %v801 = vunpack.c.l.b16 %v121
  %v802 = vunpack.c.h.b16 %v121
  %v803 = vunpack.c.l.b16 %v122
  %v804 = vunpack.c.h.b16 %v122
  %v805 = vunpack.c.l.b16 %v123
  %v806 = vunpack.c.h.b16 %v123
  %v807 = vunpack.c.l.b16 %v124
  %v808 = vunpack.c.h.b16 %v124
  %v809 = vunpack.c.l.b16 %v125
  %v810 = vunpack.c.h.b16 %v125
  %v811 = vunpack.c.l.b16 %v126
  %v812 = vunpack.c.h.b16 %v126
  %v813 = vunpack.c.l.b16 %v127
  %v814 = vunpack.c.h.b16 %v127
  %v815 = vunpack.c.l.b16 %v128
  %v816 = vunpack.c.h.b16 %v128
  %v817 = vunpack.c.l.b16 %v129
  %v818 = vunpack.c.h.b16 %v129
  %v819 = vunpack.c.l.b16 %v130
  %v820 = vunpack.c.h.b16 %v130
  %v821 = vunpack.c.l.b16 %v131
  %v822 = vunpack.c.h.b16 %v131
  %v823 = vunpack.c.l.b16 %v132
  %v824 = vunpack.c.h.b16 %v132
  %v825 = vunpack.c.l.b16 %v133
  %v826 = vunpack.c.h.b16 %v133
  %v827 = vunpack.c.l.b16 %v134
  %v828 = vunpack.c.h.b16 %v134
  %v829 = vunpack.c.l.b16 %v135
  %v830 = vunpack.c.h.b16 %v135
  %v831 = vunpack.c.l.b16 %v136
  %v832 = vunpack.c.h.b16 %v136
  %v833 = vunpack.c.l.b16 %v137
  %v834 = vunpack.c.h.b16 %v137
  %v835 = vunpack.c.l.b16 %v138
  %v836 = vunpack.c.h.b16 %v138
  %v837 = vunpack.c.l.b16 %v139
  %v838 = vunpack.c.h.b16 %v139
  %v839 = vunpack.c.l.b16 %v140
  %v840 = vunpack.c.h.b16 %v140
  %v841 = vunpack.c.l.b16 %v141
  %v842 = vunpack.c.h.b16 %v141
  %v843 = vunpack.c.l.b16 %v142
  %v844 = vunpack.c.h.b16 %v142
  %v845 = vunpack.c.l.b16 %v143
  %v846 = vunpack.c.h.b16 %v143
  %v847 = vunpack.c.l.b16 %v144
  %v848 = vunpack.c.h.b16 %v144
  %v849 = vunpack.c.l.b16 %v145
  %v850 = vunpack.c.h.b16 %v145
  %v851 = vunpack.c.l.b16 %v146
  %v852 = vunpack.c.h.b16 %v146
  %v853 = vunpack.c.l.b16 %v147
  %v854 = vunpack.c.h.b16 %v147
  %v855 = vunpack.c.l.b16 %v148
  %v856 = vunpack.c.h.b16 %v148
  %v857 = vunpack.c.l.b16 %v149
  %v858 = vunpack.c.h.b16 %v149
  %v859 = vunpack.c.l.b16 %v150
  %v860 = vunpack.c.h.b16 %v150
  %v861 = vunpack.c.l.b16 %v151
  %v862 = vunpack.c.h.b16 %v151
  %v863 = vunpack.c.l.b16 %v152
  %v864 = vunpack.c.h.b16 %v152
  %v865 = vunpack.c.l.b16 %v153
  %v866 = vunpack.c.h.b16 %v153
  %v867 = vunpack.c.l.b16 %v154
  %v868 = vunpack.c.h.b16 %v154
  %v869 = vunpack.c.l.b16 %v155
  %v870 = vunpack.c.h.b16 %v155
  %v871 = vunpack.c.l.b16 %v156
  %v872 = vunpack.c.h.b16 %v156
  %v873 = vunpack.c.l.b16 %v157
  %v874 = vunpack.c.h.b16 %v157
  %v875 = vunpack.c.l.b16 %v158
  %v876 = vunpack.c.h.b16 %v158
  %v877 = vunpack.c.l.b16 %v159
  %v878 = vunpack.c.h.b16 %v159
  %v879 = vunpack.c.l.b16 %v160
  %v880 = vunpack.c.h.b16 %v160
  %v881 = vunpack.c.l.b16 %v161
  %v882 = vunpack.c.h.b16 %v161
  %v883 = vunpack.c.l.b16 %v162
  %v884 = vunpack.c.h.b16 %v162
  %v885 = vunpack.c.l.b16 %v163
  %v886 = vunpack.c.h.b16 %v163
  %v887 = vunpack.c.l.b16 %v164
  %v888 = vunpack.c.h.b16 %v164
  %v889 = vunpack.c.l.b16 %v165
  %v890 = vunpack.c.h.b16 %v165
  %v891 = vunpack.c.l.b16 %v166
  %v892 = vunpack.c.h.b16 %v166
  %v893 = vunpack.c.l.b16 %v167
  %v894 = vunpack.c.h.b16 %v167
  %v895 = vunpack.c.l.b16 %v168
  %v896 = vunpack.c.h.b16 %v168
  %v897 = vunpack.c.l.b16 %v169
  %v898 = vunpack.c.h.b16 %v169
  %v899 = vunpack.c.l.b16 %v170
  %v900 = vunpack.c.h.b16 %v170
  %v901 = vunpack.c.l.b16 %v171
  %v902 = vunpack.c.h.b16 %v171
  %v903 = vunpack.c.l.b16 %v172
  %v904 = vunpack.c.h.b16 %v172
  %v905 = vunpack.c.l.b16 %v173
  %v906 = vunpack.c.h.b16 %v173
  %v907 = vunpack.c.l.b16 %v174
  %v908 = vunpack.c.h.b16 %v174
  %v909 = vunpack.c.l.b16 %v175
  %v910 = vunpack.c.h.b16 %v175
  %v911 = vunpack.c.l.b16 %v176
  %v912 = vunpack.c.h.b16 %v176
  %v913 = vunpack.c.l.b16 %v177
  %v914 = vunpack.c.h.b16 %v177
  %v915 = vunpack.c.l.b16 %v178
  %v916 = vunpack.c.h.b16 %v178
  %v917 = vunpack.c.l.b16 %v179
  %v918 = vunpack.c.h.b16 %v179
  %v919 = vunpack.c.l.b16 %v180
  %v920 = vunpack.c.h.b16 %v180
  %v921 = vunpack.c.l.b16 %v181
  %v922 = vunpack.c.h.b16 %v181
  %v923 = vunpack.c.l.b16 %v182
  %v924 = vunpack.c.h.b16 %v182
  %v925 = vunpack.c.l.b16 %v183
  %v926 = vunpack.c.h.b16 %v183
  %v927 = vunpack.c.l.b16 %v184
  %v928 = vunpack.c.h.b16 %v184
  %v929 = vunpack.c.l.b16 %v185
  %v930 = vunpack.c.h.b16 %v185
  %v931 = vunpack.c.l.b16 %v186
  %v932 = vunpack.c.h.b16 %v186
  %v933 = vunpack.c.l.b16 %v187
  %v934 = vunpack.c.h.b16 %v187
  %v935 = vunpack.c.l.b16 %v188
  %v936 = vunpack.c.h.b16 %v188
  %v937 = vunpack.c.l.b16 %v189
  %v938 = vunpack.c.h.b16 %v189
  %v939 = vunpack.c.l.b16 %v190
  %v940 = vunpack.c.h.b16 %v190
  %v941 = vunpack.c.l.b16 %v191
  %v942 = vunpack.c.h.b16 %v191
  %v943 = vunpack.c.l.b16 %v192
  %v944 = vunpack.c.h.b16 %v192
  %v945 = vunpack.c.l.b16 %v193
  %v946 = vunpack.c.h.b16 %v193
  %v947 = vunpack.c.l.b16 %v194
  %v948 = vunpack.c.h.b16 %v194
  %v949 = vunpack.c.l.b16 %v195
  %v950 = vunpack.c.h.b16 %v195
  %v951 = vunpack.c.l.b16 %v196
  %v952 = vunpack.c.h.b16 %v196
  %v953 = vunpack.c.l.b16 %v197
  %v954 = vunpack.c.h.b16 %v197
  %v955 = vunpack.c.l.b16 %v198
  %v956 = vunpack.c.h.b16 %v198
  %v957 = vunpack.c.l.b16 %v199
  %v958 = vunpack.c.h.b16 %v199
  %v959 = vunpack.c.l.b16 %v200
  %v960 = vunpack.c.h.b16 %v200
  %v961 = vunpack.c.l.b16 %v201
  %v962 = vunpack.c.h.b16 %v201
  %v963 = vunpack.c.l.b16 %v202
  %v964 = vunpack.c.h.b16 %v202
  %v965 = vunpack.c.l.b16 %v203
  %v966 = vunpack.c.h.b16 %v203
  %v967 = vunpack.c.l.b16 %v204
  %v968 = vunpack.c.h.b16 %v204
  %v969 = vunpack.c.l.b16 %v205
  %v970 = vunpack.c.h.b16 %v205
  %v971 = vunpack.c.l.b16 %v206
  %v972 = vunpack.c.h.b16 %v206
  %v973 = vunpack.c.l.b16 %v207
  %v974 = vunpack.c.h.b16 %v207
  %v975 = vunpack.c.l.b16 %v208
  %v976 = vunpack.c.h.b16 %v208
  %v977 = vunpack.c.l.b16 %v209
  %v978 = vunpack.c.h.b16 %v209
  %v979 = vunpack.c.l.b16 %v210
  %v980 = vunpack.c.h.b16 %v210
  %v981 = vunpack.c.l.b16 %v211
  %v982 = vunpack.c.h.b16 %v211
  %v983 = vunpack.c.l.b16 %v212
  %v984 = vunpack.c.h.b16 %v212
  %v985 = vunpack.c.l.b16 %v213
  %v986 = vunpack.c.h.b16 %v213
  %v987 = vunpack.c.l.b16 %v214
  %v988 = vunpack.c.h.b16 %v214
  %v989 = vunpack.c.l.b16 %v215
  %v990 = vunpack.c.h.b16 %v215
  %v991 = vunpack.c.l.b16 %v216
  %v992 = vunpack.c.h.b16 %v216
  %v993 = vunpack.c.l.b16 %v217
  %v994 = vunpack.c.h.b16 %v217
  %v995 = vunpack.c.l.b16 %v218
  %v996 = vunpack.c.h.b16 %v218
  %v997 = vunpack.c.l.b16 %v219
  %v998 = vunpack.c.h.b16 %v219
  %v999 = vunpack.c.l.b16 %v220
  %v1000 = vunpack.c.h.b16 %v220
  %v1001 = vunpack.c.l.b16 %v221
  %v1002 = vunpack.c.h.b16 %v221
  %v1003 = vunpack.c.l.b16 %v222
  %v1004 = vunpack.c.h.b16 %v222
  %v1005 = vunpack.c.l.b16 %v223
  %v1006 = vunpack.c.h.b16 %v223
  %v1007 = vunpack.c.l.b16 %v224
  %v1008 = vunpack.c.h.b16 %v224
  %v1009 = vunpack.c.l.b16 %v225
  %v1010 = vunpack.c.h.b16 %v225
  %v1011 = vunpack.c.l.b16 %v226
  %v1012 = vunpack.c.h.b16 %v226
  %v1013 = vunpack.c.l.b16 %v227
  %v1014 = vunpack.c.h.b16 %v227
  %v1015 = vunpack.c.l.b16 %v228
  %v1016 = vunpack.c.h.b16 %v228
  %v1017 = vunpack.c.l.b16 %v229
  %v1018 = vunpack.c.h.b16 %v229
  %v1019 = vunpack.c.l.b16 %v230
  %v1020 = vunpack.c.h.b16 %v230
  %v1021 = vunpack.c.l.b16 %v231
  %v1022 = vunpack.c.h.b16 %v231
  %v1023 = vunpack.c.l.b16 %v232
  %v1024 = vunpack.c.h.b16 %v232
  %v1025 = vunpack.c.l.b16 %v233
  %v1026 = vunpack.c.h.b16 %v233
  %v1027 = vunpack.c.l.b16 %v234
  %v1028 = vunpack.c.h.b16 %v234
  %v1029 = vunpack.c.l.b16 %v235
  %v1030 = vunpack.c.h.b16 %v235
  %v1031 = vunpack.c.l.b16 %v236
  %v1032 = vunpack.c.h.b16 %v236
  %v1033 = vunpack.c.l.b16 %v237
  %v1034 = vunpack.c.h.b16 %v237
  %v1035 = vunpack.c.l.b16 %v238
  %v1036 = vunpack.c.h.b16 %v238
  %v1037 = vunpack.c.l.b16 %v239
  %v1038 = vunpack.c.h.b16 %v239
  %v1039 = vunpack.c.l.b16 %v240
  %v1040 = vunpack.c.h.b16 %v240
  %v1041 = vpack.c.b16 %v755, %v753
  %v1042 = vpack.c.b16 %v756, %v754
  %v1043 = vpack.c.b16 %v759, %v757
  %v1044 = vpack.c.b16 %v760, %v758
  %v1045 = vpack.c.b16 %v763, %v761
  %v1046 = vpack.c.b16 %v764, %v762
  %v1047 = vpack.c.b16 %v767, %v765
  %v1048 = vpack.c.b16 %v768, %v766
  %v1049 = vpack.c.b16 %v771, %v769
  %v1050 = vpack.c.b16 %v772, %v770
  %v1051 = vpack.c.b16 %v775, %v773
  %v1052 = vpack.c.b16 %v776, %v774
  %v1053 = vpack.c.b16 %v779, %v777
  %v1054 = vpack.c.b16 %v780, %v778
  %v1055 = vpack.c.b16 %v783, %v781
  %v1056 = vpack.c.b16 %v784, %v782
  %v1057 = vpack.c.b16 %v787, %v785
  %v1058 = vpack.c.b16 %v788, %v786
  %v1059 = vpack.c.b16 %v791, %v789
  %v1060 = vpack.c.b16 %v792, %v790
  %v1061 = vpack.c.b16 %v795, %v793
  %v1062 = vpack.c.b16 %v796, %v794
  %v1063 = vpack.c.b16 %v799, %v797
  %v1064 = vpack.c.b16 %v800, %v798
  %v1065 = vpack.c.b16 %v803, %v801
  %v1066 = vpack.c.b16 %v804, %v802
  %v1067 = vpack.c.b16 %v807, %v805
  %v1068 = vpack.c.b16 %v808, %v806
  %v1069 = vpack.c.b16 %v811, %v809
  %v1070 = vpack.c.b16 %v812, %v810
  %v1071 = vpack.c.b16 %v815, %v813
  %v1072 = vpack.c.b16 %v816, %v814
  %v1073 = vpack.c.b16 %v819, %v817
  %v1074 = vpack.c.b16 %v820, %v818
  %v1075 = vpack.c.b16 %v823, %v821
  %v1076 = vpack.c.b16 %v824, %v822
  %v1077 = vpack.c.b16 %v827, %v825
  %v1078 = vpack.c.b16 %v828, %v826
  %v1079 = vpack.c.b16 %v831, %v829
  %v1080 = vpack.c.b16 %v832, %v830
  %v1081 = vpack.c.b16 %v835, %v833
  %v1082 = vpack.c.b16 %v836, %v834
  %v1083 = vpack.c.b16 %v839, %v837
  %v1084 = vpack.c.b16 %v840, %v838
  %v1085 = vpack.c.b16 %v843, %v841
  %v1086 = vpack.c.b16 %v844, %v842
  %v1087 = vpack.c.b16 %v847, %v845
  %v1088 = vpack.c.b16 %v848, %v846
  %v1089 = vpack.c.b16 %v851, %v849
  %v1090 = vpack.c.b16 %v852, %v850
  %v1091 = vpack.c.b16 %v855, %v853
  %v1092 = vpack.c.b16 %v856, %v854
  %v1093 = vpack.c.b16 %v859, %v857
  %v1094 = vpack.c.b16 %v860, %v858
  %v1095 = vpack.c.b16 %v863, %v861
  %v1096 = vpack.c.b16 %v864, %v862
  %v1097 = vpack.c.b16 %v867, %v865
  %v1098 = vpack.c.b16 %v868, %v866
  %v1099 = vpack.c.b16 %v871, %v869
  %v1100 = vpack.c.b16 %v872, %v870
  %v1101 = vpack.c.b16 %v875, %v873
  %v1102 = vpack.c.b16 %v876, %v874
  %v1103 = vpack.c.b16 %v879, %v877
  %v1104 = vpack.c.b16 %v880, %v878
  %v1105 = vpack.c.b16 %v883, %v881
  %v1106 = vpack.c.b16 %v884, %v882
  %v1107 = vpack.c.b16 %v887, %v885
  %v1108 = vpack.c.b16 %v888, %v886
  %v1109 = vpack.c.b16 %v891, %v889
  %v1110 = vpack.c.b16 %v892, %v890
  %v1111 = vpack.c.b16 %v895, %v893
  %v1112 = vpack.c.b16 %v896, %v894
  %v1113 = vpack.c.b16 %v899, %v897
  %v1114 = vpack.c.b16 %v900, %v898
  %v1115 = vpack.c.b16 %v903, %v901
  %v1116 = vpack.c.b16 %v904, %v902
  %v1117 = vpack.c.b16 %v907, %v905
  %v1118 = vpack.c.b16 %v908, %v906
  %v1119 = vpack.c.b16 %v911, %v909
  %v1120 = vpack.c.b16 %v912, %v910
  %v1121 = vpack.c.b16 %v915, %v913
  %v1122 = vpack.c.b16 %v916, %v914
  %v1123 = vpack.c.b16 %v919, %v917
  %v1124 = vpack.c.b16 %v920, %v918
  %v1125 = vpack.c.b16 %v923, %v921
  %v1126 = vpack.c.b16 %v924, %v922
  %v1127 = vpack.c.b16 %v927, %v925
  %v1128 = vpack.c.b16 %v928, %v926
  %v1129 = vpack.c.b16 %v931, %v929
  %v1130 = vpack.c.b16 %v932, %v930
  %v1131 = vpack.c.b16 %v935, %v933
  %v1132 = vpack.c.b16 %v936, %v934
  %v1133 = vpack.c.b16 %v939, %v937
  %v1134 = vpack.c.b16 %v940, %v938
  %v1135 = vpack.c.b16 %v943, %v941
  %v1136 = vpack.c.b16 %v944, %v942
  %v1137 = vpack.c.b16 %v947, %v945
  %v1138 = vpack.c.b16 %v948, %v946
  %v1139 = vpack.c.b16 %v951, %v949
  %v1140 = vpack.c.b16 %v952, %v950
  %v1141 = vpack.c.b16 %v955, %v953
  %v1142 = vpack.c.b16 %v956, %v954
  %v1143 = vpack.c.b16 %v959, %v957
  %v1144 = vpack.c.b16 %v960, %v958
  %v1145 = vpack.c.b16 %v963, %v961
  %v1146 = vpack.c.b16 %v964, %v962
  %v1147 = vpack.c.b16 %v967, %v965
  %v1148 = vpack.c.b16 %v968, %v966
  %v1149 = vpack.c.b16 %v971, %v969
  %v1150 = vpack.c.b16 %v972, %v970
  %v1151 = vpack.c.b16 %v975, %v973
  %v1152 = vpack.c.b16 %v976, %v974
  %v1153 = vpack.c.b16 %v979, %v977
  %v1154 = vpack.c.b16 %v980, %v978
  %v1155 = vpack.c.b16 %v983, %v981
  %v1156 = vpack.c.b16 %v984, %v982
  %v1157 = vpack.c.b16 %v987, %v985
  %v1158 = vpack.c.b16 %v988, %v986
  %v1159 = vpack.c.b16 %v991, %v989
  %v1160 = vpack.c.b16 %v992, %v990
  %v1161 = vpack.c.b16 %v995, %v993
  %v1162 = vpack.c.b16 %v996, %v994
  %v1163 = vpack.c.b16 %v999, %v997
  %v1164 = vpack.c.b16 %v1000, %v998
  %v1165 = vpack.c.b16 %v1003, %v1001
  %v1166 = vpack.c.b16 %v1004, %v1002
  %v1167 = vpack.c.b16 %v1007, %v1005
  %v1168 = vpack.c.b16 %v1008, %v1006
  %v1169 = vpack.c.b16 %v1011, %v1009
  %v1170 = vpack.c.b16 %v1012, %v1010
  %v1171 = vpack.c.b16 %v1015, %v1013
  %v1172 = vpack.c.b16 %v1016, %v1014
  %v1173 = vpack.c.b16 %v1019, %v1017
  %v1174 = vpack.c.b16 %v1020, %v1018
  %v1175 = vpack.c.b16 %v1023, %v1021
  %v1176 = vpack.c.b16 %v1024, %v1022
  %v1177 = vpack.c.b16 %v1027, %v1025
  %v1178 = vpack.c.b16 %v1028, %v1026
  %v1179 = vpack.c.b16 %v1031, %v1029
  %v1180 = vpack.c.b16 %v1032, %v1030
  %v1181 = vpack.c.b16 %v1035, %v1033
  %v1182 = vpack.c.b16 %v1036, %v1034
  %v1183 = vpack.c.b16 %v1039, %v1037
  %v1184 = vpack.c.b16 %v1040, %v1038
  %1329 = vmatpush.bf16.msra.mxu0 %v1055
  %1330 = vmatpush.bf16.msra.mxu0 %v1053
  %1331 = vmatpush.bf16.msra.mxu0 %v1051
  %1332 = vmatpush.bf16.msra.mxu0 %v1049
  %1333 = vmatpush.bf16.msra.mxu0 %v1047
  %1334 = vmatpush.bf16.msra.mxu0 %v1045
  %1335 = vmatpush.bf16.msra.mxu0 %v1043
  %1336 = vmatpush.bf16.msra.mxu0 %v1041
  %1337 = vmatmul.bf16.gmra.mxu0 %v465
  %v1338 = vpop.f32.mrf.mxu0
  %v1339 = vadd.f32 0.0, %v1338
  %v1340 = vpop.f32.mrf.mxu0
  %v1341 = vadd.f32 0.0, %v1340
  %1342 = vmatmul.bf16.gmra.mxu0 %v474
  %v1343 = vpop.f32.mrf.mxu0
  %v1344 = vadd.f32 0.0, %v1343
  %v1345 = vpop.f32.mrf.mxu0
  %v1346 = vadd.f32 0.0, %v1345
  %1347 = vmatmul.bf16.gmra.mxu0 %v483
  %v1348 = vpop.f32.mrf.mxu0
  %v1349 = vadd.f32 0.0, %v1348
  %v1350 = vpop.f32.mrf.mxu0
  %v1351 = vadd.f32 0.0, %v1350
  %1352 = vmatmul.bf16.gmra.mxu0 %v492
  %v1353 = vpop.f32.mrf.mxu0
  %v1354 = vadd.f32 0.0, %v1353
  %v1355 = vpop.f32.mrf.mxu0
  %v1356 = vadd.f32 0.0, %v1355
  %1357 = vmatmul.bf16.gmra.mxu0 %v501
  %v1358 = vpop.f32.mrf.mxu0
  %v1359 = vadd.f32 0.0, %v1358
  %v1360 = vpop.f32.mrf.mxu0
  %v1361 = vadd.f32 0.0, %v1360
  %1362 = vmatmul.bf16.gmra.mxu0 %v510
  %v1363 = vpop.f32.mrf.mxu0
  %v1364 = vadd.f32 0.0, %v1363
  %v1365 = vpop.f32.mrf.mxu0
  %v1366 = vadd.f32 0.0, %v1365
  %1367 = vmatmul.bf16.gmra.mxu0 %v519
  %v1368 = vpop.f32.mrf.mxu0
  %v1369 = vadd.f32 0.0, %v1368
  %v1370 = vpop.f32.mrf.mxu0
  %v1371 = vadd.f32 0.0, %v1370
  %1372 = vmatmul.bf16.gmra.mxu0 %v528
  %v1373 = vpop.f32.mrf.mxu0
  %v1374 = vadd.f32 0.0, %v1373
  %v1375 = vpop.f32.mrf.mxu0
  %v1376 = vadd.f32 0.0, %v1375
  %1377 = vdwg.mxu0
  %1378 = vmatpush.bf16.msra.mxu0 %v1071
  %1379 = vmatpush.bf16.msra.mxu0 %v1069
  %1380 = vmatpush.bf16.msra.mxu0 %v1067
  %1381 = vmatpush.bf16.msra.mxu0 %v1065
  %1382 = vmatpush.bf16.msra.mxu0 %v1063
  %1383 = vmatpush.bf16.msra.mxu0 %v1061
  %1384 = vmatpush.bf16.msra.mxu0 %v1059
  %1385 = vmatpush.bf16.msra.mxu0 %v1057
  %1386 = vmatmul.bf16.gmra.mxu0 %v466
  %v1387 = vpop.f32.mrf.mxu0
  %v1388 = vadd.f32 %v1339, %v1387
  %v1389 = vpop.f32.mrf.mxu0
  %v1390 = vadd.f32 %v1341, %v1389
  %1391 = vmatmul.bf16.gmra.mxu0 %v475
  %v1392 = vpop.f32.mrf.mxu0
  %v1393 = vadd.f32 %v1344, %v1392
  %v1394 = vpop.f32.mrf.mxu0
  %v1395 = vadd.f32 %v1346, %v1394
  %1396 = vmatmul.bf16.gmra.mxu0 %v484
  %v1397 = vpop.f32.mrf.mxu0
  %v1398 = vadd.f32 %v1349, %v1397
  %v1399 = vpop.f32.mrf.mxu0
  %v1400 = vadd.f32 %v1351, %v1399
  %1401 = vmatmul.bf16.gmra.mxu0 %v493
  %v1402 = vpop.f32.mrf.mxu0
  %v1403 = vadd.f32 %v1354, %v1402
  %v1404 = vpop.f32.mrf.mxu0
  %v1405 = vadd.f32 %v1356, %v1404
  %1406 = vmatmul.bf16.gmra.mxu0 %v502
  %v1407 = vpop.f32.mrf.mxu0
  %v1408 = vadd.f32 %v1359, %v1407
  %v1409 = vpop.f32.mrf.mxu0
  %v1410 = vadd.f32 %v1361, %v1409
  %1411 = vmatmul.bf16.gmra.mxu0 %v511
  %v1412 = vpop.f32.mrf.mxu0
  %v1413 = vadd.f32 %v1364, %v1412
  %v1414 = vpop.f32.mrf.mxu0
  %v1415 = vadd.f32 %v1366, %v1414
  %1416 = vmatmul.bf16.gmra.mxu0 %v520
  %v1417 = vpop.f32.mrf.mxu0
  %v1418 = vadd.f32 %v1369, %v1417
  %v1419 = vpop.f32.mrf.mxu0
  %v1420 = vadd.f32 %v1371, %v1419
  %1421 = vmatmul.bf16.gmra.mxu0 %v529
  %v1422 = vpop.f32.mrf.mxu0
  %v1423 = vadd.f32 %v1374, %v1422
  %v1424 = vpop.f32.mrf.mxu0
  %v1425 = vadd.f32 %v1376, %v1424
  %1426 = vdwg.mxu0
  %1427 = vmatpush.bf16.msra.mxu0 %v1087
  %1428 = vmatpush.bf16.msra.mxu0 %v1085
  %1429 = vmatpush.bf16.msra.mxu0 %v1083
  %1430 = vmatpush.bf16.msra.mxu0 %v1081
  %1431 = vmatpush.bf16.msra.mxu0 %v1079
  %1432 = vmatpush.bf16.msra.mxu0 %v1077
  %1433 = vmatpush.bf16.msra.mxu0 %v1075
  %1434 = vmatpush.bf16.msra.mxu0 %v1073
  %1435 = vmatmul.bf16.gmra.mxu0 %v467
  %v1436 = vpop.f32.mrf.mxu0
  %v1437 = vadd.f32 %v1388, %v1436
  %v1438 = vpop.f32.mrf.mxu0
  %v1439 = vadd.f32 %v1390, %v1438
  %1440 = vmatmul.bf16.gmra.mxu0 %v476
  %v1441 = vpop.f32.mrf.mxu0
  %v1442 = vadd.f32 %v1393, %v1441
  %v1443 = vpop.f32.mrf.mxu0
  %v1444 = vadd.f32 %v1395, %v1443
  %1445 = vmatmul.bf16.gmra.mxu0 %v485
  %v1446 = vpop.f32.mrf.mxu0
  %v1447 = vadd.f32 %v1398, %v1446
  %v1448 = vpop.f32.mrf.mxu0
  %v1449 = vadd.f32 %v1400, %v1448
  %1450 = vmatmul.bf16.gmra.mxu0 %v494
  %v1451 = vpop.f32.mrf.mxu0
  %v1452 = vadd.f32 %v1403, %v1451
  %v1453 = vpop.f32.mrf.mxu0
  %v1454 = vadd.f32 %v1405, %v1453
  %1455 = vmatmul.bf16.gmra.mxu0 %v503
  %v1456 = vpop.f32.mrf.mxu0
  %v1457 = vadd.f32 %v1408, %v1456
  %v1458 = vpop.f32.mrf.mxu0
  %v1459 = vadd.f32 %v1410, %v1458
  %1460 = vmatmul.bf16.gmra.mxu0 %v512
  %v1461 = vpop.f32.mrf.mxu0
  %v1462 = vadd.f32 %v1413, %v1461
  %v1463 = vpop.f32.mrf.mxu0
  %v1464 = vadd.f32 %v1415, %v1463
  %1465 = vmatmul.bf16.gmra.mxu0 %v521
  %v1466 = vpop.f32.mrf.mxu0
  %v1467 = vadd.f32 %v1418, %v1466
  %v1468 = vpop.f32.mrf.mxu0
  %v1469 = vadd.f32 %v1420, %v1468
  %1470 = vmatmul.bf16.gmra.mxu0 %v530
  %v1471 = vpop.f32.mrf.mxu0
  %v1472 = vadd.f32 %v1423, %v1471
  %v1473 = vpop.f32.mrf.mxu0
  %v1474 = vadd.f32 %v1425, %v1473
  %1475 = vdwg.mxu0
  %1476 = vmatpush.bf16.msra.mxu0 %v1103
  %1477 = vmatpush.bf16.msra.mxu0 %v1101
  %1478 = vmatpush.bf16.msra.mxu0 %v1099
  %1479 = vmatpush.bf16.msra.mxu0 %v1097
  %1480 = vmatpush.bf16.msra.mxu0 %v1095
  %1481 = vmatpush.bf16.msra.mxu0 %v1093
  %1482 = vmatpush.bf16.msra.mxu0 %v1091
  %1483 = vmatpush.bf16.msra.mxu0 %v1089
  %1484 = vmatmul.bf16.gmra.mxu0 %v468
  %v1485 = vpop.f32.mrf.mxu0
  %v1486 = vadd.f32 %v1437, %v1485
  %v1487 = vpop.f32.mrf.mxu0
  %v1488 = vadd.f32 %v1439, %v1487
  %1489 = vmatmul.bf16.gmra.mxu0 %v477
  %v1490 = vpop.f32.mrf.mxu0
  %v1491 = vadd.f32 %v1442, %v1490
  %v1492 = vpop.f32.mrf.mxu0
  %v1493 = vadd.f32 %v1444, %v1492
  %1494 = vmatmul.bf16.gmra.mxu0 %v486
  %v1495 = vpop.f32.mrf.mxu0
  %v1496 = vadd.f32 %v1447, %v1495
  %v1497 = vpop.f32.mrf.mxu0
  %v1498 = vadd.f32 %v1449, %v1497
  %1499 = vmatmul.bf16.gmra.mxu0 %v495
  %v1500 = vpop.f32.mrf.mxu0
  %v1501 = vadd.f32 %v1452, %v1500
  %v1502 = vpop.f32.mrf.mxu0
  %v1503 = vadd.f32 %v1454, %v1502
  %1504 = vmatmul.bf16.gmra.mxu0 %v504
  %v1505 = vpop.f32.mrf.mxu0
  %v1506 = vadd.f32 %v1457, %v1505
  %v1507 = vpop.f32.mrf.mxu0
  %v1508 = vadd.f32 %v1459, %v1507
  %1509 = vmatmul.bf16.gmra.mxu0 %v513
  %v1510 = vpop.f32.mrf.mxu0
  %v1511 = vadd.f32 %v1462, %v1510
  %v1512 = vpop.f32.mrf.mxu0
  %v1513 = vadd.f32 %v1464, %v1512
  %1514 = vmatmul.bf16.gmra.mxu0 %v522
  %v1515 = vpop.f32.mrf.mxu0
  %v1516 = vadd.f32 %v1467, %v1515
  %v1517 = vpop.f32.mrf.mxu0
  %v1518 = vadd.f32 %v1469, %v1517
  %1519 = vmatmul.bf16.gmra.mxu0 %v531
  %v1520 = vpop.f32.mrf.mxu0
  %v1521 = vadd.f32 %v1472, %v1520
  %v1522 = vpop.f32.mrf.mxu0
  %v1523 = vadd.f32 %v1474, %v1522
  %1524 = vdwg.mxu0
  %1525 = vmatpush.bf16.msra.mxu0 %v1119
  %1526 = vmatpush.bf16.msra.mxu0 %v1117
  %1527 = vmatpush.bf16.msra.mxu0 %v1115
  %1528 = vmatpush.bf16.msra.mxu0 %v1113
  %1529 = vmatpush.bf16.msra.mxu0 %v1111
  %1530 = vmatpush.bf16.msra.mxu0 %v1109
  %1531 = vmatpush.bf16.msra.mxu0 %v1107
  %1532 = vmatpush.bf16.msra.mxu0 %v1105
  %1533 = vmatmul.bf16.gmra.mxu0 %v469
  %v1534 = vpop.f32.mrf.mxu0
  %v1535 = vadd.f32 %v1486, %v1534
  %v1536 = vpop.f32.mrf.mxu0
  %v1537 = vadd.f32 %v1488, %v1536
  %1538 = vmatmul.bf16.gmra.mxu0 %v478
  %v1539 = vpop.f32.mrf.mxu0
  %v1540 = vadd.f32 %v1491, %v1539
  %v1541 = vpop.f32.mrf.mxu0
  %v1542 = vadd.f32 %v1493, %v1541
  %1543 = vmatmul.bf16.gmra.mxu0 %v487
  %v1544 = vpop.f32.mrf.mxu0
  %v1545 = vadd.f32 %v1496, %v1544
  %v1546 = vpop.f32.mrf.mxu0
  %v1547 = vadd.f32 %v1498, %v1546
  %1548 = vmatmul.bf16.gmra.mxu0 %v496
  %v1549 = vpop.f32.mrf.mxu0
  %v1550 = vadd.f32 %v1501, %v1549
  %v1551 = vpop.f32.mrf.mxu0
  %v1552 = vadd.f32 %v1503, %v1551
  %1553 = vmatmul.bf16.gmra.mxu0 %v505
  %v1554 = vpop.f32.mrf.mxu0
  %v1555 = vadd.f32 %v1506, %v1554
  %v1556 = vpop.f32.mrf.mxu0
  %v1557 = vadd.f32 %v1508, %v1556
  %1558 = vmatmul.bf16.gmra.mxu0 %v514
  %v1559 = vpop.f32.mrf.mxu0
  %v1560 = vadd.f32 %v1511, %v1559
  %v1561 = vpop.f32.mrf.mxu0
  %v1562 = vadd.f32 %v1513, %v1561
  %1563 = vmatmul.bf16.gmra.mxu0 %v523
  %v1564 = vpop.f32.mrf.mxu0
  %v1565 = vadd.f32 %v1516, %v1564
  %v1566 = vpop.f32.mrf.mxu0
  %v1567 = vadd.f32 %v1518, %v1566
  %1568 = vmatmul.bf16.gmra.mxu0 %v532
  %v1569 = vpop.f32.mrf.mxu0
  %v1570 = vadd.f32 %v1521, %v1569
  %v1571 = vpop.f32.mrf.mxu0
  %v1572 = vadd.f32 %v1523, %v1571
  %1573 = vdwg.mxu0
  %1574 = vmatpush.bf16.msra.mxu0 %v1135
  %1575 = vmatpush.bf16.msra.mxu0 %v1133
  %1576 = vmatpush.bf16.msra.mxu0 %v1131
  %1577 = vmatpush.bf16.msra.mxu0 %v1129
  %1578 = vmatpush.bf16.msra.mxu0 %v1127
  %1579 = vmatpush.bf16.msra.mxu0 %v1125
  %1580 = vmatpush.bf16.msra.mxu0 %v1123
  %1581 = vmatpush.bf16.msra.mxu0 %v1121
  %1582 = vmatmul.bf16.gmra.mxu0 %v470
  %v1583 = vpop.f32.mrf.mxu0
  %v1584 = vadd.f32 %v1535, %v1583
  %v1585 = vpop.f32.mrf.mxu0
  %v1586 = vadd.f32 %v1537, %v1585
  %1587 = vmatmul.bf16.gmra.mxu0 %v479
  %v1588 = vpop.f32.mrf.mxu0
  %v1589 = vadd.f32 %v1540, %v1588
  %v1590 = vpop.f32.mrf.mxu0
  %v1591 = vadd.f32 %v1542, %v1590
  %1592 = vmatmul.bf16.gmra.mxu0 %v488
  %v1593 = vpop.f32.mrf.mxu0
  %v1594 = vadd.f32 %v1545, %v1593
  %v1595 = vpop.f32.mrf.mxu0
  %v1596 = vadd.f32 %v1547, %v1595
  %1597 = vmatmul.bf16.gmra.mxu0 %v497
  %v1598 = vpop.f32.mrf.mxu0
  %v1599 = vadd.f32 %v1550, %v1598
  %v1600 = vpop.f32.mrf.mxu0
  %v1601 = vadd.f32 %v1552, %v1600
  %1602 = vmatmul.bf16.gmra.mxu0 %v506
  %v1603 = vpop.f32.mrf.mxu0
  %v1604 = vadd.f32 %v1555, %v1603
  %v1605 = vpop.f32.mrf.mxu0
  %v1606 = vadd.f32 %v1557, %v1605
  %1607 = vmatmul.bf16.gmra.mxu0 %v515
  %v1608 = vpop.f32.mrf.mxu0
  %v1609 = vadd.f32 %v1560, %v1608
  %v1610 = vpop.f32.mrf.mxu0
  %v1611 = vadd.f32 %v1562, %v1610
  %1612 = vmatmul.bf16.gmra.mxu0 %v524
  %v1613 = vpop.f32.mrf.mxu0
  %v1614 = vadd.f32 %v1565, %v1613
  %v1615 = vpop.f32.mrf.mxu0
  %v1616 = vadd.f32 %v1567, %v1615
  %1617 = vmatmul.bf16.gmra.mxu0 %v533
  %v1618 = vpop.f32.mrf.mxu0
  %v1619 = vadd.f32 %v1570, %v1618
  %v1620 = vpop.f32.mrf.mxu0
  %v1621 = vadd.f32 %v1572, %v1620
  %1622 = vdwg.mxu0
  %1623 = vmatpush.bf16.msra.mxu0 %v1151
  %1624 = vmatpush.bf16.msra.mxu0 %v1149
  %1625 = vmatpush.bf16.msra.mxu0 %v1147
  %1626 = vmatpush.bf16.msra.mxu0 %v1145
  %1627 = vmatpush.bf16.msra.mxu0 %v1143
  %1628 = vmatpush.bf16.msra.mxu0 %v1141
  %1629 = vmatpush.bf16.msra.mxu0 %v1139
  %1630 = vmatpush.bf16.msra.mxu0 %v1137
  %1631 = vmatmul.bf16.gmra.mxu0 %v471
  %v1632 = vpop.f32.mrf.mxu0
  %v1633 = vadd.f32 %v1584, %v1632
  %v1634 = vpop.f32.mrf.mxu0
  %v1635 = vadd.f32 %v1586, %v1634
  %1636 = vmatmul.bf16.gmra.mxu0 %v480
  %v1637 = vpop.f32.mrf.mxu0
  %v1638 = vadd.f32 %v1589, %v1637
  %v1639 = vpop.f32.mrf.mxu0
  %v1640 = vadd.f32 %v1591, %v1639
  %1641 = vmatmul.bf16.gmra.mxu0 %v489
  %v1642 = vpop.f32.mrf.mxu0
  %v1643 = vadd.f32 %v1594, %v1642
  %v1644 = vpop.f32.mrf.mxu0
  %v1645 = vadd.f32 %v1596, %v1644
  %1646 = vmatmul.bf16.gmra.mxu0 %v498
  %v1647 = vpop.f32.mrf.mxu0
  %v1648 = vadd.f32 %v1599, %v1647
  %v1649 = vpop.f32.mrf.mxu0
  %v1650 = vadd.f32 %v1601, %v1649
  %1651 = vmatmul.bf16.gmra.mxu0 %v507
  %v1652 = vpop.f32.mrf.mxu0
  %v1653 = vadd.f32 %v1604, %v1652
  %v1654 = vpop.f32.mrf.mxu0
  %v1655 = vadd.f32 %v1606, %v1654
  %1656 = vmatmul.bf16.gmra.mxu0 %v516
  %v1657 = vpop.f32.mrf.mxu0
  %v1658 = vadd.f32 %v1609, %v1657
  %v1659 = vpop.f32.mrf.mxu0
  %v1660 = vadd.f32 %v1611, %v1659
  %1661 = vmatmul.bf16.gmra.mxu0 %v525
  %v1662 = vpop.f32.mrf.mxu0
  %v1663 = vadd.f32 %v1614, %v1662
  %v1664 = vpop.f32.mrf.mxu0
  %v1665 = vadd.f32 %v1616, %v1664
  %1666 = vmatmul.bf16.gmra.mxu0 %v534
  %v1667 = vpop.f32.mrf.mxu0
  %v1668 = vadd.f32 %v1619, %v1667
  %v1669 = vpop.f32.mrf.mxu0
  %v1670 = vadd.f32 %v1621, %v1669
  %1671 = vdwg.mxu0
  %1672 = vmatpush.bf16.msra.mxu0 %v1167
  %1673 = vmatpush.bf16.msra.mxu0 %v1165
  %1674 = vmatpush.bf16.msra.mxu0 %v1163
  %1675 = vmatpush.bf16.msra.mxu0 %v1161
  %1676 = vmatpush.bf16.msra.mxu0 %v1159
  %1677 = vmatpush.bf16.msra.mxu0 %v1157
  %1678 = vmatpush.bf16.msra.mxu0 %v1155
  %1679 = vmatpush.bf16.msra.mxu0 %v1153
  %1680 = vmatmul.bf16.gmra.mxu0 %v472
  %v1681 = vpop.f32.mrf.mxu0
  %v1682 = vadd.f32 %v1633, %v1681
  %v1683 = vpop.f32.mrf.mxu0
  %v1684 = vadd.f32 %v1635, %v1683
  %1685 = vmatmul.bf16.gmra.mxu0 %v481
  %v1686 = vpop.f32.mrf.mxu0
  %v1687 = vadd.f32 %v1638, %v1686
  %v1688 = vpop.f32.mrf.mxu0
  %v1689 = vadd.f32 %v1640, %v1688
  %1690 = vmatmul.bf16.gmra.mxu0 %v490
  %v1691 = vpop.f32.mrf.mxu0
  %v1692 = vadd.f32 %v1643, %v1691
  %v1693 = vpop.f32.mrf.mxu0
  %v1694 = vadd.f32 %v1645, %v1693
  %1695 = vmatmul.bf16.gmra.mxu0 %v499
  %v1696 = vpop.f32.mrf.mxu0
  %v1697 = vadd.f32 %v1648, %v1696
  %v1698 = vpop.f32.mrf.mxu0
  %v1699 = vadd.f32 %v1650, %v1698
  %1700 = vmatmul.bf16.gmra.mxu0 %v508
  %v1701 = vpop.f32.mrf.mxu0
  %v1702 = vadd.f32 %v1653, %v1701
  %v1703 = vpop.f32.mrf.mxu0
  %v1704 = vadd.f32 %v1655, %v1703
  %1705 = vmatmul.bf16.gmra.mxu0 %v517
  %v1706 = vpop.f32.mrf.mxu0
  %v1707 = vadd.f32 %v1658, %v1706
  %v1708 = vpop.f32.mrf.mxu0
  %v1709 = vadd.f32 %v1660, %v1708
  %1710 = vmatmul.bf16.gmra.mxu0 %v526
  %v1711 = vpop.f32.mrf.mxu0
  %v1712 = vadd.f32 %v1663, %v1711
  %v1713 = vpop.f32.mrf.mxu0
  %v1714 = vadd.f32 %v1665, %v1713
  %1715 = vmatmul.bf16.gmra.mxu0 %v535
  %v1716 = vpop.f32.mrf.mxu0
  %v1717 = vadd.f32 %v1668, %v1716
  %v1718 = vpop.f32.mrf.mxu0
  %v1719 = vadd.f32 %v1670, %v1718
  %1720 = vdwg.mxu0
  %1721 = vmatpush.bf16.msra.mxu0 %v1183
  %1722 = vmatpush.bf16.msra.mxu0 %v1181
  %1723 = vmatpush.bf16.msra.mxu0 %v1179
  %1724 = vmatpush.bf16.msra.mxu0 %v1177
  %1725 = vmatpush.bf16.msra.mxu0 %v1175
  %1726 = vmatpush.bf16.msra.mxu0 %v1173
  %1727 = vmatpush.bf16.msra.mxu0 %v1171
  %1728 = vmatpush.bf16.msra.mxu0 %v1169
  %1729 = vmatmul.bf16.gmra.mxu0 %v473
  %v1730 = vpop.f32.mrf.mxu0
  %v1731 = vadd.f32 %v1682, %v1730
  %v1732 = vpop.f32.mrf.mxu0
  %v1733 = vadd.f32 %v1684, %v1732
  %1734 = vmatmul.bf16.gmra.mxu0 %v482
  %v1735 = vpop.f32.mrf.mxu0
  %v1736 = vadd.f32 %v1687, %v1735
  %v1737 = vpop.f32.mrf.mxu0
  %v1738 = vadd.f32 %v1689, %v1737
  %1739 = vmatmul.bf16.gmra.mxu0 %v491
  %v1740 = vpop.f32.mrf.mxu0
  %v1741 = vadd.f32 %v1692, %v1740
  %v1742 = vpop.f32.mrf.mxu0
  %v1743 = vadd.f32 %v1694, %v1742
  %1744 = vmatmul.bf16.gmra.mxu0 %v500
  %v1745 = vpop.f32.mrf.mxu0
  %v1746 = vadd.f32 %v1697, %v1745
  %v1747 = vpop.f32.mrf.mxu0
  %v1748 = vadd.f32 %v1699, %v1747
  %1749 = vmatmul.bf16.gmra.mxu0 %v509
  %v1750 = vpop.f32.mrf.mxu0
  %v1751 = vadd.f32 %v1702, %v1750
  %v1752 = vpop.f32.mrf.mxu0
  %v1753 = vadd.f32 %v1704, %v1752
  %1754 = vmatmul.bf16.gmra.mxu0 %v518
  %v1755 = vpop.f32.mrf.mxu0
  %v1756 = vadd.f32 %v1707, %v1755
  %v1757 = vpop.f32.mrf.mxu0
  %v1758 = vadd.f32 %v1709, %v1757
  %1759 = vmatmul.bf16.gmra.mxu0 %v527
  %v1760 = vpop.f32.mrf.mxu0
  %v1761 = vadd.f32 %v1712, %v1760
  %v1762 = vpop.f32.mrf.mxu0
  %v1763 = vadd.f32 %v1714, %v1762
  %1764 = vmatmul.bf16.gmra.mxu0 %v536
  %v1765 = vpop.f32.mrf.mxu0
  %v1766 = vadd.f32 %v1717, %v1765
  %v1767 = vpop.f32.mrf.mxu0
  %v1768 = vadd.f32 %v1719, %v1767
  %1769 = vdwg.mxu0
  %1770 = vmatpush.bf16.msra.mxu0 %v1056
  %1771 = vmatpush.bf16.msra.mxu0 %v1054
  %1772 = vmatpush.bf16.msra.mxu0 %v1052
  %1773 = vmatpush.bf16.msra.mxu0 %v1050
  %1774 = vmatpush.bf16.msra.mxu0 %v1048
  %1775 = vmatpush.bf16.msra.mxu0 %v1046
  %1776 = vmatpush.bf16.msra.mxu0 %v1044
  %1777 = vmatpush.bf16.msra.mxu0 %v1042
  %1778 = vmatmul.bf16.gmra.mxu0 %v465
  %v1779 = vpop.f32.mrf.mxu0
  %v1780 = vadd.f32 0.0, %v1779
  %v1781 = vpop.f32.mrf.mxu0
  %v1782 = vadd.f32 0.0, %v1781
  %1783 = vmatmul.bf16.gmra.mxu0 %v474
  %v1784 = vpop.f32.mrf.mxu0
  %v1785 = vadd.f32 0.0, %v1784
  %v1786 = vpop.f32.mrf.mxu0
  %v1787 = vadd.f32 0.0, %v1786
  %1788 = vmatmul.bf16.gmra.mxu0 %v483
  %v1789 = vpop.f32.mrf.mxu0
  %v1790 = vadd.f32 0.0, %v1789
  %v1791 = vpop.f32.mrf.mxu0
  %v1792 = vadd.f32 0.0, %v1791
  %1793 = vmatmul.bf16.gmra.mxu0 %v492
  %v1794 = vpop.f32.mrf.mxu0
  %v1795 = vadd.f32 0.0, %v1794
  %v1796 = vpop.f32.mrf.mxu0
  %v1797 = vadd.f32 0.0, %v1796
  %1798 = vmatmul.bf16.gmra.mxu0 %v501
  %v1799 = vpop.f32.mrf.mxu0
  %v1800 = vadd.f32 0.0, %v1799
  %v1801 = vpop.f32.mrf.mxu0
  %v1802 = vadd.f32 0.0, %v1801
  %1803 = vmatmul.bf16.gmra.mxu0 %v510
  %v1804 = vpop.f32.mrf.mxu0
  %v1805 = vadd.f32 0.0, %v1804
  %v1806 = vpop.f32.mrf.mxu0
  %v1807 = vadd.f32 0.0, %v1806
  %1808 = vmatmul.bf16.gmra.mxu0 %v519
  %v1809 = vpop.f32.mrf.mxu0
  %v1810 = vadd.f32 0.0, %v1809
  %v1811 = vpop.f32.mrf.mxu0
  %v1812 = vadd.f32 0.0, %v1811
  %1813 = vmatmul.bf16.gmra.mxu0 %v528
  %v1814 = vpop.f32.mrf.mxu0
  %v1815 = vadd.f32 0.0, %v1814
  %v1816 = vpop.f32.mrf.mxu0
  %v1817 = vadd.f32 0.0, %v1816
  %1818 = vdwg.mxu0
  %1819 = vmatpush.bf16.msra.mxu0 %v1072
  %1820 = vmatpush.bf16.msra.mxu0 %v1070
  %1821 = vmatpush.bf16.msra.mxu0 %v1068
  %1822 = vmatpush.bf16.msra.mxu0 %v1066
  %1823 = vmatpush.bf16.msra.mxu0 %v1064
  %1824 = vmatpush.bf16.msra.mxu0 %v1062
  %1825 = vmatpush.bf16.msra.mxu0 %v1060
  %1826 = vmatpush.bf16.msra.mxu0 %v1058
  %1827 = vmatmul.bf16.gmra.mxu0 %v466
  %v1828 = vpop.f32.mrf.mxu0
  %v1829 = vadd.f32 %v1780, %v1828
  %v1830 = vpop.f32.mrf.mxu0
  %v1831 = vadd.f32 %v1782, %v1830
  %1832 = vmatmul.bf16.gmra.mxu0 %v475
  %v1833 = vpop.f32.mrf.mxu0
  %v1834 = vadd.f32 %v1785, %v1833
  %v1835 = vpop.f32.mrf.mxu0
  %v1836 = vadd.f32 %v1787, %v1835
  %1837 = vmatmul.bf16.gmra.mxu0 %v484
  %v1838 = vpop.f32.mrf.mxu0
  %v1839 = vadd.f32 %v1790, %v1838
  %v1840 = vpop.f32.mrf.mxu0
  %v1841 = vadd.f32 %v1792, %v1840
  %1842 = vmatmul.bf16.gmra.mxu0 %v493
  %v1843 = vpop.f32.mrf.mxu0
  %v1844 = vadd.f32 %v1795, %v1843
  %v1845 = vpop.f32.mrf.mxu0
  %v1846 = vadd.f32 %v1797, %v1845
  %1847 = vmatmul.bf16.gmra.mxu0 %v502
  %v1848 = vpop.f32.mrf.mxu0
  %v1849 = vadd.f32 %v1800, %v1848
  %v1850 = vpop.f32.mrf.mxu0
  %v1851 = vadd.f32 %v1802, %v1850
  %1852 = vmatmul.bf16.gmra.mxu0 %v511
  %v1853 = vpop.f32.mrf.mxu0
  %v1854 = vadd.f32 %v1805, %v1853
  %v1855 = vpop.f32.mrf.mxu0
  %v1856 = vadd.f32 %v1807, %v1855
  %1857 = vmatmul.bf16.gmra.mxu0 %v520
  %v1858 = vpop.f32.mrf.mxu0
  %v1859 = vadd.f32 %v1810, %v1858
  %v1860 = vpop.f32.mrf.mxu0
  %v1861 = vadd.f32 %v1812, %v1860
  %1862 = vmatmul.bf16.gmra.mxu0 %v529
  %v1863 = vpop.f32.mrf.mxu0
  %v1864 = vadd.f32 %v1815, %v1863
  %v1865 = vpop.f32.mrf.mxu0
  %v1866 = vadd.f32 %v1817, %v1865
  %1867 = vdwg.mxu0
  %1868 = vmatpush.bf16.msra.mxu0 %v1088
  %1869 = vmatpush.bf16.msra.mxu0 %v1086
  %1870 = vmatpush.bf16.msra.mxu0 %v1084
  %1871 = vmatpush.bf16.msra.mxu0 %v1082
  %1872 = vmatpush.bf16.msra.mxu0 %v1080
  %1873 = vmatpush.bf16.msra.mxu0 %v1078
  %1874 = vmatpush.bf16.msra.mxu0 %v1076
  %1875 = vmatpush.bf16.msra.mxu0 %v1074
  %1876 = vmatmul.bf16.gmra.mxu0 %v467
  %v1877 = vpop.f32.mrf.mxu0
  %v1878 = vadd.f32 %v1829, %v1877
  %v1879 = vpop.f32.mrf.mxu0
  %v1880 = vadd.f32 %v1831, %v1879
  %1881 = vmatmul.bf16.gmra.mxu0 %v476
  %v1882 = vpop.f32.mrf.mxu0
  %v1883 = vadd.f32 %v1834, %v1882
  %v1884 = vpop.f32.mrf.mxu0
  %v1885 = vadd.f32 %v1836, %v1884
  %1886 = vmatmul.bf16.gmra.mxu0 %v485
  %v1887 = vpop.f32.mrf.mxu0
  %v1888 = vadd.f32 %v1839, %v1887
  %v1889 = vpop.f32.mrf.mxu0
  %v1890 = vadd.f32 %v1841, %v1889
  %1891 = vmatmul.bf16.gmra.mxu0 %v494
  %v1892 = vpop.f32.mrf.mxu0
  %v1893 = vadd.f32 %v1844, %v1892
  %v1894 = vpop.f32.mrf.mxu0
  %v1895 = vadd.f32 %v1846, %v1894
  %1896 = vmatmul.bf16.gmra.mxu0 %v503
  %v1897 = vpop.f32.mrf.mxu0
  %v1898 = vadd.f32 %v1849, %v1897
  %v1899 = vpop.f32.mrf.mxu0
  %v1900 = vadd.f32 %v1851, %v1899
  %1901 = vmatmul.bf16.gmra.mxu0 %v512
  %v1902 = vpop.f32.mrf.mxu0
  %v1903 = vadd.f32 %v1854, %v1902
  %v1904 = vpop.f32.mrf.mxu0
  %v1905 = vadd.f32 %v1856, %v1904
  %1906 = vmatmul.bf16.gmra.mxu0 %v521
  %v1907 = vpop.f32.mrf.mxu0
  %v1908 = vadd.f32 %v1859, %v1907
  %v1909 = vpop.f32.mrf.mxu0
  %v1910 = vadd.f32 %v1861, %v1909
  %1911 = vmatmul.bf16.gmra.mxu0 %v530
  %v1912 = vpop.f32.mrf.mxu0
  %v1913 = vadd.f32 %v1864, %v1912
  %v1914 = vpop.f32.mrf.mxu0
  %v1915 = vadd.f32 %v1866, %v1914
  %1916 = vdwg.mxu0
  %1917 = vmatpush.bf16.msra.mxu0 %v1104
  %1918 = vmatpush.bf16.msra.mxu0 %v1102
  %1919 = vmatpush.bf16.msra.mxu0 %v1100
  %1920 = vmatpush.bf16.msra.mxu0 %v1098
  %1921 = vmatpush.bf16.msra.mxu0 %v1096
  %1922 = vmatpush.bf16.msra.mxu0 %v1094
  %1923 = vmatpush.bf16.msra.mxu0 %v1092
  %1924 = vmatpush.bf16.msra.mxu0 %v1090
  %1925 = vmatmul.bf16.gmra.mxu0 %v468
  %v1926 = vpop.f32.mrf.mxu0
  %v1927 = vadd.f32 %v1878, %v1926
  %v1928 = vpop.f32.mrf.mxu0
  %v1929 = vadd.f32 %v1880, %v1928
  %1930 = vmatmul.bf16.gmra.mxu0 %v477
  %v1931 = vpop.f32.mrf.mxu0
  %v1932 = vadd.f32 %v1883, %v1931
  %v1933 = vpop.f32.mrf.mxu0
  %v1934 = vadd.f32 %v1885, %v1933
  %1935 = vmatmul.bf16.gmra.mxu0 %v486
  %v1936 = vpop.f32.mrf.mxu0
  %v1937 = vadd.f32 %v1888, %v1936
  %v1938 = vpop.f32.mrf.mxu0
  %v1939 = vadd.f32 %v1890, %v1938
  %1940 = vmatmul.bf16.gmra.mxu0 %v495
  %v1941 = vpop.f32.mrf.mxu0
  %v1942 = vadd.f32 %v1893, %v1941
  %v1943 = vpop.f32.mrf.mxu0
  %v1944 = vadd.f32 %v1895, %v1943
  %1945 = vmatmul.bf16.gmra.mxu0 %v504
  %v1946 = vpop.f32.mrf.mxu0
  %v1947 = vadd.f32 %v1898, %v1946
  %v1948 = vpop.f32.mrf.mxu0
  %v1949 = vadd.f32 %v1900, %v1948
  %1950 = vmatmul.bf16.gmra.mxu0 %v513
  %v1951 = vpop.f32.mrf.mxu0
  %v1952 = vadd.f32 %v1903, %v1951
  %v1953 = vpop.f32.mrf.mxu0
  %v1954 = vadd.f32 %v1905, %v1953
  %1955 = vmatmul.bf16.gmra.mxu0 %v522
  %v1956 = vpop.f32.mrf.mxu0
  %v1957 = vadd.f32 %v1908, %v1956
  %v1958 = vpop.f32.mrf.mxu0
  %v1959 = vadd.f32 %v1910, %v1958
  %1960 = vmatmul.bf16.gmra.mxu0 %v531
  %v1961 = vpop.f32.mrf.mxu0
  %v1962 = vadd.f32 %v1913, %v1961
  %v1963 = vpop.f32.mrf.mxu0
  %v1964 = vadd.f32 %v1915, %v1963
  %1965 = vdwg.mxu0
  %1966 = vmatpush.bf16.msra.mxu0 %v1120
  %1967 = vmatpush.bf16.msra.mxu0 %v1118
  %1968 = vmatpush.bf16.msra.mxu0 %v1116
  %1969 = vmatpush.bf16.msra.mxu0 %v1114
  %1970 = vmatpush.bf16.msra.mxu0 %v1112
  %1971 = vmatpush.bf16.msra.mxu0 %v1110
  %1972 = vmatpush.bf16.msra.mxu0 %v1108
  %1973 = vmatpush.bf16.msra.mxu0 %v1106
  %1974 = vmatmul.bf16.gmra.mxu0 %v469
  %v1975 = vpop.f32.mrf.mxu0
  %v1976 = vadd.f32 %v1927, %v1975
  %v1977 = vpop.f32.mrf.mxu0
  %v1978 = vadd.f32 %v1929, %v1977
  %1979 = vmatmul.bf16.gmra.mxu0 %v478
  %v1980 = vpop.f32.mrf.mxu0
  %v1981 = vadd.f32 %v1932, %v1980
  %v1982 = vpop.f32.mrf.mxu0
  %v1983 = vadd.f32 %v1934, %v1982
  %1984 = vmatmul.bf16.gmra.mxu0 %v487
  %v1985 = vpop.f32.mrf.mxu0
  %v1986 = vadd.f32 %v1937, %v1985
  %v1987 = vpop.f32.mrf.mxu0
  %v1988 = vadd.f32 %v1939, %v1987
  %1989 = vmatmul.bf16.gmra.mxu0 %v496
  %v1990 = vpop.f32.mrf.mxu0
  %v1991 = vadd.f32 %v1942, %v1990
  %v1992 = vpop.f32.mrf.mxu0
  %v1993 = vadd.f32 %v1944, %v1992
  %1994 = vmatmul.bf16.gmra.mxu0 %v505
  %v1995 = vpop.f32.mrf.mxu0
  %v1996 = vadd.f32 %v1947, %v1995
  %v1997 = vpop.f32.mrf.mxu0
  %v1998 = vadd.f32 %v1949, %v1997
  %1999 = vmatmul.bf16.gmra.mxu0 %v514
  %v2000 = vpop.f32.mrf.mxu0
  %v2001 = vadd.f32 %v1952, %v2000
  %v2002 = vpop.f32.mrf.mxu0
  %v2003 = vadd.f32 %v1954, %v2002
  %2004 = vmatmul.bf16.gmra.mxu0 %v523
  %v2005 = vpop.f32.mrf.mxu0
  %v2006 = vadd.f32 %v1957, %v2005
  %v2007 = vpop.f32.mrf.mxu0
  %v2008 = vadd.f32 %v1959, %v2007
  %2009 = vmatmul.bf16.gmra.mxu0 %v532
  %v2010 = vpop.f32.mrf.mxu0
  %v2011 = vadd.f32 %v1962, %v2010
  %v2012 = vpop.f32.mrf.mxu0
  %v2013 = vadd.f32 %v1964, %v2012
  %2014 = vdwg.mxu0
  %2015 = vmatpush.bf16.msra.mxu0 %v1136
  %2016 = vmatpush.bf16.msra.mxu0 %v1134
  %2017 = vmatpush.bf16.msra.mxu0 %v1132
  %2018 = vmatpush.bf16.msra.mxu0 %v1130
  %2019 = vmatpush.bf16.msra.mxu0 %v1128
  %2020 = vmatpush.bf16.msra.mxu0 %v1126
  %2021 = vmatpush.bf16.msra.mxu0 %v1124
  %2022 = vmatpush.bf16.msra.mxu0 %v1122
  %2023 = vmatmul.bf16.gmra.mxu0 %v470
  %v2024 = vpop.f32.mrf.mxu0
  %v2025 = vadd.f32 %v1976, %v2024
  %v2026 = vpop.f32.mrf.mxu0
  %v2027 = vadd.f32 %v1978, %v2026
  %2028 = vmatmul.bf16.gmra.mxu0 %v479
  %v2029 = vpop.f32.mrf.mxu0
  %v2030 = vadd.f32 %v1981, %v2029
  %v2031 = vpop.f32.mrf.mxu0
  %v2032 = vadd.f32 %v1983, %v2031
  %2033 = vmatmul.bf16.gmra.mxu0 %v488
  %v2034 = vpop.f32.mrf.mxu0
  %v2035 = vadd.f32 %v1986, %v2034
  %v2036 = vpop.f32.mrf.mxu0
  %v2037 = vadd.f32 %v1988, %v2036
  %2038 = vmatmul.bf16.gmra.mxu0 %v497
  %v2039 = vpop.f32.mrf.mxu0
  %v2040 = vadd.f32 %v1991, %v2039
  %v2041 = vpop.f32.mrf.mxu0
  %v2042 = vadd.f32 %v1993, %v2041
  %2043 = vmatmul.bf16.gmra.mxu0 %v506
  %v2044 = vpop.f32.mrf.mxu0
  %v2045 = vadd.f32 %v1996, %v2044
  %v2046 = vpop.f32.mrf.mxu0
  %v2047 = vadd.f32 %v1998, %v2046
  %2048 = vmatmul.bf16.gmra.mxu0 %v515
  %v2049 = vpop.f32.mrf.mxu0
  %v2050 = vadd.f32 %v2001, %v2049
  %v2051 = vpop.f32.mrf.mxu0
  %v2052 = vadd.f32 %v2003, %v2051
  %2053 = vmatmul.bf16.gmra.mxu0 %v524
  %v2054 = vpop.f32.mrf.mxu0
  %v2055 = vadd.f32 %v2006, %v2054
  %v2056 = vpop.f32.mrf.mxu0
  %v2057 = vadd.f32 %v2008, %v2056
  %2058 = vmatmul.bf16.gmra.mxu0 %v533
  %v2059 = vpop.f32.mrf.mxu0
  %v2060 = vadd.f32 %v2011, %v2059
  %v2061 = vpop.f32.mrf.mxu0
  %v2062 = vadd.f32 %v2013, %v2061
  %2063 = vdwg.mxu0
  %2064 = vmatpush.bf16.msra.mxu0 %v1152
  %2065 = vmatpush.bf16.msra.mxu0 %v1150
  %2066 = vmatpush.bf16.msra.mxu0 %v1148
  %2067 = vmatpush.bf16.msra.mxu0 %v1146
  %2068 = vmatpush.bf16.msra.mxu0 %v1144
  %2069 = vmatpush.bf16.msra.mxu0 %v1142
  %2070 = vmatpush.bf16.msra.mxu0 %v1140
  %2071 = vmatpush.bf16.msra.mxu0 %v1138
  %2072 = vmatmul.bf16.gmra.mxu0 %v471
  %v2073 = vpop.f32.mrf.mxu0
  %v2074 = vadd.f32 %v2025, %v2073
  %v2075 = vpop.f32.mrf.mxu0
  %v2076 = vadd.f32 %v2027, %v2075
  %2077 = vmatmul.bf16.gmra.mxu0 %v480
  %v2078 = vpop.f32.mrf.mxu0
  %v2079 = vadd.f32 %v2030, %v2078
  %v2080 = vpop.f32.mrf.mxu0
  %v2081 = vadd.f32 %v2032, %v2080
  %2082 = vmatmul.bf16.gmra.mxu0 %v489
  %v2083 = vpop.f32.mrf.mxu0
  %v2084 = vadd.f32 %v2035, %v2083
  %v2085 = vpop.f32.mrf.mxu0
  %v2086 = vadd.f32 %v2037, %v2085
  %2087 = vmatmul.bf16.gmra.mxu0 %v498
  %v2088 = vpop.f32.mrf.mxu0
  %v2089 = vadd.f32 %v2040, %v2088
  %v2090 = vpop.f32.mrf.mxu0
  %v2091 = vadd.f32 %v2042, %v2090
  %2092 = vmatmul.bf16.gmra.mxu0 %v507
  %v2093 = vpop.f32.mrf.mxu0
  %v2094 = vadd.f32 %v2045, %v2093
  %v2095 = vpop.f32.mrf.mxu0
  %v2096 = vadd.f32 %v2047, %v2095
  %2097 = vmatmul.bf16.gmra.mxu0 %v516
  %v2098 = vpop.f32.mrf.mxu0
  %v2099 = vadd.f32 %v2050, %v2098
  %v2100 = vpop.f32.mrf.mxu0
  %v2101 = vadd.f32 %v2052, %v2100
  %2102 = vmatmul.bf16.gmra.mxu0 %v525
  %v2103 = vpop.f32.mrf.mxu0
  %v2104 = vadd.f32 %v2055, %v2103
  %v2105 = vpop.f32.mrf.mxu0
  %v2106 = vadd.f32 %v2057, %v2105
  %2107 = vmatmul.bf16.gmra.mxu0 %v534
  %v2108 = vpop.f32.mrf.mxu0
  %v2109 = vadd.f32 %v2060, %v2108
  %v2110 = vpop.f32.mrf.mxu0
  %v2111 = vadd.f32 %v2062, %v2110
  %2112 = vdwg.mxu0
  %2113 = vmatpush.bf16.msra.mxu0 %v1168
  %2114 = vmatpush.bf16.msra.mxu0 %v1166
  %2115 = vmatpush.bf16.msra.mxu0 %v1164
  %2116 = vmatpush.bf16.msra.mxu0 %v1162
  %2117 = vmatpush.bf16.msra.mxu0 %v1160
  %2118 = vmatpush.bf16.msra.mxu0 %v1158
  %2119 = vmatpush.bf16.msra.mxu0 %v1156
  %2120 = vmatpush.bf16.msra.mxu0 %v1154
  %2121 = vmatmul.bf16.gmra.mxu0 %v472
  %v2122 = vpop.f32.mrf.mxu0
  %v2123 = vadd.f32 %v2074, %v2122
  %v2124 = vpop.f32.mrf.mxu0
  %v2125 = vadd.f32 %v2076, %v2124
  %2126 = vmatmul.bf16.gmra.mxu0 %v481
  %v2127 = vpop.f32.mrf.mxu0
  %v2128 = vadd.f32 %v2079, %v2127
  %v2129 = vpop.f32.mrf.mxu0
  %v2130 = vadd.f32 %v2081, %v2129
  %2131 = vmatmul.bf16.gmra.mxu0 %v490
  %v2132 = vpop.f32.mrf.mxu0
  %v2133 = vadd.f32 %v2084, %v2132
  %v2134 = vpop.f32.mrf.mxu0
  %v2135 = vadd.f32 %v2086, %v2134
  %2136 = vmatmul.bf16.gmra.mxu0 %v499
  %v2137 = vpop.f32.mrf.mxu0
  %v2138 = vadd.f32 %v2089, %v2137
  %v2139 = vpop.f32.mrf.mxu0
  %v2140 = vadd.f32 %v2091, %v2139
  %2141 = vmatmul.bf16.gmra.mxu0 %v508
  %v2142 = vpop.f32.mrf.mxu0
  %v2143 = vadd.f32 %v2094, %v2142
  %v2144 = vpop.f32.mrf.mxu0
  %v2145 = vadd.f32 %v2096, %v2144
  %2146 = vmatmul.bf16.gmra.mxu0 %v517
  %v2147 = vpop.f32.mrf.mxu0
  %v2148 = vadd.f32 %v2099, %v2147
  %v2149 = vpop.f32.mrf.mxu0
  %v2150 = vadd.f32 %v2101, %v2149
  %2151 = vmatmul.bf16.gmra.mxu0 %v526
  %v2152 = vpop.f32.mrf.mxu0
  %v2153 = vadd.f32 %v2104, %v2152
  %v2154 = vpop.f32.mrf.mxu0
  %v2155 = vadd.f32 %v2106, %v2154
  %2156 = vmatmul.bf16.gmra.mxu0 %v535
  %v2157 = vpop.f32.mrf.mxu0
  %v2158 = vadd.f32 %v2109, %v2157
  %v2159 = vpop.f32.mrf.mxu0
  %v2160 = vadd.f32 %v2111, %v2159
  %2161 = vdwg.mxu0
  %2162 = vmatpush.bf16.msra.mxu0 %v1184
  %2163 = vmatpush.bf16.msra.mxu0 %v1182
  %2164 = vmatpush.bf16.msra.mxu0 %v1180
  %2165 = vmatpush.bf16.msra.mxu0 %v1178
  %2166 = vmatpush.bf16.msra.mxu0 %v1176
  %2167 = vmatpush.bf16.msra.mxu0 %v1174
  %2168 = vmatpush.bf16.msra.mxu0 %v1172
  %2169 = vmatpush.bf16.msra.mxu0 %v1170
  %2170 = vmatmul.bf16.gmra.mxu0 %v473
  %v2171 = vpop.f32.mrf.mxu0
  %v2172 = vadd.f32 %v2123, %v2171
  %v2173 = vpop.f32.mrf.mxu0
  %v2174 = vadd.f32 %v2125, %v2173
  %2175 = vmatmul.bf16.gmra.mxu0 %v482
  %v2176 = vpop.f32.mrf.mxu0
  %v2177 = vadd.f32 %v2128, %v2176
  %v2178 = vpop.f32.mrf.mxu0
  %v2179 = vadd.f32 %v2130, %v2178
  %2180 = vmatmul.bf16.gmra.mxu0 %v491
  %v2181 = vpop.f32.mrf.mxu0
  %v2182 = vadd.f32 %v2133, %v2181
  %v2183 = vpop.f32.mrf.mxu0
  %v2184 = vadd.f32 %v2135, %v2183
  %2185 = vmatmul.bf16.gmra.mxu0 %v500
  %v2186 = vpop.f32.mrf.mxu0
  %v2187 = vadd.f32 %v2138, %v2186
  %v2188 = vpop.f32.mrf.mxu0
  %v2189 = vadd.f32 %v2140, %v2188
  %2190 = vmatmul.bf16.gmra.mxu0 %v509
  %v2191 = vpop.f32.mrf.mxu0
  %v2192 = vadd.f32 %v2143, %v2191
  %v2193 = vpop.f32.mrf.mxu0
  %v2194 = vadd.f32 %v2145, %v2193
  %2195 = vmatmul.bf16.gmra.mxu0 %v518
  %v2196 = vpop.f32.mrf.mxu0
  %v2197 = vadd.f32 %v2148, %v2196
  %v2198 = vpop.f32.mrf.mxu0
  %v2199 = vadd.f32 %v2150, %v2198
  %2200 = vmatmul.bf16.gmra.mxu0 %v527
  %v2201 = vpop.f32.mrf.mxu0
  %v2202 = vadd.f32 %v2153, %v2201
  %v2203 = vpop.f32.mrf.mxu0
  %v2204 = vadd.f32 %v2155, %v2203
  %2205 = vmatmul.bf16.gmra.mxu0 %v536
  %v2206 = vpop.f32.mrf.mxu0
  %v2207 = vadd.f32 %v2158, %v2206
  %v2208 = vpop.f32.mrf.mxu0
  %v2209 = vadd.f32 %v2160, %v2208
  %2210 = vdwg.mxu0
  %v2211 = vadd.f32 %v1731, %v1733
  %v2212 = vadd.f32 %v2211, %v1736
  %v2213 = vadd.f32 %v2212, %v1738
  %v2214 = vadd.f32 %v2213, %v1741
  %v2215 = vadd.f32 %v2214, %v1743
  %v2216 = vadd.f32 %v2215, %v1746
  %v2217 = vadd.f32 %v2216, %v1748
  %v2218 = vadd.f32 %v2217, %v1751
  %v2219 = vadd.f32 %v2218, %v1753
  %v2220 = vadd.f32 %v2219, %v1756
  %v2221 = vadd.f32 %v2220, %v1758
  %v2222 = vadd.f32 %v2221, %v1761
  %v2223 = vadd.f32 %v2222, %v1763
  %v2224 = vadd.f32 %v2223, %v1766
  %v2225 = vadd.f32 %v2224, %v1768
  %v2226 = vrot.slane %v2225, 4
  %v2227 = vadd.f32 %v2225, %v2226
  %v2228 = vrot.slane %v2227, 2
  %v2229 = vadd.f32 %v2227, %v2228
  %v2230 = vrot.slane %v2229, 1
  %v2231 = vadd.f32 %v2229, %v2230
  %v2232 = vadd.f32 %v2172, %v2174
  %v2233 = vadd.f32 %v2232, %v2177
  %v2234 = vadd.f32 %v2233, %v2179
  %v2235 = vadd.f32 %v2234, %v2182
  %v2236 = vadd.f32 %v2235, %v2184
  %v2237 = vadd.f32 %v2236, %v2187
  %v2238 = vadd.f32 %v2237, %v2189
  %v2239 = vadd.f32 %v2238, %v2192
  %v2240 = vadd.f32 %v2239, %v2194
  %v2241 = vadd.f32 %v2240, %v2197
  %v2242 = vadd.f32 %v2241, %v2199
  %v2243 = vadd.f32 %v2242, %v2202
  %v2244 = vadd.f32 %v2243, %v2204
  %v2245 = vadd.f32 %v2244, %v2207
  %v2246 = vadd.f32 %v2245, %v2209
  %v2247 = vrot.slane %v2246, 4
  %v2248 = vadd.f32 %v2246, %v2247
  %v2249 = vrot.slane %v2248, 2
  %v2250 = vadd.f32 %v2248, %v2249
  %v2251 = vrot.slane %v2250, 1
  %v2252 = vadd.f32 %v2250, %v2251
  %v2253 = vmul.f32 %v2231, 0.0078125
  %v2254 = vmul.f32 %v2252, 0.0078125
  %v2255 = vmul.f32 %v1731, %v1731
  %v2256 = vmul.f32 %v2172, %v2172
  %v2257 = vmul.f32 %v1733, %v1733
  %v2258 = vmul.f32 %v2174, %v2174
  %v2259 = vmul.f32 %v1736, %v1736
  %v2260 = vmul.f32 %v2177, %v2177
  %v2261 = vmul.f32 %v1738, %v1738
  %v2262 = vmul.f32 %v2179, %v2179
  %v2263 = vmul.f32 %v1741, %v1741
  %v2264 = vmul.f32 %v2182, %v2182
  %v2265 = vmul.f32 %v1743, %v1743
  %v2266 = vmul.f32 %v2184, %v2184
  %v2267 = vmul.f32 %v1746, %v1746
  %v2268 = vmul.f32 %v2187, %v2187
  %v2269 = vmul.f32 %v1748, %v1748
  %v2270 = vmul.f32 %v2189, %v2189
  %v2271 = vmul.f32 %v1751, %v1751
  %v2272 = vmul.f32 %v2192, %v2192
  %v2273 = vmul.f32 %v1753, %v1753
  %v2274 = vmul.f32 %v2194, %v2194
  %v2275 = vmul.f32 %v1756, %v1756
  %v2276 = vmul.f32 %v2197, %v2197
  %v2277 = vmul.f32 %v1758, %v1758
  %v2278 = vmul.f32 %v2199, %v2199
  %v2279 = vmul.f32 %v1761, %v1761
  %v2280 = vmul.f32 %v2202, %v2202
  %v2281 = vmul.f32 %v1763, %v1763
  %v2282 = vmul.f32 %v2204, %v2204
  %v2283 = vmul.f32 %v1766, %v1766
  %v2284 = vmul.f32 %v2207, %v2207
  %v2285 = vmul.f32 %v1768, %v1768
  %v2286 = vmul.f32 %v2209, %v2209
  %v2287 = vadd.f32 %v2255, %v2257
  %v2288 = vadd.f32 %v2287, %v2259
  %v2289 = vadd.f32 %v2288, %v2261
  %v2290 = vadd.f32 %v2289, %v2263
  %v2291 = vadd.f32 %v2290, %v2265
  %v2292 = vadd.f32 %v2291, %v2267
  %v2293 = vadd.f32 %v2292, %v2269
  %v2294 = vadd.f32 %v2293, %v2271
  %v2295 = vadd.f32 %v2294, %v2273
  %v2296 = vadd.f32 %v2295, %v2275
  %v2297 = vadd.f32 %v2296, %v2277
  %v2298 = vadd.f32 %v2297, %v2279
  %v2299 = vadd.f32 %v2298, %v2281
  %v2300 = vadd.f32 %v2299, %v2283
  %v2301 = vadd.f32 %v2300, %v2285
  %v2302 = vrot.slane %v2301, 4
  %v2303 = vadd.f32 %v2301, %v2302
  %v2304 = vrot.slane %v2303, 2
  %v2305 = vadd.f32 %v2303, %v2304
  %v2306 = vrot.slane %v2305, 1
  %v2307 = vadd.f32 %v2305, %v2306
  %v2308 = vadd.f32 %v2256, %v2258
  %v2309 = vadd.f32 %v2308, %v2260
  %v2310 = vadd.f32 %v2309, %v2262
  %v2311 = vadd.f32 %v2310, %v2264
  %v2312 = vadd.f32 %v2311, %v2266
  %v2313 = vadd.f32 %v2312, %v2268
  %v2314 = vadd.f32 %v2313, %v2270
  %v2315 = vadd.f32 %v2314, %v2272
  %v2316 = vadd.f32 %v2315, %v2274
  %v2317 = vadd.f32 %v2316, %v2276
  %v2318 = vadd.f32 %v2317, %v2278
  %v2319 = vadd.f32 %v2318, %v2280
  %v2320 = vadd.f32 %v2319, %v2282
  %v2321 = vadd.f32 %v2320, %v2284
  %v2322 = vadd.f32 %v2321, %v2286
  %v2323 = vrot.slane %v2322, 4
  %v2324 = vadd.f32 %v2322, %v2323
  %v2325 = vrot.slane %v2324, 2
  %v2326 = vadd.f32 %v2324, %v2325
  %v2327 = vrot.slane %v2326, 1
  %v2328 = vadd.f32 %v2326, %v2327
  %v2329 = vmul.f32 %v2307, 0.0078125
  %v2330 = vmul.f32 %v2328, 0.0078125
  %v2331 = vmul.f32 %v2253, %v2253
  %v2332 = vmul.f32 %v2254, %v2254
  %v2333 = vsub.f32 %v2329, %v2331
  %v2334 = vsub.f32 %v2330, %v2332
  %v2335 = vmax.f32 %v2333, 0.0
  %v2336 = vmax.f32 %v2334, 0.0
  %v2337 = vadd.f32 %v2335, 1e-05
  %v2338 = vadd.f32 %v2336, 1e-05
  %v2339 = vrsqrt.pop %v2337
  %v2340 = vmul.f32 %v2339, %v2337
  %v2341 = vmul.f32 %v2340, %v2339
  %v2342 = vmul.f32 0.5, %v2341
  %v2343 = vsub.f32 1.5, %v2342
  %v2344 = vmul.f32 %v2339, %v2343
  %vm2345 = vweird.f32 %v2337
  %vm2346 = vweird.f32 %v2339
  %vm2347 = vmor %vm2345, %vm2346
  %v2348 = vsel %vm2347, %v2339, %v2344
  %v2349 = vrsqrt.pop %v2338
  %v2350 = vmul.f32 %v2349, %v2338
  %v2351 = vmul.f32 %v2350, %v2349
  %v2352 = vmul.f32 0.5, %v2351
  %v2353 = vsub.f32 1.5, %v2352
  %v2354 = vmul.f32 %v2349, %v2353
  %vm2355 = vweird.f32 %v2338
  %vm2356 = vweird.f32 %v2349
  %vm2357 = vmor %vm2355, %vm2356
  %v2358 = vsel %vm2357, %v2349, %v2354
  %v2359 = vld [vmem:[%s2] sm:$0x3]
  %v2361 = vperm.slane %v2359, 0
  %v2362 = vperm.slane %v2359, 1
  %v2365 = vmul.f32 %v2348, %v2361
  %v2366 = vmul.f32 %v2358, %v2362
  %v2367 = vld [vmem:[%s3] sm:$0x3]
  %v2368 = vmul.f32 %v2253, %v2365
  %v2369 = vmul.f32 %v2254, %v2366
  %v2372 = vrot.slane %v2369, 7
  %vm2373 = vcmask 1040384
  %v2374 = vsel %vm2373, %v2368, %v2372
  %v2376 = vsub.f32 %v2367, %v2374
  %v2377 = vperm.slane %v2365, 0
  %v2378 = vperm.slane %v2366, 0
  %v2379 = vmul.f32 %v1731, %v2377
  %v2380 = vmul.f32 %v2172, %v2378
  %v2381 = vmul.f32 %v1733, %v2377
  %v2382 = vmul.f32 %v2174, %v2378
  %v2383 = vmul.f32 %v1736, %v2377
  %v2384 = vmul.f32 %v2177, %v2378
  %v2385 = vmul.f32 %v1738, %v2377
  %v2386 = vmul.f32 %v2179, %v2378
  %v2387 = vmul.f32 %v1741, %v2377
  %v2388 = vmul.f32 %v2182, %v2378
  %v2389 = vmul.f32 %v1743, %v2377
  %v2390 = vmul.f32 %v2184, %v2378
  %v2391 = vmul.f32 %v1746, %v2377
  %v2392 = vmul.f32 %v2187, %v2378
  %v2393 = vmul.f32 %v1748, %v2377
  %v2394 = vmul.f32 %v2189, %v2378
  %v2395 = vmul.f32 %v1751, %v2377
  %v2396 = vmul.f32 %v2192, %v2378
  %v2397 = vmul.f32 %v1753, %v2377
  %v2398 = vmul.f32 %v2194, %v2378
  %v2399 = vmul.f32 %v1756, %v2377
  %v2400 = vmul.f32 %v2197, %v2378
  %v2401 = vmul.f32 %v1758, %v2377
  %v2402 = vmul.f32 %v2199, %v2378
  %v2403 = vmul.f32 %v1761, %v2377
  %v2404 = vmul.f32 %v2202, %v2378
  %v2405 = vmul.f32 %v1763, %v2377
  %v2406 = vmul.f32 %v2204, %v2378
  %v2407 = vmul.f32 %v1766, %v2377
  %v2408 = vmul.f32 %v2207, %v2378
  %v2409 = vmul.f32 %v1768, %v2377
  %v2410 = vmul.f32 %v2209, %v2378
  %v2412 = vperm.slane %v2376, 0
  %v2413 = vperm.slane %v2376, 1
  %v2416 = vadd.f32 %v2379, %v2412
  %v2417 = vadd.f32 %v2380, %v2413
  %v2418 = vadd.f32 %v2381, %v2412
  %v2419 = vadd.f32 %v2382, %v2413
  %v2420 = vadd.f32 %v2383, %v2412
  %v2421 = vadd.f32 %v2384, %v2413
  %v2422 = vadd.f32 %v2385, %v2412
  %v2423 = vadd.f32 %v2386, %v2413
  %v2424 = vadd.f32 %v2387, %v2412
  %v2425 = vadd.f32 %v2388, %v2413
  %v2426 = vadd.f32 %v2389, %v2412
  %v2427 = vadd.f32 %v2390, %v2413
  %v2428 = vadd.f32 %v2391, %v2412
  %v2429 = vadd.f32 %v2392, %v2413
  %v2430 = vadd.f32 %v2393, %v2412
  %v2431 = vadd.f32 %v2394, %v2413
  %v2432 = vadd.f32 %v2395, %v2412
  %v2433 = vadd.f32 %v2396, %v2413
  %v2434 = vadd.f32 %v2397, %v2412
  %v2435 = vadd.f32 %v2398, %v2413
  %v2436 = vadd.f32 %v2399, %v2412
  %v2437 = vadd.f32 %v2400, %v2413
  %v2438 = vadd.f32 %v2401, %v2412
  %v2439 = vadd.f32 %v2402, %v2413
  %v2440 = vadd.f32 %v2403, %v2412
  %v2441 = vadd.f32 %v2404, %v2413
  %v2442 = vadd.f32 %v2405, %v2412
  %v2443 = vadd.f32 %v2406, %v2413
  %v2444 = vadd.f32 %v2407, %v2412
  %v2445 = vadd.f32 %v2408, %v2413
  %v2446 = vadd.f32 %v2409, %v2412
  %v2447 = vadd.f32 %v2410, %v2413
  %vm2448 = vcmp.gt.f32.partialorder %v2416, 0.0
  %vm2449 = vcmp.gt.f32.partialorder %v2417, 0.0
  %vm2450 = vcmp.gt.f32.partialorder %v2418, 0.0
  %vm2451 = vcmp.gt.f32.partialorder %v2419, 0.0
  %vm2452 = vcmp.gt.f32.partialorder %v2420, 0.0
  %vm2453 = vcmp.gt.f32.partialorder %v2421, 0.0
  %vm2454 = vcmp.gt.f32.partialorder %v2422, 0.0
  %vm2455 = vcmp.gt.f32.partialorder %v2423, 0.0
  %vm2456 = vcmp.gt.f32.partialorder %v2424, 0.0
  %vm2457 = vcmp.gt.f32.partialorder %v2425, 0.0
  %vm2458 = vcmp.gt.f32.partialorder %v2426, 0.0
  %vm2459 = vcmp.gt.f32.partialorder %v2427, 0.0
  %vm2460 = vcmp.gt.f32.partialorder %v2428, 0.0
  %vm2461 = vcmp.gt.f32.partialorder %v2429, 0.0
  %vm2462 = vcmp.gt.f32.partialorder %v2430, 0.0
  %vm2463 = vcmp.gt.f32.partialorder %v2431, 0.0
  %vm2464 = vcmp.gt.f32.partialorder %v2432, 0.0
  %vm2465 = vcmp.gt.f32.partialorder %v2433, 0.0
  %vm2466 = vcmp.gt.f32.partialorder %v2434, 0.0
  %vm2467 = vcmp.gt.f32.partialorder %v2435, 0.0
  %vm2468 = vcmp.gt.f32.partialorder %v2436, 0.0
  %vm2469 = vcmp.gt.f32.partialorder %v2437, 0.0
  %vm2470 = vcmp.gt.f32.partialorder %v2438, 0.0
  %vm2471 = vcmp.gt.f32.partialorder %v2439, 0.0
  %vm2472 = vcmp.gt.f32.partialorder %v2440, 0.0
  %vm2473 = vcmp.gt.f32.partialorder %v2441, 0.0
  %vm2474 = vcmp.gt.f32.partialorder %v2442, 0.0
  %vm2475 = vcmp.gt.f32.partialorder %v2443, 0.0
  %vm2476 = vcmp.gt.f32.partialorder %v2444, 0.0
  %vm2477 = vcmp.gt.f32.partialorder %v2445, 0.0
  %vm2478 = vcmp.gt.f32.partialorder %v2446, 0.0
  %vm2479 = vcmp.gt.f32.partialorder %v2447, 0.0
  %v2480 = vmul.f32 %v2416, 0.2
  %v2481 = vmul.f32 %v2417, 0.2
  %v2482 = vmul.f32 %v2418, 0.2
  %v2483 = vmul.f32 %v2419, 0.2
  %v2484 = vmul.f32 %v2420, 0.2
  %v2485 = vmul.f32 %v2421, 0.2
  %v2486 = vmul.f32 %v2422, 0.2
  %v2487 = vmul.f32 %v2423, 0.2
  %v2488 = vmul.f32 %v2424, 0.2
  %v2489 = vmul.f32 %v2425, 0.2
  %v2490 = vmul.f32 %v2426, 0.2
  %v2491 = vmul.f32 %v2427, 0.2
  %v2492 = vmul.f32 %v2428, 0.2
  %v2493 = vmul.f32 %v2429, 0.2
  %v2494 = vmul.f32 %v2430, 0.2
  %v2495 = vmul.f32 %v2431, 0.2
  %v2496 = vmul.f32 %v2432, 0.2
  %v2497 = vmul.f32 %v2433, 0.2
  %v2498 = vmul.f32 %v2434, 0.2
  %v2499 = vmul.f32 %v2435, 0.2
  %v2500 = vmul.f32 %v2436, 0.2
  %v2501 = vmul.f32 %v2437, 0.2
  %v2502 = vmul.f32 %v2438, 0.2
  %v2503 = vmul.f32 %v2439, 0.2
  %v2504 = vmul.f32 %v2440, 0.2
  %v2505 = vmul.f32 %v2441, 0.2
  %v2506 = vmul.f32 %v2442, 0.2
  %v2507 = vmul.f32 %v2443, 0.2
  %v2508 = vmul.f32 %v2444, 0.2
  %v2509 = vmul.f32 %v2445, 0.2
  %v2510 = vmul.f32 %v2446, 0.2
  %v2511 = vmul.f32 %v2447, 0.2
  %v2512 = vsel %vm2448, %v2416, %v2480
  %v2513 = vsel %vm2449, %v2417, %v2481
  %v2514 = vsel %vm2450, %v2418, %v2482
  %v2515 = vsel %vm2451, %v2419, %v2483
  %v2516 = vsel %vm2452, %v2420, %v2484
  %v2517 = vsel %vm2453, %v2421, %v2485
  %v2518 = vsel %vm2454, %v2422, %v2486
  %v2519 = vsel %vm2455, %v2423, %v2487
  %v2520 = vsel %vm2456, %v2424, %v2488
  %v2521 = vsel %vm2457, %v2425, %v2489
  %v2522 = vsel %vm2458, %v2426, %v2490
  %v2523 = vsel %vm2459, %v2427, %v2491
  %v2524 = vsel %vm2460, %v2428, %v2492
  %v2525 = vsel %vm2461, %v2429, %v2493
  %v2526 = vsel %vm2462, %v2430, %v2494
  %v2527 = vsel %vm2463, %v2431, %v2495
  %v2528 = vsel %vm2464, %v2432, %v2496
  %v2529 = vsel %vm2465, %v2433, %v2497
  %v2530 = vsel %vm2466, %v2434, %v2498
  %v2531 = vsel %vm2467, %v2435, %v2499
  %v2532 = vsel %vm2468, %v2436, %v2500
  %v2533 = vsel %vm2469, %v2437, %v2501
  %v2534 = vsel %vm2470, %v2438, %v2502
  %v2535 = vsel %vm2471, %v2439, %v2503
  %v2536 = vsel %vm2472, %v2440, %v2504
  %v2537 = vsel %vm2473, %v2441, %v2505
  %v2538 = vsel %vm2474, %v2442, %v2506
  %v2539 = vsel %vm2475, %v2443, %v2507
  %v2540 = vsel %vm2476, %v2444, %v2508
  %v2541 = vsel %vm2477, %v2445, %v2509
  %v2542 = vsel %vm2478, %v2446, %v2510
  %v2543 = vsel %vm2479, %v2447, %v2511
  %v2544 = vpack.c.bf16 %v2513, %v2512
  %v2545 = vpack.c.bf16 %v2515, %v2514
  %v2546 = vpack.c.bf16 %v2517, %v2516
  %v2547 = vpack.c.bf16 %v2519, %v2518
  %v2548 = vpack.c.bf16 %v2521, %v2520
  %v2549 = vpack.c.bf16 %v2523, %v2522
  %v2550 = vpack.c.bf16 %v2525, %v2524
  %v2551 = vpack.c.bf16 %v2527, %v2526
  %v2552 = vpack.c.bf16 %v2529, %v2528
  %v2553 = vpack.c.bf16 %v2531, %v2530
  %v2554 = vpack.c.bf16 %v2533, %v2532
  %v2555 = vpack.c.bf16 %v2535, %v2534
  %v2556 = vpack.c.bf16 %v2537, %v2536
  %v2557 = vpack.c.bf16 %v2539, %v2538
  %v2558 = vpack.c.bf16 %v2541, %v2540
  %v2559 = vpack.c.bf16 %v2543, %v2542
  %2560 = vst [vmem:[%s4] sm:$0xff] %v2544
  %2561 = vst [vmem:[%s4 + $0x8] sm:$0xff] %v2545
  %2562 = vst [vmem:[%s4 + $0x10] sm:$0xff] %v2546
  %2563 = vst [vmem:[%s4 + $0x18] sm:$0xff] %v2547
  %2564 = vst [vmem:[%s4 + $0x20] sm:$0xff] %v2548
  %2565 = vst [vmem:[%s4 + $0x28] sm:$0xff] %v2549
  %2566 = vst [vmem:[%s4 + $0x30] sm:$0xff] %v2550
  %2567 = vst [vmem:[%s4 + $0x38] sm:$0xff] %v2551
  %2568 = vst [vmem:[%s4 + $0x40] sm:$0xff] %v2552
  %2569 = vst [vmem:[%s4 + $0x48] sm:$0xff] %v2553
  %2570 = vst [vmem:[%s4 + $0x50] sm:$0xff] %v2554
  %2571 = vst [vmem:[%s4 + $0x58] sm:$0xff] %v2555
  %2572 = vst [vmem:[%s4 + $0x60] sm:$0xff] %v2556
  %2573 = vst [vmem:[%s4 + $0x68] sm:$0xff] %v2557
  %2574 = vst [vmem:[%s4 + $0x70] sm:$0xff] %v2558
  %2575 = vst [vmem:[%s4 + $0x78] sm:$0xff] %v2559
  // Predicated region
  $region18: #{discriminator.12} parent=0 // pred_check
    _
  $region19: #{discriminator.12} parent=0 // pred_check_branch
    %2577 = sbr.rel (0) target = $region21
  $region20: #{discriminator.12} parent=0 // pred_region
    _
  $region21: #{discriminator.12} parent=0 // pred_fallthru
    _
  // Predicated region
  $region22: #{discriminator.12} parent=0 // pred_check
    _
  $region23: #{discriminator.12} parent=0 // pred_check_branch
    %2579 = sbr.rel (0) target = $region25
  $region24: #{discriminator.12} parent=0 // pred_region
    _
  $region25: #{discriminator.12} parent=0 // pred_fallthru
    _

// kernel: discriminator.13
$region0: #{discriminator.13}
  #allocation0 [shape = 'u32[]', space=smem, size = 0x4, offset = 0x4, fixed_abs, tag = 'smem constant byte address 0x4 - core index']
  #allocation1 [shape = 'u32[72,128]{1,0:T(1,128)}', space=vmem, size = 0x9000, scoped, tag = 'internal scratch']
  %s0 = inlined_call_operand.vmem [shape: bf16[128,2304], index: 0, kind: input, shape index: {}]
  %s1 = inlined_call_operand.vmem [shape: bf16[2304,128], index: 1, kind: input, shape index: {}]
  %s2 = inlined_call_operand.vmem [shape: f32[128,128], index: 2, kind: output, shape index: {}]
  %s3 = sld [smem:[#allocation0]]
  $region18: #{discriminator.13} parent=0
    _
  %s5 = ssub.s32 1, %s3
  %s6 = scalar_select 0, %s5, %s3
  // Predicated region
  $region2: #{discriminator.13} parent=0 // pred_check
    _
  $region3: #{discriminator.13} parent=0 // pred_check_branch
    %8 = sbr.rel (0) target = $region5
  $region4: #{discriminator.13} parent=0 // pred_region
    _
  $region5: #{discriminator.13} parent=0 // pred_fallthru
    _
  // Predicated region
  $region6: #{discriminator.13} parent=0 // pred_check
    _
  $region7: #{discriminator.13} parent=0 // pred_check_branch
    %10 = sbr.rel (0) target = $region9
  $region8: #{discriminator.13} parent=0 // pred_region
    _
  $region9: #{discriminator.13} parent=0 // pred_fallthru
    _
  %v11 = vld [vmem:[%s0] sm:$0xff]
  %v12 = vld [vmem:[%s0 + $0x8] sm:$0xff]
  %v13 = vld [vmem:[%s0 + $0x10] sm:$0xff]
  %v14 = vld [vmem:[%s0 + $0x18] sm:$0xff]
  %v15 = vld [vmem:[%s0 + $0x20] sm:$0xff]
  %v16 = vld [vmem:[%s0 + $0x28] sm:$0xff]
  %v17 = vld [vmem:[%s0 + $0x30] sm:$0xff]
  %v18 = vld [vmem:[%s0 + $0x38] sm:$0xff]
  %v19 = vld [vmem:[%s0 + $0x40] sm:$0xff]
  %v20 = vld [vmem:[%s0 + $0x48] sm:$0xff]
  %v21 = vld [vmem:[%s0 + $0x50] sm:$0xff]
  %v22 = vld [vmem:[%s0 + $0x58] sm:$0xff]
  %v23 = vld [vmem:[%s0 + $0x60] sm:$0xff]
  %v24 = vld [vmem:[%s0 + $0x68] sm:$0xff]
  %v25 = vld [vmem:[%s0 + $0x70] sm:$0xff]
  %v26 = vld [vmem:[%s0 + $0x78] sm:$0xff]
  %v27 = vld [vmem:[%s0 + $0x80] sm:$0xff]
  %v28 = vld [vmem:[%s0 + $0x88] sm:$0xff]
  %v29 = vld [vmem:[%s0 + $0x90] sm:$0xff]
  %v30 = vld [vmem:[%s0 + $0x98] sm:$0xff]
  %v31 = vld [vmem:[%s0 + $0xa0] sm:$0xff]
  %v32 = vld [vmem:[%s0 + $0xa8] sm:$0xff]
  %v33 = vld [vmem:[%s0 + $0xb0] sm:$0xff]
  %v34 = vld [vmem:[%s0 + $0xb8] sm:$0xff]
  %v35 = vld [vmem:[%s0 + $0xc0] sm:$0xff]
  %v36 = vld [vmem:[%s0 + $0xc8] sm:$0xff]
  %v37 = vld [vmem:[%s0 + $0xd0] sm:$0xff]
  %v38 = vld [vmem:[%s0 + $0xd8] sm:$0xff]
  %v39 = vld [vmem:[%s0 + $0xe0] sm:$0xff]
  %v40 = vld [vmem:[%s0 + $0xe8] sm:$0xff]
  %v41 = vld [vmem:[%s0 + $0xf0] sm:$0xff]
  %v42 = vld [vmem:[%s0 + $0xf8] sm:$0xff]
  %v43 = vld [vmem:[%s0 + $0x100] sm:$0xff]
  %v44 = vld [vmem:[%s0 + $0x108] sm:$0xff]
  %v45 = vld [vmem:[%s0 + $0x110] sm:$0xff]
  %v46 = vld [vmem:[%s0 + $0x118] sm:$0xff]
  %v47 = vld [vmem:[%s0 + $0x120] sm:$0xff]
  %v48 = vld [vmem:[%s0 + $0x128] sm:$0xff]
  %v49 = vld [vmem:[%s0 + $0x130] sm:$0xff]
  %v50 = vld [vmem:[%s0 + $0x138] sm:$0xff]
  %v51 = vld [vmem:[%s0 + $0x140] sm:$0xff]
  %v52 = vld [vmem:[%s0 + $0x148] sm:$0xff]
  %v53 = vld [vmem:[%s0 + $0x150] sm:$0xff]
  %v54 = vld [vmem:[%s0 + $0x158] sm:$0xff]
  %v55 = vld [vmem:[%s0 + $0x160] sm:$0xff]
  %v56 = vld [vmem:[%s0 + $0x168] sm:$0xff]
  %v57 = vld [vmem:[%s0 + $0x170] sm:$0xff]
  %v58 = vld [vmem:[%s0 + $0x178] sm:$0xff]
  %v59 = vld [vmem:[%s0 + $0x180] sm:$0xff]
  %v60 = vld [vmem:[%s0 + $0x188] sm:$0xff]
  %v61 = vld [vmem:[%s0 + $0x190] sm:$0xff]
  %v62 = vld [vmem:[%s0 + $0x198] sm:$0xff]
  %v63 = vld [vmem:[%s0 + $0x1a0] sm:$0xff]
  %v64 = vld [vmem:[%s0 + $0x1a8] sm:$0xff]
  %v65 = vld [vmem:[%s0 + $0x1b0] sm:$0xff]
  %v66 = vld [vmem:[%s0 + $0x1b8] sm:$0xff]
  %v67 = vld [vmem:[%s0 + $0x1c0] sm:$0xff]
  %v68 = vld [vmem:[%s0 + $0x1c8] sm:$0xff]
  %v69 = vld [vmem:[%s0 + $0x1d0] sm:$0xff]
  %v70 = vld [vmem:[%s0 + $0x1d8] sm:$0xff]
  %v71 = vld [vmem:[%s0 + $0x1e0] sm:$0xff]
  %v72 = vld [vmem:[%s0 + $0x1e8] sm:$0xff]
  %v73 = vld [vmem:[%s0 + $0x1f0] sm:$0xff]
  %v74 = vld [vmem:[%s0 + $0x1f8] sm:$0xff]
  %v75 = vld [vmem:[%s0 + $0x200] sm:$0xff]
  %v76 = vld [vmem:[%s0 + $0x208] sm:$0xff]
  %v77 = vld [vmem:[%s0 + $0x210] sm:$0xff]
  %v78 = vld [vmem:[%s0 + $0x218] sm:$0xff]
  %v79 = vld [vmem:[%s0 + $0x220] sm:$0xff]
  %v80 = vld [vmem:[%s0 + $0x228] sm:$0xff]
  %v81 = vld [vmem:[%s0 + $0x230] sm:$0xff]
  %v82 = vld [vmem:[%s0 + $0x238] sm:$0xff]
  %v83 = vld [vmem:[%s0 + $0x240] sm:$0xff]
  %v84 = vld [vmem:[%s0 + $0x248] sm:$0xff]
  %v85 = vld [vmem:[%s0 + $0x250] sm:$0xff]
  %v86 = vld [vmem:[%s0 + $0x258] sm:$0xff]
  %v87 = vld [vmem:[%s0 + $0x260] sm:$0xff]
  %v88 = vld [vmem:[%s0 + $0x268] sm:$0xff]
  %v89 = vld [vmem:[%s0 + $0x270] sm:$0xff]
  %v90 = vld [vmem:[%s0 + $0x278] sm:$0xff]
  %v91 = vld [vmem:[%s0 + $0x280] sm:$0xff]
  %v92 = vld [vmem:[%s0 + $0x288] sm:$0xff]
  %v93 = vld [vmem:[%s0 + $0x290] sm:$0xff]
  %v94 = vld [vmem:[%s0 + $0x298] sm:$0xff]
  %v95 = vld [vmem:[%s0 + $0x2a0] sm:$0xff]
  %v96 = vld [vmem:[%s0 + $0x2a8] sm:$0xff]
  %v97 = vld [vmem:[%s0 + $0x2b0] sm:$0xff]
  %v98 = vld [vmem:[%s0 + $0x2b8] sm:$0xff]
  %v99 = vld [vmem:[%s0 + $0x2c0] sm:$0xff]
  %v100 = vld [vmem:[%s0 + $0x2c8] sm:$0xff]
  %v101 = vld [vmem:[%s0 + $0x2d0] sm:$0xff]
  %v102 = vld [vmem:[%s0 + $0x2d8] sm:$0xff]
  %v103 = vld [vmem:[%s0 + $0x2e0] sm:$0xff]
  %v104 = vld [vmem:[%s0 + $0x2e8] sm:$0xff]
  %v105 = vld [vmem:[%s0 + $0x2f0] sm:$0xff]
  %v106 = vld [vmem:[%s0 + $0x2f8] sm:$0xff]
  %v107 = vld [vmem:[%s0 + $0x300] sm:$0xff]
  %v108 = vld [vmem:[%s0 + $0x308] sm:$0xff]
  %v109 = vld [vmem:[%s0 + $0x310] sm:$0xff]
  %v110 = vld [vmem:[%s0 + $0x318] sm:$0xff]
  %v111 = vld [vmem:[%s0 + $0x320] sm:$0xff]
  %v112 = vld [vmem:[%s0 + $0x328] sm:$0xff]
  %v113 = vld [vmem:[%s0 + $0x330] sm:$0xff]
  %v114 = vld [vmem:[%s0 + $0x338] sm:$0xff]
  %v115 = vld [vmem:[%s0 + $0x340] sm:$0xff]
  %v116 = vld [vmem:[%s0 + $0x348] sm:$0xff]
  %v117 = vld [vmem:[%s0 + $0x350] sm:$0xff]
  %v118 = vld [vmem:[%s0 + $0x358] sm:$0xff]
  %v119 = vld [vmem:[%s0 + $0x360] sm:$0xff]
  %v120 = vld [vmem:[%s0 + $0x368] sm:$0xff]
  %v121 = vld [vmem:[%s0 + $0x370] sm:$0xff]
  %v122 = vld [vmem:[%s0 + $0x378] sm:$0xff]
  %v123 = vld [vmem:[%s0 + $0x380] sm:$0xff]
  %v124 = vld [vmem:[%s0 + $0x388] sm:$0xff]
  %v125 = vld [vmem:[%s0 + $0x390] sm:$0xff]
  %v126 = vld [vmem:[%s0 + $0x398] sm:$0xff]
  %v127 = vld [vmem:[%s0 + $0x3a0] sm:$0xff]
  %v128 = vld [vmem:[%s0 + $0x3a8] sm:$0xff]
  %v129 = vld [vmem:[%s0 + $0x3b0] sm:$0xff]
  %v130 = vld [vmem:[%s0 + $0x3b8] sm:$0xff]
  %v131 = vld [vmem:[%s0 + $0x3c0] sm:$0xff]
  %v132 = vld [vmem:[%s0 + $0x3c8] sm:$0xff]
  %v133 = vld [vmem:[%s0 + $0x3d0] sm:$0xff]
  %v134 = vld [vmem:[%s0 + $0x3d8] sm:$0xff]
  %v135 = vld [vmem:[%s0 + $0x3e0] sm:$0xff]
  %v136 = vld [vmem:[%s0 + $0x3e8] sm:$0xff]
  %v137 = vld [vmem:[%s0 + $0x3f0] sm:$0xff]
  %v138 = vld [vmem:[%s0 + $0x3f8] sm:$0xff]
  %v139 = vld [vmem:[%s0 + $0x400] sm:$0xff]
  %v140 = vld [vmem:[%s0 + $0x408] sm:$0xff]
  %v141 = vld [vmem:[%s0 + $0x410] sm:$0xff]
  %v142 = vld [vmem:[%s0 + $0x418] sm:$0xff]
  %v143 = vld [vmem:[%s0 + $0x420] sm:$0xff]
  %v144 = vld [vmem:[%s0 + $0x428] sm:$0xff]
  %v145 = vld [vmem:[%s0 + $0x430] sm:$0xff]
  %v146 = vld [vmem:[%s0 + $0x438] sm:$0xff]
  %v147 = vld [vmem:[%s0 + $0x440] sm:$0xff]
  %v148 = vld [vmem:[%s0 + $0x448] sm:$0xff]
  %v149 = vld [vmem:[%s0 + $0x450] sm:$0xff]
  %v150 = vld [vmem:[%s0 + $0x458] sm:$0xff]
  %v151 = vld [vmem:[%s0 + $0x460] sm:$0xff]
  %v152 = vld [vmem:[%s0 + $0x468] sm:$0xff]
  %v153 = vld [vmem:[%s0 + $0x470] sm:$0xff]
  %v154 = vld [vmem:[%s0 + $0x478] sm:$0xff]
  %v155 = vld [vmem:[%s1] sm:$0xf]
  %v156 = vld [vmem:[%s1 + $0x4] sm:$0xf]
  %v157 = vld [vmem:[%s1 + $0x8] sm:$0xf]
  %v158 = vld [vmem:[%s1 + $0xc] sm:$0xf]
  %v159 = vld [vmem:[%s1 + $0x10] sm:$0xf]
  %v160 = vld [vmem:[%s1 + $0x14] sm:$0xf]
  %v161 = vld [vmem:[%s1 + $0x18] sm:$0xf]
  %v162 = vld [vmem:[%s1 + $0x1c] sm:$0xf]
  %v163 = vld [vmem:[%s1 + $0x20] sm:$0xf]
  %v164 = vld [vmem:[%s1 + $0x24] sm:$0xf]
  %v165 = vld [vmem:[%s1 + $0x28] sm:$0xf]
  %v166 = vld [vmem:[%s1 + $0x2c] sm:$0xf]
  %v167 = vld [vmem:[%s1 + $0x30] sm:$0xf]
  %v168 = vld [vmem:[%s1 + $0x34] sm:$0xf]
  %v169 = vld [vmem:[%s1 + $0x38] sm:$0xf]
  %v170 = vld [vmem:[%s1 + $0x3c] sm:$0xf]
  %v171 = vld [vmem:[%s1 + $0x40] sm:$0xf]
  %v172 = vld [vmem:[%s1 + $0x44] sm:$0xf]
  %v173 = vld [vmem:[%s1 + $0x48] sm:$0xf]
  %v174 = vld [vmem:[%s1 + $0x4c] sm:$0xf]
  %v175 = vld [vmem:[%s1 + $0x50] sm:$0xf]
  %v176 = vld [vmem:[%s1 + $0x54] sm:$0xf]
  %v177 = vld [vmem:[%s1 + $0x58] sm:$0xf]
  %v178 = vld [vmem:[%s1 + $0x5c] sm:$0xf]
  %v179 = vld [vmem:[%s1 + $0x60] sm:$0xf]
  %v180 = vld [vmem:[%s1 + $0x64] sm:$0xf]
  %v181 = vld [vmem:[%s1 + $0x68] sm:$0xf]
  %v182 = vld [vmem:[%s1 + $0x6c] sm:$0xf]
  %v183 = vld [vmem:[%s1 + $0x70] sm:$0xf]
  %v184 = vld [vmem:[%s1 + $0x74] sm:$0xf]
  %v185 = vld [vmem:[%s1 + $0x78] sm:$0xf]
  %v186 = vld [vmem:[%s1 + $0x7c] sm:$0xf]
  %v187 = vld [vmem:[%s1 + $0x80] sm:$0xf]
  %v188 = vld [vmem:[%s1 + $0x84] sm:$0xf]
  %v189 = vld [vmem:[%s1 + $0x88] sm:$0xf]
  %v190 = vld [vmem:[%s1 + $0x8c] sm:$0xf]
  %v191 = vld [vmem:[%s1 + $0x90] sm:$0xf]
  %v192 = vld [vmem:[%s1 + $0x94] sm:$0xf]
  %v193 = vld [vmem:[%s1 + $0x98] sm:$0xf]
  %v194 = vld [vmem:[%s1 + $0x9c] sm:$0xf]
  %v195 = vld [vmem:[%s1 + $0xa0] sm:$0xf]
  %v196 = vld [vmem:[%s1 + $0xa4] sm:$0xf]
  %v197 = vld [vmem:[%s1 + $0xa8] sm:$0xf]
  %v198 = vld [vmem:[%s1 + $0xac] sm:$0xf]
  %v199 = vld [vmem:[%s1 + $0xb0] sm:$0xf]
  %v200 = vld [vmem:[%s1 + $0xb4] sm:$0xf]
  %v201 = vld [vmem:[%s1 + $0xb8] sm:$0xf]
  %v202 = vld [vmem:[%s1 + $0xbc] sm:$0xf]
  %v203 = vld [vmem:[%s1 + $0xc0] sm:$0xf]
  %v204 = vld [vmem:[%s1 + $0xc4] sm:$0xf]
  %v205 = vld [vmem:[%s1 + $0xc8] sm:$0xf]
  %v206 = vld [vmem:[%s1 + $0xcc] sm:$0xf]
  %v207 = vld [vmem:[%s1 + $0xd0] sm:$0xf]
  %v208 = vld [vmem:[%s1 + $0xd4] sm:$0xf]
  %v209 = vld [vmem:[%s1 + $0xd8] sm:$0xf]
  %v210 = vld [vmem:[%s1 + $0xdc] sm:$0xf]
  %v211 = vld [vmem:[%s1 + $0xe0] sm:$0xf]
  %v212 = vld [vmem:[%s1 + $0xe4] sm:$0xf]
  %v213 = vld [vmem:[%s1 + $0xe8] sm:$0xf]
  %v214 = vld [vmem:[%s1 + $0xec] sm:$0xf]
  %v215 = vld [vmem:[%s1 + $0xf0] sm:$0xf]
  %v216 = vld [vmem:[%s1 + $0xf4] sm:$0xf]
  %v217 = vld [vmem:[%s1 + $0xf8] sm:$0xf]
  %v218 = vld [vmem:[%s1 + $0xfc] sm:$0xf]
  %v219 = vld [vmem:[%s1 + $0x100] sm:$0xf]
  %v220 = vld [vmem:[%s1 + $0x104] sm:$0xf]
  %v221 = vld [vmem:[%s1 + $0x108] sm:$0xf]
  %v222 = vld [vmem:[%s1 + $0x10c] sm:$0xf]
  %v223 = vld [vmem:[%s1 + $0x110] sm:$0xf]
  %v224 = vld [vmem:[%s1 + $0x114] sm:$0xf]
  %v225 = vld [vmem:[%s1 + $0x118] sm:$0xf]
  %v226 = vld [vmem:[%s1 + $0x11c] sm:$0xf]
  %v227 = vld [vmem:[%s1 + $0x120] sm:$0xf]
  %v228 = vld [vmem:[%s1 + $0x124] sm:$0xf]
  %v229 = vld [vmem:[%s1 + $0x128] sm:$0xf]
  %v230 = vld [vmem:[%s1 + $0x12c] sm:$0xf]
  %v231 = vld [vmem:[%s1 + $0x130] sm:$0xf]
  %v232 = vld [vmem:[%s1 + $0x134] sm:$0xf]
  %v233 = vld [vmem:[%s1 + $0x138] sm:$0xf]
  %v234 = vld [vmem:[%s1 + $0x13c] sm:$0xf]
  %v235 = vld [vmem:[%s1 + $0x140] sm:$0xf]
  %v236 = vld [vmem:[%s1 + $0x144] sm:$0xf]
  %v237 = vld [vmem:[%s1 + $0x148] sm:$0xf]
  %v238 = vld [vmem:[%s1 + $0x14c] sm:$0xf]
  %v239 = vld [vmem:[%s1 + $0x150] sm:$0xf]
  %v240 = vld [vmem:[%s1 + $0x154] sm:$0xf]
  %v241 = vld [vmem:[%s1 + $0x158] sm:$0xf]
  %v242 = vld [vmem:[%s1 + $0x15c] sm:$0xf]
  %v243 = vld [vmem:[%s1 + $0x160] sm:$0xf]
  %v244 = vld [vmem:[%s1 + $0x164] sm:$0xf]
  %v245 = vld [vmem:[%s1 + $0x168] sm:$0xf]
  %v246 = vld [vmem:[%s1 + $0x16c] sm:$0xf]
  %v247 = vld [vmem:[%s1 + $0x170] sm:$0xf]
  %v248 = vld [vmem:[%s1 + $0x174] sm:$0xf]
  %v249 = vld [vmem:[%s1 + $0x178] sm:$0xf]
  %v250 = vld [vmem:[%s1 + $0x17c] sm:$0xf]
  %v251 = vld [vmem:[%s1 + $0x180] sm:$0xf]
  %v252 = vld [vmem:[%s1 + $0x184] sm:$0xf]
  %v253 = vld [vmem:[%s1 + $0x188] sm:$0xf]
  %v254 = vld [vmem:[%s1 + $0x18c] sm:$0xf]
  %v255 = vld [vmem:[%s1 + $0x190] sm:$0xf]
  %v256 = vld [vmem:[%s1 + $0x194] sm:$0xf]
  %v257 = vld [vmem:[%s1 + $0x198] sm:$0xf]
  %v258 = vld [vmem:[%s1 + $0x19c] sm:$0xf]
  %v259 = vld [vmem:[%s1 + $0x1a0] sm:$0xf]
  %v260 = vld [vmem:[%s1 + $0x1a4] sm:$0xf]
  %v261 = vld [vmem:[%s1 + $0x1a8] sm:$0xf]
  %v262 = vld [vmem:[%s1 + $0x1ac] sm:$0xf]
  %v263 = vld [vmem:[%s1 + $0x1b0] sm:$0xf]
  %v264 = vld [vmem:[%s1 + $0x1b4] sm:$0xf]
  %v265 = vld [vmem:[%s1 + $0x1b8] sm:$0xf]
  %v266 = vld [vmem:[%s1 + $0x1bc] sm:$0xf]
  %v267 = vld [vmem:[%s1 + $0x1c0] sm:$0xf]
  %v268 = vld [vmem:[%s1 + $0x1c4] sm:$0xf]
  %v269 = vld [vmem:[%s1 + $0x1c8] sm:$0xf]
  %v270 = vld [vmem:[%s1 + $0x1cc] sm:$0xf]
  %v271 = vld [vmem:[%s1 + $0x1d0] sm:$0xf]
  %v272 = vld [vmem:[%s1 + $0x1d4] sm:$0xf]
  %v273 = vld [vmem:[%s1 + $0x1d8] sm:$0xf]
  %v274 = vld [vmem:[%s1 + $0x1dc] sm:$0xf]
  %v275 = vld [vmem:[%s1 + $0x1e0] sm:$0xf]
  %v276 = vld [vmem:[%s1 + $0x1e4] sm:$0xf]
  %v277 = vld [vmem:[%s1 + $0x1e8] sm:$0xf]
  %v278 = vld [vmem:[%s1 + $0x1ec] sm:$0xf]
  %v279 = vld [vmem:[%s1 + $0x1f0] sm:$0xf]
  %v280 = vld [vmem:[%s1 + $0x1f4] sm:$0xf]
  %v281 = vld [vmem:[%s1 + $0x1f8] sm:$0xf]
  %v282 = vld [vmem:[%s1 + $0x1fc] sm:$0xf]
  %v283 = vld [vmem:[%s1 + $0x200] sm:$0xf]
  %v284 = vld [vmem:[%s1 + $0x204] sm:$0xf]
  %v285 = vld [vmem:[%s1 + $0x208] sm:$0xf]
  %v286 = vld [vmem:[%s1 + $0x20c] sm:$0xf]
  %v287 = vld [vmem:[%s1 + $0x210] sm:$0xf]
  %v288 = vld [vmem:[%s1 + $0x214] sm:$0xf]
  %v289 = vld [vmem:[%s1 + $0x218] sm:$0xf]
  %v290 = vld [vmem:[%s1 + $0x21c] sm:$0xf]
  %v291 = vld [vmem:[%s1 + $0x220] sm:$0xf]
  %v292 = vld [vmem:[%s1 + $0x224] sm:$0xf]
  %v293 = vld [vmem:[%s1 + $0x228] sm:$0xf]
  %v294 = vld [vmem:[%s1 + $0x22c] sm:$0xf]
  %v295 = vld [vmem:[%s1 + $0x230] sm:$0xf]
  %v296 = vld [vmem:[%s1 + $0x234] sm:$0xf]
  %v297 = vld [vmem:[%s1 + $0x238] sm:$0xf]
  %v298 = vld [vmem:[%s1 + $0x23c] sm:$0xf]
  %v299 = vld [vmem:[%s1 + $0x240] sm:$0xf]
  %v300 = vld [vmem:[%s1 + $0x244] sm:$0xf]
  %v301 = vld [vmem:[%s1 + $0x248] sm:$0xf]
  %v302 = vld [vmem:[%s1 + $0x24c] sm:$0xf]
  %v303 = vld [vmem:[%s1 + $0x250] sm:$0xf]
  %v304 = vld [vmem:[%s1 + $0x254] sm:$0xf]
  %v305 = vld [vmem:[%s1 + $0x258] sm:$0xf]
  %v306 = vld [vmem:[%s1 + $0x25c] sm:$0xf]
  %v307 = vld [vmem:[%s1 + $0x260] sm:$0xf]
  %v308 = vld [vmem:[%s1 + $0x264] sm:$0xf]
  %v309 = vld [vmem:[%s1 + $0x268] sm:$0xf]
  %v310 = vld [vmem:[%s1 + $0x26c] sm:$0xf]
  %v311 = vld [vmem:[%s1 + $0x270] sm:$0xf]
  %v312 = vld [vmem:[%s1 + $0x274] sm:$0xf]
  %v313 = vld [vmem:[%s1 + $0x278] sm:$0xf]
  %v314 = vld [vmem:[%s1 + $0x27c] sm:$0xf]
  %v315 = vld [vmem:[%s1 + $0x280] sm:$0xf]
  %v316 = vld [vmem:[%s1 + $0x284] sm:$0xf]
  %v317 = vld [vmem:[%s1 + $0x288] sm:$0xf]
  %v318 = vld [vmem:[%s1 + $0x28c] sm:$0xf]
  %v319 = vld [vmem:[%s1 + $0x290] sm:$0xf]
  %v320 = vld [vmem:[%s1 + $0x294] sm:$0xf]
  %v321 = vld [vmem:[%s1 + $0x298] sm:$0xf]
  %v322 = vld [vmem:[%s1 + $0x29c] sm:$0xf]
  %v323 = vld [vmem:[%s1 + $0x2a0] sm:$0xf]
  %v324 = vld [vmem:[%s1 + $0x2a4] sm:$0xf]
  %v325 = vld [vmem:[%s1 + $0x2a8] sm:$0xf]
  %v326 = vld [vmem:[%s1 + $0x2ac] sm:$0xf]
  %v327 = vld [vmem:[%s1 + $0x2b0] sm:$0xf]
  %v328 = vld [vmem:[%s1 + $0x2b4] sm:$0xf]
  %v329 = vld [vmem:[%s1 + $0x2b8] sm:$0xf]
  %v330 = vld [vmem:[%s1 + $0x2bc] sm:$0xf]
  %v331 = vld [vmem:[%s1 + $0x2c0] sm:$0xf]
  %v332 = vld [vmem:[%s1 + $0x2c4] sm:$0xf]
  %v333 = vld [vmem:[%s1 + $0x2c8] sm:$0xf]
  %v334 = vld [vmem:[%s1 + $0x2cc] sm:$0xf]
  %v335 = vld [vmem:[%s1 + $0x2d0] sm:$0xf]
  %v336 = vld [vmem:[%s1 + $0x2d4] sm:$0xf]
  %v337 = vld [vmem:[%s1 + $0x2d8] sm:$0xf]
  %v338 = vld [vmem:[%s1 + $0x2dc] sm:$0xf]
  %v339 = vld [vmem:[%s1 + $0x2e0] sm:$0xf]
  %v340 = vld [vmem:[%s1 + $0x2e4] sm:$0xf]
  %v341 = vld [vmem:[%s1 + $0x2e8] sm:$0xf]
  %v342 = vld [vmem:[%s1 + $0x2ec] sm:$0xf]
  %v343 = vld [vmem:[%s1 + $0x2f0] sm:$0xf]
  %v344 = vld [vmem:[%s1 + $0x2f4] sm:$0xf]
  %v345 = vld [vmem:[%s1 + $0x2f8] sm:$0xf]
  %v346 = vld [vmem:[%s1 + $0x2fc] sm:$0xf]
  %v347 = vld [vmem:[%s1 + $0x300] sm:$0xf]
  %v348 = vld [vmem:[%s1 + $0x304] sm:$0xf]
  %v349 = vld [vmem:[%s1 + $0x308] sm:$0xf]
  %v350 = vld [vmem:[%s1 + $0x30c] sm:$0xf]
  %v351 = vld [vmem:[%s1 + $0x310] sm:$0xf]
  %v352 = vld [vmem:[%s1 + $0x314] sm:$0xf]
  %v353 = vld [vmem:[%s1 + $0x318] sm:$0xf]
  %v354 = vld [vmem:[%s1 + $0x31c] sm:$0xf]
  %v355 = vld [vmem:[%s1 + $0x320] sm:$0xf]
  %v356 = vld [vmem:[%s1 + $0x324] sm:$0xf]
  %v357 = vld [vmem:[%s1 + $0x328] sm:$0xf]
  %v358 = vld [vmem:[%s1 + $0x32c] sm:$0xf]
  %v359 = vld [vmem:[%s1 + $0x330] sm:$0xf]
  %v360 = vld [vmem:[%s1 + $0x334] sm:$0xf]
  %v361 = vld [vmem:[%s1 + $0x338] sm:$0xf]
  %v362 = vld [vmem:[%s1 + $0x33c] sm:$0xf]
  %v363 = vld [vmem:[%s1 + $0x340] sm:$0xf]
  %v364 = vld [vmem:[%s1 + $0x344] sm:$0xf]
  %v365 = vld [vmem:[%s1 + $0x348] sm:$0xf]
  %v366 = vld [vmem:[%s1 + $0x34c] sm:$0xf]
  %v367 = vld [vmem:[%s1 + $0x350] sm:$0xf]
  %v368 = vld [vmem:[%s1 + $0x354] sm:$0xf]
  %v369 = vld [vmem:[%s1 + $0x358] sm:$0xf]
  %v370 = vld [vmem:[%s1 + $0x35c] sm:$0xf]
  %v371 = vld [vmem:[%s1 + $0x360] sm:$0xf]
  %v372 = vld [vmem:[%s1 + $0x364] sm:$0xf]
  %v373 = vld [vmem:[%s1 + $0x368] sm:$0xf]
  %v374 = vld [vmem:[%s1 + $0x36c] sm:$0xf]
  %v375 = vld [vmem:[%s1 + $0x370] sm:$0xf]
  %v376 = vld [vmem:[%s1 + $0x374] sm:$0xf]
  %v377 = vld [vmem:[%s1 + $0x378] sm:$0xf]
  %v378 = vld [vmem:[%s1 + $0x37c] sm:$0xf]
  %v379 = vld [vmem:[%s1 + $0x380] sm:$0xf]
  %v380 = vld [vmem:[%s1 + $0x384] sm:$0xf]
  %v381 = vld [vmem:[%s1 + $0x388] sm:$0xf]
  %v382 = vld [vmem:[%s1 + $0x38c] sm:$0xf]
  %v383 = vld [vmem:[%s1 + $0x390] sm:$0xf]
  %v384 = vld [vmem:[%s1 + $0x394] sm:$0xf]
  %v385 = vld [vmem:[%s1 + $0x398] sm:$0xf]
  %v386 = vld [vmem:[%s1 + $0x39c] sm:$0xf]
  %v387 = vld [vmem:[%s1 + $0x3a0] sm:$0xf]
  %v388 = vld [vmem:[%s1 + $0x3a4] sm:$0xf]
  %v389 = vld [vmem:[%s1 + $0x3a8] sm:$0xf]
  %v390 = vld [vmem:[%s1 + $0x3ac] sm:$0xf]
  %v391 = vld [vmem:[%s1 + $0x3b0] sm:$0xf]
  %v392 = vld [vmem:[%s1 + $0x3b4] sm:$0xf]
  %v393 = vld [vmem:[%s1 + $0x3b8] sm:$0xf]
  %v394 = vld [vmem:[%s1 + $0x3bc] sm:$0xf]
  %v395 = vld [vmem:[%s1 + $0x3c0] sm:$0xf]
  %v396 = vld [vmem:[%s1 + $0x3c4] sm:$0xf]
  %v397 = vld [vmem:[%s1 + $0x3c8] sm:$0xf]
  %v398 = vld [vmem:[%s1 + $0x3cc] sm:$0xf]
  %v399 = vld [vmem:[%s1 + $0x3d0] sm:$0xf]
  %v400 = vld [vmem:[%s1 + $0x3d4] sm:$0xf]
  %v401 = vld [vmem:[%s1 + $0x3d8] sm:$0xf]
  %v402 = vld [vmem:[%s1 + $0x3dc] sm:$0xf]
  %v403 = vld [vmem:[%s1 + $0x3e0] sm:$0xf]
  %v404 = vld [vmem:[%s1 + $0x3e4] sm:$0xf]
  %v405 = vld [vmem:[%s1 + $0x3e8] sm:$0xf]
  %v406 = vld [vmem:[%s1 + $0x3ec] sm:$0xf]
  %v407 = vld [vmem:[%s1 + $0x3f0] sm:$0xf]
  %v408 = vld [vmem:[%s1 + $0x3f4] sm:$0xf]
  %v409 = vld [vmem:[%s1 + $0x3f8] sm:$0xf]
  %v410 = vld [vmem:[%s1 + $0x3fc] sm:$0xf]
  %v411 = vld [vmem:[%s1 + $0x400] sm:$0xf]
  %v412 = vld [vmem:[%s1 + $0x404] sm:$0xf]
  %v413 = vld [vmem:[%s1 + $0x408] sm:$0xf]
  %v414 = vld [vmem:[%s1 + $0x40c] sm:$0xf]
  %v415 = vld [vmem:[%s1 + $0x410] sm:$0xf]
  %v416 = vld [vmem:[%s1 + $0x414] sm:$0xf]
  %v417 = vld [vmem:[%s1 + $0x418] sm:$0xf]
  %v418 = vld [vmem:[%s1 + $0x41c] sm:$0xf]
  %v419 = vld [vmem:[%s1 + $0x420] sm:$0xf]
  %v420 = vld [vmem:[%s1 + $0x424] sm:$0xf]
  %v421 = vld [vmem:[%s1 + $0x428] sm:$0xf]
  %v422 = vld [vmem:[%s1 + $0x42c] sm:$0xf]
  %v423 = vld [vmem:[%s1 + $0x430] sm:$0xf]
  %v424 = vld [vmem:[%s1 + $0x434] sm:$0xf]
  %v425 = vld [vmem:[%s1 + $0x438] sm:$0xf]
  %v426 = vld [vmem:[%s1 + $0x43c] sm:$0xf]
  %v427 = vld [vmem:[%s1 + $0x440] sm:$0xf]
  %v428 = vld [vmem:[%s1 + $0x444] sm:$0xf]
  %v429 = vld [vmem:[%s1 + $0x448] sm:$0xf]
  %v430 = vld [vmem:[%s1 + $0x44c] sm:$0xf]
  %v431 = vld [vmem:[%s1 + $0x450] sm:$0xf]
  %v432 = vld [vmem:[%s1 + $0x454] sm:$0xf]
  %v433 = vld [vmem:[%s1 + $0x458] sm:$0xf]
  %v434 = vld [vmem:[%s1 + $0x45c] sm:$0xf]
  %v435 = vld [vmem:[%s1 + $0x460] sm:$0xf]
  %v436 = vld [vmem:[%s1 + $0x464] sm:$0xf]
  %v437 = vld [vmem:[%s1 + $0x468] sm:$0xf]
  %v438 = vld [vmem:[%s1 + $0x46c] sm:$0xf]
  %v439 = vld [vmem:[%s1 + $0x470] sm:$0xf]
  %v440 = vld [vmem:[%s1 + $0x474] sm:$0xf]
  %v441 = vld [vmem:[%s1 + $0x478] sm:$0xf]
  %v442 = vld [vmem:[%s1 + $0x47c] sm:$0xf]
  %v587 = vunpack.c.l.b16 %v11
  %v588 = vunpack.c.h.b16 %v11
  %v589 = vunpack.c.l.b16 %v12
  %v590 = vunpack.c.h.b16 %v12
  %v591 = vunpack.c.l.b16 %v13
  %v592 = vunpack.c.h.b16 %v13
  %v593 = vunpack.c.l.b16 %v14
  %v594 = vunpack.c.h.b16 %v14
  %v595 = vunpack.c.l.b16 %v15
  %v596 = vunpack.c.h.b16 %v15
  %v597 = vunpack.c.l.b16 %v16
  %v598 = vunpack.c.h.b16 %v16
  %v599 = vunpack.c.l.b16 %v17
  %v600 = vunpack.c.h.b16 %v17
  %v601 = vunpack.c.l.b16 %v18
  %v602 = vunpack.c.h.b16 %v18
  %v603 = vunpack.c.l.b16 %v19
  %v604 = vunpack.c.h.b16 %v19
  %v605 = vunpack.c.l.b16 %v20
  %v606 = vunpack.c.h.b16 %v20
  %v607 = vunpack.c.l.b16 %v21
  %v608 = vunpack.c.h.b16 %v21
  %v609 = vunpack.c.l.b16 %v22
  %v610 = vunpack.c.h.b16 %v22
  %v611 = vunpack.c.l.b16 %v23
  %v612 = vunpack.c.h.b16 %v23
  %v613 = vunpack.c.l.b16 %v24
  %v614 = vunpack.c.h.b16 %v24
  %v615 = vunpack.c.l.b16 %v25
  %v616 = vunpack.c.h.b16 %v25
  %v617 = vunpack.c.l.b16 %v26
  %v618 = vunpack.c.h.b16 %v26
  %v619 = vunpack.c.l.b16 %v27
  %v620 = vunpack.c.h.b16 %v27
  %v621 = vunpack.c.l.b16 %v28
  %v622 = vunpack.c.h.b16 %v28
  %v623 = vunpack.c.l.b16 %v29
  %v624 = vunpack.c.h.b16 %v29
  %v625 = vunpack.c.l.b16 %v30
  %v626 = vunpack.c.h.b16 %v30
  %v627 = vunpack.c.l.b16 %v31
  %v628 = vunpack.c.h.b16 %v31
  %v629 = vunpack.c.l.b16 %v32
  %v630 = vunpack.c.h.b16 %v32
  %v631 = vunpack.c.l.b16 %v33
  %v632 = vunpack.c.h.b16 %v33
  %v633 = vunpack.c.l.b16 %v34
  %v634 = vunpack.c.h.b16 %v34
  %v635 = vunpack.c.l.b16 %v35
  %v636 = vunpack.c.h.b16 %v35
  %v637 = vunpack.c.l.b16 %v36
  %v638 = vunpack.c.h.b16 %v36
  %v639 = vunpack.c.l.b16 %v37
  %v640 = vunpack.c.h.b16 %v37
  %v641 = vunpack.c.l.b16 %v38
  %v642 = vunpack.c.h.b16 %v38
  %v643 = vunpack.c.l.b16 %v39
  %v644 = vunpack.c.h.b16 %v39
  %v645 = vunpack.c.l.b16 %v40
  %v646 = vunpack.c.h.b16 %v40
  %v647 = vunpack.c.l.b16 %v41
  %v648 = vunpack.c.h.b16 %v41
  %v649 = vunpack.c.l.b16 %v42
  %v650 = vunpack.c.h.b16 %v42
  %v651 = vunpack.c.l.b16 %v43
  %v652 = vunpack.c.h.b16 %v43
  %v653 = vunpack.c.l.b16 %v44
  %v654 = vunpack.c.h.b16 %v44
  %v655 = vunpack.c.l.b16 %v45
  %v656 = vunpack.c.h.b16 %v45
  %v657 = vunpack.c.l.b16 %v46
  %v658 = vunpack.c.h.b16 %v46
  %v659 = vunpack.c.l.b16 %v47
  %v660 = vunpack.c.h.b16 %v47
  %v661 = vunpack.c.l.b16 %v48
  %v662 = vunpack.c.h.b16 %v48
  %v663 = vunpack.c.l.b16 %v49
  %v664 = vunpack.c.h.b16 %v49
  %v665 = vunpack.c.l.b16 %v50
  %v666 = vunpack.c.h.b16 %v50
  %v667 = vunpack.c.l.b16 %v51
  %v668 = vunpack.c.h.b16 %v51
  %v669 = vunpack.c.l.b16 %v52
  %v670 = vunpack.c.h.b16 %v52
  %v671 = vunpack.c.l.b16 %v53
  %v672 = vunpack.c.h.b16 %v53
  %v673 = vunpack.c.l.b16 %v54
  %v674 = vunpack.c.h.b16 %v54
  %v675 = vunpack.c.l.b16 %v55
  %v676 = vunpack.c.h.b16 %v55
  %v677 = vunpack.c.l.b16 %v56
  %v678 = vunpack.c.h.b16 %v56
  %v679 = vunpack.c.l.b16 %v57
  %v680 = vunpack.c.h.b16 %v57
  %v681 = vunpack.c.l.b16 %v58
  %v682 = vunpack.c.h.b16 %v58
  %v683 = vunpack.c.l.b16 %v59
  %v684 = vunpack.c.h.b16 %v59
  %v685 = vunpack.c.l.b16 %v60
  %v686 = vunpack.c.h.b16 %v60
  %v687 = vunpack.c.l.b16 %v61
  %v688 = vunpack.c.h.b16 %v61
  %v689 = vunpack.c.l.b16 %v62
  %v690 = vunpack.c.h.b16 %v62
  %v691 = vunpack.c.l.b16 %v63
  %v692 = vunpack.c.h.b16 %v63
  %v693 = vunpack.c.l.b16 %v64
  %v694 = vunpack.c.h.b16 %v64
  %v695 = vunpack.c.l.b16 %v65
  %v696 = vunpack.c.h.b16 %v65
  %v697 = vunpack.c.l.b16 %v66
  %v698 = vunpack.c.h.b16 %v66
  %v699 = vunpack.c.l.b16 %v67
  %v700 = vunpack.c.h.b16 %v67
  %v701 = vunpack.c.l.b16 %v68
  %v702 = vunpack.c.h.b16 %v68
  %v703 = vunpack.c.l.b16 %v69
  %v704 = vunpack.c.h.b16 %v69
  %v705 = vunpack.c.l.b16 %v70
  %v706 = vunpack.c.h.b16 %v70
  %v707 = vunpack.c.l.b16 %v71
  %v708 = vunpack.c.h.b16 %v71
  %v709 = vunpack.c.l.b16 %v72
  %v710 = vunpack.c.h.b16 %v72
  %v711 = vunpack.c.l.b16 %v73
  %v712 = vunpack.c.h.b16 %v73
  %v713 = vunpack.c.l.b16 %v74
  %v714 = vunpack.c.h.b16 %v74
  %v715 = vunpack.c.l.b16 %v75
  %v716 = vunpack.c.h.b16 %v75
  %v717 = vunpack.c.l.b16 %v76
  %v718 = vunpack.c.h.b16 %v76
  %v719 = vunpack.c.l.b16 %v77
  %v720 = vunpack.c.h.b16 %v77
  %v721 = vunpack.c.l.b16 %v78
  %v722 = vunpack.c.h.b16 %v78
  %v723 = vunpack.c.l.b16 %v79
  %v724 = vunpack.c.h.b16 %v79
  %v725 = vunpack.c.l.b16 %v80
  %v726 = vunpack.c.h.b16 %v80
  %v727 = vunpack.c.l.b16 %v81
  %v728 = vunpack.c.h.b16 %v81
  %v729 = vunpack.c.l.b16 %v82
  %v730 = vunpack.c.h.b16 %v82
  %v731 = vunpack.c.l.b16 %v83
  %v732 = vunpack.c.h.b16 %v83
  %v733 = vunpack.c.l.b16 %v84
  %v734 = vunpack.c.h.b16 %v84
  %v735 = vunpack.c.l.b16 %v85
  %v736 = vunpack.c.h.b16 %v85
  %v737 = vunpack.c.l.b16 %v86
  %v738 = vunpack.c.h.b16 %v86
  %v739 = vunpack.c.l.b16 %v87
  %v740 = vunpack.c.h.b16 %v87
  %v741 = vunpack.c.l.b16 %v88
  %v742 = vunpack.c.h.b16 %v88
  %v743 = vunpack.c.l.b16 %v89
  %v744 = vunpack.c.h.b16 %v89
  %v745 = vunpack.c.l.b16 %v90
  %v746 = vunpack.c.h.b16 %v90
  %v747 = vunpack.c.l.b16 %v91
  %v748 = vunpack.c.h.b16 %v91
  %v749 = vunpack.c.l.b16 %v92
  %v750 = vunpack.c.h.b16 %v92
  %v751 = vunpack.c.l.b16 %v93
  %v752 = vunpack.c.h.b16 %v93
  %v753 = vunpack.c.l.b16 %v94
  %v754 = vunpack.c.h.b16 %v94
  %v755 = vunpack.c.l.b16 %v95
  %v756 = vunpack.c.h.b16 %v95
  %v757 = vunpack.c.l.b16 %v96
  %v758 = vunpack.c.h.b16 %v96
  %v759 = vunpack.c.l.b16 %v97
  %v760 = vunpack.c.h.b16 %v97
  %v761 = vunpack.c.l.b16 %v98
  %v762 = vunpack.c.h.b16 %v98
  %v763 = vunpack.c.l.b16 %v99
  %v764 = vunpack.c.h.b16 %v99
  %v765 = vunpack.c.l.b16 %v100
  %v766 = vunpack.c.h.b16 %v100
  %v767 = vunpack.c.l.b16 %v101
  %v768 = vunpack.c.h.b16 %v101
  %v769 = vunpack.c.l.b16 %v102
  %v770 = vunpack.c.h.b16 %v102
  %v771 = vunpack.c.l.b16 %v103
  %v772 = vunpack.c.h.b16 %v103
  %v773 = vunpack.c.l.b16 %v104
  %v774 = vunpack.c.h.b16 %v104
  %v775 = vunpack.c.l.b16 %v105
  %v776 = vunpack.c.h.b16 %v105
  %v777 = vunpack.c.l.b16 %v106
  %v778 = vunpack.c.h.b16 %v106
  %v779 = vunpack.c.l.b16 %v107
  %v780 = vunpack.c.h.b16 %v107
  %v781 = vunpack.c.l.b16 %v108
  %v782 = vunpack.c.h.b16 %v108
  %v783 = vunpack.c.l.b16 %v109
  %v784 = vunpack.c.h.b16 %v109
  %v785 = vunpack.c.l.b16 %v110
  %v786 = vunpack.c.h.b16 %v110
  %v787 = vunpack.c.l.b16 %v111
  %v788 = vunpack.c.h.b16 %v111
  %v789 = vunpack.c.l.b16 %v112
  %v790 = vunpack.c.h.b16 %v112
  %v791 = vunpack.c.l.b16 %v113
  %v792 = vunpack.c.h.b16 %v113
  %v793 = vunpack.c.l.b16 %v114
  %v794 = vunpack.c.h.b16 %v114
  %v795 = vunpack.c.l.b16 %v115
  %v796 = vunpack.c.h.b16 %v115
  %v797 = vunpack.c.l.b16 %v116
  %v798 = vunpack.c.h.b16 %v116
  %v799 = vunpack.c.l.b16 %v117
  %v800 = vunpack.c.h.b16 %v117
  %v801 = vunpack.c.l.b16 %v118
  %v802 = vunpack.c.h.b16 %v118
  %v803 = vunpack.c.l.b16 %v119
  %v804 = vunpack.c.h.b16 %v119
  %v805 = vunpack.c.l.b16 %v120
  %v806 = vunpack.c.h.b16 %v120
  %v807 = vunpack.c.l.b16 %v121
  %v808 = vunpack.c.h.b16 %v121
  %v809 = vunpack.c.l.b16 %v122
  %v810 = vunpack.c.h.b16 %v122
  %v811 = vunpack.c.l.b16 %v123
  %v812 = vunpack.c.h.b16 %v123
  %v813 = vunpack.c.l.b16 %v124
  %v814 = vunpack.c.h.b16 %v124
  %v815 = vunpack.c.l.b16 %v125
  %v816 = vunpack.c.h.b16 %v125
  %v817 = vunpack.c.l.b16 %v126
  %v818 = vunpack.c.h.b16 %v126
  %v819 = vunpack.c.l.b16 %v127
  %v820 = vunpack.c.h.b16 %v127
  %v821 = vunpack.c.l.b16 %v128
  %v822 = vunpack.c.h.b16 %v128
  %v823 = vunpack.c.l.b16 %v129
  %v824 = vunpack.c.h.b16 %v129
  %v825 = vunpack.c.l.b16 %v130
  %v826 = vunpack.c.h.b16 %v130
  %v827 = vunpack.c.l.b16 %v131
  %v828 = vunpack.c.h.b16 %v131
  %v829 = vunpack.c.l.b16 %v132
  %v830 = vunpack.c.h.b16 %v132
  %v831 = vunpack.c.l.b16 %v133
  %v832 = vunpack.c.h.b16 %v133
  %v833 = vunpack.c.l.b16 %v134
  %v834 = vunpack.c.h.b16 %v134
  %v835 = vunpack.c.l.b16 %v135
  %v836 = vunpack.c.h.b16 %v135
  %v837 = vunpack.c.l.b16 %v136
  %v838 = vunpack.c.h.b16 %v136
  %v839 = vunpack.c.l.b16 %v137
  %v840 = vunpack.c.h.b16 %v137
  %v841 = vunpack.c.l.b16 %v138
  %v842 = vunpack.c.h.b16 %v138
  %v843 = vunpack.c.l.b16 %v139
  %v844 = vunpack.c.h.b16 %v139
  %v845 = vunpack.c.l.b16 %v140
  %v846 = vunpack.c.h.b16 %v140
  %v847 = vunpack.c.l.b16 %v141
  %v848 = vunpack.c.h.b16 %v141
  %v849 = vunpack.c.l.b16 %v142
  %v850 = vunpack.c.h.b16 %v142
  %v851 = vunpack.c.l.b16 %v143
  %v852 = vunpack.c.h.b16 %v143
  %v853 = vunpack.c.l.b16 %v144
  %v854 = vunpack.c.h.b16 %v144
  %v855 = vunpack.c.l.b16 %v145
  %v856 = vunpack.c.h.b16 %v145
  %v857 = vunpack.c.l.b16 %v146
  %v858 = vunpack.c.h.b16 %v146
  %v859 = vunpack.c.l.b16 %v147
  %v860 = vunpack.c.h.b16 %v147
  %v861 = vunpack.c.l.b16 %v148
  %v862 = vunpack.c.h.b16 %v148
  %v863 = vunpack.c.l.b16 %v149
  %v864 = vunpack.c.h.b16 %v149
  %v865 = vunpack.c.l.b16 %v150
  %v866 = vunpack.c.h.b16 %v150
  %v867 = vunpack.c.l.b16 %v151
  %v868 = vunpack.c.h.b16 %v151
  %v869 = vunpack.c.l.b16 %v152
  %v870 = vunpack.c.h.b16 %v152
  %v871 = vunpack.c.l.b16 %v153
  %v872 = vunpack.c.h.b16 %v153
  %v873 = vunpack.c.l.b16 %v154
  %v874 = vunpack.c.h.b16 %v154
  %v875 = vpack.c.b16 %v605, %v587
  %v876 = vpack.c.b16 %v606, %v588
  %v877 = vpack.c.b16 %v607, %v589
  %v878 = vpack.c.b16 %v608, %v590
  %v879 = vpack.c.b16 %v609, %v591
  %v880 = vpack.c.b16 %v610, %v592
  %v881 = vpack.c.b16 %v611, %v593
  %v882 = vpack.c.b16 %v612, %v594
  %v883 = vpack.c.b16 %v613, %v595
  %v884 = vpack.c.b16 %v614, %v596
  %v885 = vpack.c.b16 %v615, %v597
  %v886 = vpack.c.b16 %v616, %v598
  %v887 = vpack.c.b16 %v617, %v599
  %v888 = vpack.c.b16 %v618, %v600
  %v889 = vpack.c.b16 %v619, %v601
  %v890 = vpack.c.b16 %v620, %v602
  %v891 = vpack.c.b16 %v621, %v603
  %v892 = vpack.c.b16 %v622, %v604
  %v893 = vpack.c.b16 %v641, %v623
  %v894 = vpack.c.b16 %v642, %v624
  %v895 = vpack.c.b16 %v643, %v625
  %v896 = vpack.c.b16 %v644, %v626
  %v897 = vpack.c.b16 %v645, %v627
  %v898 = vpack.c.b16 %v646, %v628
  %v899 = vpack.c.b16 %v647, %v629
  %v900 = vpack.c.b16 %v648, %v630
  %v901 = vpack.c.b16 %v649, %v631
  %v902 = vpack.c.b16 %v650, %v632
  %v903 = vpack.c.b16 %v651, %v633
  %v904 = vpack.c.b16 %v652, %v634
  %v905 = vpack.c.b16 %v653, %v635
  %v906 = vpack.c.b16 %v654, %v636
  %v907 = vpack.c.b16 %v655, %v637
  %v908 = vpack.c.b16 %v656, %v638
  %v909 = vpack.c.b16 %v657, %v639
  %v910 = vpack.c.b16 %v658, %v640
  %v911 = vpack.c.b16 %v677, %v659
  %v912 = vpack.c.b16 %v678, %v660
  %v913 = vpack.c.b16 %v679, %v661
  %v914 = vpack.c.b16 %v680, %v662
  %v915 = vpack.c.b16 %v681, %v663
  %v916 = vpack.c.b16 %v682, %v664
  %v917 = vpack.c.b16 %v683, %v665
  %v918 = vpack.c.b16 %v684, %v666
  %v919 = vpack.c.b16 %v685, %v667
  %v920 = vpack.c.b16 %v686, %v668
  %v921 = vpack.c.b16 %v687, %v669
  %v922 = vpack.c.b16 %v688, %v670
  %v923 = vpack.c.b16 %v689, %v671
  %v924 = vpack.c.b16 %v690, %v672
  %v925 = vpack.c.b16 %v691, %v673
  %v926 = vpack.c.b16 %v692, %v674
  %v927 = vpack.c.b16 %v693, %v675
  %v928 = vpack.c.b16 %v694, %v676
  %v929 = vpack.c.b16 %v713, %v695
  %v930 = vpack.c.b16 %v714, %v696
  %v931 = vpack.c.b16 %v715, %v697
  %v932 = vpack.c.b16 %v716, %v698
  %v933 = vpack.c.b16 %v717, %v699
  %v934 = vpack.c.b16 %v718, %v700
  %v935 = vpack.c.b16 %v719, %v701
  %v936 = vpack.c.b16 %v720, %v702
  %v937 = vpack.c.b16 %v721, %v703
  %v938 = vpack.c.b16 %v722, %v704
  %v939 = vpack.c.b16 %v723, %v705
  %v940 = vpack.c.b16 %v724, %v706
  %v941 = vpack.c.b16 %v725, %v707
  %v942 = vpack.c.b16 %v726, %v708
  %v943 = vpack.c.b16 %v727, %v709
  %v944 = vpack.c.b16 %v728, %v710
  %v945 = vpack.c.b16 %v729, %v711
  %v946 = vpack.c.b16 %v730, %v712
  %v947 = vpack.c.b16 %v749, %v731
  %v948 = vpack.c.b16 %v750, %v732
  %v949 = vpack.c.b16 %v751, %v733
  %v950 = vpack.c.b16 %v752, %v734
  %v951 = vpack.c.b16 %v753, %v735
  %v952 = vpack.c.b16 %v754, %v736
  %v953 = vpack.c.b16 %v755, %v737
  %v954 = vpack.c.b16 %v756, %v738
  %v955 = vpack.c.b16 %v757, %v739
  %v956 = vpack.c.b16 %v758, %v740
  %v957 = vpack.c.b16 %v759, %v741
  %v958 = vpack.c.b16 %v760, %v742
  %v959 = vpack.c.b16 %v761, %v743
  %v960 = vpack.c.b16 %v762, %v744
  %v961 = vpack.c.b16 %v763, %v745
  %v962 = vpack.c.b16 %v764, %v746
  %v963 = vpack.c.b16 %v765, %v747
  %v964 = vpack.c.b16 %v766, %v748
  %v965 = vpack.c.b16 %v785, %v767
  %v966 = vpack.c.b16 %v786, %v768
  %v967 = vpack.c.b16 %v787, %v769
  %v968 = vpack.c.b16 %v788, %v770
  %v969 = vpack.c.b16 %v789, %v771
  %v970 = vpack.c.b16 %v790, %v772
  %v971 = vpack.c.b16 %v791, %v773
  %v972 = vpack.c.b16 %v792, %v774
  %v973 = vpack.c.b16 %v793, %v775
  %v974 = vpack.c.b16 %v794, %v776
  %v975 = vpack.c.b16 %v795, %v777
  %v976 = vpack.c.b16 %v796, %v778
  %v977 = vpack.c.b16 %v797, %v779
  %v978 = vpack.c.b16 %v798, %v780
  %v979 = vpack.c.b16 %v799, %v781
  %v980 = vpack.c.b16 %v800, %v782
  %v981 = vpack.c.b16 %v801, %v783
  %v982 = vpack.c.b16 %v802, %v784
  %v983 = vpack.c.b16 %v821, %v803
  %v984 = vpack.c.b16 %v822, %v804
  %v985 = vpack.c.b16 %v823, %v805
  %v986 = vpack.c.b16 %v824, %v806
  %v987 = vpack.c.b16 %v825, %v807
  %v988 = vpack.c.b16 %v826, %v808
  %v989 = vpack.c.b16 %v827, %v809
  %v990 = vpack.c.b16 %v828, %v810
  %v991 = vpack.c.b16 %v829, %v811
  %v992 = vpack.c.b16 %v830, %v812
  %v993 = vpack.c.b16 %v831, %v813
  %v994 = vpack.c.b16 %v832, %v814
  %v995 = vpack.c.b16 %v833, %v815
  %v996 = vpack.c.b16 %v834, %v816
  %v997 = vpack.c.b16 %v835, %v817
  %v998 = vpack.c.b16 %v836, %v818
  %v999 = vpack.c.b16 %v837, %v819
  %v1000 = vpack.c.b16 %v838, %v820
  %v1001 = vpack.c.b16 %v857, %v839
  %v1002 = vpack.c.b16 %v858, %v840
  %v1003 = vpack.c.b16 %v859, %v841
  %v1004 = vpack.c.b16 %v860, %v842
  %v1005 = vpack.c.b16 %v861, %v843
  %v1006 = vpack.c.b16 %v862, %v844
  %v1007 = vpack.c.b16 %v863, %v845
  %v1008 = vpack.c.b16 %v864, %v846
  %v1009 = vpack.c.b16 %v865, %v847
  %v1010 = vpack.c.b16 %v866, %v848
  %v1011 = vpack.c.b16 %v867, %v849
  %v1012 = vpack.c.b16 %v868, %v850
  %v1013 = vpack.c.b16 %v869, %v851
  %v1014 = vpack.c.b16 %v870, %v852
  %v1015 = vpack.c.b16 %v871, %v853
  %v1016 = vpack.c.b16 %v872, %v854
  %v1017 = vpack.c.b16 %v873, %v855
  %v1018 = vpack.c.b16 %v874, %v856
  %v1451 = vunpack.c.l.b16 %v155
  %v1452 = vunpack.c.l.b16 %v156
  %v1453 = vunpack.c.l.b16 %v157
  %v1454 = vunpack.c.l.b16 %v158
  %v1455 = vunpack.c.l.b16 %v159
  %v1456 = vunpack.c.l.b16 %v160
  %v1457 = vunpack.c.l.b16 %v161
  %v1458 = vunpack.c.l.b16 %v162
  %v1459 = vunpack.c.l.b16 %v163
  %v1460 = vunpack.c.l.b16 %v164
  %v1461 = vunpack.c.l.b16 %v165
  %v1462 = vunpack.c.l.b16 %v166
  %v1463 = vunpack.c.l.b16 %v167
  %v1464 = vunpack.c.l.b16 %v168
  %v1465 = vunpack.c.l.b16 %v169
  %v1466 = vunpack.c.l.b16 %v170
  %v1467 = vunpack.c.l.b16 %v171
  %v1468 = vunpack.c.l.b16 %v172
  %v1469 = vunpack.c.l.b16 %v173
  %v1470 = vunpack.c.l.b16 %v174
  %v1471 = vunpack.c.l.b16 %v175
  %v1472 = vunpack.c.l.b16 %v176
  %v1473 = vunpack.c.l.b16 %v177
  %v1474 = vunpack.c.l.b16 %v178
  %v1475 = vunpack.c.l.b16 %v179
  %v1476 = vunpack.c.l.b16 %v180
  %v1477 = vunpack.c.l.b16 %v181
  %v1478 = vunpack.c.l.b16 %v182
  %v1479 = vunpack.c.l.b16 %v183
  %v1480 = vunpack.c.l.b16 %v184
  %v1481 = vunpack.c.l.b16 %v185
  %v1482 = vunpack.c.l.b16 %v186
  %v1483 = vunpack.c.l.b16 %v187
  %v1484 = vunpack.c.l.b16 %v188
  %v1485 = vunpack.c.l.b16 %v189
  %v1486 = vunpack.c.l.b16 %v190
  %v1487 = vunpack.c.l.b16 %v191
  %v1488 = vunpack.c.l.b16 %v192
  %v1489 = vunpack.c.l.b16 %v193
  %v1490 = vunpack.c.l.b16 %v194
  %v1491 = vunpack.c.l.b16 %v195
  %v1492 = vunpack.c.l.b16 %v196
  %v1493 = vunpack.c.l.b16 %v197
  %v1494 = vunpack.c.l.b16 %v198
  %v1495 = vunpack.c.l.b16 %v199
  %v1496 = vunpack.c.l.b16 %v200
  %v1497 = vunpack.c.l.b16 %v201
  %v1498 = vunpack.c.l.b16 %v202
  %v1499 = vunpack.c.l.b16 %v203
  %v1500 = vunpack.c.l.b16 %v204
  %v1501 = vunpack.c.l.b16 %v205
  %v1502 = vunpack.c.l.b16 %v206
  %v1503 = vunpack.c.l.b16 %v207
  %v1504 = vunpack.c.l.b16 %v208
  %v1505 = vunpack.c.l.b16 %v209
  %v1506 = vunpack.c.l.b16 %v210
  %v1507 = vunpack.c.l.b16 %v211
  %v1508 = vunpack.c.l.b16 %v212
  %v1509 = vunpack.c.l.b16 %v213
  %v1510 = vunpack.c.l.b16 %v214
  %v1511 = vunpack.c.l.b16 %v215
  %v1512 = vunpack.c.l.b16 %v216
  %v1513 = vunpack.c.l.b16 %v217
  %v1514 = vunpack.c.l.b16 %v218
  %v1515 = vunpack.c.l.b16 %v219
  %v1516 = vunpack.c.l.b16 %v220
  %v1517 = vunpack.c.l.b16 %v221
  %v1518 = vunpack.c.l.b16 %v222
  %v1519 = vunpack.c.l.b16 %v223
  %v1520 = vunpack.c.l.b16 %v224
  %v1521 = vunpack.c.l.b16 %v225
  %v1522 = vunpack.c.l.b16 %v226
  %v1523 = vunpack.c.l.b16 %v227
  %v1524 = vunpack.c.l.b16 %v228
  %v1525 = vunpack.c.l.b16 %v229
  %v1526 = vunpack.c.l.b16 %v230
  %v1527 = vunpack.c.l.b16 %v231
  %v1528 = vunpack.c.l.b16 %v232
  %v1529 = vunpack.c.l.b16 %v233
  %v1530 = vunpack.c.l.b16 %v234
  %v1531 = vunpack.c.l.b16 %v235
  %v1532 = vunpack.c.l.b16 %v236
  %v1533 = vunpack.c.l.b16 %v237
  %v1534 = vunpack.c.l.b16 %v238
  %v1535 = vunpack.c.l.b16 %v239
  %v1536 = vunpack.c.l.b16 %v240
  %v1537 = vunpack.c.l.b16 %v241
  %v1538 = vunpack.c.l.b16 %v242
  %v1539 = vunpack.c.l.b16 %v243
  %v1540 = vunpack.c.l.b16 %v244
  %v1541 = vunpack.c.l.b16 %v245
  %v1542 = vunpack.c.l.b16 %v246
  %v1543 = vunpack.c.l.b16 %v247
  %v1544 = vunpack.c.l.b16 %v248
  %v1545 = vunpack.c.l.b16 %v249
  %v1546 = vunpack.c.l.b16 %v250
  %v1547 = vunpack.c.l.b16 %v251
  %v1548 = vunpack.c.l.b16 %v252
  %v1549 = vunpack.c.l.b16 %v253
  %v1550 = vunpack.c.l.b16 %v254
  %v1551 = vunpack.c.l.b16 %v255
  %v1552 = vunpack.c.l.b16 %v256
  %v1553 = vunpack.c.l.b16 %v257
  %v1554 = vunpack.c.l.b16 %v258
  %v1555 = vunpack.c.l.b16 %v259
  %v1556 = vunpack.c.l.b16 %v260
  %v1557 = vunpack.c.l.b16 %v261
  %v1558 = vunpack.c.l.b16 %v262
  %v1559 = vunpack.c.l.b16 %v263
  %v1560 = vunpack.c.l.b16 %v264
  %v1561 = vunpack.c.l.b16 %v265
  %v1562 = vunpack.c.l.b16 %v266
  %v1563 = vunpack.c.l.b16 %v267
  %v1564 = vunpack.c.l.b16 %v268
  %v1565 = vunpack.c.l.b16 %v269
  %v1566 = vunpack.c.l.b16 %v270
  %v1567 = vunpack.c.l.b16 %v271
  %v1568 = vunpack.c.l.b16 %v272
  %v1569 = vunpack.c.l.b16 %v273
  %v1570 = vunpack.c.l.b16 %v274
  %v1571 = vunpack.c.l.b16 %v275
  %v1572 = vunpack.c.l.b16 %v276
  %v1573 = vunpack.c.l.b16 %v277
  %v1574 = vunpack.c.l.b16 %v278
  %v1575 = vunpack.c.l.b16 %v279
  %v1576 = vunpack.c.l.b16 %v280
  %v1577 = vunpack.c.l.b16 %v281
  %v1578 = vunpack.c.l.b16 %v282
  %v1579 = vunpack.c.l.b16 %v283
  %v1580 = vunpack.c.l.b16 %v284
  %v1581 = vunpack.c.l.b16 %v285
  %v1582 = vunpack.c.l.b16 %v286
  %v1583 = vunpack.c.l.b16 %v287
  %v1584 = vunpack.c.l.b16 %v288
  %v1585 = vunpack.c.l.b16 %v289
  %v1586 = vunpack.c.l.b16 %v290
  %v1587 = vunpack.c.l.b16 %v291
  %v1588 = vunpack.c.l.b16 %v292
  %v1589 = vunpack.c.l.b16 %v293
  %v1590 = vunpack.c.l.b16 %v294
  %v1591 = vunpack.c.l.b16 %v295
  %v1592 = vunpack.c.l.b16 %v296
  %v1593 = vunpack.c.l.b16 %v297
  %v1594 = vunpack.c.l.b16 %v298
  %v1595 = vunpack.c.l.b16 %v299
  %v1596 = vunpack.c.l.b16 %v300
  %v1597 = vunpack.c.l.b16 %v301
  %v1598 = vunpack.c.l.b16 %v302
  %v1599 = vunpack.c.l.b16 %v303
  %v1600 = vunpack.c.l.b16 %v304
  %v1601 = vunpack.c.l.b16 %v305
  %v1602 = vunpack.c.l.b16 %v306
  %v1603 = vunpack.c.l.b16 %v307
  %v1604 = vunpack.c.l.b16 %v308
  %v1605 = vunpack.c.l.b16 %v309
  %v1606 = vunpack.c.l.b16 %v310
  %v1607 = vunpack.c.l.b16 %v311
  %v1608 = vunpack.c.l.b16 %v312
  %v1609 = vunpack.c.l.b16 %v313
  %v1610 = vunpack.c.l.b16 %v314
  %v1611 = vunpack.c.l.b16 %v315
  %v1612 = vunpack.c.l.b16 %v316
  %v1613 = vunpack.c.l.b16 %v317
  %v1614 = vunpack.c.l.b16 %v318
  %v1615 = vunpack.c.l.b16 %v319
  %v1616 = vunpack.c.l.b16 %v320
  %v1617 = vunpack.c.l.b16 %v321
  %v1618 = vunpack.c.l.b16 %v322
  %v1619 = vunpack.c.l.b16 %v323
  %v1620 = vunpack.c.l.b16 %v324
  %v1621 = vunpack.c.l.b16 %v325
  %v1622 = vunpack.c.l.b16 %v326
  %v1623 = vunpack.c.l.b16 %v327
  %v1624 = vunpack.c.l.b16 %v328
  %v1625 = vunpack.c.l.b16 %v329
  %v1626 = vunpack.c.l.b16 %v330
  %v1627 = vunpack.c.l.b16 %v331
  %v1628 = vunpack.c.l.b16 %v332
  %v1629 = vunpack.c.l.b16 %v333
  %v1630 = vunpack.c.l.b16 %v334
  %v1631 = vunpack.c.l.b16 %v335
  %v1632 = vunpack.c.l.b16 %v336
  %v1633 = vunpack.c.l.b16 %v337
  %v1634 = vunpack.c.l.b16 %v338
  %v1635 = vunpack.c.l.b16 %v339
  %v1636 = vunpack.c.l.b16 %v340
  %v1637 = vunpack.c.l.b16 %v341
  %v1638 = vunpack.c.l.b16 %v342
  %v1639 = vunpack.c.l.b16 %v343
  %v1640 = vunpack.c.l.b16 %v344
  %v1641 = vunpack.c.l.b16 %v345
  %v1642 = vunpack.c.l.b16 %v346
  %v1643 = vunpack.c.l.b16 %v347
  %v1644 = vunpack.c.l.b16 %v348
  %v1645 = vunpack.c.l.b16 %v349
  %v1646 = vunpack.c.l.b16 %v350
  %v1647 = vunpack.c.l.b16 %v351
  %v1648 = vunpack.c.l.b16 %v352
  %v1649 = vunpack.c.l.b16 %v353
  %v1650 = vunpack.c.l.b16 %v354
  %v1651 = vunpack.c.l.b16 %v355
  %v1652 = vunpack.c.l.b16 %v356
  %v1653 = vunpack.c.l.b16 %v357
  %v1654 = vunpack.c.l.b16 %v358
  %v1655 = vunpack.c.l.b16 %v359
  %v1656 = vunpack.c.l.b16 %v360
  %v1657 = vunpack.c.l.b16 %v361
  %v1658 = vunpack.c.l.b16 %v362
  %v1659 = vunpack.c.l.b16 %v363
  %v1660 = vunpack.c.l.b16 %v364
  %v1661 = vunpack.c.l.b16 %v365
  %v1662 = vunpack.c.l.b16 %v366
  %v1663 = vunpack.c.l.b16 %v367
  %v1664 = vunpack.c.l.b16 %v368
  %v1665 = vunpack.c.l.b16 %v369
  %v1666 = vunpack.c.l.b16 %v370
  %v1667 = vunpack.c.l.b16 %v371
  %v1668 = vunpack.c.l.b16 %v372
  %v1669 = vunpack.c.l.b16 %v373
  %v1670 = vunpack.c.l.b16 %v374
  %v1671 = vunpack.c.l.b16 %v375
  %v1672 = vunpack.c.l.b16 %v376
  %v1673 = vunpack.c.l.b16 %v377
  %v1674 = vunpack.c.l.b16 %v378
  %v1675 = vunpack.c.l.b16 %v379
  %v1676 = vunpack.c.l.b16 %v380
  %v1677 = vunpack.c.l.b16 %v381
  %v1678 = vunpack.c.l.b16 %v382
  %v1679 = vunpack.c.l.b16 %v383
  %v1680 = vunpack.c.l.b16 %v384
  %v1681 = vunpack.c.l.b16 %v385
  %v1682 = vunpack.c.l.b16 %v386
  %v1683 = vunpack.c.l.b16 %v387
  %v1684 = vunpack.c.l.b16 %v388
  %v1685 = vunpack.c.l.b16 %v389
  %v1686 = vunpack.c.l.b16 %v390
  %v1687 = vunpack.c.l.b16 %v391
  %v1688 = vunpack.c.l.b16 %v392
  %v1689 = vunpack.c.l.b16 %v393
  %v1690 = vunpack.c.l.b16 %v394
  %v1691 = vunpack.c.l.b16 %v395
  %v1692 = vunpack.c.l.b16 %v396
  %v1693 = vunpack.c.l.b16 %v397
  %v1694 = vunpack.c.l.b16 %v398
  %v1695 = vunpack.c.l.b16 %v399
  %v1696 = vunpack.c.l.b16 %v400
  %v1697 = vunpack.c.l.b16 %v401
  %v1698 = vunpack.c.l.b16 %v402
  %v1699 = vunpack.c.l.b16 %v403
  %v1700 = vunpack.c.l.b16 %v404
  %v1701 = vunpack.c.l.b16 %v405
  %v1702 = vunpack.c.l.b16 %v406
  %v1703 = vunpack.c.l.b16 %v407
  %v1704 = vunpack.c.l.b16 %v408
  %v1705 = vunpack.c.l.b16 %v409
  %v1706 = vunpack.c.l.b16 %v410
  %v1707 = vunpack.c.l.b16 %v411
  %v1708 = vunpack.c.l.b16 %v412
  %v1709 = vunpack.c.l.b16 %v413
  %v1710 = vunpack.c.l.b16 %v414
  %v1711 = vunpack.c.l.b16 %v415
  %v1712 = vunpack.c.l.b16 %v416
  %v1713 = vunpack.c.l.b16 %v417
  %v1714 = vunpack.c.l.b16 %v418
  %v1715 = vunpack.c.l.b16 %v419
  %v1716 = vunpack.c.l.b16 %v420
  %v1717 = vunpack.c.l.b16 %v421
  %v1718 = vunpack.c.l.b16 %v422
  %v1719 = vunpack.c.l.b16 %v423
  %v1720 = vunpack.c.l.b16 %v424
  %v1721 = vunpack.c.l.b16 %v425
  %v1722 = vunpack.c.l.b16 %v426
  %v1723 = vunpack.c.l.b16 %v427
  %v1724 = vunpack.c.l.b16 %v428
  %v1725 = vunpack.c.l.b16 %v429
  %v1726 = vunpack.c.l.b16 %v430
  %v1727 = vunpack.c.l.b16 %v431
  %v1728 = vunpack.c.l.b16 %v432
  %v1729 = vunpack.c.l.b16 %v433
  %v1730 = vunpack.c.l.b16 %v434
  %v1731 = vunpack.c.l.b16 %v435
  %v1732 = vunpack.c.l.b16 %v436
  %v1733 = vunpack.c.l.b16 %v437
  %v1734 = vunpack.c.l.b16 %v438
  %v1735 = vunpack.c.l.b16 %v439
  %v1736 = vunpack.c.l.b16 %v440
  %v1737 = vunpack.c.l.b16 %v441
  %v1738 = vunpack.c.l.b16 %v442
  %v1739 = vpack.c.b16 %v1452, %v1451
  %v1740 = vpack.c.b16 %v1454, %v1453
  %v1741 = vpack.c.b16 %v1456, %v1455
  %v1742 = vpack.c.b16 %v1458, %v1457
  %v1743 = vpack.c.b16 %v1460, %v1459
  %v1744 = vpack.c.b16 %v1462, %v1461
  %v1745 = vpack.c.b16 %v1464, %v1463
  %v1746 = vpack.c.b16 %v1466, %v1465
  %v1747 = vpack.c.b16 %v1468, %v1467
  %v1748 = vpack.c.b16 %v1470, %v1469
  %v1749 = vpack.c.b16 %v1472, %v1471
  %v1750 = vpack.c.b16 %v1474, %v1473
  %v1751 = vpack.c.b16 %v1476, %v1475
  %v1752 = vpack.c.b16 %v1478, %v1477
  %v1753 = vpack.c.b16 %v1480, %v1479
  %v1754 = vpack.c.b16 %v1482, %v1481
  %v1755 = vpack.c.b16 %v1484, %v1483
  %v1756 = vpack.c.b16 %v1486, %v1485
  %v1757 = vpack.c.b16 %v1488, %v1487
  %v1758 = vpack.c.b16 %v1490, %v1489
  %v1759 = vpack.c.b16 %v1492, %v1491
  %v1760 = vpack.c.b16 %v1494, %v1493
  %v1761 = vpack.c.b16 %v1496, %v1495
  %v1762 = vpack.c.b16 %v1498, %v1497
  %v1763 = vpack.c.b16 %v1500, %v1499
  %v1764 = vpack.c.b16 %v1502, %v1501
  %v1765 = vpack.c.b16 %v1504, %v1503
  %v1766 = vpack.c.b16 %v1506, %v1505
  %v1767 = vpack.c.b16 %v1508, %v1507
  %v1768 = vpack.c.b16 %v1510, %v1509
  %v1769 = vpack.c.b16 %v1512, %v1511
  %v1770 = vpack.c.b16 %v1514, %v1513
  %v1771 = vpack.c.b16 %v1516, %v1515
  %v1772 = vpack.c.b16 %v1518, %v1517
  %v1773 = vpack.c.b16 %v1520, %v1519
  %v1774 = vpack.c.b16 %v1522, %v1521
  %v1775 = vpack.c.b16 %v1524, %v1523
  %v1776 = vpack.c.b16 %v1526, %v1525
  %v1777 = vpack.c.b16 %v1528, %v1527
  %v1778 = vpack.c.b16 %v1530, %v1529
  %v1779 = vpack.c.b16 %v1532, %v1531
  %v1780 = vpack.c.b16 %v1534, %v1533
  %v1781 = vpack.c.b16 %v1536, %v1535
  %v1782 = vpack.c.b16 %v1538, %v1537
  %v1783 = vpack.c.b16 %v1540, %v1539
  %v1784 = vpack.c.b16 %v1542, %v1541
  %v1785 = vpack.c.b16 %v1544, %v1543
  %v1786 = vpack.c.b16 %v1546, %v1545
  %v1787 = vpack.c.b16 %v1548, %v1547
  %v1788 = vpack.c.b16 %v1550, %v1549
  %v1789 = vpack.c.b16 %v1552, %v1551
  %v1790 = vpack.c.b16 %v1554, %v1553
  %v1791 = vpack.c.b16 %v1556, %v1555
  %v1792 = vpack.c.b16 %v1558, %v1557
  %v1793 = vpack.c.b16 %v1560, %v1559
  %v1794 = vpack.c.b16 %v1562, %v1561
  %v1795 = vpack.c.b16 %v1564, %v1563
  %v1796 = vpack.c.b16 %v1566, %v1565
  %v1797 = vpack.c.b16 %v1568, %v1567
  %v1798 = vpack.c.b16 %v1570, %v1569
  %v1799 = vpack.c.b16 %v1572, %v1571
  %v1800 = vpack.c.b16 %v1574, %v1573
  %v1801 = vpack.c.b16 %v1576, %v1575
  %v1802 = vpack.c.b16 %v1578, %v1577
  %v1803 = vpack.c.b16 %v1580, %v1579
  %v1804 = vpack.c.b16 %v1582, %v1581
  %v1805 = vpack.c.b16 %v1584, %v1583
  %v1806 = vpack.c.b16 %v1586, %v1585
  %v1807 = vpack.c.b16 %v1588, %v1587
  %v1808 = vpack.c.b16 %v1590, %v1589
  %v1809 = vpack.c.b16 %v1592, %v1591
  %v1810 = vpack.c.b16 %v1594, %v1593
  %v1811 = vpack.c.b16 %v1596, %v1595
  %v1812 = vpack.c.b16 %v1598, %v1597
  %v1813 = vpack.c.b16 %v1600, %v1599
  %v1814 = vpack.c.b16 %v1602, %v1601
  %v1815 = vpack.c.b16 %v1604, %v1603
  %v1816 = vpack.c.b16 %v1606, %v1605
  %v1817 = vpack.c.b16 %v1608, %v1607
  %v1818 = vpack.c.b16 %v1610, %v1609
  %v1819 = vpack.c.b16 %v1612, %v1611
  %v1820 = vpack.c.b16 %v1614, %v1613
  %v1821 = vpack.c.b16 %v1616, %v1615
  %v1822 = vpack.c.b16 %v1618, %v1617
  %v1823 = vpack.c.b16 %v1620, %v1619
  %v1824 = vpack.c.b16 %v1622, %v1621
  %v1825 = vpack.c.b16 %v1624, %v1623
  %v1826 = vpack.c.b16 %v1626, %v1625
  %v1827 = vpack.c.b16 %v1628, %v1627
  %v1828 = vpack.c.b16 %v1630, %v1629
  %v1829 = vpack.c.b16 %v1632, %v1631
  %v1830 = vpack.c.b16 %v1634, %v1633
  %v1831 = vpack.c.b16 %v1636, %v1635
  %v1832 = vpack.c.b16 %v1638, %v1637
  %v1833 = vpack.c.b16 %v1640, %v1639
  %v1834 = vpack.c.b16 %v1642, %v1641
  %v1835 = vpack.c.b16 %v1644, %v1643
  %v1836 = vpack.c.b16 %v1646, %v1645
  %v1837 = vpack.c.b16 %v1648, %v1647
  %v1838 = vpack.c.b16 %v1650, %v1649
  %v1839 = vpack.c.b16 %v1652, %v1651
  %v1840 = vpack.c.b16 %v1654, %v1653
  %v1841 = vpack.c.b16 %v1656, %v1655
  %v1842 = vpack.c.b16 %v1658, %v1657
  %v1843 = vpack.c.b16 %v1660, %v1659
  %v1844 = vpack.c.b16 %v1662, %v1661
  %v1845 = vpack.c.b16 %v1664, %v1663
  %v1846 = vpack.c.b16 %v1666, %v1665
  %v1847 = vpack.c.b16 %v1668, %v1667
  %v1848 = vpack.c.b16 %v1670, %v1669
  %v1849 = vpack.c.b16 %v1672, %v1671
  %v1850 = vpack.c.b16 %v1674, %v1673
  %v1851 = vpack.c.b16 %v1676, %v1675
  %v1852 = vpack.c.b16 %v1678, %v1677
  %v1853 = vpack.c.b16 %v1680, %v1679
  %v1854 = vpack.c.b16 %v1682, %v1681
  %v1855 = vpack.c.b16 %v1684, %v1683
  %v1856 = vpack.c.b16 %v1686, %v1685
  %v1857 = vpack.c.b16 %v1688, %v1687
  %v1858 = vpack.c.b16 %v1690, %v1689
  %v1859 = vpack.c.b16 %v1692, %v1691
  %v1860 = vpack.c.b16 %v1694, %v1693
  %v1861 = vpack.c.b16 %v1696, %v1695
  %v1862 = vpack.c.b16 %v1698, %v1697
  %v1863 = vpack.c.b16 %v1700, %v1699
  %v1864 = vpack.c.b16 %v1702, %v1701
  %v1865 = vpack.c.b16 %v1704, %v1703
  %v1866 = vpack.c.b16 %v1706, %v1705
  %v1867 = vpack.c.b16 %v1708, %v1707
  %v1868 = vpack.c.b16 %v1710, %v1709
  %v1869 = vpack.c.b16 %v1712, %v1711
  %v1870 = vpack.c.b16 %v1714, %v1713
  %v1871 = vpack.c.b16 %v1716, %v1715
  %v1872 = vpack.c.b16 %v1718, %v1717
  %v1873 = vpack.c.b16 %v1720, %v1719
  %v1874 = vpack.c.b16 %v1722, %v1721
  %v1875 = vpack.c.b16 %v1724, %v1723
  %v1876 = vpack.c.b16 %v1726, %v1725
  %v1877 = vpack.c.b16 %v1728, %v1727
  %v1878 = vpack.c.b16 %v1730, %v1729
  %v1879 = vpack.c.b16 %v1732, %v1731
  %v1880 = vpack.c.b16 %v1734, %v1733
  %v1881 = vpack.c.b16 %v1736, %v1735
  %v1882 = vpack.c.b16 %v1738, %v1737
  %2027 = vmatpush.bf16.msra.mxu0 %v1746
  %2028 = vmatpush.bf16.msra.mxu0 %v1745
  %2029 = vmatpush.bf16.msra.mxu0 %v1744
  %2030 = vmatpush.bf16.msra.mxu0 %v1743
  %2031 = vmatpush.bf16.msra.mxu0 %v1742
  %2032 = vmatpush.bf16.msra.mxu0 %v1741
  %2033 = vmatpush.bf16.msra.mxu0 %v1740
  %2034 = vmatpush.bf16.msra.mxu0 %v1739
  %2035 = vmatmul.bf16.gmra.mxu0 %v875
  %v2036 = vpop.f32.mrf.mxu0
  %v2037 = vadd.f32 0.0, %v2036
  %v2038 = vpop.f32.mrf.mxu0
  %v2039 = vadd.f32 0.0, %v2038
  %2040 = vmatmul.bf16.gmra.mxu0 %v893
  %v2041 = vpop.f32.mrf.mxu0
  %v2042 = vadd.f32 0.0, %v2041
  %v2043 = vpop.f32.mrf.mxu0
  %v2044 = vadd.f32 0.0, %v2043
  %2045 = vmatmul.bf16.gmra.mxu0 %v911
  %v2046 = vpop.f32.mrf.mxu0
  %v2047 = vadd.f32 0.0, %v2046
  %v2048 = vpop.f32.mrf.mxu0
  %v2049 = vadd.f32 0.0, %v2048
  %2050 = vmatmul.bf16.gmra.mxu0 %v929
  %v2051 = vpop.f32.mrf.mxu0
  %v2052 = vadd.f32 0.0, %v2051
  %v2053 = vpop.f32.mrf.mxu0
  %v2054 = vadd.f32 0.0, %v2053
  %2055 = vmatmul.bf16.gmra.mxu0 %v947
  %v2056 = vpop.f32.mrf.mxu0
  %v2057 = vadd.f32 0.0, %v2056
  %v2058 = vpop.f32.mrf.mxu0
  %v2059 = vadd.f32 0.0, %v2058
  %2060 = vmatmul.bf16.gmra.mxu0 %v965
  %v2061 = vpop.f32.mrf.mxu0
  %v2062 = vadd.f32 0.0, %v2061
  %v2063 = vpop.f32.mrf.mxu0
  %v2064 = vadd.f32 0.0, %v2063
  %2065 = vmatmul.bf16.gmra.mxu0 %v983
  %v2066 = vpop.f32.mrf.mxu0
  %v2067 = vadd.f32 0.0, %v2066
  %v2068 = vpop.f32.mrf.mxu0
  %v2069 = vadd.f32 0.0, %v2068
  %2070 = vmatmul.bf16.gmra.mxu0 %v1001
  %v2071 = vpop.f32.mrf.mxu0
  %v2072 = vadd.f32 0.0, %v2071
  %v2073 = vpop.f32.mrf.mxu0
  %v2074 = vadd.f32 0.0, %v2073
  %2075 = vdwg.mxu0
  %2076 = vmatpush.bf16.msra.mxu0 %v1754
  %2077 = vmatpush.bf16.msra.mxu0 %v1753
  %2078 = vmatpush.bf16.msra.mxu0 %v1752
  %2079 = vmatpush.bf16.msra.mxu0 %v1751
  %2080 = vmatpush.bf16.msra.mxu0 %v1750
  %2081 = vmatpush.bf16.msra.mxu0 %v1749
  %2082 = vmatpush.bf16.msra.mxu0 %v1748
  %2083 = vmatpush.bf16.msra.mxu0 %v1747
  %2084 = vmatmul.bf16.gmra.mxu0 %v876
  %v2085 = vpop.f32.mrf.mxu0
  %v2086 = vadd.f32 %v2037, %v2085
  %v2087 = vpop.f32.mrf.mxu0
  %v2088 = vadd.f32 %v2039, %v2087
  %2089 = vmatmul.bf16.gmra.mxu0 %v894
  %v2090 = vpop.f32.mrf.mxu0
  %v2091 = vadd.f32 %v2042, %v2090
  %v2092 = vpop.f32.mrf.mxu0
  %v2093 = vadd.f32 %v2044, %v2092
  %2094 = vmatmul.bf16.gmra.mxu0 %v912
  %v2095 = vpop.f32.mrf.mxu0
  %v2096 = vadd.f32 %v2047, %v2095
  %v2097 = vpop.f32.mrf.mxu0
  %v2098 = vadd.f32 %v2049, %v2097
  %2099 = vmatmul.bf16.gmra.mxu0 %v930
  %v2100 = vpop.f32.mrf.mxu0
  %v2101 = vadd.f32 %v2052, %v2100
  %v2102 = vpop.f32.mrf.mxu0
  %v2103 = vadd.f32 %v2054, %v2102
  %2104 = vmatmul.bf16.gmra.mxu0 %v948
  %v2105 = vpop.f32.mrf.mxu0
  %v2106 = vadd.f32 %v2057, %v2105
  %v2107 = vpop.f32.mrf.mxu0
  %v2108 = vadd.f32 %v2059, %v2107
  %2109 = vmatmul.bf16.gmra.mxu0 %v966
  %v2110 = vpop.f32.mrf.mxu0
  %v2111 = vadd.f32 %v2062, %v2110
  %v2112 = vpop.f32.mrf.mxu0
  %v2113 = vadd.f32 %v2064, %v2112
  %2114 = vmatmul.bf16.gmra.mxu0 %v984
  %v2115 = vpop.f32.mrf.mxu0
  %v2116 = vadd.f32 %v2067, %v2115
  %v2117 = vpop.f32.mrf.mxu0
  %v2118 = vadd.f32 %v2069, %v2117
  %2119 = vmatmul.bf16.gmra.mxu0 %v1002
  %v2120 = vpop.f32.mrf.mxu0
  %v2121 = vadd.f32 %v2072, %v2120
  %v2122 = vpop.f32.mrf.mxu0
  %v2123 = vadd.f32 %v2074, %v2122
  %2124 = vdwg.mxu0
  %2125 = vmatpush.bf16.msra.mxu0 %v1762
  %2126 = vmatpush.bf16.msra.mxu0 %v1761
  %2127 = vmatpush.bf16.msra.mxu0 %v1760
  %2128 = vmatpush.bf16.msra.mxu0 %v1759
  %2129 = vmatpush.bf16.msra.mxu0 %v1758
  %2130 = vmatpush.bf16.msra.mxu0 %v1757
  %2131 = vmatpush.bf16.msra.mxu0 %v1756
  %2132 = vmatpush.bf16.msra.mxu0 %v1755
  %2133 = vmatmul.bf16.gmra.mxu0 %v877
  %v2134 = vpop.f32.mrf.mxu0
  %v2135 = vadd.f32 %v2086, %v2134
  %v2136 = vpop.f32.mrf.mxu0
  %v2137 = vadd.f32 %v2088, %v2136
  %2138 = vmatmul.bf16.gmra.mxu0 %v895
  %v2139 = vpop.f32.mrf.mxu0
  %v2140 = vadd.f32 %v2091, %v2139
  %v2141 = vpop.f32.mrf.mxu0
  %v2142 = vadd.f32 %v2093, %v2141
  %2143 = vmatmul.bf16.gmra.mxu0 %v913
  %v2144 = vpop.f32.mrf.mxu0
  %v2145 = vadd.f32 %v2096, %v2144
  %v2146 = vpop.f32.mrf.mxu0
  %v2147 = vadd.f32 %v2098, %v2146
  %2148 = vmatmul.bf16.gmra.mxu0 %v931
  %v2149 = vpop.f32.mrf.mxu0
  %v2150 = vadd.f32 %v2101, %v2149
  %v2151 = vpop.f32.mrf.mxu0
  %v2152 = vadd.f32 %v2103, %v2151
  %2153 = vmatmul.bf16.gmra.mxu0 %v949
  %v2154 = vpop.f32.mrf.mxu0
  %v2155 = vadd.f32 %v2106, %v2154
  %v2156 = vpop.f32.mrf.mxu0
  %v2157 = vadd.f32 %v2108, %v2156
  %2158 = vmatmul.bf16.gmra.mxu0 %v967
  %v2159 = vpop.f32.mrf.mxu0
  %v2160 = vadd.f32 %v2111, %v2159
  %v2161 = vpop.f32.mrf.mxu0
  %v2162 = vadd.f32 %v2113, %v2161
  %2163 = vmatmul.bf16.gmra.mxu0 %v985
  %v2164 = vpop.f32.mrf.mxu0
  %v2165 = vadd.f32 %v2116, %v2164
  %v2166 = vpop.f32.mrf.mxu0
  %v2167 = vadd.f32 %v2118, %v2166
  %2168 = vmatmul.bf16.gmra.mxu0 %v1003
  %v2169 = vpop.f32.mrf.mxu0
  %v2170 = vadd.f32 %v2121, %v2169
  %v2171 = vpop.f32.mrf.mxu0
  %v2172 = vadd.f32 %v2123, %v2171
  %2173 = vdwg.mxu0
  %2174 = vmatpush.bf16.msra.mxu0 %v1770
  %2175 = vmatpush.bf16.msra.mxu0 %v1769
  %2176 = vmatpush.bf16.msra.mxu0 %v1768
  %2177 = vmatpush.bf16.msra.mxu0 %v1767
  %2178 = vmatpush.bf16.msra.mxu0 %v1766
  %2179 = vmatpush.bf16.msra.mxu0 %v1765
  %2180 = vmatpush.bf16.msra.mxu0 %v1764
  %2181 = vmatpush.bf16.msra.mxu0 %v1763
  %2182 = vmatmul.bf16.gmra.mxu0 %v878
  %v2183 = vpop.f32.mrf.mxu0
  %v2184 = vadd.f32 %v2135, %v2183
  %v2185 = vpop.f32.mrf.mxu0
  %v2186 = vadd.f32 %v2137, %v2185
  %2187 = vmatmul.bf16.gmra.mxu0 %v896
  %v2188 = vpop.f32.mrf.mxu0
  %v2189 = vadd.f32 %v2140, %v2188
  %v2190 = vpop.f32.mrf.mxu0
  %v2191 = vadd.f32 %v2142, %v2190
  %2192 = vmatmul.bf16.gmra.mxu0 %v914
  %v2193 = vpop.f32.mrf.mxu0
  %v2194 = vadd.f32 %v2145, %v2193
  %v2195 = vpop.f32.mrf.mxu0
  %v2196 = vadd.f32 %v2147, %v2195
  %2197 = vmatmul.bf16.gmra.mxu0 %v932
  %v2198 = vpop.f32.mrf.mxu0
  %v2199 = vadd.f32 %v2150, %v2198
  %v2200 = vpop.f32.mrf.mxu0
  %v2201 = vadd.f32 %v2152, %v2200
  %2202 = vmatmul.bf16.gmra.mxu0 %v950
  %v2203 = vpop.f32.mrf.mxu0
  %v2204 = vadd.f32 %v2155, %v2203
  %v2205 = vpop.f32.mrf.mxu0
  %v2206 = vadd.f32 %v2157, %v2205
  %2207 = vmatmul.bf16.gmra.mxu0 %v968
  %v2208 = vpop.f32.mrf.mxu0
  %v2209 = vadd.f32 %v2160, %v2208
  %v2210 = vpop.f32.mrf.mxu0
  %v2211 = vadd.f32 %v2162, %v2210
  %2212 = vmatmul.bf16.gmra.mxu0 %v986
  %v2213 = vpop.f32.mrf.mxu0
  %v2214 = vadd.f32 %v2165, %v2213
  %v2215 = vpop.f32.mrf.mxu0
  %v2216 = vadd.f32 %v2167, %v2215
  %2217 = vmatmul.bf16.gmra.mxu0 %v1004
  %v2218 = vpop.f32.mrf.mxu0
  %v2219 = vadd.f32 %v2170, %v2218
  %v2220 = vpop.f32.mrf.mxu0
  %v2221 = vadd.f32 %v2172, %v2220
  %2222 = vdwg.mxu0
  %2223 = vmatpush.bf16.msra.mxu0 %v1778
  %2224 = vmatpush.bf16.msra.mxu0 %v1777
  %2225 = vmatpush.bf16.msra.mxu0 %v1776
  %2226 = vmatpush.bf16.msra.mxu0 %v1775
  %2227 = vmatpush.bf16.msra.mxu0 %v1774
  %2228 = vmatpush.bf16.msra.mxu0 %v1773
  %2229 = vmatpush.bf16.msra.mxu0 %v1772
  %2230 = vmatpush.bf16.msra.mxu0 %v1771
  %2231 = vmatmul.bf16.gmra.mxu0 %v879
  %v2232 = vpop.f32.mrf.mxu0
  %v2233 = vadd.f32 %v2184, %v2232
  %v2234 = vpop.f32.mrf.mxu0
  %v2235 = vadd.f32 %v2186, %v2234
  %2236 = vmatmul.bf16.gmra.mxu0 %v897
  %v2237 = vpop.f32.mrf.mxu0
  %v2238 = vadd.f32 %v2189, %v2237
  %v2239 = vpop.f32.mrf.mxu0
  %v2240 = vadd.f32 %v2191, %v2239
  %2241 = vmatmul.bf16.gmra.mxu0 %v915
  %v2242 = vpop.f32.mrf.mxu0
  %v2243 = vadd.f32 %v2194, %v2242
  %v2244 = vpop.f32.mrf.mxu0
  %v2245 = vadd.f32 %v2196, %v2244
  %2246 = vmatmul.bf16.gmra.mxu0 %v933
  %v2247 = vpop.f32.mrf.mxu0
  %v2248 = vadd.f32 %v2199, %v2247
  %v2249 = vpop.f32.mrf.mxu0
  %v2250 = vadd.f32 %v2201, %v2249
  %2251 = vmatmul.bf16.gmra.mxu0 %v951
  %v2252 = vpop.f32.mrf.mxu0
  %v2253 = vadd.f32 %v2204, %v2252
  %v2254 = vpop.f32.mrf.mxu0
  %v2255 = vadd.f32 %v2206, %v2254
  %2256 = vmatmul.bf16.gmra.mxu0 %v969
  %v2257 = vpop.f32.mrf.mxu0
  %v2258 = vadd.f32 %v2209, %v2257
  %v2259 = vpop.f32.mrf.mxu0
  %v2260 = vadd.f32 %v2211, %v2259
  %2261 = vmatmul.bf16.gmra.mxu0 %v987
  %v2262 = vpop.f32.mrf.mxu0
  %v2263 = vadd.f32 %v2214, %v2262
  %v2264 = vpop.f32.mrf.mxu0
  %v2265 = vadd.f32 %v2216, %v2264
  %2266 = vmatmul.bf16.gmra.mxu0 %v1005
  %v2267 = vpop.f32.mrf.mxu0
  %v2268 = vadd.f32 %v2219, %v2267
  %v2269 = vpop.f32.mrf.mxu0
  %v2270 = vadd.f32 %v2221, %v2269
  %2271 = vdwg.mxu0
  %2272 = vmatpush.bf16.msra.mxu0 %v1786
  %2273 = vmatpush.bf16.msra.mxu0 %v1785
  %2274 = vmatpush.bf16.msra.mxu0 %v1784
  %2275 = vmatpush.bf16.msra.mxu0 %v1783
  %2276 = vmatpush.bf16.msra.mxu0 %v1782
  %2277 = vmatpush.bf16.msra.mxu0 %v1781
  %2278 = vmatpush.bf16.msra.mxu0 %v1780
  %2279 = vmatpush.bf16.msra.mxu0 %v1779
  %2280 = vmatmul.bf16.gmra.mxu0 %v880
  %v2281 = vpop.f32.mrf.mxu0
  %v2282 = vadd.f32 %v2233, %v2281
  %v2283 = vpop.f32.mrf.mxu0
  %v2284 = vadd.f32 %v2235, %v2283
  %2285 = vmatmul.bf16.gmra.mxu0 %v898
  %v2286 = vpop.f32.mrf.mxu0
  %v2287 = vadd.f32 %v2238, %v2286
  %v2288 = vpop.f32.mrf.mxu0
  %v2289 = vadd.f32 %v2240, %v2288
  %2290 = vmatmul.bf16.gmra.mxu0 %v916
  %v2291 = vpop.f32.mrf.mxu0
  %v2292 = vadd.f32 %v2243, %v2291
  %v2293 = vpop.f32.mrf.mxu0
  %v2294 = vadd.f32 %v2245, %v2293
  %2295 = vmatmul.bf16.gmra.mxu0 %v934
  %v2296 = vpop.f32.mrf.mxu0
  %v2297 = vadd.f32 %v2248, %v2296
  %v2298 = vpop.f32.mrf.mxu0
  %v2299 = vadd.f32 %v2250, %v2298
  %2300 = vmatmul.bf16.gmra.mxu0 %v952
  %v2301 = vpop.f32.mrf.mxu0
  %v2302 = vadd.f32 %v2253, %v2301
  %v2303 = vpop.f32.mrf.mxu0
  %v2304 = vadd.f32 %v2255, %v2303
  %2305 = vmatmul.bf16.gmra.mxu0 %v970
  %v2306 = vpop.f32.mrf.mxu0
  %v2307 = vadd.f32 %v2258, %v2306
  %v2308 = vpop.f32.mrf.mxu0
  %v2309 = vadd.f32 %v2260, %v2308
  %2310 = vmatmul.bf16.gmra.mxu0 %v988
  %v2311 = vpop.f32.mrf.mxu0
  %v2312 = vadd.f32 %v2263, %v2311
  %v2313 = vpop.f32.mrf.mxu0
  %v2314 = vadd.f32 %v2265, %v2313
  %2315 = vmatmul.bf16.gmra.mxu0 %v1006
  %v2316 = vpop.f32.mrf.mxu0
  %v2317 = vadd.f32 %v2268, %v2316
  %v2318 = vpop.f32.mrf.mxu0
  %v2319 = vadd.f32 %v2270, %v2318
  %2320 = vdwg.mxu0
  %2321 = vmatpush.bf16.msra.mxu0 %v1794
  %2322 = vmatpush.bf16.msra.mxu0 %v1793
  %2323 = vmatpush.bf16.msra.mxu0 %v1792
  %2324 = vmatpush.bf16.msra.mxu0 %v1791
  %2325 = vmatpush.bf16.msra.mxu0 %v1790
  %2326 = vmatpush.bf16.msra.mxu0 %v1789
  %2327 = vmatpush.bf16.msra.mxu0 %v1788
  %2328 = vmatpush.bf16.msra.mxu0 %v1787
  %2329 = vmatmul.bf16.gmra.mxu0 %v881
  %v2330 = vpop.f32.mrf.mxu0
  %v2331 = vadd.f32 %v2282, %v2330
  %v2332 = vpop.f32.mrf.mxu0
  %v2333 = vadd.f32 %v2284, %v2332
  %2334 = vmatmul.bf16.gmra.mxu0 %v899
  %v2335 = vpop.f32.mrf.mxu0
  %v2336 = vadd.f32 %v2287, %v2335
  %v2337 = vpop.f32.mrf.mxu0
  %v2338 = vadd.f32 %v2289, %v2337
  %2339 = vmatmul.bf16.gmra.mxu0 %v917
  %v2340 = vpop.f32.mrf.mxu0
  %v2341 = vadd.f32 %v2292, %v2340
  %v2342 = vpop.f32.mrf.mxu0
  %v2343 = vadd.f32 %v2294, %v2342
  %2344 = vmatmul.bf16.gmra.mxu0 %v935
  %v2345 = vpop.f32.mrf.mxu0
  %v2346 = vadd.f32 %v2297, %v2345
  %v2347 = vpop.f32.mrf.mxu0
  %v2348 = vadd.f32 %v2299, %v2347
  %2349 = vmatmul.bf16.gmra.mxu0 %v953
  %v2350 = vpop.f32.mrf.mxu0
  %v2351 = vadd.f32 %v2302, %v2350
  %v2352 = vpop.f32.mrf.mxu0
  %v2353 = vadd.f32 %v2304, %v2352
  %2354 = vmatmul.bf16.gmra.mxu0 %v971
  %v2355 = vpop.f32.mrf.mxu0
  %v2356 = vadd.f32 %v2307, %v2355
  %v2357 = vpop.f32.mrf.mxu0
  %v2358 = vadd.f32 %v2309, %v2357
  %2359 = vmatmul.bf16.gmra.mxu0 %v989
  %v2360 = vpop.f32.mrf.mxu0
  %v2361 = vadd.f32 %v2312, %v2360
  %v2362 = vpop.f32.mrf.mxu0
  %v2363 = vadd.f32 %v2314, %v2362
  %2364 = vmatmul.bf16.gmra.mxu0 %v1007
  %v2365 = vpop.f32.mrf.mxu0
  %v2366 = vadd.f32 %v2317, %v2365
  %v2367 = vpop.f32.mrf.mxu0
  %v2368 = vadd.f32 %v2319, %v2367
  %2369 = vdwg.mxu0
  %2370 = vmatpush.bf16.msra.mxu0 %v1802
  %2371 = vmatpush.bf16.msra.mxu0 %v1801
  %2372 = vmatpush.bf16.msra.mxu0 %v1800
  %2373 = vmatpush.bf16.msra.mxu0 %v1799
  %2374 = vmatpush.bf16.msra.mxu0 %v1798
  %2375 = vmatpush.bf16.msra.mxu0 %v1797
  %2376 = vmatpush.bf16.msra.mxu0 %v1796
  %2377 = vmatpush.bf16.msra.mxu0 %v1795
  %2378 = vmatmul.bf16.gmra.mxu0 %v882
  %v2379 = vpop.f32.mrf.mxu0
  %v2380 = vadd.f32 %v2331, %v2379
  %v2381 = vpop.f32.mrf.mxu0
  %v2382 = vadd.f32 %v2333, %v2381
  %2383 = vmatmul.bf16.gmra.mxu0 %v900
  %v2384 = vpop.f32.mrf.mxu0
  %v2385 = vadd.f32 %v2336, %v2384
  %v2386 = vpop.f32.mrf.mxu0
  %v2387 = vadd.f32 %v2338, %v2386
  %2388 = vmatmul.bf16.gmra.mxu0 %v918
  %v2389 = vpop.f32.mrf.mxu0
  %v2390 = vadd.f32 %v2341, %v2389
  %v2391 = vpop.f32.mrf.mxu0
  %v2392 = vadd.f32 %v2343, %v2391
  %2393 = vmatmul.bf16.gmra.mxu0 %v936
  %v2394 = vpop.f32.mrf.mxu0
  %v2395 = vadd.f32 %v2346, %v2394
  %v2396 = vpop.f32.mrf.mxu0
  %v2397 = vadd.f32 %v2348, %v2396
  %2398 = vmatmul.bf16.gmra.mxu0 %v954
  %v2399 = vpop.f32.mrf.mxu0
  %v2400 = vadd.f32 %v2351, %v2399
  %v2401 = vpop.f32.mrf.mxu0
  %v2402 = vadd.f32 %v2353, %v2401
  %2403 = vmatmul.bf16.gmra.mxu0 %v972
  %v2404 = vpop.f32.mrf.mxu0
  %v2405 = vadd.f32 %v2356, %v2404
  %v2406 = vpop.f32.mrf.mxu0
  %v2407 = vadd.f32 %v2358, %v2406
  %2408 = vmatmul.bf16.gmra.mxu0 %v990
  %v2409 = vpop.f32.mrf.mxu0
  %v2410 = vadd.f32 %v2361, %v2409
  %v2411 = vpop.f32.mrf.mxu0
  %v2412 = vadd.f32 %v2363, %v2411
  %2413 = vmatmul.bf16.gmra.mxu0 %v1008
  %v2414 = vpop.f32.mrf.mxu0
  %v2415 = vadd.f32 %v2366, %v2414
  %v2416 = vpop.f32.mrf.mxu0
  %v2417 = vadd.f32 %v2368, %v2416
  %2418 = vdwg.mxu0
  %2419 = vmatpush.bf16.msra.mxu0 %v1810
  %2420 = vmatpush.bf16.msra.mxu0 %v1809
  %2421 = vmatpush.bf16.msra.mxu0 %v1808
  %2422 = vmatpush.bf16.msra.mxu0 %v1807
  %2423 = vmatpush.bf16.msra.mxu0 %v1806
  %2424 = vmatpush.bf16.msra.mxu0 %v1805
  %2425 = vmatpush.bf16.msra.mxu0 %v1804
  %2426 = vmatpush.bf16.msra.mxu0 %v1803
  %2427 = vmatmul.bf16.gmra.mxu0 %v883
  %v2428 = vpop.f32.mrf.mxu0
  %v2429 = vadd.f32 %v2380, %v2428
  %v2430 = vpop.f32.mrf.mxu0
  %v2431 = vadd.f32 %v2382, %v2430
  %2432 = vmatmul.bf16.gmra.mxu0 %v901
  %v2433 = vpop.f32.mrf.mxu0
  %v2434 = vadd.f32 %v2385, %v2433
  %v2435 = vpop.f32.mrf.mxu0
  %v2436 = vadd.f32 %v2387, %v2435
  %2437 = vmatmul.bf16.gmra.mxu0 %v919
  %v2438 = vpop.f32.mrf.mxu0
  %v2439 = vadd.f32 %v2390, %v2438
  %v2440 = vpop.f32.mrf.mxu0
  %v2441 = vadd.f32 %v2392, %v2440
  %2442 = vmatmul.bf16.gmra.mxu0 %v937
  %v2443 = vpop.f32.mrf.mxu0
  %v2444 = vadd.f32 %v2395, %v2443
  %v2445 = vpop.f32.mrf.mxu0
  %v2446 = vadd.f32 %v2397, %v2445
  %2447 = vmatmul.bf16.gmra.mxu0 %v955
  %v2448 = vpop.f32.mrf.mxu0
  %v2449 = vadd.f32 %v2400, %v2448
  %v2450 = vpop.f32.mrf.mxu0
  %v2451 = vadd.f32 %v2402, %v2450
  %2452 = vmatmul.bf16.gmra.mxu0 %v973
  %v2453 = vpop.f32.mrf.mxu0
  %v2454 = vadd.f32 %v2405, %v2453
  %v2455 = vpop.f32.mrf.mxu0
  %v2456 = vadd.f32 %v2407, %v2455
  %2457 = vmatmul.bf16.gmra.mxu0 %v991
  %v2458 = vpop.f32.mrf.mxu0
  %v2459 = vadd.f32 %v2410, %v2458
  %v2460 = vpop.f32.mrf.mxu0
  %v2461 = vadd.f32 %v2412, %v2460
  %2462 = vmatmul.bf16.gmra.mxu0 %v1009
  %v2463 = vpop.f32.mrf.mxu0
  %v2464 = vadd.f32 %v2415, %v2463
  %v2465 = vpop.f32.mrf.mxu0
  %v2466 = vadd.f32 %v2417, %v2465
  %2467 = vdwg.mxu0
  %2468 = vmatpush.bf16.msra.mxu0 %v1818
  %2469 = vmatpush.bf16.msra.mxu0 %v1817
  %2470 = vmatpush.bf16.msra.mxu0 %v1816
  %2471 = vmatpush.bf16.msra.mxu0 %v1815
  %2472 = vmatpush.bf16.msra.mxu0 %v1814
  %2473 = vmatpush.bf16.msra.mxu0 %v1813
  %2474 = vmatpush.bf16.msra.mxu0 %v1812
  %2475 = vmatpush.bf16.msra.mxu0 %v1811
  %2476 = vmatmul.bf16.gmra.mxu0 %v884
  %v2477 = vpop.f32.mrf.mxu0
  %v2478 = vadd.f32 %v2429, %v2477
  %v2479 = vpop.f32.mrf.mxu0
  %v2480 = vadd.f32 %v2431, %v2479
  %2481 = vmatmul.bf16.gmra.mxu0 %v902
  %v2482 = vpop.f32.mrf.mxu0
  %v2483 = vadd.f32 %v2434, %v2482
  %v2484 = vpop.f32.mrf.mxu0
  %v2485 = vadd.f32 %v2436, %v2484
  %2486 = vmatmul.bf16.gmra.mxu0 %v920
  %v2487 = vpop.f32.mrf.mxu0
  %v2488 = vadd.f32 %v2439, %v2487
  %v2489 = vpop.f32.mrf.mxu0
  %v2490 = vadd.f32 %v2441, %v2489
  %2491 = vmatmul.bf16.gmra.mxu0 %v938
  %v2492 = vpop.f32.mrf.mxu0
  %v2493 = vadd.f32 %v2444, %v2492
  %v2494 = vpop.f32.mrf.mxu0
  %v2495 = vadd.f32 %v2446, %v2494
  %2496 = vmatmul.bf16.gmra.mxu0 %v956
  %v2497 = vpop.f32.mrf.mxu0
  %v2498 = vadd.f32 %v2449, %v2497
  %v2499 = vpop.f32.mrf.mxu0
  %v2500 = vadd.f32 %v2451, %v2499
  %2501 = vmatmul.bf16.gmra.mxu0 %v974
  %v2502 = vpop.f32.mrf.mxu0
  %v2503 = vadd.f32 %v2454, %v2502
  %v2504 = vpop.f32.mrf.mxu0
  %v2505 = vadd.f32 %v2456, %v2504
  %2506 = vmatmul.bf16.gmra.mxu0 %v992
  %v2507 = vpop.f32.mrf.mxu0
  %v2508 = vadd.f32 %v2459, %v2507
  %v2509 = vpop.f32.mrf.mxu0
  %v2510 = vadd.f32 %v2461, %v2509
  %2511 = vmatmul.bf16.gmra.mxu0 %v1010
  %v2512 = vpop.f32.mrf.mxu0
  %v2513 = vadd.f32 %v2464, %v2512
  %v2514 = vpop.f32.mrf.mxu0
  %v2515 = vadd.f32 %v2466, %v2514
  %2516 = vdwg.mxu0
  %2517 = vmatpush.bf16.msra.mxu0 %v1826
  %2518 = vmatpush.bf16.msra.mxu0 %v1825
  %2519 = vmatpush.bf16.msra.mxu0 %v1824
  %2520 = vmatpush.bf16.msra.mxu0 %v1823
  %2521 = vmatpush.bf16.msra.mxu0 %v1822
  %2522 = vmatpush.bf16.msra.mxu0 %v1821
  %2523 = vmatpush.bf16.msra.mxu0 %v1820
  %2524 = vmatpush.bf16.msra.mxu0 %v1819
  %2525 = vmatmul.bf16.gmra.mxu0 %v885
  %v2526 = vpop.f32.mrf.mxu0
  %v2527 = vadd.f32 %v2478, %v2526
  %v2528 = vpop.f32.mrf.mxu0
  %v2529 = vadd.f32 %v2480, %v2528
  %2530 = vmatmul.bf16.gmra.mxu0 %v903
  %v2531 = vpop.f32.mrf.mxu0
  %v2532 = vadd.f32 %v2483, %v2531
  %v2533 = vpop.f32.mrf.mxu0
  %v2534 = vadd.f32 %v2485, %v2533
  %2535 = vmatmul.bf16.gmra.mxu0 %v921
  %v2536 = vpop.f32.mrf.mxu0
  %v2537 = vadd.f32 %v2488, %v2536
  %v2538 = vpop.f32.mrf.mxu0
  %v2539 = vadd.f32 %v2490, %v2538
  %2540 = vmatmul.bf16.gmra.mxu0 %v939
  %v2541 = vpop.f32.mrf.mxu0
  %v2542 = vadd.f32 %v2493, %v2541
  %v2543 = vpop.f32.mrf.mxu0
  %v2544 = vadd.f32 %v2495, %v2543
  %2545 = vmatmul.bf16.gmra.mxu0 %v957
  %v2546 = vpop.f32.mrf.mxu0
  %v2547 = vadd.f32 %v2498, %v2546
  %v2548 = vpop.f32.mrf.mxu0
  %v2549 = vadd.f32 %v2500, %v2548
  %2550 = vmatmul.bf16.gmra.mxu0 %v975
  %v2551 = vpop.f32.mrf.mxu0
  %v2552 = vadd.f32 %v2503, %v2551
  %v2553 = vpop.f32.mrf.mxu0
  %v2554 = vadd.f32 %v2505, %v2553
  %2555 = vmatmul.bf16.gmra.mxu0 %v993
  %v2556 = vpop.f32.mrf.mxu0
  %v2557 = vadd.f32 %v2508, %v2556
  %v2558 = vpop.f32.mrf.mxu0
  %v2559 = vadd.f32 %v2510, %v2558
  %2560 = vmatmul.bf16.gmra.mxu0 %v1011
  %v2561 = vpop.f32.mrf.mxu0
  %v2562 = vadd.f32 %v2513, %v2561
  %v2563 = vpop.f32.mrf.mxu0
  %v2564 = vadd.f32 %v2515, %v2563
  %2565 = vdwg.mxu0
  %2566 = vmatpush.bf16.msra.mxu0 %v1834
  %2567 = vmatpush.bf16.msra.mxu0 %v1833
  %2568 = vmatpush.bf16.msra.mxu0 %v1832
  %2569 = vmatpush.bf16.msra.mxu0 %v1831
  %2570 = vmatpush.bf16.msra.mxu0 %v1830
  %2571 = vmatpush.bf16.msra.mxu0 %v1829
  %2572 = vmatpush.bf16.msra.mxu0 %v1828
  %2573 = vmatpush.bf16.msra.mxu0 %v1827
  %2574 = vmatmul.bf16.gmra.mxu0 %v886
  %v2575 = vpop.f32.mrf.mxu0
  %v2576 = vadd.f32 %v2527, %v2575
  %v2577 = vpop.f32.mrf.mxu0
  %v2578 = vadd.f32 %v2529, %v2577
  %2579 = vmatmul.bf16.gmra.mxu0 %v904
  %v2580 = vpop.f32.mrf.mxu0
  %v2581 = vadd.f32 %v2532, %v2580
  %v2582 = vpop.f32.mrf.mxu0
  %v2583 = vadd.f32 %v2534, %v2582
  %2584 = vmatmul.bf16.gmra.mxu0 %v922
  %v2585 = vpop.f32.mrf.mxu0
  %v2586 = vadd.f32 %v2537, %v2585
  %v2587 = vpop.f32.mrf.mxu0
  %v2588 = vadd.f32 %v2539, %v2587
  %2589 = vmatmul.bf16.gmra.mxu0 %v940
  %v2590 = vpop.f32.mrf.mxu0
  %v2591 = vadd.f32 %v2542, %v2590
  %v2592 = vpop.f32.mrf.mxu0
  %v2593 = vadd.f32 %v2544, %v2592
  %2594 = vmatmul.bf16.gmra.mxu0 %v958
  %v2595 = vpop.f32.mrf.mxu0
  %v2596 = vadd.f32 %v2547, %v2595
  %v2597 = vpop.f32.mrf.mxu0
  %v2598 = vadd.f32 %v2549, %v2597
  %2599 = vmatmul.bf16.gmra.mxu0 %v976
  %v2600 = vpop.f32.mrf.mxu0
  %v2601 = vadd.f32 %v2552, %v2600
  %v2602 = vpop.f32.mrf.mxu0
  %v2603 = vadd.f32 %v2554, %v2602
  %2604 = vmatmul.bf16.gmra.mxu0 %v994
  %v2605 = vpop.f32.mrf.mxu0
  %v2606 = vadd.f32 %v2557, %v2605
  %v2607 = vpop.f32.mrf.mxu0
  %v2608 = vadd.f32 %v2559, %v2607
  %2609 = vmatmul.bf16.gmra.mxu0 %v1012
  %v2610 = vpop.f32.mrf.mxu0
  %v2611 = vadd.f32 %v2562, %v2610
  %v2612 = vpop.f32.mrf.mxu0
  %v2613 = vadd.f32 %v2564, %v2612
  %2614 = vdwg.mxu0
  %2615 = vmatpush.bf16.msra.mxu0 %v1842
  %2616 = vmatpush.bf16.msra.mxu0 %v1841
  %2617 = vmatpush.bf16.msra.mxu0 %v1840
  %2618 = vmatpush.bf16.msra.mxu0 %v1839
  %2619 = vmatpush.bf16.msra.mxu0 %v1838
  %2620 = vmatpush.bf16.msra.mxu0 %v1837
  %2621 = vmatpush.bf16.msra.mxu0 %v1836
  %2622 = vmatpush.bf16.msra.mxu0 %v1835
  %2623 = vmatmul.bf16.gmra.mxu0 %v887
  %v2624 = vpop.f32.mrf.mxu0
  %v2625 = vadd.f32 %v2576, %v2624
  %v2626 = vpop.f32.mrf.mxu0
  %v2627 = vadd.f32 %v2578, %v2626
  %2628 = vmatmul.bf16.gmra.mxu0 %v905
  %v2629 = vpop.f32.mrf.mxu0
  %v2630 = vadd.f32 %v2581, %v2629
  %v2631 = vpop.f32.mrf.mxu0
  %v2632 = vadd.f32 %v2583, %v2631
  %2633 = vmatmul.bf16.gmra.mxu0 %v923
  %v2634 = vpop.f32.mrf.mxu0
  %v2635 = vadd.f32 %v2586, %v2634
  %v2636 = vpop.f32.mrf.mxu0
  %v2637 = vadd.f32 %v2588, %v2636
  %2638 = vmatmul.bf16.gmra.mxu0 %v941
  %v2639 = vpop.f32.mrf.mxu0
  %v2640 = vadd.f32 %v2591, %v2639
  %v2641 = vpop.f32.mrf.mxu0
  %v2642 = vadd.f32 %v2593, %v2641
  %2643 = vmatmul.bf16.gmra.mxu0 %v959
  %v2644 = vpop.f32.mrf.mxu0
  %v2645 = vadd.f32 %v2596, %v2644
  %v2646 = vpop.f32.mrf.mxu0
  %v2647 = vadd.f32 %v2598, %v2646
  %2648 = vmatmul.bf16.gmra.mxu0 %v977
  %v2649 = vpop.f32.mrf.mxu0
  %v2650 = vadd.f32 %v2601, %v2649
  %v2651 = vpop.f32.mrf.mxu0
  %v2652 = vadd.f32 %v2603, %v2651
  %2653 = vmatmul.bf16.gmra.mxu0 %v995
  %v2654 = vpop.f32.mrf.mxu0
  %v2655 = vadd.f32 %v2606, %v2654
  %v2656 = vpop.f32.mrf.mxu0
  %v2657 = vadd.f32 %v2608, %v2656
  %2658 = vmatmul.bf16.gmra.mxu0 %v1013
  %v2659 = vpop.f32.mrf.mxu0
  %v2660 = vadd.f32 %v2611, %v2659
  %v2661 = vpop.f32.mrf.mxu0
  %v2662 = vadd.f32 %v2613, %v2661
  %2663 = vdwg.mxu0
  %2664 = vmatpush.bf16.msra.mxu0 %v1850
  %2665 = vmatpush.bf16.msra.mxu0 %v1849
  %2666 = vmatpush.bf16.msra.mxu0 %v1848
  %2667 = vmatpush.bf16.msra.mxu0 %v1847
  %2668 = vmatpush.bf16.msra.mxu0 %v1846
  %2669 = vmatpush.bf16.msra.mxu0 %v1845
  %2670 = vmatpush.bf16.msra.mxu0 %v1844
  %2671 = vmatpush.bf16.msra.mxu0 %v1843
  %2672 = vmatmul.bf16.gmra.mxu0 %v888
  %v2673 = vpop.f32.mrf.mxu0
  %v2674 = vadd.f32 %v2625, %v2673
  %v2675 = vpop.f32.mrf.mxu0
  %v2676 = vadd.f32 %v2627, %v2675
  %2677 = vmatmul.bf16.gmra.mxu0 %v906
  %v2678 = vpop.f32.mrf.mxu0
  %v2679 = vadd.f32 %v2630, %v2678
  %v2680 = vpop.f32.mrf.mxu0
  %v2681 = vadd.f32 %v2632, %v2680
  %2682 = vmatmul.bf16.gmra.mxu0 %v924
  %v2683 = vpop.f32.mrf.mxu0
  %v2684 = vadd.f32 %v2635, %v2683
  %v2685 = vpop.f32.mrf.mxu0
  %v2686 = vadd.f32 %v2637, %v2685
  %2687 = vmatmul.bf16.gmra.mxu0 %v942
  %v2688 = vpop.f32.mrf.mxu0
  %v2689 = vadd.f32 %v2640, %v2688
  %v2690 = vpop.f32.mrf.mxu0
  %v2691 = vadd.f32 %v2642, %v2690
  %2692 = vmatmul.bf16.gmra.mxu0 %v960
  %v2693 = vpop.f32.mrf.mxu0
  %v2694 = vadd.f32 %v2645, %v2693
  %v2695 = vpop.f32.mrf.mxu0
  %v2696 = vadd.f32 %v2647, %v2695
  %2697 = vmatmul.bf16.gmra.mxu0 %v978
  %v2698 = vpop.f32.mrf.mxu0
  %v2699 = vadd.f32 %v2650, %v2698
  %v2700 = vpop.f32.mrf.mxu0
  %v2701 = vadd.f32 %v2652, %v2700
  %2702 = vmatmul.bf16.gmra.mxu0 %v996
  %v2703 = vpop.f32.mrf.mxu0
  %v2704 = vadd.f32 %v2655, %v2703
  %v2705 = vpop.f32.mrf.mxu0
  %v2706 = vadd.f32 %v2657, %v2705
  %2707 = vmatmul.bf16.gmra.mxu0 %v1014
  %v2708 = vpop.f32.mrf.mxu0
  %v2709 = vadd.f32 %v2660, %v2708
  %v2710 = vpop.f32.mrf.mxu0
  %v2711 = vadd.f32 %v2662, %v2710
  %2712 = vdwg.mxu0
  %2713 = vmatpush.bf16.msra.mxu0 %v1858
  %2714 = vmatpush.bf16.msra.mxu0 %v1857
  %2715 = vmatpush.bf16.msra.mxu0 %v1856
  %2716 = vmatpush.bf16.msra.mxu0 %v1855
  %2717 = vmatpush.bf16.msra.mxu0 %v1854
  %2718 = vmatpush.bf16.msra.mxu0 %v1853
  %2719 = vmatpush.bf16.msra.mxu0 %v1852
  %2720 = vmatpush.bf16.msra.mxu0 %v1851
  %2721 = vmatmul.bf16.gmra.mxu0 %v889
  %v2722 = vpop.f32.mrf.mxu0
  %v2723 = vadd.f32 %v2674, %v2722
  %v2724 = vpop.f32.mrf.mxu0
  %v2725 = vadd.f32 %v2676, %v2724
  %2726 = vmatmul.bf16.gmra.mxu0 %v907
  %v2727 = vpop.f32.mrf.mxu0
  %v2728 = vadd.f32 %v2679, %v2727
  %v2729 = vpop.f32.mrf.mxu0
  %v2730 = vadd.f32 %v2681, %v2729
  %2731 = vmatmul.bf16.gmra.mxu0 %v925
  %v2732 = vpop.f32.mrf.mxu0
  %v2733 = vadd.f32 %v2684, %v2732
  %v2734 = vpop.f32.mrf.mxu0
  %v2735 = vadd.f32 %v2686, %v2734
  %2736 = vmatmul.bf16.gmra.mxu0 %v943
  %v2737 = vpop.f32.mrf.mxu0
  %v2738 = vadd.f32 %v2689, %v2737
  %v2739 = vpop.f32.mrf.mxu0
  %v2740 = vadd.f32 %v2691, %v2739
  %2741 = vmatmul.bf16.gmra.mxu0 %v961
  %v2742 = vpop.f32.mrf.mxu0
  %v2743 = vadd.f32 %v2694, %v2742
  %v2744 = vpop.f32.mrf.mxu0
  %v2745 = vadd.f32 %v2696, %v2744
  %2746 = vmatmul.bf16.gmra.mxu0 %v979
  %v2747 = vpop.f32.mrf.mxu0
  %v2748 = vadd.f32 %v2699, %v2747
  %v2749 = vpop.f32.mrf.mxu0
  %v2750 = vadd.f32 %v2701, %v2749
  %2751 = vmatmul.bf16.gmra.mxu0 %v997
  %v2752 = vpop.f32.mrf.mxu0
  %v2753 = vadd.f32 %v2704, %v2752
  %v2754 = vpop.f32.mrf.mxu0
  %v2755 = vadd.f32 %v2706, %v2754
  %2756 = vmatmul.bf16.gmra.mxu0 %v1015
  %v2757 = vpop.f32.mrf.mxu0
  %v2758 = vadd.f32 %v2709, %v2757
  %v2759 = vpop.f32.mrf.mxu0
  %v2760 = vadd.f32 %v2711, %v2759
  %2761 = vdwg.mxu0
  %2762 = vmatpush.bf16.msra.mxu0 %v1866
  %2763 = vmatpush.bf16.msra.mxu0 %v1865
  %2764 = vmatpush.bf16.msra.mxu0 %v1864
  %2765 = vmatpush.bf16.msra.mxu0 %v1863
  %2766 = vmatpush.bf16.msra.mxu0 %v1862
  %2767 = vmatpush.bf16.msra.mxu0 %v1861
  %2768 = vmatpush.bf16.msra.mxu0 %v1860
  %2769 = vmatpush.bf16.msra.mxu0 %v1859
  %2770 = vmatmul.bf16.gmra.mxu0 %v890
  %v2771 = vpop.f32.mrf.mxu0
  %v2772 = vadd.f32 %v2723, %v2771
  %v2773 = vpop.f32.mrf.mxu0
  %v2774 = vadd.f32 %v2725, %v2773
  %2775 = vmatmul.bf16.gmra.mxu0 %v908
  %v2776 = vpop.f32.mrf.mxu0
  %v2777 = vadd.f32 %v2728, %v2776
  %v2778 = vpop.f32.mrf.mxu0
  %v2779 = vadd.f32 %v2730, %v2778
  %2780 = vmatmul.bf16.gmra.mxu0 %v926
  %v2781 = vpop.f32.mrf.mxu0
  %v2782 = vadd.f32 %v2733, %v2781
  %v2783 = vpop.f32.mrf.mxu0
  %v2784 = vadd.f32 %v2735, %v2783
  %2785 = vmatmul.bf16.gmra.mxu0 %v944
  %v2786 = vpop.f32.mrf.mxu0
  %v2787 = vadd.f32 %v2738, %v2786
  %v2788 = vpop.f32.mrf.mxu0
  %v2789 = vadd.f32 %v2740, %v2788
  %2790 = vmatmul.bf16.gmra.mxu0 %v962
  %v2791 = vpop.f32.mrf.mxu0
  %v2792 = vadd.f32 %v2743, %v2791
  %v2793 = vpop.f32.mrf.mxu0
  %v2794 = vadd.f32 %v2745, %v2793
  %2795 = vmatmul.bf16.gmra.mxu0 %v980
  %v2796 = vpop.f32.mrf.mxu0
  %v2797 = vadd.f32 %v2748, %v2796
  %v2798 = vpop.f32.mrf.mxu0
  %v2799 = vadd.f32 %v2750, %v2798
  %2800 = vmatmul.bf16.gmra.mxu0 %v998
  %v2801 = vpop.f32.mrf.mxu0
  %v2802 = vadd.f32 %v2753, %v2801
  %v2803 = vpop.f32.mrf.mxu0
  %v2804 = vadd.f32 %v2755, %v2803
  %2805 = vmatmul.bf16.gmra.mxu0 %v1016
  %v2806 = vpop.f32.mrf.mxu0
  %v2807 = vadd.f32 %v2758, %v2806
  %v2808 = vpop.f32.mrf.mxu0
  %v2809 = vadd.f32 %v2760, %v2808
  %2810 = vdwg.mxu0
  %2811 = vmatpush.bf16.msra.mxu0 %v1874
  %2812 = vmatpush.bf16.msra.mxu0 %v1873
  %2813 = vmatpush.bf16.msra.mxu0 %v1872
  %2814 = vmatpush.bf16.msra.mxu0 %v1871
  %2815 = vmatpush.bf16.msra.mxu0 %v1870
  %2816 = vmatpush.bf16.msra.mxu0 %v1869
  %2817 = vmatpush.bf16.msra.mxu0 %v1868
  %2818 = vmatpush.bf16.msra.mxu0 %v1867
  %2819 = vmatmul.bf16.gmra.mxu0 %v891
  %v2820 = vpop.f32.mrf.mxu0
  %v2821 = vadd.f32 %v2772, %v2820
  %v2822 = vpop.f32.mrf.mxu0
  %v2823 = vadd.f32 %v2774, %v2822
  %2824 = vmatmul.bf16.gmra.mxu0 %v909
  %v2825 = vpop.f32.mrf.mxu0
  %v2826 = vadd.f32 %v2777, %v2825
  %v2827 = vpop.f32.mrf.mxu0
  %v2828 = vadd.f32 %v2779, %v2827
  %2829 = vmatmul.bf16.gmra.mxu0 %v927
  %v2830 = vpop.f32.mrf.mxu0
  %v2831 = vadd.f32 %v2782, %v2830
  %v2832 = vpop.f32.mrf.mxu0
  %v2833 = vadd.f32 %v2784, %v2832
  %2834 = vmatmul.bf16.gmra.mxu0 %v945
  %v2835 = vpop.f32.mrf.mxu0
  %v2836 = vadd.f32 %v2787, %v2835
  %v2837 = vpop.f32.mrf.mxu0
  %v2838 = vadd.f32 %v2789, %v2837
  %2839 = vmatmul.bf16.gmra.mxu0 %v963
  %v2840 = vpop.f32.mrf.mxu0
  %v2841 = vadd.f32 %v2792, %v2840
  %v2842 = vpop.f32.mrf.mxu0
  %v2843 = vadd.f32 %v2794, %v2842
  %2844 = vmatmul.bf16.gmra.mxu0 %v981
  %v2845 = vpop.f32.mrf.mxu0
  %v2846 = vadd.f32 %v2797, %v2845
  %v2847 = vpop.f32.mrf.mxu0
  %v2848 = vadd.f32 %v2799, %v2847
  %2849 = vmatmul.bf16.gmra.mxu0 %v999
  %v2850 = vpop.f32.mrf.mxu0
  %v2851 = vadd.f32 %v2802, %v2850
  %v2852 = vpop.f32.mrf.mxu0
  %v2853 = vadd.f32 %v2804, %v2852
  %2854 = vmatmul.bf16.gmra.mxu0 %v1017
  %v2855 = vpop.f32.mrf.mxu0
  %v2856 = vadd.f32 %v2807, %v2855
  %v2857 = vpop.f32.mrf.mxu0
  %v2858 = vadd.f32 %v2809, %v2857
  %2859 = vdwg.mxu0
  %2860 = vmatpush.bf16.msra.mxu0 %v1882
  %2861 = vmatpush.bf16.msra.mxu0 %v1881
  %2862 = vmatpush.bf16.msra.mxu0 %v1880
  %2863 = vmatpush.bf16.msra.mxu0 %v1879
  %2864 = vmatpush.bf16.msra.mxu0 %v1878
  %2865 = vmatpush.bf16.msra.mxu0 %v1877
  %2866 = vmatpush.bf16.msra.mxu0 %v1876
  %2867 = vmatpush.bf16.msra.mxu0 %v1875
  %2868 = vmatmul.bf16.gmra.mxu0 %v892
  %v2869 = vpop.f32.mrf.mxu0
  %v2870 = vadd.f32 %v2821, %v2869
  %v2871 = vpop.f32.mrf.mxu0
  %v2872 = vadd.f32 %v2823, %v2871
  %2873 = vmatmul.bf16.gmra.mxu0 %v910
  %v2874 = vpop.f32.mrf.mxu0
  %v2875 = vadd.f32 %v2826, %v2874
  %v2876 = vpop.f32.mrf.mxu0
  %v2877 = vadd.f32 %v2828, %v2876
  %2878 = vmatmul.bf16.gmra.mxu0 %v928
  %v2879 = vpop.f32.mrf.mxu0
  %v2880 = vadd.f32 %v2831, %v2879
  %v2881 = vpop.f32.mrf.mxu0
  %v2882 = vadd.f32 %v2833, %v2881
  %2883 = vmatmul.bf16.gmra.mxu0 %v946
  %v2884 = vpop.f32.mrf.mxu0
  %v2885 = vadd.f32 %v2836, %v2884
  %v2886 = vpop.f32.mrf.mxu0
  %v2887 = vadd.f32 %v2838, %v2886
  %2888 = vmatmul.bf16.gmra.mxu0 %v964
  %v2889 = vpop.f32.mrf.mxu0
  %v2890 = vadd.f32 %v2841, %v2889
  %v2891 = vpop.f32.mrf.mxu0
  %v2892 = vadd.f32 %v2843, %v2891
  %2893 = vmatmul.bf16.gmra.mxu0 %v982
  %v2894 = vpop.f32.mrf.mxu0
  %v2895 = vadd.f32 %v2846, %v2894
  %v2896 = vpop.f32.mrf.mxu0
  %v2897 = vadd.f32 %v2848, %v2896
  %2898 = vmatmul.bf16.gmra.mxu0 %v1000
  %v2899 = vpop.f32.mrf.mxu0
  %v2900 = vadd.f32 %v2851, %v2899
  %v2901 = vpop.f32.mrf.mxu0
  %v2902 = vadd.f32 %v2853, %v2901
  %2903 = vmatmul.bf16.gmra.mxu0 %v1018
  %v2904 = vpop.f32.mrf.mxu0
  %v2905 = vadd.f32 %v2856, %v2904
  %v2906 = vpop.f32.mrf.mxu0
  %v2907 = vadd.f32 %v2858, %v2906
  %2908 = vdwg.mxu0
  %2909 = vst [vmem:[%s2] sm:$0xff] %v2870
  %2910 = vst [vmem:[%s2 + $0x8] sm:$0xff] %v2872
  %2911 = vst [vmem:[%s2 + $0x10] sm:$0xff] %v2875
  %2912 = vst [vmem:[%s2 + $0x18] sm:$0xff] %v2877
  %2913 = vst [vmem:[%s2 + $0x20] sm:$0xff] %v2880
  %2914 = vst [vmem:[%s2 + $0x28] sm:$0xff] %v2882
  %2915 = vst [vmem:[%s2 + $0x30] sm:$0xff] %v2885
  %2916 = vst [vmem:[%s2 + $0x38] sm:$0xff] %v2887
  %2917 = vst [vmem:[%s2 + $0x40] sm:$0xff] %v2890
  %2918 = vst [vmem:[%s2 + $0x48] sm:$0xff] %v2892
  %2919 = vst [vmem:[%s2 + $0x50] sm:$0xff] %v2895
  %2920 = vst [vmem:[%s2 + $0x58] sm:$0xff] %v2897
  %2921 = vst [vmem:[%s2 + $0x60] sm:$0xff] %v2900
  %2922 = vst [vmem:[%s2 + $0x68] sm:$0xff] %v2902
  %2923 = vst [vmem:[%s2 + $0x70] sm:$0xff] %v2905
  %2924 = vst [vmem:[%s2 + $0x78] sm:$0xff] %v2907
  // Predicated region
  $region10: #{discriminator.13} parent=0 // pred_check
    _
  $region11: #{discriminator.13} parent=0 // pred_check_branch
    %2926 = sbr.rel (0) target = $region13
  $region12: #{discriminator.13} parent=0 // pred_region
    _
  $region13: #{discriminator.13} parent=0 // pred_fallthru
    _
  // Predicated region
  $region14: #{discriminator.13} parent=0 // pred_check
    _
  $region15: #{discriminator.13} parent=0 // pred_check_branch
    %2928 = sbr.rel (0) target = $region17
  $region16: #{discriminator.13} parent=0 // pred_region
    _
  $region17: #{discriminator.13} parent=0 // pred_fallthru
    _

</llo_original>
